<compile_context>
chip_gen: v7x
topology: tpu7x:2x2x1
jax: 0.10.0
libtpu: 0.0.40
codegen_flags: <defaults>
</compile_context>

<pallas_src>
import functools

import jax
import jax.numpy as jnp
from jax import lax
from jax.experimental import pallas as pl
from jax.experimental.pallas import tpu as pltpu


def _round_up(x, m):
    return (x + m - 1) // m * m


def _device_kind():
    try:
        return jax.devices()[0].device_kind.lower()
    except Exception:
        return ""


def _tile_defaults():
    """(pref_row_tile, pref_col_tile, vmem_cap_bytes, tile_budget_bytes)."""
    kind = _device_kind()
    if "v7" in kind:
        # 256-wide MXU, but only 64 MiB VMEM per TensorCore -> tighter budget.
        return 512, 256, 56 * 1024 * 1024, 36 * 1024 * 1024
    if "v4" in kind or "v5" in kind:
        # 128-wide MXU: widening the output tile past 128 buys nothing.
        return 512, 128, 96 * 1024 * 1024, 64 * 1024 * 1024
    # v6e (256-wide MXU, 128 MiB VMEM) and unknown / future chips.
    return 512, 256, 96 * 1024 * 1024, 64 * 1024 * 1024


def _cplx_conv_kernel(p_ref, w_ref, b_ref, o_ref, *, precision):
    # p_ref: (TILE_R, TILE_K)   im2col patch rows (compute dtype)
    # w_ref: (TILE_K, TILE_C)   fused complex weights (compute dtype)
    # b_ref: (1, TILE_C)        fused bias (f32)
    # o_ref: (TILE_R, TILE_C)   [real | imag] output columns (f32); resident
    #                           across the innermost ("arbitrary") K axis.
    k = pl.program_id(2)
    acc = jnp.dot(p_ref[...], w_ref[...],
                  preferred_element_type=jnp.float32, precision=precision)

    @pl.when(k == 0)
    def _():
        o_ref[...] = acc + b_ref[...]

    @pl.when(k > 0)
    def _():
        o_ref[...] += acc


def cplx_conv2d(x, w_real, w_imag, b_real, b_imag, *, stride=1, padding=1,
                compute_dtype=jnp.bfloat16, tile_hw=None, tile_co=None):
    """Complex conv2d.  x: complex64 (N, Cin, H, W); weights: (Cout, Cin, KH, KW);
    biases: (Cout,).  compute_dtype: float32 (exact), bfloat16 (default), or an
    fp8 dtype on v7x where accuracy permits."""
    N, Cin, H, W = x.shape
    Cout, _, KH, KW = w_real.shape
    out_h = (H + 2 * padding - KH) // stride + 1
    out_w = (W + 2 * padding - KW) // stride + 1
    hw = out_h * out_w
    rows = N * hw                       # N merged into the row axis
    c2 = 2 * Cin
    k_flat = KH * KW * c2
    co2 = 2 * Cout

    pref_r, pref_c, vmem_cap, tile_budget = _tile_defaults()
    if tile_hw is None:
        tile_hw = pref_r
    if tile_co is None:
        tile_co = pref_c

    itemsize = jnp.dtype(compute_dtype).itemsize

    # --- lane-dense, padded problem sizes ---------------------------------
    tile_co = min(tile_co, _round_up(co2, 128))
    co2_pad = _round_up(co2, tile_co)
    tile_hw = min(tile_hw, _round_up(rows, 128))
    rows_pad = _round_up(rows, tile_hw)

    # K tiling only when a full-K tile would blow the per-generation VMEM budget.
    k_pad_full = _round_up(k_flat, 128)
    fixed = 2 * tile_hw * tile_co * 4 + 2 * 8 * tile_co * 4      # f32 out + bias
    per_k = 2 * (tile_hw + tile_co) * itemsize                   # patches + weights (dbl-buf)
    tile_k = max(128, min(k_pad_full, (tile_budget - fixed) // per_k // 128 * 128))
    k_pad = _round_up(k_flat, tile_k)

    weights_resident = (co2_pad == tile_co) and (k_pad == tile_k)

    # --- wrapper-side layout work (all in the compute dtype) --------------
    xr = jnp.real(x).astype(compute_dtype)
    xi = jnp.imag(x).astype(compute_dtype)

    def _prep(a):  # NCHW -> NHWC, zero-pad spatial dims
        a = jnp.transpose(a, (0, 2, 3, 1))
        return jnp.pad(a, ((0, 0), (padding, padding), (padding, padding), (0, 0)))

    # real channels then imag channels on the lane axis
    x_cat = jnp.concatenate([_prep(xr), _prep(xi)], axis=-1)     # (N, Hp, Wp, 2Cin)

    # im2col in the wrapper: one shifted strided window per tap.
    # TODO(synk): for strongly HBM-bound shapes, replace this materialized im2col
    # with in-kernel per-tap accumulation over x_cat to remove ~KH*KW x traffic.
    cols = []
    for kh in range(KH):
        for kw in range(KW):
            cols.append(x_cat[:, kh:kh + (out_h - 1) * stride + 1:stride,
                                 kw:kw + (out_w - 1) * stride + 1:stride, :])
    patches = jnp.concatenate(cols, axis=-1).reshape(rows, k_flat)
    patches = jnp.pad(patches, ((0, rows_pad - rows), (0, k_pad - k_flat)))

    # fused complex weights: columns [0:Cout] -> real output, [Cout:2Cout] -> imag
    wr = jnp.transpose(w_real, (2, 3, 1, 0)).astype(jnp.float32)   # (KH, KW, Cin, Cout)
    wi = jnp.transpose(w_imag, (2, 3, 1, 0)).astype(jnp.float32)
    w_real_cols = jnp.concatenate([wr, -wi], axis=2)               # (KH, KW, 2Cin, Cout)
    w_imag_cols = jnp.concatenate([wi, wr], axis=2)
    w_fused = jnp.concatenate([w_real_cols, w_imag_cols], axis=3)  # (KH, KW, 2Cin, 2Cout)
    w_fused = w_fused.reshape(k_flat, co2)                         # row order matches im2col
    w_fused = jnp.pad(w_fused, ((0, k_pad - k_flat), (0, co2_pad - co2)))
    w_fused = w_fused.astype(compute_dtype)

    bias = jnp.concatenate([b_real - b_imag, b_real + b_imag]).astype(jnp.float32)
    bias = jnp.pad(bias, (0, co2_pad - co2)).reshape(1, co2_pad)

    # --- pallas_call -------------------------------------------------------
    # Grid = (cout tiles, row tiles, K tiles): weights only change on the slow
    # axes; K is innermost so the output block stays resident while accumulating.
    grid = (co2_pad // tile_co, rows_pad // tile_hw, k_pad // tile_k)
    precision = lax.Precision.HIGHEST if compute_dtype == jnp.float32 else None
    kernel = functools.partial(_cplx_conv_kernel, precision=precision)

    w_bufs = 1 if weights_resident else 2
    footprint = (2 * tile_hw * tile_k * itemsize          # patches (double-buffered)
                 + w_bufs * tile_k * tile_co * itemsize   # fused weights
                 + w_bufs * 8 * tile_co * 4               # bias (sublane-padded)
                 + 2 * tile_hw * tile_co * 4)             # f32 output (double-buffered)
    vmem_limit = int(min(vmem_cap, max(32 * 1024 * 1024, 2 * footprint)))

    def _call(single_buffer_weights):
        extra = dict(pipeline_mode=pl.Buffered(1)) if single_buffer_weights else {}
        grid_spec = pltpu.PrefetchScalarGridSpec(
            num_scalar_prefetch=0,
            grid=grid,
            in_specs=[
                # patch rows: new block per (row-tile, k-tile); constant over cout
                pl.BlockSpec((tile_hw, tile_k), lambda c, r, k: (r, k)),
                # weights / bias: index independent of the row axis -> VMEM-resident
                # (never re-DMA'd) when there is a single cout/K tile.
                pl.BlockSpec((tile_k, tile_co), lambda c, r, k: (k, c), **extra),
                pl.BlockSpec((1, tile_co), lambda c, r, k: (0, c), **extra),
            ],
            out_specs=pl.BlockSpec((tile_hw, tile_co), lambda c, r, k: (r, c)),
        )
        return pl.pallas_call(
            kernel,
            out_shape=jax.ShapeDtypeStruct((rows_pad, co2_pad), jnp.float32),
            grid_spec=grid_spec,
            compiler_params=pltpu.CompilerParams(
                dimension_semantics=("parallel", "parallel", "arbitrary"),
                vmem_limit_bytes=vmem_limit,
            ),
        )(patches, w_fused, bias)

    if weights_resident:
        try:
            out = _call(True)
        except Exception:   # if this JAX rejects Buffered(1), fall back safely
            out = _call(False)
    else:
        out = _call(False)

    # --- epilogue: un-pad + ONE fused reshape/transpose for both halves ---
    out = out[:rows, :co2].reshape(N, out_h, out_w, 2, Cout)
    out = jnp.transpose(out, (3, 0, 4, 1, 2))          # (2, N, Cout, Hout, Wout)
    return lax.complex(out[0], out[1])                 # complex64, NCHW


# ----------------------------- self-test --------------------------------------

def _conv_ref(x, w, b, stride, padding):
    y = lax.conv_general_dilated(
        x, w, window_strides=(stride, stride),
        padding=[(padding, padding), (padding, padding)],
        dimension_numbers=("NCHW", "OIHW", "NCHW"))
    return y + b.reshape(1, -1, 1, 1)


def _cplx_ref(x, wr, wi, br, bi, stride, padding):
    xr = jnp.real(x)
    xi = jnp.imag(x)
    real = _conv_ref(xr, wr, br, stride, padding) - _conv_ref(xi, wi, bi, stride, padding)
    imag = _conv_ref(xi, wr, br, stride, padding) + _conv_ref(xr, wi, bi, stride, padding)
    return lax.complex(real, imag)


if __name__ == "__main__":
    N, Cin, Cout, H, W, K = 2, 4, 8, 16, 16, 3

    key = jax.random.PRNGKey(0)
    k1, k2, k3, k4, k5, k6 = jax.random.split(key, 6)

    # deterministic synthetic parameters (shapes per nn.Conv2d(in, out, k))
    w_real = jax.random.normal(k1, (Cout, Cin, K, K), jnp.float32) * 0.1
    w_imag = jax.random.normal(k2, (Cout, Cin, K, K), jnp.float32) * 0.1
    b_real = jax.random.normal(k3, (Cout,), jnp.float32) * 0.1
    b_imag = jax.random.normal(k4, (Cout,), jnp.float32) * 0.1

    xr = jax.random.normal(k5, (N, Cin, H, W), jnp.float32)
    xi = jax.random.normal(k6, (N, Cin, H, W), jnp.float32)
    x = lax.complex(xr, xi)

    # 1) f32 compute path (HIGHEST precision): tight tolerance against pure JAX
    ref = _cplx_ref(x, w_real, w_imag, b_real, b_imag, 1, 1)
    out_f32 = jax.block_until_ready(
        cplx_conv2d(x, w_real, w_imag, b_real, b_imag, stride=1, padding=1,
                    compute_dtype=jnp.float32))
    assert out_f32.shape == (N, Cout, H, W) and out_f32.dtype == jnp.complex64
    assert jnp.allclose(jnp.real(out_f32), jnp.real(ref), atol=1e-4, rtol=1e-4)
    assert jnp.allclose(jnp.imag(out_f32), jnp.imag(ref), atol=1e-4, rtol=1e-4)

    # 2) bf16-operand / f32-accumulate fast path, looser tolerance
    out_bf16 = jax.block_until_ready(
        cplx_conv2d(x, w_real, w_imag, b_real, b_imag, stride=1, padding=1,
                    compute_dtype=jnp.bfloat16))
    assert jnp.allclose(jnp.real(out_bf16), jnp.real(ref), atol=5e-2, rtol=5e-2)
    assert jnp.allclose(jnp.imag(out_bf16), jnp.imag(ref), atol=5e-2, rtol=5e-2)

    # 3) stride=2 path (stride handled in the wrapper im2col, exact in f32)
    ref_s2 = _cplx_ref(x, w_real, w_imag, b_real, b_imag, 2, 1)
    out_s2 = jax.block_until_ready(
        cplx_conv2d(x, w_real, w_imag, b_real, b_imag, stride=2, padding=1,
                    compute_dtype=jnp.float32))
    assert out_s2.shape == ref_s2.shape
    assert jnp.allclose(jnp.real(out_s2), jnp.real(ref_s2), atol=1e-4, rtol=1e-4)
    assert jnp.allclose(jnp.imag(out_s2), jnp.imag(ref_s2), atol=1e-4, rtol=1e-4)

    print("KERNEL_OK")
</pallas_src>

<mosaic_0001>
module attributes {stable_mosaic.version = 11 : i64} {
  func.func @_cplx_conv_kernel(%arg0: i32, %arg1: i32, %arg2: i32, %arg3: memref<512x128xf32, #tpu.memory_space<vmem>>, %arg4: memref<128x128xf32, #tpu.memory_space<vmem>>, %arg5: memref<1x128xf32, #tpu.memory_space<vmem>>, %arg6: memref<512x128xf32, #tpu.memory_space<vmem>>) attributes {dimension_semantics = [#tpu.dimension_semantics<parallel>, #tpu.dimension_semantics<parallel>, #tpu.dimension_semantics<arbitrary>], iteration_bounds = array<i64: 1, 1, 1>, scalar_prefetch = 0 : i64, scratch_operands = 0 : i64, tpu.core_type = #tpu.core_type<tc>, window_params = [{transform_indices = @transform_0, window_bounds = array<i64: 512, 128>}, {pipeline_mode = #tpu.pipeline_mode<synchronous>, transform_indices = @transform_1, window_bounds = array<i64: 128, 128>}, {pipeline_mode = #tpu.pipeline_mode<synchronous>, transform_indices = @transform_2, window_bounds = array<i64: 1, 128>}, {transform_indices = @transform_3, window_bounds = array<i64: 512, 128>}]} {
    %c0 = arith.constant 0 : index
    %c0_0 = arith.constant 0 : index
    %0 = vector.load %arg3[%c0, %c0_0] : memref<512x128xf32, #tpu.memory_space<vmem>>, vector<512x128xf32>
    %c0_1 = arith.constant 0 : index
    %c0_2 = arith.constant 0 : index
    %1 = vector.load %arg4[%c0_1, %c0_2] : memref<128x128xf32, #tpu.memory_space<vmem>>, vector<128x128xf32>
    %cst = arith.constant dense<0.000000e+00> : vector<512x128xf32>
    %2 = tpu.matmul %0, %1, %cst {dimension_numbers = #tpu.dot_dimension_numbers<[1], [0], [0], [1], [0, 0, 1, 1], [], []>, precision = #tpu.contract_precision<fp32>} : vector<512x128xf32>, vector<128x128xf32>, vector<512x128xf32> -> vector<512x128xf32>
    %c0_i32 = arith.constant 0 : i32
    %3 = arith.cmpi eq, %arg2, %c0_i32 : i32
    %4 = arith.extui %3 : i1 to i32
    %c0_i32_3 = arith.constant 0 : i32
    %5 = arith.cmpi ne, %4, %c0_i32_3 : i32
    scf.if %5 {
      %c0_6 = arith.constant 0 : index
      %c0_7 = arith.constant 0 : index
      %9 = vector.load %arg5[%c0_6, %c0_7] : memref<1x128xf32, #tpu.memory_space<vmem>>, vector<1x128xf32>
      %10 = vector.broadcast %9 : vector<1x128xf32> to vector<512x128xf32>
      %11 = arith.addf %2, %10 : vector<512x128xf32>
      %c0_8 = arith.constant 0 : index
      %c0_9 = arith.constant 0 : index
      %12 = vector.load %arg6[%c0_8, %c0_9] : memref<512x128xf32, #tpu.memory_space<vmem>>, vector<512x128xf32>
      tpu.vector_store %arg6[%c0_8, %c0_9], %11 {strides = array<i32>} : memref<512x128xf32, #tpu.memory_space<vmem>>, vector<512x128xf32>,
    } else {
    }
    %c0_i32_4 = arith.constant 0 : i32
    %6 = arith.cmpi sgt, %arg2, %c0_i32_4 : i32
    %7 = arith.extui %6 : i1 to i32
    %c0_i32_5 = arith.constant 0 : i32
    %8 = arith.cmpi ne, %7, %c0_i32_5 : i32
    scf.if %8 {
      %c0_6 = arith.constant 0 : index
      %c0_7 = arith.constant 0 : index
      %9 = vector.load %arg6[%c0_6, %c0_7] : memref<512x128xf32, #tpu.memory_space<vmem>>, vector<512x128xf32>
      %10 = arith.addf %9, %2 : vector<512x128xf32>
      %c0_8 = arith.constant 0 : index
      %c0_9 = arith.constant 0 : index
      %11 = vector.load %arg6[%c0_8, %c0_9] : memref<512x128xf32, #tpu.memory_space<vmem>>, vector<512x128xf32>
      tpu.vector_store %arg6[%c0_8, %c0_9], %10 {strides = array<i32>} : memref<512x128xf32, #tpu.memory_space<vmem>>, vector<512x128xf32>,
    } else {
    }
    return
  }
  func.func @transform_0(%arg0: i32, %arg1: i32, %arg2: i32) -> (i32, i32) {
    %c0_i32 = arith.constant 0 : i32
    return %arg1, %arg2 : i32, i32
  }
  func.func @transform_1(%arg0: i32, %arg1: i32, %arg2: i32) -> (i32, i32) {
    %c0_i32 = arith.constant 0 : i32
    return %arg2, %arg0 : i32, i32
  }
  func.func @transform_2(%arg0: i32, %arg1: i32, %arg2: i32) -> (i32, i32) {
    %c0_i32 = arith.constant 0 : i32
    %c0_i32_0 = arith.constant 0 : i32
    return %c0_i32, %arg0 : i32, i32
  }
  func.func @transform_3(%arg0: i32, %arg1: i32, %arg2: i32) -> (i32, i32) {
    %c0_i32 = arith.constant 0 : i32
    return %arg1, %arg0 : i32, i32
  }
}

module attributes {stable_mosaic.version = 11 : i64} {
  func.func @_cplx_conv_kernel(%arg0: i32, %arg1: i32, %arg2: i32, %arg3: memref<512x128xf32, #tpu.memory_space<vmem>>, %arg4: memref<128x128xf32, #tpu.memory_space<vmem>>, %arg5: memref<1x128xf32, #tpu.memory_space<vmem>>, %arg6: memref<512x128xf32, #tpu.memory_space<vmem>>) attributes {dimension_semantics = [#tpu.dimension_semantics<parallel>, #tpu.dimension_semantics<parallel>, #tpu.dimension_semantics<arbitrary>], iteration_bounds = array<i64: 1, 1, 1>, scalar_prefetch = 0 : i64, scratch_operands = 0 : i64, tpu.core_type = #tpu.core_type<tc>, window_params = [{transform_indices = @transform_0, window_bounds = array<i64: 512, 128>}, {transform_indices = @transform_1, window_bounds = array<i64: 128, 128>}, {transform_indices = @transform_2, window_bounds = array<i64: 1, 128>}, {transform_indices = @transform_3, window_bounds = array<i64: 512, 128>}]} {
    %c0 = arith.constant 0 : index
    %c0_0 = arith.constant 0 : index
    %0 = vector.load %arg3[%c0, %c0_0] : memref<512x128xf32, #tpu.memory_space<vmem>>, vector<512x128xf32>
    %c0_1 = arith.constant 0 : index
    %c0_2 = arith.constant 0 : index
    %1 = vector.load %arg4[%c0_1, %c0_2] : memref<128x128xf32, #tpu.memory_space<vmem>>, vector<128x128xf32>
    %cst = arith.constant dense<0.000000e+00> : vector<512x128xf32>
    %2 = tpu.matmul %0, %1, %cst {dimension_numbers = #tpu.dot_dimension_numbers<[1], [0], [0], [1], [0, 0, 1, 1], [], []>, precision = #tpu.contract_precision<fp32>} : vector<512x128xf32>, vector<128x128xf32>, vector<512x128xf32> -> vector<512x128xf32>
    %c0_i32 = arith.constant 0 : i32
    %3 = arith.cmpi eq, %arg2, %c0_i32 : i32
    %4 = arith.extui %3 : i1 to i32
    %c0_i32_3 = arith.constant 0 : i32
    %5 = arith.cmpi ne, %4, %c0_i32_3 : i32
    scf.if %5 {
      %c0_6 = arith.constant 0 : index
      %c0_7 = arith.constant 0 : index
      %9 = vector.load %arg5[%c0_6, %c0_7] : memref<1x128xf32, #tpu.memory_space<vmem>>, vector<1x128xf32>
      %10 = vector.broadcast %9 : vector<1x128xf32> to vector<512x128xf32>
      %11 = arith.addf %2, %10 : vector<512x128xf32>
      %c0_8 = arith.constant 0 : index
      %c0_9 = arith.constant 0 : index
      %12 = vector.load %arg6[%c0_8, %c0_9] : memref<512x128xf32, #tpu.memory_space<vmem>>, vector<512x128xf32>
      tpu.vector_store %arg6[%c0_8, %c0_9], %11 {strides = array<i32>} : memref<512x128xf32, #tpu.memory_space<vmem>>, vector<512x128xf32>,
    } else {
    }
    %c0_i32_4 = arith.constant 0 : i32
    %6 = arith.cmpi sgt, %arg2, %c0_i32_4 : i32
    %7 = arith.extui %6 : i1 to i32
    %c0_i32_5 = arith.constant 0 : i32
    %8 = arith.cmpi ne, %7, %c0_i32_5 : i32
    scf.if %8 {
      %c0_6 = arith.constant 0 : index
      %c0_7 = arith.constant 0 : index
      %9 = vector.load %arg6[%c0_6, %c0_7] : memref<512x128xf32, #tpu.memory_space<vmem>>, vector<512x128xf32>
      %10 = arith.addf %9, %2 : vector<512x128xf32>
      %c0_8 = arith.constant 0 : index
      %c0_9 = arith.constant 0 : index
      %11 = vector.load %arg6[%c0_8, %c0_9] : memref<512x128xf32, #tpu.memory_space<vmem>>, vector<512x128xf32>
      tpu.vector_store %arg6[%c0_8, %c0_9], %10 {strides = array<i32>} : memref<512x128xf32, #tpu.memory_space<vmem>>, vector<512x128xf32>,
    } else {
    }
    return
  }
  func.func @transform_0(%arg0: i32, %arg1: i32, %arg2: i32) -> (i32, i32) {
    %c0_i32 = arith.constant 0 : i32
    return %arg1, %arg2 : i32, i32
  }
  func.func @transform_1(%arg0: i32, %arg1: i32, %arg2: i32) -> (i32, i32) {
    %c0_i32 = arith.constant 0 : i32
    return %arg2, %arg0 : i32, i32
  }
  func.func @transform_2(%arg0: i32, %arg1: i32, %arg2: i32) -> (i32, i32) {
    %c0_i32 = arith.constant 0 : i32
    %c0_i32_0 = arith.constant 0 : i32
    return %c0_i32, %arg0 : i32, i32
  }
  func.func @transform_3(%arg0: i32, %arg1: i32, %arg2: i32) -> (i32, i32) {
    %c0_i32 = arith.constant 0 : i32
    return %arg1, %arg0 : i32, i32
  }
}

</mosaic_0001>

<llo_original>
// kernel: tpu_custom_call.1
$region0: #{tpu_custom_call.1}
  #allocation0 [shape = 'u32[]', space=smem, size = 0x4, offset = 0x4, fixed_abs, tag = 'smem constant byte address 0x4 - core index']
  #allocation1 [shape = 'u32[144,128]{1,0:T(1,128)}', space=vmem, size = 0x12000, scoped, tag = 'internal scratch']
  %s0 = inlined_call_operand.hbm [shape: f32[512,128], index: 0, kind: input, shape index: {}]
  %s1 = inlined_call_operand.hbm [shape: f32[128,128], index: 1, kind: input, shape index: {}]
  %s2 = inlined_call_operand.vmem [shape: f32[1,128], index: 2, kind: input, shape index: {}]
  %s3 = inlined_call_operand.hbm [shape: f32[512,128], index: 3, kind: output, shape index: {}]
  %s4 = sld [smem:[#allocation0]]
  $region38: #{tpu_custom_call.1} parent=0
    _
  %s6 = ssub.s32 1, %s4
  %s7 = scalar_select 0, %s6, %s4
  $region1: #{tpu_custom_call.1} parent=0
    #allocation2 [shape = 'u8[262144]{0}', space=vmem, size = 0x40000, scoped, tag = 'input window, operand 0, single buffered']
    #allocation3 [shape = 's32[1]{0}', space=sflag, size = 0x4, scoped, tag = 'scoped memory for tpu_custom_call.1']
    #allocation4 [shape = 's32[1]{0}', space=sflag, size = 0x4, scoped, tag = 'scoped memory for tpu_custom_call.1']
    #allocation5 [shape = 'u8[65536]{0}', space=vmem, size = 0x10000, scoped, tag = 'input window, operand 1, single buffered']
    #allocation6 [shape = 's32[1]{0}', space=sflag, size = 0x4, scoped, tag = 'scoped memory for tpu_custom_call.1']
    #allocation7 [shape = 'u8[262144]{0}', space=vmem, size = 0x40000, scoped, tag = 'output window, operand 0, single buffered']
    %8 = vsyncpa [#allocation3], 0
    %9 = vsyncpa [#allocation6], 0
    %10 = vsyncpa [#allocation4], 0
    // Predicated region
    $region2: #{tpu_custom_call.1} parent=1 // pred_check
      _
    $region3: #{tpu_custom_call.1} parent=1 // pred_check_branch
      %12 = sbr.rel (0) target = $region5
    $region4: #{tpu_custom_call.1} parent=1 // pred_region
      %s14 = ssub.s32 8192, 8192
      %15 = vsyncadd [#allocation3], %s14
      %s16 = sshll.u32 [#allocation2], 4
      %s17 = int_to_ptr.vmem [resolvable:$true] %s16
      %22 = dma.hbm_to_vmem [thread:$0]  %s0, 8192, %s17, [#allocation3], 128, 128, 8
    $region5: #{tpu_custom_call.1} parent=1 // pred_fallthru
      _
    // Predicated region
    $region6: #{tpu_custom_call.1} parent=1 // pred_check
      _
    $region7: #{tpu_custom_call.1} parent=1 // pred_check_branch
      %24 = sbr.rel (0) target = $region9
    $region8: #{tpu_custom_call.1} parent=1 // pred_region
      %s26 = ssub.s32 2048, 2048
      %27 = vsyncadd [#allocation6], %s26
      %s28 = sshll.u32 [#allocation5], 4
      %s29 = int_to_ptr.vmem [resolvable:$true] %s28
      %34 = dma.hbm_to_vmem [thread:$0]  %s1, 2048, %s29, [#allocation6], 128, 128, 8
    $region9: #{tpu_custom_call.1} parent=1 // pred_fallthru
      _
    // Predicated region
    $region10: #{tpu_custom_call.1} parent=1 // pred_check
      _
    $region11: #{tpu_custom_call.1} parent=1 // pred_check_branch
      %36 = sbr.rel (0) target = $region13
    $region12: #{tpu_custom_call.1} parent=1 // pred_region
      _
    $region13: #{tpu_custom_call.1} parent=1 // pred_fallthru
      _
    // Predicated region
    $region14: #{tpu_custom_call.1} parent=1 // pred_check
      _
    $region15: #{tpu_custom_call.1} parent=1 // pred_check_branch
      %38 = sbr.rel (0) target = $region17
    $region16: #{tpu_custom_call.1} parent=1 // pred_region
      %39 = dma.done [#allocation3], 8192
    $region17: #{tpu_custom_call.1} parent=1 // pred_fallthru
      _
    // Predicated region
    $region18: #{tpu_custom_call.1} parent=1 // pred_check
      _
    $region19: #{tpu_custom_call.1} parent=1 // pred_check_branch
      %41 = sbr.rel (0) target = $region21
    $region20: #{tpu_custom_call.1} parent=1 // pred_region
      %42 = dma.done [#allocation6], 2048
    $region21: #{tpu_custom_call.1} parent=1 // pred_fallthru
      _
    %v43 = vld [vmem:[#allocation2] sm:$0xff]
    %v44 = vld [vmem:[#allocation2 + $0x8] sm:$0xff]
    %v45 = vld [vmem:[#allocation2 + $0x10] sm:$0xff]
    %v46 = vld [vmem:[#allocation2 + $0x18] sm:$0xff]
    %v47 = vld [vmem:[#allocation2 + $0x20] sm:$0xff]
    %v48 = vld [vmem:[#allocation2 + $0x28] sm:$0xff]
    %v49 = vld [vmem:[#allocation2 + $0x30] sm:$0xff]
    %v50 = vld [vmem:[#allocation2 + $0x38] sm:$0xff]
    %v51 = vld [vmem:[#allocation2 + $0x40] sm:$0xff]
    %v52 = vld [vmem:[#allocation2 + $0x48] sm:$0xff]
    %v53 = vld [vmem:[#allocation2 + $0x50] sm:$0xff]
    %v54 = vld [vmem:[#allocation2 + $0x58] sm:$0xff]
    %v55 = vld [vmem:[#allocation2 + $0x60] sm:$0xff]
    %v56 = vld [vmem:[#allocation2 + $0x68] sm:$0xff]
    %v57 = vld [vmem:[#allocation2 + $0x70] sm:$0xff]
    %v58 = vld [vmem:[#allocation2 + $0x78] sm:$0xff]
    %v59 = vld [vmem:[#allocation2 + $0x80] sm:$0xff]
    %v60 = vld [vmem:[#allocation2 + $0x88] sm:$0xff]
    %v61 = vld [vmem:[#allocation2 + $0x90] sm:$0xff]
    %v62 = vld [vmem:[#allocation2 + $0x98] sm:$0xff]
    %v63 = vld [vmem:[#allocation2 + $0xa0] sm:$0xff]
    %v64 = vld [vmem:[#allocation2 + $0xa8] sm:$0xff]
    %v65 = vld [vmem:[#allocation2 + $0xb0] sm:$0xff]
    %v66 = vld [vmem:[#allocation2 + $0xb8] sm:$0xff]
    %v67 = vld [vmem:[#allocation2 + $0xc0] sm:$0xff]
    %v68 = vld [vmem:[#allocation2 + $0xc8] sm:$0xff]
    %v69 = vld [vmem:[#allocation2 + $0xd0] sm:$0xff]
    %v70 = vld [vmem:[#allocation2 + $0xd8] sm:$0xff]
    %v71 = vld [vmem:[#allocation2 + $0xe0] sm:$0xff]
    %v72 = vld [vmem:[#allocation2 + $0xe8] sm:$0xff]
    %v73 = vld [vmem:[#allocation2 + $0xf0] sm:$0xff]
    %v74 = vld [vmem:[#allocation2 + $0xf8] sm:$0xff]
    %v75 = vld [vmem:[#allocation2 + $0x100] sm:$0xff]
    %v76 = vld [vmem:[#allocation2 + $0x108] sm:$0xff]
    %v77 = vld [vmem:[#allocation2 + $0x110] sm:$0xff]
    %v78 = vld [vmem:[#allocation2 + $0x118] sm:$0xff]
    %v79 = vld [vmem:[#allocation2 + $0x120] sm:$0xff]
    %v80 = vld [vmem:[#allocation2 + $0x128] sm:$0xff]
    %v81 = vld [vmem:[#allocation2 + $0x130] sm:$0xff]
    %v82 = vld [vmem:[#allocation2 + $0x138] sm:$0xff]
    %v83 = vld [vmem:[#allocation2 + $0x140] sm:$0xff]
    %v84 = vld [vmem:[#allocation2 + $0x148] sm:$0xff]
    %v85 = vld [vmem:[#allocation2 + $0x150] sm:$0xff]
    %v86 = vld [vmem:[#allocation2 + $0x158] sm:$0xff]
    %v87 = vld [vmem:[#allocation2 + $0x160] sm:$0xff]
    %v88 = vld [vmem:[#allocation2 + $0x168] sm:$0xff]
    %v89 = vld [vmem:[#allocation2 + $0x170] sm:$0xff]
    %v90 = vld [vmem:[#allocation2 + $0x178] sm:$0xff]
    %v91 = vld [vmem:[#allocation2 + $0x180] sm:$0xff]
    %v92 = vld [vmem:[#allocation2 + $0x188] sm:$0xff]
    %v93 = vld [vmem:[#allocation2 + $0x190] sm:$0xff]
    %v94 = vld [vmem:[#allocation2 + $0x198] sm:$0xff]
    %v95 = vld [vmem:[#allocation2 + $0x1a0] sm:$0xff]
    %v96 = vld [vmem:[#allocation2 + $0x1a8] sm:$0xff]
    %v97 = vld [vmem:[#allocation2 + $0x1b0] sm:$0xff]
    %v98 = vld [vmem:[#allocation2 + $0x1b8] sm:$0xff]
    %v99 = vld [vmem:[#allocation2 + $0x1c0] sm:$0xff]
    %v100 = vld [vmem:[#allocation2 + $0x1c8] sm:$0xff]
    %v101 = vld [vmem:[#allocation2 + $0x1d0] sm:$0xff]
    %v102 = vld [vmem:[#allocation2 + $0x1d8] sm:$0xff]
    %v103 = vld [vmem:[#allocation2 + $0x1e0] sm:$0xff]
    %v104 = vld [vmem:[#allocation2 + $0x1e8] sm:$0xff]
    %v105 = vld [vmem:[#allocation2 + $0x1f0] sm:$0xff]
    %v106 = vld [vmem:[#allocation2 + $0x1f8] sm:$0xff]
    %v107 = vld [vmem:[#allocation5] sm:$0xff]
    %v108 = vld [vmem:[#allocation5 + $0x8] sm:$0xff]
    %v109 = vld [vmem:[#allocation5 + $0x10] sm:$0xff]
    %v110 = vld [vmem:[#allocation5 + $0x18] sm:$0xff]
    %v111 = vld [vmem:[#allocation5 + $0x20] sm:$0xff]
    %v112 = vld [vmem:[#allocation5 + $0x28] sm:$0xff]
    %v113 = vld [vmem:[#allocation5 + $0x30] sm:$0xff]
    %v114 = vld [vmem:[#allocation5 + $0x38] sm:$0xff]
    %v115 = vld [vmem:[#allocation5 + $0x40] sm:$0xff]
    %v116 = vld [vmem:[#allocation5 + $0x48] sm:$0xff]
    %v117 = vld [vmem:[#allocation5 + $0x50] sm:$0xff]
    %v118 = vld [vmem:[#allocation5 + $0x58] sm:$0xff]
    %v119 = vld [vmem:[#allocation5 + $0x60] sm:$0xff]
    %v120 = vld [vmem:[#allocation5 + $0x68] sm:$0xff]
    %v121 = vld [vmem:[#allocation5 + $0x70] sm:$0xff]
    %v122 = vld [vmem:[#allocation5 + $0x78] sm:$0xff]
    %123 = vmatprep.subr.mxu0 0.0
    %v124 = vand.u32 %v107, 4294901760
    %125 = vmatpush1.msra.mxu0 %v124
    %126 = vmatprep.subr.mxu0 0.0
    %v127 = vand.u32 %v108, 4294901760
    %128 = vmatpush1.msra.mxu0 %v127
    %129 = vmatprep.subr.mxu0 0.0
    %v130 = vand.u32 %v109, 4294901760
    %131 = vmatpush1.msra.mxu0 %v130
    %132 = vmatprep.subr.mxu0 0.0
    %v133 = vand.u32 %v110, 4294901760
    %134 = vmatpush1.msra.mxu0 %v133
    %135 = vmatprep.subr.mxu0 0.0
    %v136 = vand.u32 %v111, 4294901760
    %137 = vmatpush1.msra.mxu0 %v136
    %138 = vmatprep.subr.mxu0 0.0
    %v139 = vand.u32 %v112, 4294901760
    %140 = vmatpush1.msra.mxu0 %v139
    %141 = vmatprep.subr.mxu0 0.0
    %v142 = vand.u32 %v113, 4294901760
    %143 = vmatpush1.msra.mxu0 %v142
    %144 = vmatprep.subr.mxu0 0.0
    %v145 = vand.u32 %v114, 4294901760
    %146 = vmatpush1.msra.mxu0 %v145
    %147 = vmatprep.subr.mxu0 0.0
    %v148 = vand.u32 %v115, 4294901760
    %149 = vmatpush1.msra.mxu0 %v148
    %150 = vmatprep.subr.mxu0 0.0
    %v151 = vand.u32 %v116, 4294901760
    %152 = vmatpush1.msra.mxu0 %v151
    %153 = vmatprep.subr.mxu0 0.0
    %v154 = vand.u32 %v117, 4294901760
    %155 = vmatpush1.msra.mxu0 %v154
    %156 = vmatprep.subr.mxu0 0.0
    %v157 = vand.u32 %v118, 4294901760
    %158 = vmatpush1.msra.mxu0 %v157
    %159 = vmatprep.subr.mxu0 0.0
    %v160 = vand.u32 %v119, 4294901760
    %161 = vmatpush1.msra.mxu0 %v160
    %162 = vmatprep.subr.mxu0 0.0
    %v163 = vand.u32 %v120, 4294901760
    %164 = vmatpush1.msra.mxu0 %v163
    %165 = vmatprep.subr.mxu0 0.0
    %v166 = vand.u32 %v121, 4294901760
    %167 = vmatpush1.msra.mxu0 %v166
    %168 = vmatprep.subr.mxu0 0.0
    %v169 = vand.u32 %v122, 4294901760
    %170 = vmatpush1.msra.mxu0 %v169
    %171 = vmatprep.subr.mxu0 0.0
    %172 = vmatpush1.msra.mxu0 0.0
    %173 = vmatprep.subr.mxu0 0.0
    %174 = vmatpush1.msra.mxu0 0.0
    %175 = vmatprep.subr.mxu0 0.0
    %176 = vmatpush1.msra.mxu0 0.0
    %177 = vmatprep.subr.mxu0 0.0
    %178 = vmatpush1.msra.mxu0 0.0
    %179 = vmatprep.subr.mxu0 0.0
    %180 = vmatpush1.msra.mxu0 0.0
    %181 = vmatprep.subr.mxu0 0.0
    %182 = vmatpush1.msra.mxu0 0.0
    %183 = vmatprep.subr.mxu0 0.0
    %184 = vmatpush1.msra.mxu0 0.0
    %185 = vmatprep.subr.mxu0 0.0
    %186 = vmatpush1.msra.mxu0 0.0
    %187 = vmatprep.subr.mxu0 0.0
    %188 = vmatpush1.msra.mxu0 0.0
    %189 = vmatprep.subr.mxu0 0.0
    %190 = vmatpush1.msra.mxu0 0.0
    %191 = vmatprep.subr.mxu0 0.0
    %192 = vmatpush1.msra.mxu0 0.0
    %193 = vmatprep.subr.mxu0 0.0
    %194 = vmatpush1.msra.mxu0 0.0
    %195 = vmatprep.subr.mxu0 0.0
    %196 = vmatpush1.msra.mxu0 0.0
    %197 = vmatprep.subr.mxu0 0.0
    %198 = vmatpush1.msra.mxu0 0.0
    %199 = vmatprep.subr.mxu0 0.0
    %200 = vmatpush1.msra.mxu0 0.0
    %201 = vmatprep.subr.mxu0 0.0
    %202 = vmatpush1.msra.mxu0 0.0
    %203 = vmatprep.mubr.f32.mxu0 0.0
    %v204 = vand.u32 %v43, 4294901760
    %v205 = vsub.f32 %v43, %v204
    %v206 = vand.u32 %v205, 4294901760
    %v207 = vsub.f32 %v205, %v206
    %v208 = vand.u32 %v207, 4294901760
    %209 = vmatmul.mubr.f32.gmra.mrb[0].mxu0 %v208
    %v210 = vpop.f32.mrb[0].mxu0
    %v211 = vadd.f32 0.0, %v210
    %v212 = vpop.f32.mrb[0].mxu0
    %213 = vmatprep.mubr.f32.mxu0 0.0
    %v214 = vand.u32 %v44, 4294901760
    %v215 = vsub.f32 %v44, %v214
    %v216 = vand.u32 %v215, 4294901760
    %v217 = vsub.f32 %v215, %v216
    %v218 = vand.u32 %v217, 4294901760
    %219 = vmatmul.mubr.f32.gmra.mrb[0].mxu0 %v218
    %v220 = vpop.f32.mrb[0].mxu0
    %v221 = vadd.f32 0.0, %v220
    %v222 = vpop.f32.mrb[0].mxu0
    %223 = vmatprep.mubr.f32.mxu0 0.0
    %v224 = vand.u32 %v45, 4294901760
    %v225 = vsub.f32 %v45, %v224
    %v226 = vand.u32 %v225, 4294901760
    %v227 = vsub.f32 %v225, %v226
    %v228 = vand.u32 %v227, 4294901760
    %229 = vmatmul.mubr.f32.gmra.mrb[0].mxu0 %v228
    %v230 = vpop.f32.mrb[0].mxu0
    %v231 = vadd.f32 0.0, %v230
    %v232 = vpop.f32.mrb[0].mxu0
    %233 = vmatprep.mubr.f32.mxu0 0.0
    %v234 = vand.u32 %v46, 4294901760
    %v235 = vsub.f32 %v46, %v234
    %v236 = vand.u32 %v235, 4294901760
    %v237 = vsub.f32 %v235, %v236
    %v238 = vand.u32 %v237, 4294901760
    %239 = vmatmul.mubr.f32.gmra.mrb[0].mxu0 %v238
    %v240 = vpop.f32.mrb[0].mxu0
    %v241 = vadd.f32 0.0, %v240
    %v242 = vpop.f32.mrb[0].mxu0
    %243 = vmatprep.mubr.f32.mxu0 0.0
    %v244 = vand.u32 %v47, 4294901760
    %v245 = vsub.f32 %v47, %v244
    %v246 = vand.u32 %v245, 4294901760
    %v247 = vsub.f32 %v245, %v246
    %v248 = vand.u32 %v247, 4294901760
    %249 = vmatmul.mubr.f32.gmra.mrb[0].mxu0 %v248
    %v250 = vpop.f32.mrb[0].mxu0
    %v251 = vadd.f32 0.0, %v250
    %v252 = vpop.f32.mrb[0].mxu0
    %253 = vmatprep.mubr.f32.mxu0 0.0
    %v254 = vand.u32 %v48, 4294901760
    %v255 = vsub.f32 %v48, %v254
    %v256 = vand.u32 %v255, 4294901760
    %v257 = vsub.f32 %v255, %v256
    %v258 = vand.u32 %v257, 4294901760
    %259 = vmatmul.mubr.f32.gmra.mrb[0].mxu0 %v258
    %v260 = vpop.f32.mrb[0].mxu0
    %v261 = vadd.f32 0.0, %v260
    %v262 = vpop.f32.mrb[0].mxu0
    %263 = vmatprep.mubr.f32.mxu0 0.0
    %v264 = vand.u32 %v49, 4294901760
    %v265 = vsub.f32 %v49, %v264
    %v266 = vand.u32 %v265, 4294901760
    %v267 = vsub.f32 %v265, %v266
    %v268 = vand.u32 %v267, 4294901760
    %269 = vmatmul.mubr.f32.gmra.mrb[0].mxu0 %v268
    %v270 = vpop.f32.mrb[0].mxu0
    %v271 = vadd.f32 0.0, %v270
    %v272 = vpop.f32.mrb[0].mxu0
    %273 = vmatprep.mubr.f32.mxu0 0.0
    %v274 = vand.u32 %v50, 4294901760
    %v275 = vsub.f32 %v50, %v274
    %v276 = vand.u32 %v275, 4294901760
    %v277 = vsub.f32 %v275, %v276
    %v278 = vand.u32 %v277, 4294901760
    %279 = vmatmul.mubr.f32.gmra.mrb[0].mxu0 %v278
    %v280 = vpop.f32.mrb[0].mxu0
    %v281 = vadd.f32 0.0, %v280
    %v282 = vpop.f32.mrb[0].mxu0
    %283 = vmatprep.mubr.f32.mxu0 0.0
    %v284 = vand.u32 %v51, 4294901760
    %v285 = vsub.f32 %v51, %v284
    %v286 = vand.u32 %v285, 4294901760
    %v287 = vsub.f32 %v285, %v286
    %v288 = vand.u32 %v287, 4294901760
    %289 = vmatmul.mubr.f32.gmra.mrb[0].mxu0 %v288
    %v290 = vpop.f32.mrb[0].mxu0
    %v291 = vadd.f32 0.0, %v290
    %v292 = vpop.f32.mrb[0].mxu0
    %293 = vmatprep.mubr.f32.mxu0 0.0
    %v294 = vand.u32 %v52, 4294901760
    %v295 = vsub.f32 %v52, %v294
    %v296 = vand.u32 %v295, 4294901760
    %v297 = vsub.f32 %v295, %v296
    %v298 = vand.u32 %v297, 4294901760
    %299 = vmatmul.mubr.f32.gmra.mrb[0].mxu0 %v298
    %v300 = vpop.f32.mrb[0].mxu0
    %v301 = vadd.f32 0.0, %v300
    %v302 = vpop.f32.mrb[0].mxu0
    %303 = vmatprep.mubr.f32.mxu0 0.0
    %v304 = vand.u32 %v53, 4294901760
    %v305 = vsub.f32 %v53, %v304
    %v306 = vand.u32 %v305, 4294901760
    %v307 = vsub.f32 %v305, %v306
    %v308 = vand.u32 %v307, 4294901760
    %309 = vmatmul.mubr.f32.gmra.mrb[0].mxu0 %v308
    %v310 = vpop.f32.mrb[0].mxu0
    %v311 = vadd.f32 0.0, %v310
    %v312 = vpop.f32.mrb[0].mxu0
    %313 = vmatprep.mubr.f32.mxu0 0.0
    %v314 = vand.u32 %v54, 4294901760
    %v315 = vsub.f32 %v54, %v314
    %v316 = vand.u32 %v315, 4294901760
    %v317 = vsub.f32 %v315, %v316
    %v318 = vand.u32 %v317, 4294901760
    %319 = vmatmul.mubr.f32.gmra.mrb[0].mxu0 %v318
    %v320 = vpop.f32.mrb[0].mxu0
    %v321 = vadd.f32 0.0, %v320
    %v322 = vpop.f32.mrb[0].mxu0
    %323 = vmatprep.mubr.f32.mxu0 0.0
    %v324 = vand.u32 %v55, 4294901760
    %v325 = vsub.f32 %v55, %v324
    %v326 = vand.u32 %v325, 4294901760
    %v327 = vsub.f32 %v325, %v326
    %v328 = vand.u32 %v327, 4294901760
    %329 = vmatmul.mubr.f32.gmra.mrb[0].mxu0 %v328
    %v330 = vpop.f32.mrb[0].mxu0
    %v331 = vadd.f32 0.0, %v330
    %v332 = vpop.f32.mrb[0].mxu0
    %333 = vmatprep.mubr.f32.mxu0 0.0
    %v334 = vand.u32 %v56, 4294901760
    %v335 = vsub.f32 %v56, %v334
    %v336 = vand.u32 %v335, 4294901760
    %v337 = vsub.f32 %v335, %v336
    %v338 = vand.u32 %v337, 4294901760
    %339 = vmatmul.mubr.f32.gmra.mrb[0].mxu0 %v338
    %v340 = vpop.f32.mrb[0].mxu0
    %v341 = vadd.f32 0.0, %v340
    %v342 = vpop.f32.mrb[0].mxu0
    %343 = vmatprep.mubr.f32.mxu0 0.0
    %v344 = vand.u32 %v57, 4294901760
    %v345 = vsub.f32 %v57, %v344
    %v346 = vand.u32 %v345, 4294901760
    %v347 = vsub.f32 %v345, %v346
    %v348 = vand.u32 %v347, 4294901760
    %349 = vmatmul.mubr.f32.gmra.mrb[0].mxu0 %v348
    %v350 = vpop.f32.mrb[0].mxu0
    %v351 = vadd.f32 0.0, %v350
    %v352 = vpop.f32.mrb[0].mxu0
    %353 = vmatprep.mubr.f32.mxu0 0.0
    %v354 = vand.u32 %v58, 4294901760
    %v355 = vsub.f32 %v58, %v354
    %v356 = vand.u32 %v355, 4294901760
    %v357 = vsub.f32 %v355, %v356
    %v358 = vand.u32 %v357, 4294901760
    %359 = vmatmul.mubr.f32.gmra.mrb[0].mxu0 %v358
    %v360 = vpop.f32.mrb[0].mxu0
    %v361 = vadd.f32 0.0, %v360
    %v362 = vpop.f32.mrb[0].mxu0
    %363 = vmatprep.mubr.f32.mxu0 0.0
    %v364 = vand.u32 %v59, 4294901760
    %v365 = vsub.f32 %v59, %v364
    %v366 = vand.u32 %v365, 4294901760
    %v367 = vsub.f32 %v365, %v366
    %v368 = vand.u32 %v367, 4294901760
    %369 = vmatmul.mubr.f32.gmra.mrb[0].mxu0 %v368
    %v370 = vpop.f32.mrb[0].mxu0
    %v371 = vadd.f32 0.0, %v370
    %v372 = vpop.f32.mrb[0].mxu0
    %373 = vmatprep.mubr.f32.mxu0 0.0
    %v374 = vand.u32 %v60, 4294901760
    %v375 = vsub.f32 %v60, %v374
    %v376 = vand.u32 %v375, 4294901760
    %v377 = vsub.f32 %v375, %v376
    %v378 = vand.u32 %v377, 4294901760
    %379 = vmatmul.mubr.f32.gmra.mrb[0].mxu0 %v378
    %v380 = vpop.f32.mrb[0].mxu0
    %v381 = vadd.f32 0.0, %v380
    %v382 = vpop.f32.mrb[0].mxu0
    %383 = vmatprep.mubr.f32.mxu0 0.0
    %v384 = vand.u32 %v61, 4294901760
    %v385 = vsub.f32 %v61, %v384
    %v386 = vand.u32 %v385, 4294901760
    %v387 = vsub.f32 %v385, %v386
    %v388 = vand.u32 %v387, 4294901760
    %389 = vmatmul.mubr.f32.gmra.mrb[0].mxu0 %v388
    %v390 = vpop.f32.mrb[0].mxu0
    %v391 = vadd.f32 0.0, %v390
    %v392 = vpop.f32.mrb[0].mxu0
    %393 = vmatprep.mubr.f32.mxu0 0.0
    %v394 = vand.u32 %v62, 4294901760
    %v395 = vsub.f32 %v62, %v394
    %v396 = vand.u32 %v395, 4294901760
    %v397 = vsub.f32 %v395, %v396
    %v398 = vand.u32 %v397, 4294901760
    %399 = vmatmul.mubr.f32.gmra.mrb[0].mxu0 %v398
    %v400 = vpop.f32.mrb[0].mxu0
    %v401 = vadd.f32 0.0, %v400
    %v402 = vpop.f32.mrb[0].mxu0
    %403 = vmatprep.mubr.f32.mxu0 0.0
    %v404 = vand.u32 %v63, 4294901760
    %v405 = vsub.f32 %v63, %v404
    %v406 = vand.u32 %v405, 4294901760
    %v407 = vsub.f32 %v405, %v406
    %v408 = vand.u32 %v407, 4294901760
    %409 = vmatmul.mubr.f32.gmra.mrb[0].mxu0 %v408
    %v410 = vpop.f32.mrb[0].mxu0
    %v411 = vadd.f32 0.0, %v410
    %v412 = vpop.f32.mrb[0].mxu0
    %413 = vmatprep.mubr.f32.mxu0 0.0
    %v414 = vand.u32 %v64, 4294901760
    %v415 = vsub.f32 %v64, %v414
    %v416 = vand.u32 %v415, 4294901760
    %v417 = vsub.f32 %v415, %v416
    %v418 = vand.u32 %v417, 4294901760
    %419 = vmatmul.mubr.f32.gmra.mrb[0].mxu0 %v418
    %v420 = vpop.f32.mrb[0].mxu0
    %v421 = vadd.f32 0.0, %v420
    %v422 = vpop.f32.mrb[0].mxu0
    %423 = vmatprep.mubr.f32.mxu0 0.0
    %v424 = vand.u32 %v65, 4294901760
    %v425 = vsub.f32 %v65, %v424
    %v426 = vand.u32 %v425, 4294901760
    %v427 = vsub.f32 %v425, %v426
    %v428 = vand.u32 %v427, 4294901760
    %429 = vmatmul.mubr.f32.gmra.mrb[0].mxu0 %v428
    %v430 = vpop.f32.mrb[0].mxu0
    %v431 = vadd.f32 0.0, %v430
    %v432 = vpop.f32.mrb[0].mxu0
    %433 = vmatprep.mubr.f32.mxu0 0.0
    %v434 = vand.u32 %v66, 4294901760
    %v435 = vsub.f32 %v66, %v434
    %v436 = vand.u32 %v435, 4294901760
    %v437 = vsub.f32 %v435, %v436
    %v438 = vand.u32 %v437, 4294901760
    %439 = vmatmul.mubr.f32.gmra.mrb[0].mxu0 %v438
    %v440 = vpop.f32.mrb[0].mxu0
    %v441 = vadd.f32 0.0, %v440
    %v442 = vpop.f32.mrb[0].mxu0
    %443 = vmatprep.mubr.f32.mxu0 0.0
    %v444 = vand.u32 %v67, 4294901760
    %v445 = vsub.f32 %v67, %v444
    %v446 = vand.u32 %v445, 4294901760
    %v447 = vsub.f32 %v445, %v446
    %v448 = vand.u32 %v447, 4294901760
    %449 = vmatmul.mubr.f32.gmra.mrb[0].mxu0 %v448
    %v450 = vpop.f32.mrb[0].mxu0
    %v451 = vadd.f32 0.0, %v450
    %v452 = vpop.f32.mrb[0].mxu0
    %453 = vmatprep.mubr.f32.mxu0 0.0
    %v454 = vand.u32 %v68, 4294901760
    %v455 = vsub.f32 %v68, %v454
    %v456 = vand.u32 %v455, 4294901760
    %v457 = vsub.f32 %v455, %v456
    %v458 = vand.u32 %v457, 4294901760
    %459 = vmatmul.mubr.f32.gmra.mrb[0].mxu0 %v458
    %v460 = vpop.f32.mrb[0].mxu0
    %v461 = vadd.f32 0.0, %v460
    %v462 = vpop.f32.mrb[0].mxu0
    %463 = vmatprep.mubr.f32.mxu0 0.0
    %v464 = vand.u32 %v69, 4294901760
    %v465 = vsub.f32 %v69, %v464
    %v466 = vand.u32 %v465, 4294901760
    %v467 = vsub.f32 %v465, %v466
    %v468 = vand.u32 %v467, 4294901760
    %469 = vmatmul.mubr.f32.gmra.mrb[0].mxu0 %v468
    %v470 = vpop.f32.mrb[0].mxu0
    %v471 = vadd.f32 0.0, %v470
    %v472 = vpop.f32.mrb[0].mxu0
    %473 = vmatprep.mubr.f32.mxu0 0.0
    %v474 = vand.u32 %v70, 4294901760
    %v475 = vsub.f32 %v70, %v474
    %v476 = vand.u32 %v475, 4294901760
    %v477 = vsub.f32 %v475, %v476
    %v478 = vand.u32 %v477, 4294901760
    %479 = vmatmul.mubr.f32.gmra.mrb[0].mxu0 %v478
    %v480 = vpop.f32.mrb[0].mxu0
    %v481 = vadd.f32 0.0, %v480
    %v482 = vpop.f32.mrb[0].mxu0
    %483 = vmatprep.mubr.f32.mxu0 0.0
    %v484 = vand.u32 %v71, 4294901760
    %v485 = vsub.f32 %v71, %v484
    %v486 = vand.u32 %v485, 4294901760
    %v487 = vsub.f32 %v485, %v486
    %v488 = vand.u32 %v487, 4294901760
    %489 = vmatmul.mubr.f32.gmra.mrb[0].mxu0 %v488
    %v490 = vpop.f32.mrb[0].mxu0
    %v491 = vadd.f32 0.0, %v490
    %v492 = vpop.f32.mrb[0].mxu0
    %493 = vmatprep.mubr.f32.mxu0 0.0
    %v494 = vand.u32 %v72, 4294901760
    %v495 = vsub.f32 %v72, %v494
    %v496 = vand.u32 %v495, 4294901760
    %v497 = vsub.f32 %v495, %v496
    %v498 = vand.u32 %v497, 4294901760
    %499 = vmatmul.mubr.f32.gmra.mrb[0].mxu0 %v498
    %v500 = vpop.f32.mrb[0].mxu0
    %v501 = vadd.f32 0.0, %v500
    %v502 = vpop.f32.mrb[0].mxu0
    %503 = vmatprep.mubr.f32.mxu0 0.0
    %v504 = vand.u32 %v73, 4294901760
    %v505 = vsub.f32 %v73, %v504
    %v506 = vand.u32 %v505, 4294901760
    %v507 = vsub.f32 %v505, %v506
    %v508 = vand.u32 %v507, 4294901760
    %509 = vmatmul.mubr.f32.gmra.mrb[0].mxu0 %v508
    %v510 = vpop.f32.mrb[0].mxu0
    %v511 = vadd.f32 0.0, %v510
    %v512 = vpop.f32.mrb[0].mxu0
    %513 = vmatprep.mubr.f32.mxu0 0.0
    %v514 = vand.u32 %v74, 4294901760
    %v515 = vsub.f32 %v74, %v514
    %v516 = vand.u32 %v515, 4294901760
    %v517 = vsub.f32 %v515, %v516
    %v518 = vand.u32 %v517, 4294901760
    %519 = vmatmul.mubr.f32.gmra.mrb[0].mxu0 %v518
    %v520 = vpop.f32.mrb[0].mxu0
    %v521 = vadd.f32 0.0, %v520
    %v522 = vpop.f32.mrb[0].mxu0
    %523 = vmatprep.mubr.f32.mxu0 0.0
    %v524 = vand.u32 %v75, 4294901760
    %v525 = vsub.f32 %v75, %v524
    %v526 = vand.u32 %v525, 4294901760
    %v527 = vsub.f32 %v525, %v526
    %v528 = vand.u32 %v527, 4294901760
    %529 = vmatmul.mubr.f32.gmra.mrb[0].mxu0 %v528
    %v530 = vpop.f32.mrb[0].mxu0
    %v531 = vadd.f32 0.0, %v530
    %v532 = vpop.f32.mrb[0].mxu0
    %533 = vmatprep.mubr.f32.mxu0 0.0
    %v534 = vand.u32 %v76, 4294901760
    %v535 = vsub.f32 %v76, %v534
    %v536 = vand.u32 %v535, 4294901760
    %v537 = vsub.f32 %v535, %v536
    %v538 = vand.u32 %v537, 4294901760
    %539 = vmatmul.mubr.f32.gmra.mrb[0].mxu0 %v538
    %v540 = vpop.f32.mrb[0].mxu0
    %v541 = vadd.f32 0.0, %v540
    %v542 = vpop.f32.mrb[0].mxu0
    %543 = vmatprep.mubr.f32.mxu0 0.0
    %v544 = vand.u32 %v77, 4294901760
    %v545 = vsub.f32 %v77, %v544
    %v546 = vand.u32 %v545, 4294901760
    %v547 = vsub.f32 %v545, %v546
    %v548 = vand.u32 %v547, 4294901760
    %549 = vmatmul.mubr.f32.gmra.mrb[0].mxu0 %v548
    %v550 = vpop.f32.mrb[0].mxu0
    %v551 = vadd.f32 0.0, %v550
    %v552 = vpop.f32.mrb[0].mxu0
    %553 = vmatprep.mubr.f32.mxu0 0.0
    %v554 = vand.u32 %v78, 4294901760
    %v555 = vsub.f32 %v78, %v554
    %v556 = vand.u32 %v555, 4294901760
    %v557 = vsub.f32 %v555, %v556
    %v558 = vand.u32 %v557, 4294901760
    %559 = vmatmul.mubr.f32.gmra.mrb[0].mxu0 %v558
    %v560 = vpop.f32.mrb[0].mxu0
    %v561 = vadd.f32 0.0, %v560
    %v562 = vpop.f32.mrb[0].mxu0
    %563 = vmatprep.mubr.f32.mxu0 0.0
    %v564 = vand.u32 %v79, 4294901760
    %v565 = vsub.f32 %v79, %v564
    %v566 = vand.u32 %v565, 4294901760
    %v567 = vsub.f32 %v565, %v566
    %v568 = vand.u32 %v567, 4294901760
    %569 = vmatmul.mubr.f32.gmra.mrb[0].mxu0 %v568
    %v570 = vpop.f32.mrb[0].mxu0
    %v571 = vadd.f32 0.0, %v570
    %v572 = vpop.f32.mrb[0].mxu0
    %573 = vmatprep.mubr.f32.mxu0 0.0
    %v574 = vand.u32 %v80, 4294901760
    %v575 = vsub.f32 %v80, %v574
    %v576 = vand.u32 %v575, 4294901760
    %v577 = vsub.f32 %v575, %v576
    %v578 = vand.u32 %v577, 4294901760
    %579 = vmatmul.mubr.f32.gmra.mrb[0].mxu0 %v578
    %v580 = vpop.f32.mrb[0].mxu0
    %v581 = vadd.f32 0.0, %v580
    %v582 = vpop.f32.mrb[0].mxu0
    %583 = vmatprep.mubr.f32.mxu0 0.0
    %v584 = vand.u32 %v81, 4294901760
    %v585 = vsub.f32 %v81, %v584
    %v586 = vand.u32 %v585, 4294901760
    %v587 = vsub.f32 %v585, %v586
    %v588 = vand.u32 %v587, 4294901760
    %589 = vmatmul.mubr.f32.gmra.mrb[0].mxu0 %v588
    %v590 = vpop.f32.mrb[0].mxu0
    %v591 = vadd.f32 0.0, %v590
    %v592 = vpop.f32.mrb[0].mxu0
    %593 = vmatprep.mubr.f32.mxu0 0.0
    %v594 = vand.u32 %v82, 4294901760
    %v595 = vsub.f32 %v82, %v594
    %v596 = vand.u32 %v595, 4294901760
    %v597 = vsub.f32 %v595, %v596
    %v598 = vand.u32 %v597, 4294901760
    %599 = vmatmul.mubr.f32.gmra.mrb[0].mxu0 %v598
    %v600 = vpop.f32.mrb[0].mxu0
    %v601 = vadd.f32 0.0, %v600
    %v602 = vpop.f32.mrb[0].mxu0
    %603 = vmatprep.mubr.f32.mxu0 0.0
    %v604 = vand.u32 %v83, 4294901760
    %v605 = vsub.f32 %v83, %v604
    %v606 = vand.u32 %v605, 4294901760
    %v607 = vsub.f32 %v605, %v606
    %v608 = vand.u32 %v607, 4294901760
    %609 = vmatmul.mubr.f32.gmra.mrb[0].mxu0 %v608
    %v610 = vpop.f32.mrb[0].mxu0
    %v611 = vadd.f32 0.0, %v610
    %v612 = vpop.f32.mrb[0].mxu0
    %613 = vmatprep.mubr.f32.mxu0 0.0
    %v614 = vand.u32 %v84, 4294901760
    %v615 = vsub.f32 %v84, %v614
    %v616 = vand.u32 %v615, 4294901760
    %v617 = vsub.f32 %v615, %v616
    %v618 = vand.u32 %v617, 4294901760
    %619 = vmatmul.mubr.f32.gmra.mrb[0].mxu0 %v618
    %v620 = vpop.f32.mrb[0].mxu0
    %v621 = vadd.f32 0.0, %v620
    %v622 = vpop.f32.mrb[0].mxu0
    %623 = vmatprep.mubr.f32.mxu0 0.0
    %v624 = vand.u32 %v85, 4294901760
    %v625 = vsub.f32 %v85, %v624
    %v626 = vand.u32 %v625, 4294901760
    %v627 = vsub.f32 %v625, %v626
    %v628 = vand.u32 %v627, 4294901760
    %629 = vmatmul.mubr.f32.gmra.mrb[0].mxu0 %v628
    %v630 = vpop.f32.mrb[0].mxu0
    %v631 = vadd.f32 0.0, %v630
    %v632 = vpop.f32.mrb[0].mxu0
    %633 = vmatprep.mubr.f32.mxu0 0.0
    %v634 = vand.u32 %v86, 4294901760
    %v635 = vsub.f32 %v86, %v634
    %v636 = vand.u32 %v635, 4294901760
    %v637 = vsub.f32 %v635, %v636
    %v638 = vand.u32 %v637, 4294901760
    %639 = vmatmul.mubr.f32.gmra.mrb[0].mxu0 %v638
    %v640 = vpop.f32.mrb[0].mxu0
    %v641 = vadd.f32 0.0, %v640
    %v642 = vpop.f32.mrb[0].mxu0
    %643 = vmatprep.mubr.f32.mxu0 0.0
    %v644 = vand.u32 %v87, 4294901760
    %v645 = vsub.f32 %v87, %v644
    %v646 = vand.u32 %v645, 4294901760
    %v647 = vsub.f32 %v645, %v646
    %v648 = vand.u32 %v647, 4294901760
    %649 = vmatmul.mubr.f32.gmra.mrb[0].mxu0 %v648
    %v650 = vpop.f32.mrb[0].mxu0
    %v651 = vadd.f32 0.0, %v650
    %v652 = vpop.f32.mrb[0].mxu0
    %653 = vmatprep.mubr.f32.mxu0 0.0
    %v654 = vand.u32 %v88, 4294901760
    %v655 = vsub.f32 %v88, %v654
    %v656 = vand.u32 %v655, 4294901760
    %v657 = vsub.f32 %v655, %v656
    %v658 = vand.u32 %v657, 4294901760
    %659 = vmatmul.mubr.f32.gmra.mrb[0].mxu0 %v658
    %v660 = vpop.f32.mrb[0].mxu0
    %v661 = vadd.f32 0.0, %v660
    %v662 = vpop.f32.mrb[0].mxu0
    %663 = vmatprep.mubr.f32.mxu0 0.0
    %v664 = vand.u32 %v89, 4294901760
    %v665 = vsub.f32 %v89, %v664
    %v666 = vand.u32 %v665, 4294901760
    %v667 = vsub.f32 %v665, %v666
    %v668 = vand.u32 %v667, 4294901760
    %669 = vmatmul.mubr.f32.gmra.mrb[0].mxu0 %v668
    %v670 = vpop.f32.mrb[0].mxu0
    %v671 = vadd.f32 0.0, %v670
    %v672 = vpop.f32.mrb[0].mxu0
    %673 = vmatprep.mubr.f32.mxu0 0.0
    %v674 = vand.u32 %v90, 4294901760
    %v675 = vsub.f32 %v90, %v674
    %v676 = vand.u32 %v675, 4294901760
    %v677 = vsub.f32 %v675, %v676
    %v678 = vand.u32 %v677, 4294901760
    %679 = vmatmul.mubr.f32.gmra.mrb[0].mxu0 %v678
    %v680 = vpop.f32.mrb[0].mxu0
    %v681 = vadd.f32 0.0, %v680
    %v682 = vpop.f32.mrb[0].mxu0
    %683 = vmatprep.mubr.f32.mxu0 0.0
    %v684 = vand.u32 %v91, 4294901760
    %v685 = vsub.f32 %v91, %v684
    %v686 = vand.u32 %v685, 4294901760
    %v687 = vsub.f32 %v685, %v686
    %v688 = vand.u32 %v687, 4294901760
    %689 = vmatmul.mubr.f32.gmra.mrb[0].mxu0 %v688
    %v690 = vpop.f32.mrb[0].mxu0
    %v691 = vadd.f32 0.0, %v690
    %v692 = vpop.f32.mrb[0].mxu0
    %693 = vmatprep.mubr.f32.mxu0 0.0
    %v694 = vand.u32 %v92, 4294901760
    %v695 = vsub.f32 %v92, %v694
    %v696 = vand.u32 %v695, 4294901760
    %v697 = vsub.f32 %v695, %v696
    %v698 = vand.u32 %v697, 4294901760
    %699 = vmatmul.mubr.f32.gmra.mrb[0].mxu0 %v698
    %v700 = vpop.f32.mrb[0].mxu0
    %v701 = vadd.f32 0.0, %v700
    %v702 = vpop.f32.mrb[0].mxu0
    %703 = vmatprep.mubr.f32.mxu0 0.0
    %v704 = vand.u32 %v93, 4294901760
    %v705 = vsub.f32 %v93, %v704
    %v706 = vand.u32 %v705, 4294901760
    %v707 = vsub.f32 %v705, %v706
    %v708 = vand.u32 %v707, 4294901760
    %709 = vmatmul.mubr.f32.gmra.mrb[0].mxu0 %v708
    %v710 = vpop.f32.mrb[0].mxu0
    %v711 = vadd.f32 0.0, %v710
    %v712 = vpop.f32.mrb[0].mxu0
    %713 = vmatprep.mubr.f32.mxu0 0.0
    %v714 = vand.u32 %v94, 4294901760
    %v715 = vsub.f32 %v94, %v714
    %v716 = vand.u32 %v715, 4294901760
    %v717 = vsub.f32 %v715, %v716
    %v718 = vand.u32 %v717, 4294901760
    %719 = vmatmul.mubr.f32.gmra.mrb[0].mxu0 %v718
    %v720 = vpop.f32.mrb[0].mxu0
    %v721 = vadd.f32 0.0, %v720
    %v722 = vpop.f32.mrb[0].mxu0
    %723 = vmatprep.mubr.f32.mxu0 0.0
    %v724 = vand.u32 %v95, 4294901760
    %v725 = vsub.f32 %v95, %v724
    %v726 = vand.u32 %v725, 4294901760
    %v727 = vsub.f32 %v725, %v726
    %v728 = vand.u32 %v727, 4294901760
    %729 = vmatmul.mubr.f32.gmra.mrb[0].mxu0 %v728
    %v730 = vpop.f32.mrb[0].mxu0
    %v731 = vadd.f32 0.0, %v730
    %v732 = vpop.f32.mrb[0].mxu0
    %733 = vmatprep.mubr.f32.mxu0 0.0
    %v734 = vand.u32 %v96, 4294901760
    %v735 = vsub.f32 %v96, %v734
    %v736 = vand.u32 %v735, 4294901760
    %v737 = vsub.f32 %v735, %v736
    %v738 = vand.u32 %v737, 4294901760
    %739 = vmatmul.mubr.f32.gmra.mrb[0].mxu0 %v738
    %v740 = vpop.f32.mrb[0].mxu0
    %v741 = vadd.f32 0.0, %v740
    %v742 = vpop.f32.mrb[0].mxu0
    %743 = vmatprep.mubr.f32.mxu0 0.0
    %v744 = vand.u32 %v97, 4294901760
    %v745 = vsub.f32 %v97, %v744
    %v746 = vand.u32 %v745, 4294901760
    %v747 = vsub.f32 %v745, %v746
    %v748 = vand.u32 %v747, 4294901760
    %749 = vmatmul.mubr.f32.gmra.mrb[0].mxu0 %v748
    %v750 = vpop.f32.mrb[0].mxu0
    %v751 = vadd.f32 0.0, %v750
    %v752 = vpop.f32.mrb[0].mxu0
    %753 = vmatprep.mubr.f32.mxu0 0.0
    %v754 = vand.u32 %v98, 4294901760
    %v755 = vsub.f32 %v98, %v754
    %v756 = vand.u32 %v755, 4294901760
    %v757 = vsub.f32 %v755, %v756
    %v758 = vand.u32 %v757, 4294901760
    %759 = vmatmul.mubr.f32.gmra.mrb[0].mxu0 %v758
    %v760 = vpop.f32.mrb[0].mxu0
    %v761 = vadd.f32 0.0, %v760
    %v762 = vpop.f32.mrb[0].mxu0
    %763 = vmatprep.mubr.f32.mxu0 0.0
    %v764 = vand.u32 %v99, 4294901760
    %v765 = vsub.f32 %v99, %v764
    %v766 = vand.u32 %v765, 4294901760
    %v767 = vsub.f32 %v765, %v766
    %v768 = vand.u32 %v767, 4294901760
    %769 = vmatmul.mubr.f32.gmra.mrb[0].mxu0 %v768
    %v770 = vpop.f32.mrb[0].mxu0
    %v771 = vadd.f32 0.0, %v770
    %v772 = vpop.f32.mrb[0].mxu0
    %773 = vmatprep.mubr.f32.mxu0 0.0
    %v774 = vand.u32 %v100, 4294901760
    %v775 = vsub.f32 %v100, %v774
    %v776 = vand.u32 %v775, 4294901760
    %v777 = vsub.f32 %v775, %v776
    %v778 = vand.u32 %v777, 4294901760
    %779 = vmatmul.mubr.f32.gmra.mrb[0].mxu0 %v778
    %v780 = vpop.f32.mrb[0].mxu0
    %v781 = vadd.f32 0.0, %v780
    %v782 = vpop.f32.mrb[0].mxu0
    %783 = vmatprep.mubr.f32.mxu0 0.0
    %v784 = vand.u32 %v101, 4294901760
    %v785 = vsub.f32 %v101, %v784
    %v786 = vand.u32 %v785, 4294901760
    %v787 = vsub.f32 %v785, %v786
    %v788 = vand.u32 %v787, 4294901760
    %789 = vmatmul.mubr.f32.gmra.mrb[0].mxu0 %v788
    %v790 = vpop.f32.mrb[0].mxu0
    %v791 = vadd.f32 0.0, %v790
    %v792 = vpop.f32.mrb[0].mxu0
    %793 = vmatprep.mubr.f32.mxu0 0.0
    %v794 = vand.u32 %v102, 4294901760
    %v795 = vsub.f32 %v102, %v794
    %v796 = vand.u32 %v795, 4294901760
    %v797 = vsub.f32 %v795, %v796
    %v798 = vand.u32 %v797, 4294901760
    %799 = vmatmul.mubr.f32.gmra.mrb[0].mxu0 %v798
    %v800 = vpop.f32.mrb[0].mxu0
    %v801 = vadd.f32 0.0, %v800
    %v802 = vpop.f32.mrb[0].mxu0
    %803 = vmatprep.mubr.f32.mxu0 0.0
    %v804 = vand.u32 %v103, 4294901760
    %v805 = vsub.f32 %v103, %v804
    %v806 = vand.u32 %v805, 4294901760
    %v807 = vsub.f32 %v805, %v806
    %v808 = vand.u32 %v807, 4294901760
    %809 = vmatmul.mubr.f32.gmra.mrb[0].mxu0 %v808
    %v810 = vpop.f32.mrb[0].mxu0
    %v811 = vadd.f32 0.0, %v810
    %v812 = vpop.f32.mrb[0].mxu0
    %813 = vmatprep.mubr.f32.mxu0 0.0
    %v814 = vand.u32 %v104, 4294901760
    %v815 = vsub.f32 %v104, %v814
    %v816 = vand.u32 %v815, 4294901760
    %v817 = vsub.f32 %v815, %v816
    %v818 = vand.u32 %v817, 4294901760
    %819 = vmatmul.mubr.f32.gmra.mrb[0].mxu0 %v818
    %v820 = vpop.f32.mrb[0].mxu0
    %v821 = vadd.f32 0.0, %v820
    %v822 = vpop.f32.mrb[0].mxu0
    %823 = vmatprep.mubr.f32.mxu0 0.0
    %v824 = vand.u32 %v105, 4294901760
    %v825 = vsub.f32 %v105, %v824
    %v826 = vand.u32 %v825, 4294901760
    %v827 = vsub.f32 %v825, %v826
    %v828 = vand.u32 %v827, 4294901760
    %829 = vmatmul.mubr.f32.gmra.mrb[0].mxu0 %v828
    %v830 = vpop.f32.mrb[0].mxu0
    %v831 = vadd.f32 0.0, %v830
    %v832 = vpop.f32.mrb[0].mxu0
    %833 = vmatprep.mubr.f32.mxu0 0.0
    %v834 = vand.u32 %v106, 4294901760
    %v835 = vsub.f32 %v106, %v834
    %v836 = vand.u32 %v835, 4294901760
    %v837 = vsub.f32 %v835, %v836
    %v838 = vand.u32 %v837, 4294901760
    %839 = vmatmul.mubr.f32.gmra.mrb[0].mxu0 %v838
    %v840 = vpop.f32.mrb[0].mxu0
    %v841 = vadd.f32 0.0, %v840
    %v842 = vpop.f32.mrb[0].mxu0
    %843 = vdwg.mxu0
    %844 = vmatprep.subr.mxu0 0.0
    %v845 = vand.u32 %v107, 4294901760
    %v846 = vsub.f32 %v107, %v845
    %v847 = vand.u32 %v846, 4294901760
    %v848 = vsub.f32 %v846, %v847
    %v849 = vand.u32 %v848, 4294901760
    %850 = vmatpush1.msra.mxu0 %v849
    %851 = vmatprep.subr.mxu0 0.0
    %v852 = vand.u32 %v108, 4294901760
    %v853 = vsub.f32 %v108, %v852
    %v854 = vand.u32 %v853, 4294901760
    %v855 = vsub.f32 %v853, %v854
    %v856 = vand.u32 %v855, 4294901760
    %857 = vmatpush1.msra.mxu0 %v856
    %858 = vmatprep.subr.mxu0 0.0
    %v859 = vand.u32 %v109, 4294901760
    %v860 = vsub.f32 %v109, %v859
    %v861 = vand.u32 %v860, 4294901760
    %v862 = vsub.f32 %v860, %v861
    %v863 = vand.u32 %v862, 4294901760
    %864 = vmatpush1.msra.mxu0 %v863
    %865 = vmatprep.subr.mxu0 0.0
    %v866 = vand.u32 %v110, 4294901760
    %v867 = vsub.f32 %v110, %v866
    %v868 = vand.u32 %v867, 4294901760
    %v869 = vsub.f32 %v867, %v868
    %v870 = vand.u32 %v869, 4294901760
    %871 = vmatpush1.msra.mxu0 %v870
    %872 = vmatprep.subr.mxu0 0.0
    %v873 = vand.u32 %v111, 4294901760
    %v874 = vsub.f32 %v111, %v873
    %v875 = vand.u32 %v874, 4294901760
    %v876 = vsub.f32 %v874, %v875
    %v877 = vand.u32 %v876, 4294901760
    %878 = vmatpush1.msra.mxu0 %v877
    %879 = vmatprep.subr.mxu0 0.0
    %v880 = vand.u32 %v112, 4294901760
    %v881 = vsub.f32 %v112, %v880
    %v882 = vand.u32 %v881, 4294901760
    %v883 = vsub.f32 %v881, %v882
    %v884 = vand.u32 %v883, 4294901760
    %885 = vmatpush1.msra.mxu0 %v884
    %886 = vmatprep.subr.mxu0 0.0
    %v887 = vand.u32 %v113, 4294901760
    %v888 = vsub.f32 %v113, %v887
    %v889 = vand.u32 %v888, 4294901760
    %v890 = vsub.f32 %v888, %v889
    %v891 = vand.u32 %v890, 4294901760
    %892 = vmatpush1.msra.mxu0 %v891
    %893 = vmatprep.subr.mxu0 0.0
    %v894 = vand.u32 %v114, 4294901760
    %v895 = vsub.f32 %v114, %v894
    %v896 = vand.u32 %v895, 4294901760
    %v897 = vsub.f32 %v895, %v896
    %v898 = vand.u32 %v897, 4294901760
    %899 = vmatpush1.msra.mxu0 %v898
    %900 = vmatprep.subr.mxu0 0.0
    %v901 = vand.u32 %v115, 4294901760
    %v902 = vsub.f32 %v115, %v901
    %v903 = vand.u32 %v902, 4294901760
    %v904 = vsub.f32 %v902, %v903
    %v905 = vand.u32 %v904, 4294901760
    %906 = vmatpush1.msra.mxu0 %v905
    %907 = vmatprep.subr.mxu0 0.0
    %v908 = vand.u32 %v116, 4294901760
    %v909 = vsub.f32 %v116, %v908
    %v910 = vand.u32 %v909, 4294901760
    %v911 = vsub.f32 %v909, %v910
    %v912 = vand.u32 %v911, 4294901760
    %913 = vmatpush1.msra.mxu0 %v912
    %914 = vmatprep.subr.mxu0 0.0
    %v915 = vand.u32 %v117, 4294901760
    %v916 = vsub.f32 %v117, %v915
    %v917 = vand.u32 %v916, 4294901760
    %v918 = vsub.f32 %v916, %v917
    %v919 = vand.u32 %v918, 4294901760
    %920 = vmatpush1.msra.mxu0 %v919
    %921 = vmatprep.subr.mxu0 0.0
    %v922 = vand.u32 %v118, 4294901760
    %v923 = vsub.f32 %v118, %v922
    %v924 = vand.u32 %v923, 4294901760
    %v925 = vsub.f32 %v923, %v924
    %v926 = vand.u32 %v925, 4294901760
    %927 = vmatpush1.msra.mxu0 %v926
    %928 = vmatprep.subr.mxu0 0.0
    %v929 = vand.u32 %v119, 4294901760
    %v930 = vsub.f32 %v119, %v929
    %v931 = vand.u32 %v930, 4294901760
    %v932 = vsub.f32 %v930, %v931
    %v933 = vand.u32 %v932, 4294901760
    %934 = vmatpush1.msra.mxu0 %v933
    %935 = vmatprep.subr.mxu0 0.0
    %v936 = vand.u32 %v120, 4294901760
    %v937 = vsub.f32 %v120, %v936
    %v938 = vand.u32 %v937, 4294901760
    %v939 = vsub.f32 %v937, %v938
    %v940 = vand.u32 %v939, 4294901760
    %941 = vmatpush1.msra.mxu0 %v940
    %942 = vmatprep.subr.mxu0 0.0
    %v943 = vand.u32 %v121, 4294901760
    %v944 = vsub.f32 %v121, %v943
    %v945 = vand.u32 %v944, 4294901760
    %v946 = vsub.f32 %v944, %v945
    %v947 = vand.u32 %v946, 4294901760
    %948 = vmatpush1.msra.mxu0 %v947
    %949 = vmatprep.subr.mxu0 0.0
    %v950 = vand.u32 %v122, 4294901760
    %v951 = vsub.f32 %v122, %v950
    %v952 = vand.u32 %v951, 4294901760
    %v953 = vsub.f32 %v951, %v952
    %v954 = vand.u32 %v953, 4294901760
    %955 = vmatpush1.msra.mxu0 %v954
    %956 = vmatprep.subr.mxu0 0.0
    %957 = vmatpush1.msra.mxu0 0.0
    %958 = vmatprep.subr.mxu0 0.0
    %959 = vmatpush1.msra.mxu0 0.0
    %960 = vmatprep.subr.mxu0 0.0
    %961 = vmatpush1.msra.mxu0 0.0
    %962 = vmatprep.subr.mxu0 0.0
    %963 = vmatpush1.msra.mxu0 0.0
    %964 = vmatprep.subr.mxu0 0.0
    %965 = vmatpush1.msra.mxu0 0.0
    %966 = vmatprep.subr.mxu0 0.0
    %967 = vmatpush1.msra.mxu0 0.0
    %968 = vmatprep.subr.mxu0 0.0
    %969 = vmatpush1.msra.mxu0 0.0
    %970 = vmatprep.subr.mxu0 0.0
    %971 = vmatpush1.msra.mxu0 0.0
    %972 = vmatprep.subr.mxu0 0.0
    %973 = vmatpush1.msra.mxu0 0.0
    %974 = vmatprep.subr.mxu0 0.0
    %975 = vmatpush1.msra.mxu0 0.0
    %976 = vmatprep.subr.mxu0 0.0
    %977 = vmatpush1.msra.mxu0 0.0
    %978 = vmatprep.subr.mxu0 0.0
    %979 = vmatpush1.msra.mxu0 0.0
    %980 = vmatprep.subr.mxu0 0.0
    %981 = vmatpush1.msra.mxu0 0.0
    %982 = vmatprep.subr.mxu0 0.0
    %983 = vmatpush1.msra.mxu0 0.0
    %984 = vmatprep.subr.mxu0 0.0
    %985 = vmatpush1.msra.mxu0 0.0
    %986 = vmatprep.subr.mxu0 0.0
    %987 = vmatpush1.msra.mxu0 0.0
    %988 = vmatprep.mubr.f32.mxu0 0.0
    %v989 = vand.u32 %v43, 4294901760
    %990 = vmatmul.mubr.f32.gmra.mrb[0].mxu0 %v989
    %v991 = vpop.f32.mrb[0].mxu0
    %v992 = vadd.f32 %v211, %v991
    %v993 = vpop.f32.mrb[0].mxu0
    %994 = vmatprep.mubr.f32.mxu0 0.0
    %v995 = vand.u32 %v44, 4294901760
    %996 = vmatmul.mubr.f32.gmra.mrb[0].mxu0 %v995
    %v997 = vpop.f32.mrb[0].mxu0
    %v998 = vadd.f32 %v221, %v997
    %v999 = vpop.f32.mrb[0].mxu0
    %1000 = vmatprep.mubr.f32.mxu0 0.0
    %v1001 = vand.u32 %v45, 4294901760
    %1002 = vmatmul.mubr.f32.gmra.mrb[0].mxu0 %v1001
    %v1003 = vpop.f32.mrb[0].mxu0
    %v1004 = vadd.f32 %v231, %v1003
    %v1005 = vpop.f32.mrb[0].mxu0
    %1006 = vmatprep.mubr.f32.mxu0 0.0
    %v1007 = vand.u32 %v46, 4294901760
    %1008 = vmatmul.mubr.f32.gmra.mrb[0].mxu0 %v1007
    %v1009 = vpop.f32.mrb[0].mxu0
    %v1010 = vadd.f32 %v241, %v1009
    %v1011 = vpop.f32.mrb[0].mxu0
    %1012 = vmatprep.mubr.f32.mxu0 0.0
    %v1013 = vand.u32 %v47, 4294901760
    %1014 = vmatmul.mubr.f32.gmra.mrb[0].mxu0 %v1013
    %v1015 = vpop.f32.mrb[0].mxu0
    %v1016 = vadd.f32 %v251, %v1015
    %v1017 = vpop.f32.mrb[0].mxu0
    %1018 = vmatprep.mubr.f32.mxu0 0.0
    %v1019 = vand.u32 %v48, 4294901760
    %1020 = vmatmul.mubr.f32.gmra.mrb[0].mxu0 %v1019
    %v1021 = vpop.f32.mrb[0].mxu0
    %v1022 = vadd.f32 %v261, %v1021
    %v1023 = vpop.f32.mrb[0].mxu0
    %1024 = vmatprep.mubr.f32.mxu0 0.0
    %v1025 = vand.u32 %v49, 4294901760
    %1026 = vmatmul.mubr.f32.gmra.mrb[0].mxu0 %v1025
    %v1027 = vpop.f32.mrb[0].mxu0
    %v1028 = vadd.f32 %v271, %v1027
    %v1029 = vpop.f32.mrb[0].mxu0
    %1030 = vmatprep.mubr.f32.mxu0 0.0
    %v1031 = vand.u32 %v50, 4294901760
    %1032 = vmatmul.mubr.f32.gmra.mrb[0].mxu0 %v1031
    %v1033 = vpop.f32.mrb[0].mxu0
    %v1034 = vadd.f32 %v281, %v1033
    %v1035 = vpop.f32.mrb[0].mxu0
    %1036 = vmatprep.mubr.f32.mxu0 0.0
    %v1037 = vand.u32 %v51, 4294901760
    %1038 = vmatmul.mubr.f32.gmra.mrb[0].mxu0 %v1037
    %v1039 = vpop.f32.mrb[0].mxu0
    %v1040 = vadd.f32 %v291, %v1039
    %v1041 = vpop.f32.mrb[0].mxu0
    %1042 = vmatprep.mubr.f32.mxu0 0.0
    %v1043 = vand.u32 %v52, 4294901760
    %1044 = vmatmul.mubr.f32.gmra.mrb[0].mxu0 %v1043
    %v1045 = vpop.f32.mrb[0].mxu0
    %v1046 = vadd.f32 %v301, %v1045
    %v1047 = vpop.f32.mrb[0].mxu0
    %1048 = vmatprep.mubr.f32.mxu0 0.0
    %v1049 = vand.u32 %v53, 4294901760
    %1050 = vmatmul.mubr.f32.gmra.mrb[0].mxu0 %v1049
    %v1051 = vpop.f32.mrb[0].mxu0
    %v1052 = vadd.f32 %v311, %v1051
    %v1053 = vpop.f32.mrb[0].mxu0
    %1054 = vmatprep.mubr.f32.mxu0 0.0
    %v1055 = vand.u32 %v54, 4294901760
    %1056 = vmatmul.mubr.f32.gmra.mrb[0].mxu0 %v1055
    %v1057 = vpop.f32.mrb[0].mxu0
    %v1058 = vadd.f32 %v321, %v1057
    %v1059 = vpop.f32.mrb[0].mxu0
    %1060 = vmatprep.mubr.f32.mxu0 0.0
    %v1061 = vand.u32 %v55, 4294901760
    %1062 = vmatmul.mubr.f32.gmra.mrb[0].mxu0 %v1061
    %v1063 = vpop.f32.mrb[0].mxu0
    %v1064 = vadd.f32 %v331, %v1063
    %v1065 = vpop.f32.mrb[0].mxu0
    %1066 = vmatprep.mubr.f32.mxu0 0.0
    %v1067 = vand.u32 %v56, 4294901760
    %1068 = vmatmul.mubr.f32.gmra.mrb[0].mxu0 %v1067
    %v1069 = vpop.f32.mrb[0].mxu0
    %v1070 = vadd.f32 %v341, %v1069
    %v1071 = vpop.f32.mrb[0].mxu0
    %1072 = vmatprep.mubr.f32.mxu0 0.0
    %v1073 = vand.u32 %v57, 4294901760
    %1074 = vmatmul.mubr.f32.gmra.mrb[0].mxu0 %v1073
    %v1075 = vpop.f32.mrb[0].mxu0
    %v1076 = vadd.f32 %v351, %v1075
    %v1077 = vpop.f32.mrb[0].mxu0
    %1078 = vmatprep.mubr.f32.mxu0 0.0
    %v1079 = vand.u32 %v58, 4294901760
    %1080 = vmatmul.mubr.f32.gmra.mrb[0].mxu0 %v1079
    %v1081 = vpop.f32.mrb[0].mxu0
    %v1082 = vadd.f32 %v361, %v1081
    %v1083 = vpop.f32.mrb[0].mxu0
    %1084 = vmatprep.mubr.f32.mxu0 0.0
    %v1085 = vand.u32 %v59, 4294901760
    %1086 = vmatmul.mubr.f32.gmra.mrb[0].mxu0 %v1085
    %v1087 = vpop.f32.mrb[0].mxu0
    %v1088 = vadd.f32 %v371, %v1087
    %v1089 = vpop.f32.mrb[0].mxu0
    %1090 = vmatprep.mubr.f32.mxu0 0.0
    %v1091 = vand.u32 %v60, 4294901760
    %1092 = vmatmul.mubr.f32.gmra.mrb[0].mxu0 %v1091
    %v1093 = vpop.f32.mrb[0].mxu0
    %v1094 = vadd.f32 %v381, %v1093
    %v1095 = vpop.f32.mrb[0].mxu0
    %1096 = vmatprep.mubr.f32.mxu0 0.0
    %v1097 = vand.u32 %v61, 4294901760
    %1098 = vmatmul.mubr.f32.gmra.mrb[0].mxu0 %v1097
    %v1099 = vpop.f32.mrb[0].mxu0
    %v1100 = vadd.f32 %v391, %v1099
    %v1101 = vpop.f32.mrb[0].mxu0
    %1102 = vmatprep.mubr.f32.mxu0 0.0
    %v1103 = vand.u32 %v62, 4294901760
    %1104 = vmatmul.mubr.f32.gmra.mrb[0].mxu0 %v1103
    %v1105 = vpop.f32.mrb[0].mxu0
    %v1106 = vadd.f32 %v401, %v1105
    %v1107 = vpop.f32.mrb[0].mxu0
    %1108 = vmatprep.mubr.f32.mxu0 0.0
    %v1109 = vand.u32 %v63, 4294901760
    %1110 = vmatmul.mubr.f32.gmra.mrb[0].mxu0 %v1109
    %v1111 = vpop.f32.mrb[0].mxu0
    %v1112 = vadd.f32 %v411, %v1111
    %v1113 = vpop.f32.mrb[0].mxu0
    %1114 = vmatprep.mubr.f32.mxu0 0.0
    %v1115 = vand.u32 %v64, 4294901760
    %1116 = vmatmul.mubr.f32.gmra.mrb[0].mxu0 %v1115
    %v1117 = vpop.f32.mrb[0].mxu0
    %v1118 = vadd.f32 %v421, %v1117
    %v1119 = vpop.f32.mrb[0].mxu0
    %1120 = vmatprep.mubr.f32.mxu0 0.0
    %v1121 = vand.u32 %v65, 4294901760
    %1122 = vmatmul.mubr.f32.gmra.mrb[0].mxu0 %v1121
    %v1123 = vpop.f32.mrb[0].mxu0
    %v1124 = vadd.f32 %v431, %v1123
    %v1125 = vpop.f32.mrb[0].mxu0
    %1126 = vmatprep.mubr.f32.mxu0 0.0
    %v1127 = vand.u32 %v66, 4294901760
    %1128 = vmatmul.mubr.f32.gmra.mrb[0].mxu0 %v1127
    %v1129 = vpop.f32.mrb[0].mxu0
    %v1130 = vadd.f32 %v441, %v1129
    %v1131 = vpop.f32.mrb[0].mxu0
    %1132 = vmatprep.mubr.f32.mxu0 0.0
    %v1133 = vand.u32 %v67, 4294901760
    %1134 = vmatmul.mubr.f32.gmra.mrb[0].mxu0 %v1133
    %v1135 = vpop.f32.mrb[0].mxu0
    %v1136 = vadd.f32 %v451, %v1135
    %v1137 = vpop.f32.mrb[0].mxu0
    %1138 = vmatprep.mubr.f32.mxu0 0.0
    %v1139 = vand.u32 %v68, 4294901760
    %1140 = vmatmul.mubr.f32.gmra.mrb[0].mxu0 %v1139
    %v1141 = vpop.f32.mrb[0].mxu0
    %v1142 = vadd.f32 %v461, %v1141
    %v1143 = vpop.f32.mrb[0].mxu0
    %1144 = vmatprep.mubr.f32.mxu0 0.0
    %v1145 = vand.u32 %v69, 4294901760
    %1146 = vmatmul.mubr.f32.gmra.mrb[0].mxu0 %v1145
    %v1147 = vpop.f32.mrb[0].mxu0
    %v1148 = vadd.f32 %v471, %v1147
    %v1149 = vpop.f32.mrb[0].mxu0
    %1150 = vmatprep.mubr.f32.mxu0 0.0
    %v1151 = vand.u32 %v70, 4294901760
    %1152 = vmatmul.mubr.f32.gmra.mrb[0].mxu0 %v1151
    %v1153 = vpop.f32.mrb[0].mxu0
    %v1154 = vadd.f32 %v481, %v1153
    %v1155 = vpop.f32.mrb[0].mxu0
    %1156 = vmatprep.mubr.f32.mxu0 0.0
    %v1157 = vand.u32 %v71, 4294901760
    %1158 = vmatmul.mubr.f32.gmra.mrb[0].mxu0 %v1157
    %v1159 = vpop.f32.mrb[0].mxu0
    %v1160 = vadd.f32 %v491, %v1159
    %v1161 = vpop.f32.mrb[0].mxu0
    %1162 = vmatprep.mubr.f32.mxu0 0.0
    %v1163 = vand.u32 %v72, 4294901760
    %1164 = vmatmul.mubr.f32.gmra.mrb[0].mxu0 %v1163
    %v1165 = vpop.f32.mrb[0].mxu0
    %v1166 = vadd.f32 %v501, %v1165
    %v1167 = vpop.f32.mrb[0].mxu0
    %1168 = vmatprep.mubr.f32.mxu0 0.0
    %v1169 = vand.u32 %v73, 4294901760
    %1170 = vmatmul.mubr.f32.gmra.mrb[0].mxu0 %v1169
    %v1171 = vpop.f32.mrb[0].mxu0
    %v1172 = vadd.f32 %v511, %v1171
    %v1173 = vpop.f32.mrb[0].mxu0
    %1174 = vmatprep.mubr.f32.mxu0 0.0
    %v1175 = vand.u32 %v74, 4294901760
    %1176 = vmatmul.mubr.f32.gmra.mrb[0].mxu0 %v1175
    %v1177 = vpop.f32.mrb[0].mxu0
    %v1178 = vadd.f32 %v521, %v1177
    %v1179 = vpop.f32.mrb[0].mxu0
    %1180 = vmatprep.mubr.f32.mxu0 0.0
    %v1181 = vand.u32 %v75, 4294901760
    %1182 = vmatmul.mubr.f32.gmra.mrb[0].mxu0 %v1181
    %v1183 = vpop.f32.mrb[0].mxu0
    %v1184 = vadd.f32 %v531, %v1183
    %v1185 = vpop.f32.mrb[0].mxu0
    %1186 = vmatprep.mubr.f32.mxu0 0.0
    %v1187 = vand.u32 %v76, 4294901760
    %1188 = vmatmul.mubr.f32.gmra.mrb[0].mxu0 %v1187
    %v1189 = vpop.f32.mrb[0].mxu0
    %v1190 = vadd.f32 %v541, %v1189
    %v1191 = vpop.f32.mrb[0].mxu0
    %1192 = vmatprep.mubr.f32.mxu0 0.0
    %v1193 = vand.u32 %v77, 4294901760
    %1194 = vmatmul.mubr.f32.gmra.mrb[0].mxu0 %v1193
    %v1195 = vpop.f32.mrb[0].mxu0
    %v1196 = vadd.f32 %v551, %v1195
    %v1197 = vpop.f32.mrb[0].mxu0
    %1198 = vmatprep.mubr.f32.mxu0 0.0
    %v1199 = vand.u32 %v78, 4294901760
    %1200 = vmatmul.mubr.f32.gmra.mrb[0].mxu0 %v1199
    %v1201 = vpop.f32.mrb[0].mxu0
    %v1202 = vadd.f32 %v561, %v1201
    %v1203 = vpop.f32.mrb[0].mxu0
    %1204 = vmatprep.mubr.f32.mxu0 0.0
    %v1205 = vand.u32 %v79, 4294901760
    %1206 = vmatmul.mubr.f32.gmra.mrb[0].mxu0 %v1205
    %v1207 = vpop.f32.mrb[0].mxu0
    %v1208 = vadd.f32 %v571, %v1207
    %v1209 = vpop.f32.mrb[0].mxu0
    %1210 = vmatprep.mubr.f32.mxu0 0.0
    %v1211 = vand.u32 %v80, 4294901760
    %1212 = vmatmul.mubr.f32.gmra.mrb[0].mxu0 %v1211
    %v1213 = vpop.f32.mrb[0].mxu0
    %v1214 = vadd.f32 %v581, %v1213
    %v1215 = vpop.f32.mrb[0].mxu0
    %1216 = vmatprep.mubr.f32.mxu0 0.0
    %v1217 = vand.u32 %v81, 4294901760
    %1218 = vmatmul.mubr.f32.gmra.mrb[0].mxu0 %v1217
    %v1219 = vpop.f32.mrb[0].mxu0
    %v1220 = vadd.f32 %v591, %v1219
    %v1221 = vpop.f32.mrb[0].mxu0
    %1222 = vmatprep.mubr.f32.mxu0 0.0
    %v1223 = vand.u32 %v82, 4294901760
    %1224 = vmatmul.mubr.f32.gmra.mrb[0].mxu0 %v1223
    %v1225 = vpop.f32.mrb[0].mxu0
    %v1226 = vadd.f32 %v601, %v1225
    %v1227 = vpop.f32.mrb[0].mxu0
    %1228 = vmatprep.mubr.f32.mxu0 0.0
    %v1229 = vand.u32 %v83, 4294901760
    %1230 = vmatmul.mubr.f32.gmra.mrb[0].mxu0 %v1229
    %v1231 = vpop.f32.mrb[0].mxu0
    %v1232 = vadd.f32 %v611, %v1231
    %v1233 = vpop.f32.mrb[0].mxu0
    %1234 = vmatprep.mubr.f32.mxu0 0.0
    %v1235 = vand.u32 %v84, 4294901760
    %1236 = vmatmul.mubr.f32.gmra.mrb[0].mxu0 %v1235
    %v1237 = vpop.f32.mrb[0].mxu0
    %v1238 = vadd.f32 %v621, %v1237
    %v1239 = vpop.f32.mrb[0].mxu0
    %1240 = vmatprep.mubr.f32.mxu0 0.0
    %v1241 = vand.u32 %v85, 4294901760
    %1242 = vmatmul.mubr.f32.gmra.mrb[0].mxu0 %v1241
    %v1243 = vpop.f32.mrb[0].mxu0
    %v1244 = vadd.f32 %v631, %v1243
    %v1245 = vpop.f32.mrb[0].mxu0
    %1246 = vmatprep.mubr.f32.mxu0 0.0
    %v1247 = vand.u32 %v86, 4294901760
    %1248 = vmatmul.mubr.f32.gmra.mrb[0].mxu0 %v1247
    %v1249 = vpop.f32.mrb[0].mxu0
    %v1250 = vadd.f32 %v641, %v1249
    %v1251 = vpop.f32.mrb[0].mxu0
    %1252 = vmatprep.mubr.f32.mxu0 0.0
    %v1253 = vand.u32 %v87, 4294901760
    %1254 = vmatmul.mubr.f32.gmra.mrb[0].mxu0 %v1253
    %v1255 = vpop.f32.mrb[0].mxu0
    %v1256 = vadd.f32 %v651, %v1255
    %v1257 = vpop.f32.mrb[0].mxu0
    %1258 = vmatprep.mubr.f32.mxu0 0.0
    %v1259 = vand.u32 %v88, 4294901760
    %1260 = vmatmul.mubr.f32.gmra.mrb[0].mxu0 %v1259
    %v1261 = vpop.f32.mrb[0].mxu0
    %v1262 = vadd.f32 %v661, %v1261
    %v1263 = vpop.f32.mrb[0].mxu0
    %1264 = vmatprep.mubr.f32.mxu0 0.0
    %v1265 = vand.u32 %v89, 4294901760
    %1266 = vmatmul.mubr.f32.gmra.mrb[0].mxu0 %v1265
    %v1267 = vpop.f32.mrb[0].mxu0
    %v1268 = vadd.f32 %v671, %v1267
    %v1269 = vpop.f32.mrb[0].mxu0
    %1270 = vmatprep.mubr.f32.mxu0 0.0
    %v1271 = vand.u32 %v90, 4294901760
    %1272 = vmatmul.mubr.f32.gmra.mrb[0].mxu0 %v1271
    %v1273 = vpop.f32.mrb[0].mxu0
    %v1274 = vadd.f32 %v681, %v1273
    %v1275 = vpop.f32.mrb[0].mxu0
    %1276 = vmatprep.mubr.f32.mxu0 0.0
    %v1277 = vand.u32 %v91, 4294901760
    %1278 = vmatmul.mubr.f32.gmra.mrb[0].mxu0 %v1277
    %v1279 = vpop.f32.mrb[0].mxu0
    %v1280 = vadd.f32 %v691, %v1279
    %v1281 = vpop.f32.mrb[0].mxu0
    %1282 = vmatprep.mubr.f32.mxu0 0.0
    %v1283 = vand.u32 %v92, 4294901760
    %1284 = vmatmul.mubr.f32.gmra.mrb[0].mxu0 %v1283
    %v1285 = vpop.f32.mrb[0].mxu0
    %v1286 = vadd.f32 %v701, %v1285
    %v1287 = vpop.f32.mrb[0].mxu0
    %1288 = vmatprep.mubr.f32.mxu0 0.0
    %v1289 = vand.u32 %v93, 4294901760
    %1290 = vmatmul.mubr.f32.gmra.mrb[0].mxu0 %v1289
    %v1291 = vpop.f32.mrb[0].mxu0
    %v1292 = vadd.f32 %v711, %v1291
    %v1293 = vpop.f32.mrb[0].mxu0
    %1294 = vmatprep.mubr.f32.mxu0 0.0
    %v1295 = vand.u32 %v94, 4294901760
    %1296 = vmatmul.mubr.f32.gmra.mrb[0].mxu0 %v1295
    %v1297 = vpop.f32.mrb[0].mxu0
    %v1298 = vadd.f32 %v721, %v1297
    %v1299 = vpop.f32.mrb[0].mxu0
    %1300 = vmatprep.mubr.f32.mxu0 0.0
    %v1301 = vand.u32 %v95, 4294901760
    %1302 = vmatmul.mubr.f32.gmra.mrb[0].mxu0 %v1301
    %v1303 = vpop.f32.mrb[0].mxu0
    %v1304 = vadd.f32 %v731, %v1303
    %v1305 = vpop.f32.mrb[0].mxu0
    %1306 = vmatprep.mubr.f32.mxu0 0.0
    %v1307 = vand.u32 %v96, 4294901760
    %1308 = vmatmul.mubr.f32.gmra.mrb[0].mxu0 %v1307
    %v1309 = vpop.f32.mrb[0].mxu0
    %v1310 = vadd.f32 %v741, %v1309
    %v1311 = vpop.f32.mrb[0].mxu0
    %1312 = vmatprep.mubr.f32.mxu0 0.0
    %v1313 = vand.u32 %v97, 4294901760
    %1314 = vmatmul.mubr.f32.gmra.mrb[0].mxu0 %v1313
    %v1315 = vpop.f32.mrb[0].mxu0
    %v1316 = vadd.f32 %v751, %v1315
    %v1317 = vpop.f32.mrb[0].mxu0
    %1318 = vmatprep.mubr.f32.mxu0 0.0
    %v1319 = vand.u32 %v98, 4294901760
    %1320 = vmatmul.mubr.f32.gmra.mrb[0].mxu0 %v1319
    %v1321 = vpop.f32.mrb[0].mxu0
    %v1322 = vadd.f32 %v761, %v1321
    %v1323 = vpop.f32.mrb[0].mxu0
    %1324 = vmatprep.mubr.f32.mxu0 0.0
    %v1325 = vand.u32 %v99, 4294901760
    %1326 = vmatmul.mubr.f32.gmra.mrb[0].mxu0 %v1325
    %v1327 = vpop.f32.mrb[0].mxu0
    %v1328 = vadd.f32 %v771, %v1327
    %v1329 = vpop.f32.mrb[0].mxu0
    %1330 = vmatprep.mubr.f32.mxu0 0.0
    %v1331 = vand.u32 %v100, 4294901760
    %1332 = vmatmul.mubr.f32.gmra.mrb[0].mxu0 %v1331
    %v1333 = vpop.f32.mrb[0].mxu0
    %v1334 = vadd.f32 %v781, %v1333
    %v1335 = vpop.f32.mrb[0].mxu0
    %1336 = vmatprep.mubr.f32.mxu0 0.0
    %v1337 = vand.u32 %v101, 4294901760
    %1338 = vmatmul.mubr.f32.gmra.mrb[0].mxu0 %v1337
    %v1339 = vpop.f32.mrb[0].mxu0
    %v1340 = vadd.f32 %v791, %v1339
    %v1341 = vpop.f32.mrb[0].mxu0
    %1342 = vmatprep.mubr.f32.mxu0 0.0
    %v1343 = vand.u32 %v102, 4294901760
    %1344 = vmatmul.mubr.f32.gmra.mrb[0].mxu0 %v1343
    %v1345 = vpop.f32.mrb[0].mxu0
    %v1346 = vadd.f32 %v801, %v1345
    %v1347 = vpop.f32.mrb[0].mxu0
    %1348 = vmatprep.mubr.f32.mxu0 0.0
    %v1349 = vand.u32 %v103, 4294901760
    %1350 = vmatmul.mubr.f32.gmra.mrb[0].mxu0 %v1349
    %v1351 = vpop.f32.mrb[0].mxu0
    %v1352 = vadd.f32 %v811, %v1351
    %v1353 = vpop.f32.mrb[0].mxu0
    %1354 = vmatprep.mubr.f32.mxu0 0.0
    %v1355 = vand.u32 %v104, 4294901760
    %1356 = vmatmul.mubr.f32.gmra.mrb[0].mxu0 %v1355
    %v1357 = vpop.f32.mrb[0].mxu0
    %v1358 = vadd.f32 %v821, %v1357
    %v1359 = vpop.f32.mrb[0].mxu0
    %1360 = vmatprep.mubr.f32.mxu0 0.0
    %v1361 = vand.u32 %v105, 4294901760
    %1362 = vmatmul.mubr.f32.gmra.mrb[0].mxu0 %v1361
    %v1363 = vpop.f32.mrb[0].mxu0
    %v1364 = vadd.f32 %v831, %v1363
    %v1365 = vpop.f32.mrb[0].mxu0
    %1366 = vmatprep.mubr.f32.mxu0 0.0
    %v1367 = vand.u32 %v106, 4294901760
    %1368 = vmatmul.mubr.f32.gmra.mrb[0].mxu0 %v1367
    %v1369 = vpop.f32.mrb[0].mxu0
    %v1370 = vadd.f32 %v841, %v1369
    %v1371 = vpop.f32.mrb[0].mxu0
    %1372 = vdwg.mxu0
    %1373 = vmatprep.subr.mxu0 0.0
    %v1374 = vand.u32 %v107, 4294901760
    %v1375 = vsub.f32 %v107, %v1374
    %1376 = vmatpush1.msra.mxu0 %v1375
    %1377 = vmatprep.subr.mxu0 0.0
    %v1378 = vand.u32 %v108, 4294901760
    %v1379 = vsub.f32 %v108, %v1378
    %1380 = vmatpush1.msra.mxu0 %v1379
    %1381 = vmatprep.subr.mxu0 0.0
    %v1382 = vand.u32 %v109, 4294901760
    %v1383 = vsub.f32 %v109, %v1382
    %1384 = vmatpush1.msra.mxu0 %v1383
    %1385 = vmatprep.subr.mxu0 0.0
    %v1386 = vand.u32 %v110, 4294901760
    %v1387 = vsub.f32 %v110, %v1386
    %1388 = vmatpush1.msra.mxu0 %v1387
    %1389 = vmatprep.subr.mxu0 0.0
    %v1390 = vand.u32 %v111, 4294901760
    %v1391 = vsub.f32 %v111, %v1390
    %1392 = vmatpush1.msra.mxu0 %v1391
    %1393 = vmatprep.subr.mxu0 0.0
    %v1394 = vand.u32 %v112, 4294901760
    %v1395 = vsub.f32 %v112, %v1394
    %1396 = vmatpush1.msra.mxu0 %v1395
    %1397 = vmatprep.subr.mxu0 0.0
    %v1398 = vand.u32 %v113, 4294901760
    %v1399 = vsub.f32 %v113, %v1398
    %1400 = vmatpush1.msra.mxu0 %v1399
    %1401 = vmatprep.subr.mxu0 0.0
    %v1402 = vand.u32 %v114, 4294901760
    %v1403 = vsub.f32 %v114, %v1402
    %1404 = vmatpush1.msra.mxu0 %v1403
    %1405 = vmatprep.subr.mxu0 0.0
    %v1406 = vand.u32 %v115, 4294901760
    %v1407 = vsub.f32 %v115, %v1406
    %1408 = vmatpush1.msra.mxu0 %v1407
    %1409 = vmatprep.subr.mxu0 0.0
    %v1410 = vand.u32 %v116, 4294901760
    %v1411 = vsub.f32 %v116, %v1410
    %1412 = vmatpush1.msra.mxu0 %v1411
    %1413 = vmatprep.subr.mxu0 0.0
    %v1414 = vand.u32 %v117, 4294901760
    %v1415 = vsub.f32 %v117, %v1414
    %1416 = vmatpush1.msra.mxu0 %v1415
    %1417 = vmatprep.subr.mxu0 0.0
    %v1418 = vand.u32 %v118, 4294901760
    %v1419 = vsub.f32 %v118, %v1418
    %1420 = vmatpush1.msra.mxu0 %v1419
    %1421 = vmatprep.subr.mxu0 0.0
    %v1422 = vand.u32 %v119, 4294901760
    %v1423 = vsub.f32 %v119, %v1422
    %1424 = vmatpush1.msra.mxu0 %v1423
    %1425 = vmatprep.subr.mxu0 0.0
    %v1426 = vand.u32 %v120, 4294901760
    %v1427 = vsub.f32 %v120, %v1426
    %1428 = vmatpush1.msra.mxu0 %v1427
    %1429 = vmatprep.subr.mxu0 0.0
    %v1430 = vand.u32 %v121, 4294901760
    %v1431 = vsub.f32 %v121, %v1430
    %1432 = vmatpush1.msra.mxu0 %v1431
    %1433 = vmatprep.subr.mxu0 0.0
    %v1434 = vand.u32 %v122, 4294901760
    %v1435 = vsub.f32 %v122, %v1434
    %1436 = vmatpush1.msra.mxu0 %v1435
    %1437 = vmatprep.subr.mxu0 0.0
    %1438 = vmatpush1.msra.mxu0 0.0
    %1439 = vmatprep.subr.mxu0 0.0
    %1440 = vmatpush1.msra.mxu0 0.0
    %1441 = vmatprep.subr.mxu0 0.0
    %1442 = vmatpush1.msra.mxu0 0.0
    %1443 = vmatprep.subr.mxu0 0.0
    %1444 = vmatpush1.msra.mxu0 0.0
    %1445 = vmatprep.subr.mxu0 0.0
    %1446 = vmatpush1.msra.mxu0 0.0
    %1447 = vmatprep.subr.mxu0 0.0
    %1448 = vmatpush1.msra.mxu0 0.0
    %1449 = vmatprep.subr.mxu0 0.0
    %1450 = vmatpush1.msra.mxu0 0.0
    %1451 = vmatprep.subr.mxu0 0.0
    %1452 = vmatpush1.msra.mxu0 0.0
    %1453 = vmatprep.subr.mxu0 0.0
    %1454 = vmatpush1.msra.mxu0 0.0
    %1455 = vmatprep.subr.mxu0 0.0
    %1456 = vmatpush1.msra.mxu0 0.0
    %1457 = vmatprep.subr.mxu0 0.0
    %1458 = vmatpush1.msra.mxu0 0.0
    %1459 = vmatprep.subr.mxu0 0.0
    %1460 = vmatpush1.msra.mxu0 0.0
    %1461 = vmatprep.subr.mxu0 0.0
    %1462 = vmatpush1.msra.mxu0 0.0
    %1463 = vmatprep.subr.mxu0 0.0
    %1464 = vmatpush1.msra.mxu0 0.0
    %1465 = vmatprep.subr.mxu0 0.0
    %1466 = vmatpush1.msra.mxu0 0.0
    %1467 = vmatprep.subr.mxu0 0.0
    %1468 = vmatpush1.msra.mxu0 0.0
    %1469 = vmatprep.mubr.f32.mxu0 0.0
    %v1470 = vand.u32 %v43, 4294901760
    %v1471 = vsub.f32 %v43, %v1470
    %1472 = vmatmul.mubr.f32.gmra.mrb[0].mxu0 %v1471
    %v1473 = vpop.f32.mrb[0].mxu0
    %v1474 = vadd.f32 %v992, %v1473
    %v1475 = vpop.f32.mrb[0].mxu0
    %1476 = vmatprep.mubr.f32.mxu0 0.0
    %v1477 = vand.u32 %v44, 4294901760
    %v1478 = vsub.f32 %v44, %v1477
    %1479 = vmatmul.mubr.f32.gmra.mrb[0].mxu0 %v1478
    %v1480 = vpop.f32.mrb[0].mxu0
    %v1481 = vadd.f32 %v998, %v1480
    %v1482 = vpop.f32.mrb[0].mxu0
    %1483 = vmatprep.mubr.f32.mxu0 0.0
    %v1484 = vand.u32 %v45, 4294901760
    %v1485 = vsub.f32 %v45, %v1484
    %1486 = vmatmul.mubr.f32.gmra.mrb[0].mxu0 %v1485
    %v1487 = vpop.f32.mrb[0].mxu0
    %v1488 = vadd.f32 %v1004, %v1487
    %v1489 = vpop.f32.mrb[0].mxu0
    %1490 = vmatprep.mubr.f32.mxu0 0.0
    %v1491 = vand.u32 %v46, 4294901760
    %v1492 = vsub.f32 %v46, %v1491
    %1493 = vmatmul.mubr.f32.gmra.mrb[0].mxu0 %v1492
    %v1494 = vpop.f32.mrb[0].mxu0
    %v1495 = vadd.f32 %v1010, %v1494
    %v1496 = vpop.f32.mrb[0].mxu0
    %1497 = vmatprep.mubr.f32.mxu0 0.0
    %v1498 = vand.u32 %v47, 4294901760
    %v1499 = vsub.f32 %v47, %v1498
    %1500 = vmatmul.mubr.f32.gmra.mrb[0].mxu0 %v1499
    %v1501 = vpop.f32.mrb[0].mxu0
    %v1502 = vadd.f32 %v1016, %v1501
    %v1503 = vpop.f32.mrb[0].mxu0
    %1504 = vmatprep.mubr.f32.mxu0 0.0
    %v1505 = vand.u32 %v48, 4294901760
    %v1506 = vsub.f32 %v48, %v1505
    %1507 = vmatmul.mubr.f32.gmra.mrb[0].mxu0 %v1506
    %v1508 = vpop.f32.mrb[0].mxu0
    %v1509 = vadd.f32 %v1022, %v1508
    %v1510 = vpop.f32.mrb[0].mxu0
    %1511 = vmatprep.mubr.f32.mxu0 0.0
    %v1512 = vand.u32 %v49, 4294901760
    %v1513 = vsub.f32 %v49, %v1512
    %1514 = vmatmul.mubr.f32.gmra.mrb[0].mxu0 %v1513
    %v1515 = vpop.f32.mrb[0].mxu0
    %v1516 = vadd.f32 %v1028, %v1515
    %v1517 = vpop.f32.mrb[0].mxu0
    %1518 = vmatprep.mubr.f32.mxu0 0.0
    %v1519 = vand.u32 %v50, 4294901760
    %v1520 = vsub.f32 %v50, %v1519
    %1521 = vmatmul.mubr.f32.gmra.mrb[0].mxu0 %v1520
    %v1522 = vpop.f32.mrb[0].mxu0
    %v1523 = vadd.f32 %v1034, %v1522
    %v1524 = vpop.f32.mrb[0].mxu0
    %1525 = vmatprep.mubr.f32.mxu0 0.0
    %v1526 = vand.u32 %v51, 4294901760
    %v1527 = vsub.f32 %v51, %v1526
    %1528 = vmatmul.mubr.f32.gmra.mrb[0].mxu0 %v1527
    %v1529 = vpop.f32.mrb[0].mxu0
    %v1530 = vadd.f32 %v1040, %v1529
    %v1531 = vpop.f32.mrb[0].mxu0
    %1532 = vmatprep.mubr.f32.mxu0 0.0
    %v1533 = vand.u32 %v52, 4294901760
    %v1534 = vsub.f32 %v52, %v1533
    %1535 = vmatmul.mubr.f32.gmra.mrb[0].mxu0 %v1534
    %v1536 = vpop.f32.mrb[0].mxu0
    %v1537 = vadd.f32 %v1046, %v1536
    %v1538 = vpop.f32.mrb[0].mxu0
    %1539 = vmatprep.mubr.f32.mxu0 0.0
    %v1540 = vand.u32 %v53, 4294901760
    %v1541 = vsub.f32 %v53, %v1540
    %1542 = vmatmul.mubr.f32.gmra.mrb[0].mxu0 %v1541
    %v1543 = vpop.f32.mrb[0].mxu0
    %v1544 = vadd.f32 %v1052, %v1543
    %v1545 = vpop.f32.mrb[0].mxu0
    %1546 = vmatprep.mubr.f32.mxu0 0.0
    %v1547 = vand.u32 %v54, 4294901760
    %v1548 = vsub.f32 %v54, %v1547
    %1549 = vmatmul.mubr.f32.gmra.mrb[0].mxu0 %v1548
    %v1550 = vpop.f32.mrb[0].mxu0
    %v1551 = vadd.f32 %v1058, %v1550
    %v1552 = vpop.f32.mrb[0].mxu0
    %1553 = vmatprep.mubr.f32.mxu0 0.0
    %v1554 = vand.u32 %v55, 4294901760
    %v1555 = vsub.f32 %v55, %v1554
    %1556 = vmatmul.mubr.f32.gmra.mrb[0].mxu0 %v1555
    %v1557 = vpop.f32.mrb[0].mxu0
    %v1558 = vadd.f32 %v1064, %v1557
    %v1559 = vpop.f32.mrb[0].mxu0
    %1560 = vmatprep.mubr.f32.mxu0 0.0
    %v1561 = vand.u32 %v56, 4294901760
    %v1562 = vsub.f32 %v56, %v1561
    %1563 = vmatmul.mubr.f32.gmra.mrb[0].mxu0 %v1562
    %v1564 = vpop.f32.mrb[0].mxu0
    %v1565 = vadd.f32 %v1070, %v1564
    %v1566 = vpop.f32.mrb[0].mxu0
    %1567 = vmatprep.mubr.f32.mxu0 0.0
    %v1568 = vand.u32 %v57, 4294901760
    %v1569 = vsub.f32 %v57, %v1568
    %1570 = vmatmul.mubr.f32.gmra.mrb[0].mxu0 %v1569
    %v1571 = vpop.f32.mrb[0].mxu0
    %v1572 = vadd.f32 %v1076, %v1571
    %v1573 = vpop.f32.mrb[0].mxu0
    %1574 = vmatprep.mubr.f32.mxu0 0.0
    %v1575 = vand.u32 %v58, 4294901760
    %v1576 = vsub.f32 %v58, %v1575
    %1577 = vmatmul.mubr.f32.gmra.mrb[0].mxu0 %v1576
    %v1578 = vpop.f32.mrb[0].mxu0
    %v1579 = vadd.f32 %v1082, %v1578
    %v1580 = vpop.f32.mrb[0].mxu0
    %1581 = vmatprep.mubr.f32.mxu0 0.0
    %v1582 = vand.u32 %v59, 4294901760
    %v1583 = vsub.f32 %v59, %v1582
    %1584 = vmatmul.mubr.f32.gmra.mrb[0].mxu0 %v1583
    %v1585 = vpop.f32.mrb[0].mxu0
    %v1586 = vadd.f32 %v1088, %v1585
    %v1587 = vpop.f32.mrb[0].mxu0
    %1588 = vmatprep.mubr.f32.mxu0 0.0
    %v1589 = vand.u32 %v60, 4294901760
    %v1590 = vsub.f32 %v60, %v1589
    %1591 = vmatmul.mubr.f32.gmra.mrb[0].mxu0 %v1590
    %v1592 = vpop.f32.mrb[0].mxu0
    %v1593 = vadd.f32 %v1094, %v1592
    %v1594 = vpop.f32.mrb[0].mxu0
    %1595 = vmatprep.mubr.f32.mxu0 0.0
    %v1596 = vand.u32 %v61, 4294901760
    %v1597 = vsub.f32 %v61, %v1596
    %1598 = vmatmul.mubr.f32.gmra.mrb[0].mxu0 %v1597
    %v1599 = vpop.f32.mrb[0].mxu0
    %v1600 = vadd.f32 %v1100, %v1599
    %v1601 = vpop.f32.mrb[0].mxu0
    %1602 = vmatprep.mubr.f32.mxu0 0.0
    %v1603 = vand.u32 %v62, 4294901760
    %v1604 = vsub.f32 %v62, %v1603
    %1605 = vmatmul.mubr.f32.gmra.mrb[0].mxu0 %v1604
    %v1606 = vpop.f32.mrb[0].mxu0
    %v1607 = vadd.f32 %v1106, %v1606
    %v1608 = vpop.f32.mrb[0].mxu0
    %1609 = vmatprep.mubr.f32.mxu0 0.0
    %v1610 = vand.u32 %v63, 4294901760
    %v1611 = vsub.f32 %v63, %v1610
    %1612 = vmatmul.mubr.f32.gmra.mrb[0].mxu0 %v1611
    %v1613 = vpop.f32.mrb[0].mxu0
    %v1614 = vadd.f32 %v1112, %v1613
    %v1615 = vpop.f32.mrb[0].mxu0
    %1616 = vmatprep.mubr.f32.mxu0 0.0
    %v1617 = vand.u32 %v64, 4294901760
    %v1618 = vsub.f32 %v64, %v1617
    %1619 = vmatmul.mubr.f32.gmra.mrb[0].mxu0 %v1618
    %v1620 = vpop.f32.mrb[0].mxu0
    %v1621 = vadd.f32 %v1118, %v1620
    %v1622 = vpop.f32.mrb[0].mxu0
    %1623 = vmatprep.mubr.f32.mxu0 0.0
    %v1624 = vand.u32 %v65, 4294901760
    %v1625 = vsub.f32 %v65, %v1624
    %1626 = vmatmul.mubr.f32.gmra.mrb[0].mxu0 %v1625
    %v1627 = vpop.f32.mrb[0].mxu0
    %v1628 = vadd.f32 %v1124, %v1627
    %v1629 = vpop.f32.mrb[0].mxu0
    %1630 = vmatprep.mubr.f32.mxu0 0.0
    %v1631 = vand.u32 %v66, 4294901760
    %v1632 = vsub.f32 %v66, %v1631
    %1633 = vmatmul.mubr.f32.gmra.mrb[0].mxu0 %v1632
    %v1634 = vpop.f32.mrb[0].mxu0
    %v1635 = vadd.f32 %v1130, %v1634
    %v1636 = vpop.f32.mrb[0].mxu0
    %1637 = vmatprep.mubr.f32.mxu0 0.0
    %v1638 = vand.u32 %v67, 4294901760
    %v1639 = vsub.f32 %v67, %v1638
    %1640 = vmatmul.mubr.f32.gmra.mrb[0].mxu0 %v1639
    %v1641 = vpop.f32.mrb[0].mxu0
    %v1642 = vadd.f32 %v1136, %v1641
    %v1643 = vpop.f32.mrb[0].mxu0
    %1644 = vmatprep.mubr.f32.mxu0 0.0
    %v1645 = vand.u32 %v68, 4294901760
    %v1646 = vsub.f32 %v68, %v1645
    %1647 = vmatmul.mubr.f32.gmra.mrb[0].mxu0 %v1646
    %v1648 = vpop.f32.mrb[0].mxu0
    %v1649 = vadd.f32 %v1142, %v1648
    %v1650 = vpop.f32.mrb[0].mxu0
    %1651 = vmatprep.mubr.f32.mxu0 0.0
    %v1652 = vand.u32 %v69, 4294901760
    %v1653 = vsub.f32 %v69, %v1652
    %1654 = vmatmul.mubr.f32.gmra.mrb[0].mxu0 %v1653
    %v1655 = vpop.f32.mrb[0].mxu0
    %v1656 = vadd.f32 %v1148, %v1655
    %v1657 = vpop.f32.mrb[0].mxu0
    %1658 = vmatprep.mubr.f32.mxu0 0.0
    %v1659 = vand.u32 %v70, 4294901760
    %v1660 = vsub.f32 %v70, %v1659
    %1661 = vmatmul.mubr.f32.gmra.mrb[0].mxu0 %v1660
    %v1662 = vpop.f32.mrb[0].mxu0
    %v1663 = vadd.f32 %v1154, %v1662
    %v1664 = vpop.f32.mrb[0].mxu0
    %1665 = vmatprep.mubr.f32.mxu0 0.0
    %v1666 = vand.u32 %v71, 4294901760
    %v1667 = vsub.f32 %v71, %v1666
    %1668 = vmatmul.mubr.f32.gmra.mrb[0].mxu0 %v1667
    %v1669 = vpop.f32.mrb[0].mxu0
    %v1670 = vadd.f32 %v1160, %v1669
    %v1671 = vpop.f32.mrb[0].mxu0
    %1672 = vmatprep.mubr.f32.mxu0 0.0
    %v1673 = vand.u32 %v72, 4294901760
    %v1674 = vsub.f32 %v72, %v1673
    %1675 = vmatmul.mubr.f32.gmra.mrb[0].mxu0 %v1674
    %v1676 = vpop.f32.mrb[0].mxu0
    %v1677 = vadd.f32 %v1166, %v1676
    %v1678 = vpop.f32.mrb[0].mxu0
    %1679 = vmatprep.mubr.f32.mxu0 0.0
    %v1680 = vand.u32 %v73, 4294901760
    %v1681 = vsub.f32 %v73, %v1680
    %1682 = vmatmul.mubr.f32.gmra.mrb[0].mxu0 %v1681
    %v1683 = vpop.f32.mrb[0].mxu0
    %v1684 = vadd.f32 %v1172, %v1683
    %v1685 = vpop.f32.mrb[0].mxu0
    %1686 = vmatprep.mubr.f32.mxu0 0.0
    %v1687 = vand.u32 %v74, 4294901760
    %v1688 = vsub.f32 %v74, %v1687
    %1689 = vmatmul.mubr.f32.gmra.mrb[0].mxu0 %v1688
    %v1690 = vpop.f32.mrb[0].mxu0
    %v1691 = vadd.f32 %v1178, %v1690
    %v1692 = vpop.f32.mrb[0].mxu0
    %1693 = vmatprep.mubr.f32.mxu0 0.0
    %v1694 = vand.u32 %v75, 4294901760
    %v1695 = vsub.f32 %v75, %v1694
    %1696 = vmatmul.mubr.f32.gmra.mrb[0].mxu0 %v1695
    %v1697 = vpop.f32.mrb[0].mxu0
    %v1698 = vadd.f32 %v1184, %v1697
    %v1699 = vpop.f32.mrb[0].mxu0
    %1700 = vmatprep.mubr.f32.mxu0 0.0
    %v1701 = vand.u32 %v76, 4294901760
    %v1702 = vsub.f32 %v76, %v1701
    %1703 = vmatmul.mubr.f32.gmra.mrb[0].mxu0 %v1702
    %v1704 = vpop.f32.mrb[0].mxu0
    %v1705 = vadd.f32 %v1190, %v1704
    %v1706 = vpop.f32.mrb[0].mxu0
    %1707 = vmatprep.mubr.f32.mxu0 0.0
    %v1708 = vand.u32 %v77, 4294901760
    %v1709 = vsub.f32 %v77, %v1708
    %1710 = vmatmul.mubr.f32.gmra.mrb[0].mxu0 %v1709
    %v1711 = vpop.f32.mrb[0].mxu0
    %v1712 = vadd.f32 %v1196, %v1711
    %v1713 = vpop.f32.mrb[0].mxu0
    %1714 = vmatprep.mubr.f32.mxu0 0.0
    %v1715 = vand.u32 %v78, 4294901760
    %v1716 = vsub.f32 %v78, %v1715
    %1717 = vmatmul.mubr.f32.gmra.mrb[0].mxu0 %v1716
    %v1718 = vpop.f32.mrb[0].mxu0
    %v1719 = vadd.f32 %v1202, %v1718
    %v1720 = vpop.f32.mrb[0].mxu0
    %1721 = vmatprep.mubr.f32.mxu0 0.0
    %v1722 = vand.u32 %v79, 4294901760
    %v1723 = vsub.f32 %v79, %v1722
    %1724 = vmatmul.mubr.f32.gmra.mrb[0].mxu0 %v1723
    %v1725 = vpop.f32.mrb[0].mxu0
    %v1726 = vadd.f32 %v1208, %v1725
    %v1727 = vpop.f32.mrb[0].mxu0
    %1728 = vmatprep.mubr.f32.mxu0 0.0
    %v1729 = vand.u32 %v80, 4294901760
    %v1730 = vsub.f32 %v80, %v1729
    %1731 = vmatmul.mubr.f32.gmra.mrb[0].mxu0 %v1730
    %v1732 = vpop.f32.mrb[0].mxu0
    %v1733 = vadd.f32 %v1214, %v1732
    %v1734 = vpop.f32.mrb[0].mxu0
    %1735 = vmatprep.mubr.f32.mxu0 0.0
    %v1736 = vand.u32 %v81, 4294901760
    %v1737 = vsub.f32 %v81, %v1736
    %1738 = vmatmul.mubr.f32.gmra.mrb[0].mxu0 %v1737
    %v1739 = vpop.f32.mrb[0].mxu0
    %v1740 = vadd.f32 %v1220, %v1739
    %v1741 = vpop.f32.mrb[0].mxu0
    %1742 = vmatprep.mubr.f32.mxu0 0.0
    %v1743 = vand.u32 %v82, 4294901760
    %v1744 = vsub.f32 %v82, %v1743
    %1745 = vmatmul.mubr.f32.gmra.mrb[0].mxu0 %v1744
    %v1746 = vpop.f32.mrb[0].mxu0
    %v1747 = vadd.f32 %v1226, %v1746
    %v1748 = vpop.f32.mrb[0].mxu0
    %1749 = vmatprep.mubr.f32.mxu0 0.0
    %v1750 = vand.u32 %v83, 4294901760
    %v1751 = vsub.f32 %v83, %v1750
    %1752 = vmatmul.mubr.f32.gmra.mrb[0].mxu0 %v1751
    %v1753 = vpop.f32.mrb[0].mxu0
    %v1754 = vadd.f32 %v1232, %v1753
    %v1755 = vpop.f32.mrb[0].mxu0
    %1756 = vmatprep.mubr.f32.mxu0 0.0
    %v1757 = vand.u32 %v84, 4294901760
    %v1758 = vsub.f32 %v84, %v1757
    %1759 = vmatmul.mubr.f32.gmra.mrb[0].mxu0 %v1758
    %v1760 = vpop.f32.mrb[0].mxu0
    %v1761 = vadd.f32 %v1238, %v1760
    %v1762 = vpop.f32.mrb[0].mxu0
    %1763 = vmatprep.mubr.f32.mxu0 0.0
    %v1764 = vand.u32 %v85, 4294901760
    %v1765 = vsub.f32 %v85, %v1764
    %1766 = vmatmul.mubr.f32.gmra.mrb[0].mxu0 %v1765
    %v1767 = vpop.f32.mrb[0].mxu0
    %v1768 = vadd.f32 %v1244, %v1767
    %v1769 = vpop.f32.mrb[0].mxu0
    %1770 = vmatprep.mubr.f32.mxu0 0.0
    %v1771 = vand.u32 %v86, 4294901760
    %v1772 = vsub.f32 %v86, %v1771
    %1773 = vmatmul.mubr.f32.gmra.mrb[0].mxu0 %v1772
    %v1774 = vpop.f32.mrb[0].mxu0
    %v1775 = vadd.f32 %v1250, %v1774
    %v1776 = vpop.f32.mrb[0].mxu0
    %1777 = vmatprep.mubr.f32.mxu0 0.0
    %v1778 = vand.u32 %v87, 4294901760
    %v1779 = vsub.f32 %v87, %v1778
    %1780 = vmatmul.mubr.f32.gmra.mrb[0].mxu0 %v1779
    %v1781 = vpop.f32.mrb[0].mxu0
    %v1782 = vadd.f32 %v1256, %v1781
    %v1783 = vpop.f32.mrb[0].mxu0
    %1784 = vmatprep.mubr.f32.mxu0 0.0
    %v1785 = vand.u32 %v88, 4294901760
    %v1786 = vsub.f32 %v88, %v1785
    %1787 = vmatmul.mubr.f32.gmra.mrb[0].mxu0 %v1786
    %v1788 = vpop.f32.mrb[0].mxu0
    %v1789 = vadd.f32 %v1262, %v1788
    %v1790 = vpop.f32.mrb[0].mxu0
    %1791 = vmatprep.mubr.f32.mxu0 0.0
    %v1792 = vand.u32 %v89, 4294901760
    %v1793 = vsub.f32 %v89, %v1792
    %1794 = vmatmul.mubr.f32.gmra.mrb[0].mxu0 %v1793
    %v1795 = vpop.f32.mrb[0].mxu0
    %v1796 = vadd.f32 %v1268, %v1795
    %v1797 = vpop.f32.mrb[0].mxu0
    %1798 = vmatprep.mubr.f32.mxu0 0.0
    %v1799 = vand.u32 %v90, 4294901760
    %v1800 = vsub.f32 %v90, %v1799
    %1801 = vmatmul.mubr.f32.gmra.mrb[0].mxu0 %v1800
    %v1802 = vpop.f32.mrb[0].mxu0
    %v1803 = vadd.f32 %v1274, %v1802
    %v1804 = vpop.f32.mrb[0].mxu0
    %1805 = vmatprep.mubr.f32.mxu0 0.0
    %v1806 = vand.u32 %v91, 4294901760
    %v1807 = vsub.f32 %v91, %v1806
    %1808 = vmatmul.mubr.f32.gmra.mrb[0].mxu0 %v1807
    %v1809 = vpop.f32.mrb[0].mxu0
    %v1810 = vadd.f32 %v1280, %v1809
    %v1811 = vpop.f32.mrb[0].mxu0
    %1812 = vmatprep.mubr.f32.mxu0 0.0
    %v1813 = vand.u32 %v92, 4294901760
    %v1814 = vsub.f32 %v92, %v1813
    %1815 = vmatmul.mubr.f32.gmra.mrb[0].mxu0 %v1814
    %v1816 = vpop.f32.mrb[0].mxu0
    %v1817 = vadd.f32 %v1286, %v1816
    %v1818 = vpop.f32.mrb[0].mxu0
    %1819 = vmatprep.mubr.f32.mxu0 0.0
    %v1820 = vand.u32 %v93, 4294901760
    %v1821 = vsub.f32 %v93, %v1820
    %1822 = vmatmul.mubr.f32.gmra.mrb[0].mxu0 %v1821
    %v1823 = vpop.f32.mrb[0].mxu0
    %v1824 = vadd.f32 %v1292, %v1823
    %v1825 = vpop.f32.mrb[0].mxu0
    %1826 = vmatprep.mubr.f32.mxu0 0.0
    %v1827 = vand.u32 %v94, 4294901760
    %v1828 = vsub.f32 %v94, %v1827
    %1829 = vmatmul.mubr.f32.gmra.mrb[0].mxu0 %v1828
    %v1830 = vpop.f32.mrb[0].mxu0
    %v1831 = vadd.f32 %v1298, %v1830
    %v1832 = vpop.f32.mrb[0].mxu0
    %1833 = vmatprep.mubr.f32.mxu0 0.0
    %v1834 = vand.u32 %v95, 4294901760
    %v1835 = vsub.f32 %v95, %v1834
    %1836 = vmatmul.mubr.f32.gmra.mrb[0].mxu0 %v1835
    %v1837 = vpop.f32.mrb[0].mxu0
    %v1838 = vadd.f32 %v1304, %v1837
    %v1839 = vpop.f32.mrb[0].mxu0
    %1840 = vmatprep.mubr.f32.mxu0 0.0
    %v1841 = vand.u32 %v96, 4294901760
    %v1842 = vsub.f32 %v96, %v1841
    %1843 = vmatmul.mubr.f32.gmra.mrb[0].mxu0 %v1842
    %v1844 = vpop.f32.mrb[0].mxu0
    %v1845 = vadd.f32 %v1310, %v1844
    %v1846 = vpop.f32.mrb[0].mxu0
    %1847 = vmatprep.mubr.f32.mxu0 0.0
    %v1848 = vand.u32 %v97, 4294901760
    %v1849 = vsub.f32 %v97, %v1848
    %1850 = vmatmul.mubr.f32.gmra.mrb[0].mxu0 %v1849
    %v1851 = vpop.f32.mrb[0].mxu0
    %v1852 = vadd.f32 %v1316, %v1851
    %v1853 = vpop.f32.mrb[0].mxu0
    %1854 = vmatprep.mubr.f32.mxu0 0.0
    %v1855 = vand.u32 %v98, 4294901760
    %v1856 = vsub.f32 %v98, %v1855
    %1857 = vmatmul.mubr.f32.gmra.mrb[0].mxu0 %v1856
    %v1858 = vpop.f32.mrb[0].mxu0
    %v1859 = vadd.f32 %v1322, %v1858
    %v1860 = vpop.f32.mrb[0].mxu0
    %1861 = vmatprep.mubr.f32.mxu0 0.0
    %v1862 = vand.u32 %v99, 4294901760
    %v1863 = vsub.f32 %v99, %v1862
    %1864 = vmatmul.mubr.f32.gmra.mrb[0].mxu0 %v1863
    %v1865 = vpop.f32.mrb[0].mxu0
    %v1866 = vadd.f32 %v1328, %v1865
    %v1867 = vpop.f32.mrb[0].mxu0
    %1868 = vmatprep.mubr.f32.mxu0 0.0
    %v1869 = vand.u32 %v100, 4294901760
    %v1870 = vsub.f32 %v100, %v1869
    %1871 = vmatmul.mubr.f32.gmra.mrb[0].mxu0 %v1870
    %v1872 = vpop.f32.mrb[0].mxu0
    %v1873 = vadd.f32 %v1334, %v1872
    %v1874 = vpop.f32.mrb[0].mxu0
    %1875 = vmatprep.mubr.f32.mxu0 0.0
    %v1876 = vand.u32 %v101, 4294901760
    %v1877 = vsub.f32 %v101, %v1876
    %1878 = vmatmul.mubr.f32.gmra.mrb[0].mxu0 %v1877
    %v1879 = vpop.f32.mrb[0].mxu0
    %v1880 = vadd.f32 %v1340, %v1879
    %v1881 = vpop.f32.mrb[0].mxu0
    %1882 = vmatprep.mubr.f32.mxu0 0.0
    %v1883 = vand.u32 %v102, 4294901760
    %v1884 = vsub.f32 %v102, %v1883
    %1885 = vmatmul.mubr.f32.gmra.mrb[0].mxu0 %v1884
    %v1886 = vpop.f32.mrb[0].mxu0
    %v1887 = vadd.f32 %v1346, %v1886
    %v1888 = vpop.f32.mrb[0].mxu0
    %1889 = vmatprep.mubr.f32.mxu0 0.0
    %v1890 = vand.u32 %v103, 4294901760
    %v1891 = vsub.f32 %v103, %v1890
    %1892 = vmatmul.mubr.f32.gmra.mrb[0].mxu0 %v1891
    %v1893 = vpop.f32.mrb[0].mxu0
    %v1894 = vadd.f32 %v1352, %v1893
    %v1895 = vpop.f32.mrb[0].mxu0
    %1896 = vmatprep.mubr.f32.mxu0 0.0
    %v1897 = vand.u32 %v104, 4294901760
    %v1898 = vsub.f32 %v104, %v1897
    %1899 = vmatmul.mubr.f32.gmra.mrb[0].mxu0 %v1898
    %v1900 = vpop.f32.mrb[0].mxu0
    %v1901 = vadd.f32 %v1358, %v1900
    %v1902 = vpop.f32.mrb[0].mxu0
    %1903 = vmatprep.mubr.f32.mxu0 0.0
    %v1904 = vand.u32 %v105, 4294901760
    %v1905 = vsub.f32 %v105, %v1904
    %1906 = vmatmul.mubr.f32.gmra.mrb[0].mxu0 %v1905
    %v1907 = vpop.f32.mrb[0].mxu0
    %v1908 = vadd.f32 %v1364, %v1907
    %v1909 = vpop.f32.mrb[0].mxu0
    %1910 = vmatprep.mubr.f32.mxu0 0.0
    %v1911 = vand.u32 %v106, 4294901760
    %v1912 = vsub.f32 %v106, %v1911
    %1913 = vmatmul.mubr.f32.gmra.mrb[0].mxu0 %v1912
    %v1914 = vpop.f32.mrb[0].mxu0
    %v1915 = vadd.f32 %v1370, %v1914
    %v1916 = vpop.f32.mrb[0].mxu0
    %1917 = vdwg.mxu0
    %1918 = vmatprep.subr.mxu0 0.0
    %v1919 = vand.u32 %v107, 4294901760
    %1920 = vmatpush1.msra.mxu0 %v1919
    %1921 = vmatprep.subr.mxu0 0.0
    %v1922 = vand.u32 %v108, 4294901760
    %1923 = vmatpush1.msra.mxu0 %v1922
    %1924 = vmatprep.subr.mxu0 0.0
    %v1925 = vand.u32 %v109, 4294901760
    %1926 = vmatpush1.msra.mxu0 %v1925
    %1927 = vmatprep.subr.mxu0 0.0
    %v1928 = vand.u32 %v110, 4294901760
    %1929 = vmatpush1.msra.mxu0 %v1928
    %1930 = vmatprep.subr.mxu0 0.0
    %v1931 = vand.u32 %v111, 4294901760
    %1932 = vmatpush1.msra.mxu0 %v1931
    %1933 = vmatprep.subr.mxu0 0.0
    %v1934 = vand.u32 %v112, 4294901760
    %1935 = vmatpush1.msra.mxu0 %v1934
    %1936 = vmatprep.subr.mxu0 0.0
    %v1937 = vand.u32 %v113, 4294901760
    %1938 = vmatpush1.msra.mxu0 %v1937
    %1939 = vmatprep.subr.mxu0 0.0
    %v1940 = vand.u32 %v114, 4294901760
    %1941 = vmatpush1.msra.mxu0 %v1940
    %1942 = vmatprep.subr.mxu0 0.0
    %v1943 = vand.u32 %v115, 4294901760
    %1944 = vmatpush1.msra.mxu0 %v1943
    %1945 = vmatprep.subr.mxu0 0.0
    %v1946 = vand.u32 %v116, 4294901760
    %1947 = vmatpush1.msra.mxu0 %v1946
    %1948 = vmatprep.subr.mxu0 0.0
    %v1949 = vand.u32 %v117, 4294901760
    %1950 = vmatpush1.msra.mxu0 %v1949
    %1951 = vmatprep.subr.mxu0 0.0
    %v1952 = vand.u32 %v118, 4294901760
    %1953 = vmatpush1.msra.mxu0 %v1952
    %1954 = vmatprep.subr.mxu0 0.0
    %v1955 = vand.u32 %v119, 4294901760
    %1956 = vmatpush1.msra.mxu0 %v1955
    %1957 = vmatprep.subr.mxu0 0.0
    %v1958 = vand.u32 %v120, 4294901760
    %1959 = vmatpush1.msra.mxu0 %v1958
    %1960 = vmatprep.subr.mxu0 0.0
    %v1961 = vand.u32 %v121, 4294901760
    %1962 = vmatpush1.msra.mxu0 %v1961
    %1963 = vmatprep.subr.mxu0 0.0
    %v1964 = vand.u32 %v122, 4294901760
    %1965 = vmatpush1.msra.mxu0 %v1964
    %1966 = vmatprep.subr.mxu0 0.0
    %1967 = vmatpush1.msra.mxu0 0.0
    %1968 = vmatprep.subr.mxu0 0.0
    %1969 = vmatpush1.msra.mxu0 0.0
    %1970 = vmatprep.subr.mxu0 0.0
    %1971 = vmatpush1.msra.mxu0 0.0
    %1972 = vmatprep.subr.mxu0 0.0
    %1973 = vmatpush1.msra.mxu0 0.0
    %1974 = vmatprep.subr.mxu0 0.0
    %1975 = vmatpush1.msra.mxu0 0.0
    %1976 = vmatprep.subr.mxu0 0.0
    %1977 = vmatpush1.msra.mxu0 0.0
    %1978 = vmatprep.subr.mxu0 0.0
    %1979 = vmatpush1.msra.mxu0 0.0
    %1980 = vmatprep.subr.mxu0 0.0
    %1981 = vmatpush1.msra.mxu0 0.0
    %1982 = vmatprep.subr.mxu0 0.0
    %1983 = vmatpush1.msra.mxu0 0.0
    %1984 = vmatprep.subr.mxu0 0.0
    %1985 = vmatpush1.msra.mxu0 0.0
    %1986 = vmatprep.subr.mxu0 0.0
    %1987 = vmatpush1.msra.mxu0 0.0
    %1988 = vmatprep.subr.mxu0 0.0
    %1989 = vmatpush1.msra.mxu0 0.0
    %1990 = vmatprep.subr.mxu0 0.0
    %1991 = vmatpush1.msra.mxu0 0.0
    %1992 = vmatprep.subr.mxu0 0.0
    %1993 = vmatpush1.msra.mxu0 0.0
    %1994 = vmatprep.subr.mxu0 0.0
    %1995 = vmatpush1.msra.mxu0 0.0
    %1996 = vmatprep.subr.mxu0 0.0
    %1997 = vmatpush1.msra.mxu0 0.0
    %1998 = vmatprep.mubr.f32.mxu0 0.0
    %v1999 = vand.u32 %v43, 4294901760
    %v2000 = vsub.f32 %v43, %v1999
    %v2001 = vand.u32 %v2000, 4294901760
    %2002 = vmatmul.mubr.f32.gmra.mrb[0].mxu0 %v2001
    %v2003 = vpop.f32.mrb[0].mxu0
    %v2004 = vadd.f32 %v1474, %v2003
    %v2005 = vpop.f32.mrb[0].mxu0
    %2006 = vmatprep.mubr.f32.mxu0 0.0
    %v2007 = vand.u32 %v44, 4294901760
    %v2008 = vsub.f32 %v44, %v2007
    %v2009 = vand.u32 %v2008, 4294901760
    %2010 = vmatmul.mubr.f32.gmra.mrb[0].mxu0 %v2009
    %v2011 = vpop.f32.mrb[0].mxu0
    %v2012 = vadd.f32 %v1481, %v2011
    %v2013 = vpop.f32.mrb[0].mxu0
    %2014 = vmatprep.mubr.f32.mxu0 0.0
    %v2015 = vand.u32 %v45, 4294901760
    %v2016 = vsub.f32 %v45, %v2015
    %v2017 = vand.u32 %v2016, 4294901760
    %2018 = vmatmul.mubr.f32.gmra.mrb[0].mxu0 %v2017
    %v2019 = vpop.f32.mrb[0].mxu0
    %v2020 = vadd.f32 %v1488, %v2019
    %v2021 = vpop.f32.mrb[0].mxu0
    %2022 = vmatprep.mubr.f32.mxu0 0.0
    %v2023 = vand.u32 %v46, 4294901760
    %v2024 = vsub.f32 %v46, %v2023
    %v2025 = vand.u32 %v2024, 4294901760
    %2026 = vmatmul.mubr.f32.gmra.mrb[0].mxu0 %v2025
    %v2027 = vpop.f32.mrb[0].mxu0
    %v2028 = vadd.f32 %v1495, %v2027
    %v2029 = vpop.f32.mrb[0].mxu0
    %2030 = vmatprep.mubr.f32.mxu0 0.0
    %v2031 = vand.u32 %v47, 4294901760
    %v2032 = vsub.f32 %v47, %v2031
    %v2033 = vand.u32 %v2032, 4294901760
    %2034 = vmatmul.mubr.f32.gmra.mrb[0].mxu0 %v2033
    %v2035 = vpop.f32.mrb[0].mxu0
    %v2036 = vadd.f32 %v1502, %v2035
    %v2037 = vpop.f32.mrb[0].mxu0
    %2038 = vmatprep.mubr.f32.mxu0 0.0
    %v2039 = vand.u32 %v48, 4294901760
    %v2040 = vsub.f32 %v48, %v2039
    %v2041 = vand.u32 %v2040, 4294901760
    %2042 = vmatmul.mubr.f32.gmra.mrb[0].mxu0 %v2041
    %v2043 = vpop.f32.mrb[0].mxu0
    %v2044 = vadd.f32 %v1509, %v2043
    %v2045 = vpop.f32.mrb[0].mxu0
    %2046 = vmatprep.mubr.f32.mxu0 0.0
    %v2047 = vand.u32 %v49, 4294901760
    %v2048 = vsub.f32 %v49, %v2047
    %v2049 = vand.u32 %v2048, 4294901760
    %2050 = vmatmul.mubr.f32.gmra.mrb[0].mxu0 %v2049
    %v2051 = vpop.f32.mrb[0].mxu0
    %v2052 = vadd.f32 %v1516, %v2051
    %v2053 = vpop.f32.mrb[0].mxu0
    %2054 = vmatprep.mubr.f32.mxu0 0.0
    %v2055 = vand.u32 %v50, 4294901760
    %v2056 = vsub.f32 %v50, %v2055
    %v2057 = vand.u32 %v2056, 4294901760
    %2058 = vmatmul.mubr.f32.gmra.mrb[0].mxu0 %v2057
    %v2059 = vpop.f32.mrb[0].mxu0
    %v2060 = vadd.f32 %v1523, %v2059
    %v2061 = vpop.f32.mrb[0].mxu0
    %2062 = vmatprep.mubr.f32.mxu0 0.0
    %v2063 = vand.u32 %v51, 4294901760
    %v2064 = vsub.f32 %v51, %v2063
    %v2065 = vand.u32 %v2064, 4294901760
    %2066 = vmatmul.mubr.f32.gmra.mrb[0].mxu0 %v2065
    %v2067 = vpop.f32.mrb[0].mxu0
    %v2068 = vadd.f32 %v1530, %v2067
    %v2069 = vpop.f32.mrb[0].mxu0
    %2070 = vmatprep.mubr.f32.mxu0 0.0
    %v2071 = vand.u32 %v52, 4294901760
    %v2072 = vsub.f32 %v52, %v2071
    %v2073 = vand.u32 %v2072, 4294901760
    %2074 = vmatmul.mubr.f32.gmra.mrb[0].mxu0 %v2073
    %v2075 = vpop.f32.mrb[0].mxu0
    %v2076 = vadd.f32 %v1537, %v2075
    %v2077 = vpop.f32.mrb[0].mxu0
    %2078 = vmatprep.mubr.f32.mxu0 0.0
    %v2079 = vand.u32 %v53, 4294901760
    %v2080 = vsub.f32 %v53, %v2079
    %v2081 = vand.u32 %v2080, 4294901760
    %2082 = vmatmul.mubr.f32.gmra.mrb[0].mxu0 %v2081
    %v2083 = vpop.f32.mrb[0].mxu0
    %v2084 = vadd.f32 %v1544, %v2083
    %v2085 = vpop.f32.mrb[0].mxu0
    %2086 = vmatprep.mubr.f32.mxu0 0.0
    %v2087 = vand.u32 %v54, 4294901760
    %v2088 = vsub.f32 %v54, %v2087
    %v2089 = vand.u32 %v2088, 4294901760
    %2090 = vmatmul.mubr.f32.gmra.mrb[0].mxu0 %v2089
    %v2091 = vpop.f32.mrb[0].mxu0
    %v2092 = vadd.f32 %v1551, %v2091
    %v2093 = vpop.f32.mrb[0].mxu0
    %2094 = vmatprep.mubr.f32.mxu0 0.0
    %v2095 = vand.u32 %v55, 4294901760
    %v2096 = vsub.f32 %v55, %v2095
    %v2097 = vand.u32 %v2096, 4294901760
    %2098 = vmatmul.mubr.f32.gmra.mrb[0].mxu0 %v2097
    %v2099 = vpop.f32.mrb[0].mxu0
    %v2100 = vadd.f32 %v1558, %v2099
    %v2101 = vpop.f32.mrb[0].mxu0
    %2102 = vmatprep.mubr.f32.mxu0 0.0
    %v2103 = vand.u32 %v56, 4294901760
    %v2104 = vsub.f32 %v56, %v2103
    %v2105 = vand.u32 %v2104, 4294901760
    %2106 = vmatmul.mubr.f32.gmra.mrb[0].mxu0 %v2105
    %v2107 = vpop.f32.mrb[0].mxu0
    %v2108 = vadd.f32 %v1565, %v2107
    %v2109 = vpop.f32.mrb[0].mxu0
    %2110 = vmatprep.mubr.f32.mxu0 0.0
    %v2111 = vand.u32 %v57, 4294901760
    %v2112 = vsub.f32 %v57, %v2111
    %v2113 = vand.u32 %v2112, 4294901760
    %2114 = vmatmul.mubr.f32.gmra.mrb[0].mxu0 %v2113
    %v2115 = vpop.f32.mrb[0].mxu0
    %v2116 = vadd.f32 %v1572, %v2115
    %v2117 = vpop.f32.mrb[0].mxu0
    %2118 = vmatprep.mubr.f32.mxu0 0.0
    %v2119 = vand.u32 %v58, 4294901760
    %v2120 = vsub.f32 %v58, %v2119
    %v2121 = vand.u32 %v2120, 4294901760
    %2122 = vmatmul.mubr.f32.gmra.mrb[0].mxu0 %v2121
    %v2123 = vpop.f32.mrb[0].mxu0
    %v2124 = vadd.f32 %v1579, %v2123
    %v2125 = vpop.f32.mrb[0].mxu0
    %2126 = vmatprep.mubr.f32.mxu0 0.0
    %v2127 = vand.u32 %v59, 4294901760
    %v2128 = vsub.f32 %v59, %v2127
    %v2129 = vand.u32 %v2128, 4294901760
    %2130 = vmatmul.mubr.f32.gmra.mrb[0].mxu0 %v2129
    %v2131 = vpop.f32.mrb[0].mxu0
    %v2132 = vadd.f32 %v1586, %v2131
    %v2133 = vpop.f32.mrb[0].mxu0
    %2134 = vmatprep.mubr.f32.mxu0 0.0
    %v2135 = vand.u32 %v60, 4294901760
    %v2136 = vsub.f32 %v60, %v2135
    %v2137 = vand.u32 %v2136, 4294901760
    %2138 = vmatmul.mubr.f32.gmra.mrb[0].mxu0 %v2137
    %v2139 = vpop.f32.mrb[0].mxu0
    %v2140 = vadd.f32 %v1593, %v2139
    %v2141 = vpop.f32.mrb[0].mxu0
    %2142 = vmatprep.mubr.f32.mxu0 0.0
    %v2143 = vand.u32 %v61, 4294901760
    %v2144 = vsub.f32 %v61, %v2143
    %v2145 = vand.u32 %v2144, 4294901760
    %2146 = vmatmul.mubr.f32.gmra.mrb[0].mxu0 %v2145
    %v2147 = vpop.f32.mrb[0].mxu0
    %v2148 = vadd.f32 %v1600, %v2147
    %v2149 = vpop.f32.mrb[0].mxu0
    %2150 = vmatprep.mubr.f32.mxu0 0.0
    %v2151 = vand.u32 %v62, 4294901760
    %v2152 = vsub.f32 %v62, %v2151
    %v2153 = vand.u32 %v2152, 4294901760
    %2154 = vmatmul.mubr.f32.gmra.mrb[0].mxu0 %v2153
    %v2155 = vpop.f32.mrb[0].mxu0
    %v2156 = vadd.f32 %v1607, %v2155
    %v2157 = vpop.f32.mrb[0].mxu0
    %2158 = vmatprep.mubr.f32.mxu0 0.0
    %v2159 = vand.u32 %v63, 4294901760
    %v2160 = vsub.f32 %v63, %v2159
    %v2161 = vand.u32 %v2160, 4294901760
    %2162 = vmatmul.mubr.f32.gmra.mrb[0].mxu0 %v2161
    %v2163 = vpop.f32.mrb[0].mxu0
    %v2164 = vadd.f32 %v1614, %v2163
    %v2165 = vpop.f32.mrb[0].mxu0
    %2166 = vmatprep.mubr.f32.mxu0 0.0
    %v2167 = vand.u32 %v64, 4294901760
    %v2168 = vsub.f32 %v64, %v2167
    %v2169 = vand.u32 %v2168, 4294901760
    %2170 = vmatmul.mubr.f32.gmra.mrb[0].mxu0 %v2169
    %v2171 = vpop.f32.mrb[0].mxu0
    %v2172 = vadd.f32 %v1621, %v2171
    %v2173 = vpop.f32.mrb[0].mxu0
    %2174 = vmatprep.mubr.f32.mxu0 0.0
    %v2175 = vand.u32 %v65, 4294901760
    %v2176 = vsub.f32 %v65, %v2175
    %v2177 = vand.u32 %v2176, 4294901760
    %2178 = vmatmul.mubr.f32.gmra.mrb[0].mxu0 %v2177
    %v2179 = vpop.f32.mrb[0].mxu0
    %v2180 = vadd.f32 %v1628, %v2179
    %v2181 = vpop.f32.mrb[0].mxu0
    %2182 = vmatprep.mubr.f32.mxu0 0.0
    %v2183 = vand.u32 %v66, 4294901760
    %v2184 = vsub.f32 %v66, %v2183
    %v2185 = vand.u32 %v2184, 4294901760
    %2186 = vmatmul.mubr.f32.gmra.mrb[0].mxu0 %v2185
    %v2187 = vpop.f32.mrb[0].mxu0
    %v2188 = vadd.f32 %v1635, %v2187
    %v2189 = vpop.f32.mrb[0].mxu0
    %2190 = vmatprep.mubr.f32.mxu0 0.0
    %v2191 = vand.u32 %v67, 4294901760
    %v2192 = vsub.f32 %v67, %v2191
    %v2193 = vand.u32 %v2192, 4294901760
    %2194 = vmatmul.mubr.f32.gmra.mrb[0].mxu0 %v2193
    %v2195 = vpop.f32.mrb[0].mxu0
    %v2196 = vadd.f32 %v1642, %v2195
    %v2197 = vpop.f32.mrb[0].mxu0
    %2198 = vmatprep.mubr.f32.mxu0 0.0
    %v2199 = vand.u32 %v68, 4294901760
    %v2200 = vsub.f32 %v68, %v2199
    %v2201 = vand.u32 %v2200, 4294901760
    %2202 = vmatmul.mubr.f32.gmra.mrb[0].mxu0 %v2201
    %v2203 = vpop.f32.mrb[0].mxu0
    %v2204 = vadd.f32 %v1649, %v2203
    %v2205 = vpop.f32.mrb[0].mxu0
    %2206 = vmatprep.mubr.f32.mxu0 0.0
    %v2207 = vand.u32 %v69, 4294901760
    %v2208 = vsub.f32 %v69, %v2207
    %v2209 = vand.u32 %v2208, 4294901760
    %2210 = vmatmul.mubr.f32.gmra.mrb[0].mxu0 %v2209
    %v2211 = vpop.f32.mrb[0].mxu0
    %v2212 = vadd.f32 %v1656, %v2211
    %v2213 = vpop.f32.mrb[0].mxu0
    %2214 = vmatprep.mubr.f32.mxu0 0.0
    %v2215 = vand.u32 %v70, 4294901760
    %v2216 = vsub.f32 %v70, %v2215
    %v2217 = vand.u32 %v2216, 4294901760
    %2218 = vmatmul.mubr.f32.gmra.mrb[0].mxu0 %v2217
    %v2219 = vpop.f32.mrb[0].mxu0
    %v2220 = vadd.f32 %v1663, %v2219
    %v2221 = vpop.f32.mrb[0].mxu0
    %2222 = vmatprep.mubr.f32.mxu0 0.0
    %v2223 = vand.u32 %v71, 4294901760
    %v2224 = vsub.f32 %v71, %v2223
    %v2225 = vand.u32 %v2224, 4294901760
    %2226 = vmatmul.mubr.f32.gmra.mrb[0].mxu0 %v2225
    %v2227 = vpop.f32.mrb[0].mxu0
    %v2228 = vadd.f32 %v1670, %v2227
    %v2229 = vpop.f32.mrb[0].mxu0
    %2230 = vmatprep.mubr.f32.mxu0 0.0
    %v2231 = vand.u32 %v72, 4294901760
    %v2232 = vsub.f32 %v72, %v2231
    %v2233 = vand.u32 %v2232, 4294901760
    %2234 = vmatmul.mubr.f32.gmra.mrb[0].mxu0 %v2233
    %v2235 = vpop.f32.mrb[0].mxu0
    %v2236 = vadd.f32 %v1677, %v2235
    %v2237 = vpop.f32.mrb[0].mxu0
    %2238 = vmatprep.mubr.f32.mxu0 0.0
    %v2239 = vand.u32 %v73, 4294901760
    %v2240 = vsub.f32 %v73, %v2239
    %v2241 = vand.u32 %v2240, 4294901760
    %2242 = vmatmul.mubr.f32.gmra.mrb[0].mxu0 %v2241
    %v2243 = vpop.f32.mrb[0].mxu0
    %v2244 = vadd.f32 %v1684, %v2243
    %v2245 = vpop.f32.mrb[0].mxu0
    %2246 = vmatprep.mubr.f32.mxu0 0.0
    %v2247 = vand.u32 %v74, 4294901760
    %v2248 = vsub.f32 %v74, %v2247
    %v2249 = vand.u32 %v2248, 4294901760
    %2250 = vmatmul.mubr.f32.gmra.mrb[0].mxu0 %v2249
    %v2251 = vpop.f32.mrb[0].mxu0
    %v2252 = vadd.f32 %v1691, %v2251
    %v2253 = vpop.f32.mrb[0].mxu0
    %2254 = vmatprep.mubr.f32.mxu0 0.0
    %v2255 = vand.u32 %v75, 4294901760
    %v2256 = vsub.f32 %v75, %v2255
    %v2257 = vand.u32 %v2256, 4294901760
    %2258 = vmatmul.mubr.f32.gmra.mrb[0].mxu0 %v2257
    %v2259 = vpop.f32.mrb[0].mxu0
    %v2260 = vadd.f32 %v1698, %v2259
    %v2261 = vpop.f32.mrb[0].mxu0
    %2262 = vmatprep.mubr.f32.mxu0 0.0
    %v2263 = vand.u32 %v76, 4294901760
    %v2264 = vsub.f32 %v76, %v2263
    %v2265 = vand.u32 %v2264, 4294901760
    %2266 = vmatmul.mubr.f32.gmra.mrb[0].mxu0 %v2265
    %v2267 = vpop.f32.mrb[0].mxu0
    %v2268 = vadd.f32 %v1705, %v2267
    %v2269 = vpop.f32.mrb[0].mxu0
    %2270 = vmatprep.mubr.f32.mxu0 0.0
    %v2271 = vand.u32 %v77, 4294901760
    %v2272 = vsub.f32 %v77, %v2271
    %v2273 = vand.u32 %v2272, 4294901760
    %2274 = vmatmul.mubr.f32.gmra.mrb[0].mxu0 %v2273
    %v2275 = vpop.f32.mrb[0].mxu0
    %v2276 = vadd.f32 %v1712, %v2275
    %v2277 = vpop.f32.mrb[0].mxu0
    %2278 = vmatprep.mubr.f32.mxu0 0.0
    %v2279 = vand.u32 %v78, 4294901760
    %v2280 = vsub.f32 %v78, %v2279
    %v2281 = vand.u32 %v2280, 4294901760
    %2282 = vmatmul.mubr.f32.gmra.mrb[0].mxu0 %v2281
    %v2283 = vpop.f32.mrb[0].mxu0
    %v2284 = vadd.f32 %v1719, %v2283
    %v2285 = vpop.f32.mrb[0].mxu0
    %2286 = vmatprep.mubr.f32.mxu0 0.0
    %v2287 = vand.u32 %v79, 4294901760
    %v2288 = vsub.f32 %v79, %v2287
    %v2289 = vand.u32 %v2288, 4294901760
    %2290 = vmatmul.mubr.f32.gmra.mrb[0].mxu0 %v2289
    %v2291 = vpop.f32.mrb[0].mxu0
    %v2292 = vadd.f32 %v1726, %v2291
    %v2293 = vpop.f32.mrb[0].mxu0
    %2294 = vmatprep.mubr.f32.mxu0 0.0
    %v2295 = vand.u32 %v80, 4294901760
    %v2296 = vsub.f32 %v80, %v2295
    %v2297 = vand.u32 %v2296, 4294901760
    %2298 = vmatmul.mubr.f32.gmra.mrb[0].mxu0 %v2297
    %v2299 = vpop.f32.mrb[0].mxu0
    %v2300 = vadd.f32 %v1733, %v2299
    %v2301 = vpop.f32.mrb[0].mxu0
    %2302 = vmatprep.mubr.f32.mxu0 0.0
    %v2303 = vand.u32 %v81, 4294901760
    %v2304 = vsub.f32 %v81, %v2303
    %v2305 = vand.u32 %v2304, 4294901760
    %2306 = vmatmul.mubr.f32.gmra.mrb[0].mxu0 %v2305
    %v2307 = vpop.f32.mrb[0].mxu0
    %v2308 = vadd.f32 %v1740, %v2307
    %v2309 = vpop.f32.mrb[0].mxu0
    %2310 = vmatprep.mubr.f32.mxu0 0.0
    %v2311 = vand.u32 %v82, 4294901760
    %v2312 = vsub.f32 %v82, %v2311
    %v2313 = vand.u32 %v2312, 4294901760
    %2314 = vmatmul.mubr.f32.gmra.mrb[0].mxu0 %v2313
    %v2315 = vpop.f32.mrb[0].mxu0
    %v2316 = vadd.f32 %v1747, %v2315
    %v2317 = vpop.f32.mrb[0].mxu0
    %2318 = vmatprep.mubr.f32.mxu0 0.0
    %v2319 = vand.u32 %v83, 4294901760
    %v2320 = vsub.f32 %v83, %v2319
    %v2321 = vand.u32 %v2320, 4294901760
    %2322 = vmatmul.mubr.f32.gmra.mrb[0].mxu0 %v2321
    %v2323 = vpop.f32.mrb[0].mxu0
    %v2324 = vadd.f32 %v1754, %v2323
    %v2325 = vpop.f32.mrb[0].mxu0
    %2326 = vmatprep.mubr.f32.mxu0 0.0
    %v2327 = vand.u32 %v84, 4294901760
    %v2328 = vsub.f32 %v84, %v2327
    %v2329 = vand.u32 %v2328, 4294901760
    %2330 = vmatmul.mubr.f32.gmra.mrb[0].mxu0 %v2329
    %v2331 = vpop.f32.mrb[0].mxu0
    %v2332 = vadd.f32 %v1761, %v2331
    %v2333 = vpop.f32.mrb[0].mxu0
    %2334 = vmatprep.mubr.f32.mxu0 0.0
    %v2335 = vand.u32 %v85, 4294901760
    %v2336 = vsub.f32 %v85, %v2335
    %v2337 = vand.u32 %v2336, 4294901760
    %2338 = vmatmul.mubr.f32.gmra.mrb[0].mxu0 %v2337
    %v2339 = vpop.f32.mrb[0].mxu0
    %v2340 = vadd.f32 %v1768, %v2339
    %v2341 = vpop.f32.mrb[0].mxu0
    %2342 = vmatprep.mubr.f32.mxu0 0.0
    %v2343 = vand.u32 %v86, 4294901760
    %v2344 = vsub.f32 %v86, %v2343
    %v2345 = vand.u32 %v2344, 4294901760
    %2346 = vmatmul.mubr.f32.gmra.mrb[0].mxu0 %v2345
    %v2347 = vpop.f32.mrb[0].mxu0
    %v2348 = vadd.f32 %v1775, %v2347
    %v2349 = vpop.f32.mrb[0].mxu0
    %2350 = vmatprep.mubr.f32.mxu0 0.0
    %v2351 = vand.u32 %v87, 4294901760
    %v2352 = vsub.f32 %v87, %v2351
    %v2353 = vand.u32 %v2352, 4294901760
    %2354 = vmatmul.mubr.f32.gmra.mrb[0].mxu0 %v2353
    %v2355 = vpop.f32.mrb[0].mxu0
    %v2356 = vadd.f32 %v1782, %v2355
    %v2357 = vpop.f32.mrb[0].mxu0
    %2358 = vmatprep.mubr.f32.mxu0 0.0
    %v2359 = vand.u32 %v88, 4294901760
    %v2360 = vsub.f32 %v88, %v2359
    %v2361 = vand.u32 %v2360, 4294901760
    %2362 = vmatmul.mubr.f32.gmra.mrb[0].mxu0 %v2361
    %v2363 = vpop.f32.mrb[0].mxu0
    %v2364 = vadd.f32 %v1789, %v2363
    %v2365 = vpop.f32.mrb[0].mxu0
    %2366 = vmatprep.mubr.f32.mxu0 0.0
    %v2367 = vand.u32 %v89, 4294901760
    %v2368 = vsub.f32 %v89, %v2367
    %v2369 = vand.u32 %v2368, 4294901760
    %2370 = vmatmul.mubr.f32.gmra.mrb[0].mxu0 %v2369
    %v2371 = vpop.f32.mrb[0].mxu0
    %v2372 = vadd.f32 %v1796, %v2371
    %v2373 = vpop.f32.mrb[0].mxu0
    %2374 = vmatprep.mubr.f32.mxu0 0.0
    %v2375 = vand.u32 %v90, 4294901760
    %v2376 = vsub.f32 %v90, %v2375
    %v2377 = vand.u32 %v2376, 4294901760
    %2378 = vmatmul.mubr.f32.gmra.mrb[0].mxu0 %v2377
    %v2379 = vpop.f32.mrb[0].mxu0
    %v2380 = vadd.f32 %v1803, %v2379
    %v2381 = vpop.f32.mrb[0].mxu0
    %2382 = vmatprep.mubr.f32.mxu0 0.0
    %v2383 = vand.u32 %v91, 4294901760
    %v2384 = vsub.f32 %v91, %v2383
    %v2385 = vand.u32 %v2384, 4294901760
    %2386 = vmatmul.mubr.f32.gmra.mrb[0].mxu0 %v2385
    %v2387 = vpop.f32.mrb[0].mxu0
    %v2388 = vadd.f32 %v1810, %v2387
    %v2389 = vpop.f32.mrb[0].mxu0
    %2390 = vmatprep.mubr.f32.mxu0 0.0
    %v2391 = vand.u32 %v92, 4294901760
    %v2392 = vsub.f32 %v92, %v2391
    %v2393 = vand.u32 %v2392, 4294901760
    %2394 = vmatmul.mubr.f32.gmra.mrb[0].mxu0 %v2393
    %v2395 = vpop.f32.mrb[0].mxu0
    %v2396 = vadd.f32 %v1817, %v2395
    %v2397 = vpop.f32.mrb[0].mxu0
    %2398 = vmatprep.mubr.f32.mxu0 0.0
    %v2399 = vand.u32 %v93, 4294901760
    %v2400 = vsub.f32 %v93, %v2399
    %v2401 = vand.u32 %v2400, 4294901760
    %2402 = vmatmul.mubr.f32.gmra.mrb[0].mxu0 %v2401
    %v2403 = vpop.f32.mrb[0].mxu0
    %v2404 = vadd.f32 %v1824, %v2403
    %v2405 = vpop.f32.mrb[0].mxu0
    %2406 = vmatprep.mubr.f32.mxu0 0.0
    %v2407 = vand.u32 %v94, 4294901760
    %v2408 = vsub.f32 %v94, %v2407
    %v2409 = vand.u32 %v2408, 4294901760
    %2410 = vmatmul.mubr.f32.gmra.mrb[0].mxu0 %v2409
    %v2411 = vpop.f32.mrb[0].mxu0
    %v2412 = vadd.f32 %v1831, %v2411
    %v2413 = vpop.f32.mrb[0].mxu0
    %2414 = vmatprep.mubr.f32.mxu0 0.0
    %v2415 = vand.u32 %v95, 4294901760
    %v2416 = vsub.f32 %v95, %v2415
    %v2417 = vand.u32 %v2416, 4294901760
    %2418 = vmatmul.mubr.f32.gmra.mrb[0].mxu0 %v2417
    %v2419 = vpop.f32.mrb[0].mxu0
    %v2420 = vadd.f32 %v1838, %v2419
    %v2421 = vpop.f32.mrb[0].mxu0
    %2422 = vmatprep.mubr.f32.mxu0 0.0
    %v2423 = vand.u32 %v96, 4294901760
    %v2424 = vsub.f32 %v96, %v2423
    %v2425 = vand.u32 %v2424, 4294901760
    %2426 = vmatmul.mubr.f32.gmra.mrb[0].mxu0 %v2425
    %v2427 = vpop.f32.mrb[0].mxu0
    %v2428 = vadd.f32 %v1845, %v2427
    %v2429 = vpop.f32.mrb[0].mxu0
    %2430 = vmatprep.mubr.f32.mxu0 0.0
    %v2431 = vand.u32 %v97, 4294901760
    %v2432 = vsub.f32 %v97, %v2431
    %v2433 = vand.u32 %v2432, 4294901760
    %2434 = vmatmul.mubr.f32.gmra.mrb[0].mxu0 %v2433
    %v2435 = vpop.f32.mrb[0].mxu0
    %v2436 = vadd.f32 %v1852, %v2435
    %v2437 = vpop.f32.mrb[0].mxu0
    %2438 = vmatprep.mubr.f32.mxu0 0.0
    %v2439 = vand.u32 %v98, 4294901760
    %v2440 = vsub.f32 %v98, %v2439
    %v2441 = vand.u32 %v2440, 4294901760
    %2442 = vmatmul.mubr.f32.gmra.mrb[0].mxu0 %v2441
    %v2443 = vpop.f32.mrb[0].mxu0
    %v2444 = vadd.f32 %v1859, %v2443
    %v2445 = vpop.f32.mrb[0].mxu0
    %2446 = vmatprep.mubr.f32.mxu0 0.0
    %v2447 = vand.u32 %v99, 4294901760
    %v2448 = vsub.f32 %v99, %v2447
    %v2449 = vand.u32 %v2448, 4294901760
    %2450 = vmatmul.mubr.f32.gmra.mrb[0].mxu0 %v2449
    %v2451 = vpop.f32.mrb[0].mxu0
    %v2452 = vadd.f32 %v1866, %v2451
    %v2453 = vpop.f32.mrb[0].mxu0
    %2454 = vmatprep.mubr.f32.mxu0 0.0
    %v2455 = vand.u32 %v100, 4294901760
    %v2456 = vsub.f32 %v100, %v2455
    %v2457 = vand.u32 %v2456, 4294901760
    %2458 = vmatmul.mubr.f32.gmra.mrb[0].mxu0 %v2457
    %v2459 = vpop.f32.mrb[0].mxu0
    %v2460 = vadd.f32 %v1873, %v2459
    %v2461 = vpop.f32.mrb[0].mxu0
    %2462 = vmatprep.mubr.f32.mxu0 0.0
    %v2463 = vand.u32 %v101, 4294901760
    %v2464 = vsub.f32 %v101, %v2463
    %v2465 = vand.u32 %v2464, 4294901760
    %2466 = vmatmul.mubr.f32.gmra.mrb[0].mxu0 %v2465
    %v2467 = vpop.f32.mrb[0].mxu0
    %v2468 = vadd.f32 %v1880, %v2467
    %v2469 = vpop.f32.mrb[0].mxu0
    %2470 = vmatprep.mubr.f32.mxu0 0.0
    %v2471 = vand.u32 %v102, 4294901760
    %v2472 = vsub.f32 %v102, %v2471
    %v2473 = vand.u32 %v2472, 4294901760
    %2474 = vmatmul.mubr.f32.gmra.mrb[0].mxu0 %v2473
    %v2475 = vpop.f32.mrb[0].mxu0
    %v2476 = vadd.f32 %v1887, %v2475
    %v2477 = vpop.f32.mrb[0].mxu0
    %2478 = vmatprep.mubr.f32.mxu0 0.0
    %v2479 = vand.u32 %v103, 4294901760
    %v2480 = vsub.f32 %v103, %v2479
    %v2481 = vand.u32 %v2480, 4294901760
    %2482 = vmatmul.mubr.f32.gmra.mrb[0].mxu0 %v2481
    %v2483 = vpop.f32.mrb[0].mxu0
    %v2484 = vadd.f32 %v1894, %v2483
    %v2485 = vpop.f32.mrb[0].mxu0
    %2486 = vmatprep.mubr.f32.mxu0 0.0
    %v2487 = vand.u32 %v104, 4294901760
    %v2488 = vsub.f32 %v104, %v2487
    %v2489 = vand.u32 %v2488, 4294901760
    %2490 = vmatmul.mubr.f32.gmra.mrb[0].mxu0 %v2489
    %v2491 = vpop.f32.mrb[0].mxu0
    %v2492 = vadd.f32 %v1901, %v2491
    %v2493 = vpop.f32.mrb[0].mxu0
    %2494 = vmatprep.mubr.f32.mxu0 0.0
    %v2495 = vand.u32 %v105, 4294901760
    %v2496 = vsub.f32 %v105, %v2495
    %v2497 = vand.u32 %v2496, 4294901760
    %2498 = vmatmul.mubr.f32.gmra.mrb[0].mxu0 %v2497
    %v2499 = vpop.f32.mrb[0].mxu0
    %v2500 = vadd.f32 %v1908, %v2499
    %v2501 = vpop.f32.mrb[0].mxu0
    %2502 = vmatprep.mubr.f32.mxu0 0.0
    %v2503 = vand.u32 %v106, 4294901760
    %v2504 = vsub.f32 %v106, %v2503
    %v2505 = vand.u32 %v2504, 4294901760
    %2506 = vmatmul.mubr.f32.gmra.mrb[0].mxu0 %v2505
    %v2507 = vpop.f32.mrb[0].mxu0
    %v2508 = vadd.f32 %v1915, %v2507
    %v2509 = vpop.f32.mrb[0].mxu0
    %2510 = vdwg.mxu0
    %2511 = vmatprep.subr.mxu0 0.0
    %v2512 = vand.u32 %v107, 4294901760
    %v2513 = vsub.f32 %v107, %v2512
    %v2514 = vand.u32 %v2513, 4294901760
    %2515 = vmatpush1.msra.mxu0 %v2514
    %2516 = vmatprep.subr.mxu0 0.0
    %v2517 = vand.u32 %v108, 4294901760
    %v2518 = vsub.f32 %v108, %v2517
    %v2519 = vand.u32 %v2518, 4294901760
    %2520 = vmatpush1.msra.mxu0 %v2519
    %2521 = vmatprep.subr.mxu0 0.0
    %v2522 = vand.u32 %v109, 4294901760
    %v2523 = vsub.f32 %v109, %v2522
    %v2524 = vand.u32 %v2523, 4294901760
    %2525 = vmatpush1.msra.mxu0 %v2524
    %2526 = vmatprep.subr.mxu0 0.0
    %v2527 = vand.u32 %v110, 4294901760
    %v2528 = vsub.f32 %v110, %v2527
    %v2529 = vand.u32 %v2528, 4294901760
    %2530 = vmatpush1.msra.mxu0 %v2529
    %2531 = vmatprep.subr.mxu0 0.0
    %v2532 = vand.u32 %v111, 4294901760
    %v2533 = vsub.f32 %v111, %v2532
    %v2534 = vand.u32 %v2533, 4294901760
    %2535 = vmatpush1.msra.mxu0 %v2534
    %2536 = vmatprep.subr.mxu0 0.0
    %v2537 = vand.u32 %v112, 4294901760
    %v2538 = vsub.f32 %v112, %v2537
    %v2539 = vand.u32 %v2538, 4294901760
    %2540 = vmatpush1.msra.mxu0 %v2539
    %2541 = vmatprep.subr.mxu0 0.0
    %v2542 = vand.u32 %v113, 4294901760
    %v2543 = vsub.f32 %v113, %v2542
    %v2544 = vand.u32 %v2543, 4294901760
    %2545 = vmatpush1.msra.mxu0 %v2544
    %2546 = vmatprep.subr.mxu0 0.0
    %v2547 = vand.u32 %v114, 4294901760
    %v2548 = vsub.f32 %v114, %v2547
    %v2549 = vand.u32 %v2548, 4294901760
    %2550 = vmatpush1.msra.mxu0 %v2549
    %2551 = vmatprep.subr.mxu0 0.0
    %v2552 = vand.u32 %v115, 4294901760
    %v2553 = vsub.f32 %v115, %v2552
    %v2554 = vand.u32 %v2553, 4294901760
    %2555 = vmatpush1.msra.mxu0 %v2554
    %2556 = vmatprep.subr.mxu0 0.0
    %v2557 = vand.u32 %v116, 4294901760
    %v2558 = vsub.f32 %v116, %v2557
    %v2559 = vand.u32 %v2558, 4294901760
    %2560 = vmatpush1.msra.mxu0 %v2559
    %2561 = vmatprep.subr.mxu0 0.0
    %v2562 = vand.u32 %v117, 4294901760
    %v2563 = vsub.f32 %v117, %v2562
    %v2564 = vand.u32 %v2563, 4294901760
    %2565 = vmatpush1.msra.mxu0 %v2564
    %2566 = vmatprep.subr.mxu0 0.0
    %v2567 = vand.u32 %v118, 4294901760
    %v2568 = vsub.f32 %v118, %v2567
    %v2569 = vand.u32 %v2568, 4294901760
    %2570 = vmatpush1.msra.mxu0 %v2569
    %2571 = vmatprep.subr.mxu0 0.0
    %v2572 = vand.u32 %v119, 4294901760
    %v2573 = vsub.f32 %v119, %v2572
    %v2574 = vand.u32 %v2573, 4294901760
    %2575 = vmatpush1.msra.mxu0 %v2574
    %2576 = vmatprep.subr.mxu0 0.0
    %v2577 = vand.u32 %v120, 4294901760
    %v2578 = vsub.f32 %v120, %v2577
    %v2579 = vand.u32 %v2578, 4294901760
    %2580 = vmatpush1.msra.mxu0 %v2579
    %2581 = vmatprep.subr.mxu0 0.0
    %v2582 = vand.u32 %v121, 4294901760
    %v2583 = vsub.f32 %v121, %v2582
    %v2584 = vand.u32 %v2583, 4294901760
    %2585 = vmatpush1.msra.mxu0 %v2584
    %2586 = vmatprep.subr.mxu0 0.0
    %v2587 = vand.u32 %v122, 4294901760
    %v2588 = vsub.f32 %v122, %v2587
    %v2589 = vand.u32 %v2588, 4294901760
    %2590 = vmatpush1.msra.mxu0 %v2589
    %2591 = vmatprep.subr.mxu0 0.0
    %2592 = vmatpush1.msra.mxu0 0.0
    %2593 = vmatprep.subr.mxu0 0.0
    %2594 = vmatpush1.msra.mxu0 0.0
    %2595 = vmatprep.subr.mxu0 0.0
    %2596 = vmatpush1.msra.mxu0 0.0
    %2597 = vmatprep.subr.mxu0 0.0
    %2598 = vmatpush1.msra.mxu0 0.0
    %2599 = vmatprep.subr.mxu0 0.0
    %2600 = vmatpush1.msra.mxu0 0.0
    %2601 = vmatprep.subr.mxu0 0.0
    %2602 = vmatpush1.msra.mxu0 0.0
    %2603 = vmatprep.subr.mxu0 0.0
    %2604 = vmatpush1.msra.mxu0 0.0
    %2605 = vmatprep.subr.mxu0 0.0
    %2606 = vmatpush1.msra.mxu0 0.0
    %2607 = vmatprep.subr.mxu0 0.0
    %2608 = vmatpush1.msra.mxu0 0.0
    %2609 = vmatprep.subr.mxu0 0.0
    %2610 = vmatpush1.msra.mxu0 0.0
    %2611 = vmatprep.subr.mxu0 0.0
    %2612 = vmatpush1.msra.mxu0 0.0
    %2613 = vmatprep.subr.mxu0 0.0
    %2614 = vmatpush1.msra.mxu0 0.0
    %2615 = vmatprep.subr.mxu0 0.0
    %2616 = vmatpush1.msra.mxu0 0.0
    %2617 = vmatprep.subr.mxu0 0.0
    %2618 = vmatpush1.msra.mxu0 0.0
    %2619 = vmatprep.subr.mxu0 0.0
    %2620 = vmatpush1.msra.mxu0 0.0
    %2621 = vmatprep.subr.mxu0 0.0
    %2622 = vmatpush1.msra.mxu0 0.0
    %2623 = vmatprep.mubr.f32.mxu0 0.0
    %v2624 = vand.u32 %v43, 4294901760
    %2625 = vmatmul.mubr.f32.gmra.mrb[0].mxu0 %v2624
    %v2626 = vpop.f32.mrb[0].mxu0
    %v2627 = vadd.f32 %v2004, %v2626
    %v2628 = vpop.f32.mrb[0].mxu0
    %2629 = vmatprep.mubr.f32.mxu0 0.0
    %v2630 = vand.u32 %v44, 4294901760
    %2631 = vmatmul.mubr.f32.gmra.mrb[0].mxu0 %v2630
    %v2632 = vpop.f32.mrb[0].mxu0
    %v2633 = vadd.f32 %v2012, %v2632
    %v2634 = vpop.f32.mrb[0].mxu0
    %2635 = vmatprep.mubr.f32.mxu0 0.0
    %v2636 = vand.u32 %v45, 4294901760
    %2637 = vmatmul.mubr.f32.gmra.mrb[0].mxu0 %v2636
    %v2638 = vpop.f32.mrb[0].mxu0
    %v2639 = vadd.f32 %v2020, %v2638
    %v2640 = vpop.f32.mrb[0].mxu0
    %2641 = vmatprep.mubr.f32.mxu0 0.0
    %v2642 = vand.u32 %v46, 4294901760
    %2643 = vmatmul.mubr.f32.gmra.mrb[0].mxu0 %v2642
    %v2644 = vpop.f32.mrb[0].mxu0
    %v2645 = vadd.f32 %v2028, %v2644
    %v2646 = vpop.f32.mrb[0].mxu0
    %2647 = vmatprep.mubr.f32.mxu0 0.0
    %v2648 = vand.u32 %v47, 4294901760
    %2649 = vmatmul.mubr.f32.gmra.mrb[0].mxu0 %v2648
    %v2650 = vpop.f32.mrb[0].mxu0
    %v2651 = vadd.f32 %v2036, %v2650
    %v2652 = vpop.f32.mrb[0].mxu0
    %2653 = vmatprep.mubr.f32.mxu0 0.0
    %v2654 = vand.u32 %v48, 4294901760
    %2655 = vmatmul.mubr.f32.gmra.mrb[0].mxu0 %v2654
    %v2656 = vpop.f32.mrb[0].mxu0
    %v2657 = vadd.f32 %v2044, %v2656
    %v2658 = vpop.f32.mrb[0].mxu0
    %2659 = vmatprep.mubr.f32.mxu0 0.0
    %v2660 = vand.u32 %v49, 4294901760
    %2661 = vmatmul.mubr.f32.gmra.mrb[0].mxu0 %v2660
    %v2662 = vpop.f32.mrb[0].mxu0
    %v2663 = vadd.f32 %v2052, %v2662
    %v2664 = vpop.f32.mrb[0].mxu0
    %2665 = vmatprep.mubr.f32.mxu0 0.0
    %v2666 = vand.u32 %v50, 4294901760
    %2667 = vmatmul.mubr.f32.gmra.mrb[0].mxu0 %v2666
    %v2668 = vpop.f32.mrb[0].mxu0
    %v2669 = vadd.f32 %v2060, %v2668
    %v2670 = vpop.f32.mrb[0].mxu0
    %2671 = vmatprep.mubr.f32.mxu0 0.0
    %v2672 = vand.u32 %v51, 4294901760
    %2673 = vmatmul.mubr.f32.gmra.mrb[0].mxu0 %v2672
    %v2674 = vpop.f32.mrb[0].mxu0
    %v2675 = vadd.f32 %v2068, %v2674
    %v2676 = vpop.f32.mrb[0].mxu0
    %2677 = vmatprep.mubr.f32.mxu0 0.0
    %v2678 = vand.u32 %v52, 4294901760
    %2679 = vmatmul.mubr.f32.gmra.mrb[0].mxu0 %v2678
    %v2680 = vpop.f32.mrb[0].mxu0
    %v2681 = vadd.f32 %v2076, %v2680
    %v2682 = vpop.f32.mrb[0].mxu0
    %2683 = vmatprep.mubr.f32.mxu0 0.0
    %v2684 = vand.u32 %v53, 4294901760
    %2685 = vmatmul.mubr.f32.gmra.mrb[0].mxu0 %v2684
    %v2686 = vpop.f32.mrb[0].mxu0
    %v2687 = vadd.f32 %v2084, %v2686
    %v2688 = vpop.f32.mrb[0].mxu0
    %2689 = vmatprep.mubr.f32.mxu0 0.0
    %v2690 = vand.u32 %v54, 4294901760
    %2691 = vmatmul.mubr.f32.gmra.mrb[0].mxu0 %v2690
    %v2692 = vpop.f32.mrb[0].mxu0
    %v2693 = vadd.f32 %v2092, %v2692
    %v2694 = vpop.f32.mrb[0].mxu0
    %2695 = vmatprep.mubr.f32.mxu0 0.0
    %v2696 = vand.u32 %v55, 4294901760
    %2697 = vmatmul.mubr.f32.gmra.mrb[0].mxu0 %v2696
    %v2698 = vpop.f32.mrb[0].mxu0
    %v2699 = vadd.f32 %v2100, %v2698
    %v2700 = vpop.f32.mrb[0].mxu0
    %2701 = vmatprep.mubr.f32.mxu0 0.0
    %v2702 = vand.u32 %v56, 4294901760
    %2703 = vmatmul.mubr.f32.gmra.mrb[0].mxu0 %v2702
    %v2704 = vpop.f32.mrb[0].mxu0
    %v2705 = vadd.f32 %v2108, %v2704
    %v2706 = vpop.f32.mrb[0].mxu0
    %2707 = vmatprep.mubr.f32.mxu0 0.0
    %v2708 = vand.u32 %v57, 4294901760
    %2709 = vmatmul.mubr.f32.gmra.mrb[0].mxu0 %v2708
    %v2710 = vpop.f32.mrb[0].mxu0
    %v2711 = vadd.f32 %v2116, %v2710
    %v2712 = vpop.f32.mrb[0].mxu0
    %2713 = vmatprep.mubr.f32.mxu0 0.0
    %v2714 = vand.u32 %v58, 4294901760
    %2715 = vmatmul.mubr.f32.gmra.mrb[0].mxu0 %v2714
    %v2716 = vpop.f32.mrb[0].mxu0
    %v2717 = vadd.f32 %v2124, %v2716
    %v2718 = vpop.f32.mrb[0].mxu0
    %2719 = vmatprep.mubr.f32.mxu0 0.0
    %v2720 = vand.u32 %v59, 4294901760
    %2721 = vmatmul.mubr.f32.gmra.mrb[0].mxu0 %v2720
    %v2722 = vpop.f32.mrb[0].mxu0
    %v2723 = vadd.f32 %v2132, %v2722
    %v2724 = vpop.f32.mrb[0].mxu0
    %2725 = vmatprep.mubr.f32.mxu0 0.0
    %v2726 = vand.u32 %v60, 4294901760
    %2727 = vmatmul.mubr.f32.gmra.mrb[0].mxu0 %v2726
    %v2728 = vpop.f32.mrb[0].mxu0
    %v2729 = vadd.f32 %v2140, %v2728
    %v2730 = vpop.f32.mrb[0].mxu0
    %2731 = vmatprep.mubr.f32.mxu0 0.0
    %v2732 = vand.u32 %v61, 4294901760
    %2733 = vmatmul.mubr.f32.gmra.mrb[0].mxu0 %v2732
    %v2734 = vpop.f32.mrb[0].mxu0
    %v2735 = vadd.f32 %v2148, %v2734
    %v2736 = vpop.f32.mrb[0].mxu0
    %2737 = vmatprep.mubr.f32.mxu0 0.0
    %v2738 = vand.u32 %v62, 4294901760
    %2739 = vmatmul.mubr.f32.gmra.mrb[0].mxu0 %v2738
    %v2740 = vpop.f32.mrb[0].mxu0
    %v2741 = vadd.f32 %v2156, %v2740
    %v2742 = vpop.f32.mrb[0].mxu0
    %2743 = vmatprep.mubr.f32.mxu0 0.0
    %v2744 = vand.u32 %v63, 4294901760
    %2745 = vmatmul.mubr.f32.gmra.mrb[0].mxu0 %v2744
    %v2746 = vpop.f32.mrb[0].mxu0
    %v2747 = vadd.f32 %v2164, %v2746
    %v2748 = vpop.f32.mrb[0].mxu0
    %2749 = vmatprep.mubr.f32.mxu0 0.0
    %v2750 = vand.u32 %v64, 4294901760
    %2751 = vmatmul.mubr.f32.gmra.mrb[0].mxu0 %v2750
    %v2752 = vpop.f32.mrb[0].mxu0
    %v2753 = vadd.f32 %v2172, %v2752
    %v2754 = vpop.f32.mrb[0].mxu0
    %2755 = vmatprep.mubr.f32.mxu0 0.0
    %v2756 = vand.u32 %v65, 4294901760
    %2757 = vmatmul.mubr.f32.gmra.mrb[0].mxu0 %v2756
    %v2758 = vpop.f32.mrb[0].mxu0
    %v2759 = vadd.f32 %v2180, %v2758
    %v2760 = vpop.f32.mrb[0].mxu0
    %2761 = vmatprep.mubr.f32.mxu0 0.0
    %v2762 = vand.u32 %v66, 4294901760
    %2763 = vmatmul.mubr.f32.gmra.mrb[0].mxu0 %v2762
    %v2764 = vpop.f32.mrb[0].mxu0
    %v2765 = vadd.f32 %v2188, %v2764
    %v2766 = vpop.f32.mrb[0].mxu0
    %2767 = vmatprep.mubr.f32.mxu0 0.0
    %v2768 = vand.u32 %v67, 4294901760
    %2769 = vmatmul.mubr.f32.gmra.mrb[0].mxu0 %v2768
    %v2770 = vpop.f32.mrb[0].mxu0
    %v2771 = vadd.f32 %v2196, %v2770
    %v2772 = vpop.f32.mrb[0].mxu0
    %2773 = vmatprep.mubr.f32.mxu0 0.0
    %v2774 = vand.u32 %v68, 4294901760
    %2775 = vmatmul.mubr.f32.gmra.mrb[0].mxu0 %v2774
    %v2776 = vpop.f32.mrb[0].mxu0
    %v2777 = vadd.f32 %v2204, %v2776
    %v2778 = vpop.f32.mrb[0].mxu0
    %2779 = vmatprep.mubr.f32.mxu0 0.0
    %v2780 = vand.u32 %v69, 4294901760
    %2781 = vmatmul.mubr.f32.gmra.mrb[0].mxu0 %v2780
    %v2782 = vpop.f32.mrb[0].mxu0
    %v2783 = vadd.f32 %v2212, %v2782
    %v2784 = vpop.f32.mrb[0].mxu0
    %2785 = vmatprep.mubr.f32.mxu0 0.0
    %v2786 = vand.u32 %v70, 4294901760
    %2787 = vmatmul.mubr.f32.gmra.mrb[0].mxu0 %v2786
    %v2788 = vpop.f32.mrb[0].mxu0
    %v2789 = vadd.f32 %v2220, %v2788
    %v2790 = vpop.f32.mrb[0].mxu0
    %2791 = vmatprep.mubr.f32.mxu0 0.0
    %v2792 = vand.u32 %v71, 4294901760
    %2793 = vmatmul.mubr.f32.gmra.mrb[0].mxu0 %v2792
    %v2794 = vpop.f32.mrb[0].mxu0
    %v2795 = vadd.f32 %v2228, %v2794
    %v2796 = vpop.f32.mrb[0].mxu0
    %2797 = vmatprep.mubr.f32.mxu0 0.0
    %v2798 = vand.u32 %v72, 4294901760
    %2799 = vmatmul.mubr.f32.gmra.mrb[0].mxu0 %v2798
    %v2800 = vpop.f32.mrb[0].mxu0
    %v2801 = vadd.f32 %v2236, %v2800
    %v2802 = vpop.f32.mrb[0].mxu0
    %2803 = vmatprep.mubr.f32.mxu0 0.0
    %v2804 = vand.u32 %v73, 4294901760
    %2805 = vmatmul.mubr.f32.gmra.mrb[0].mxu0 %v2804
    %v2806 = vpop.f32.mrb[0].mxu0
    %v2807 = vadd.f32 %v2244, %v2806
    %v2808 = vpop.f32.mrb[0].mxu0
    %2809 = vmatprep.mubr.f32.mxu0 0.0
    %v2810 = vand.u32 %v74, 4294901760
    %2811 = vmatmul.mubr.f32.gmra.mrb[0].mxu0 %v2810
    %v2812 = vpop.f32.mrb[0].mxu0
    %v2813 = vadd.f32 %v2252, %v2812
    %v2814 = vpop.f32.mrb[0].mxu0
    %2815 = vmatprep.mubr.f32.mxu0 0.0
    %v2816 = vand.u32 %v75, 4294901760
    %2817 = vmatmul.mubr.f32.gmra.mrb[0].mxu0 %v2816
    %v2818 = vpop.f32.mrb[0].mxu0
    %v2819 = vadd.f32 %v2260, %v2818
    %v2820 = vpop.f32.mrb[0].mxu0
    %2821 = vmatprep.mubr.f32.mxu0 0.0
    %v2822 = vand.u32 %v76, 4294901760
    %2823 = vmatmul.mubr.f32.gmra.mrb[0].mxu0 %v2822
    %v2824 = vpop.f32.mrb[0].mxu0
    %v2825 = vadd.f32 %v2268, %v2824
    %v2826 = vpop.f32.mrb[0].mxu0
    %2827 = vmatprep.mubr.f32.mxu0 0.0
    %v2828 = vand.u32 %v77, 4294901760
    %2829 = vmatmul.mubr.f32.gmra.mrb[0].mxu0 %v2828
    %v2830 = vpop.f32.mrb[0].mxu0
    %v2831 = vadd.f32 %v2276, %v2830
    %v2832 = vpop.f32.mrb[0].mxu0
    %2833 = vmatprep.mubr.f32.mxu0 0.0
    %v2834 = vand.u32 %v78, 4294901760
    %2835 = vmatmul.mubr.f32.gmra.mrb[0].mxu0 %v2834
    %v2836 = vpop.f32.mrb[0].mxu0
    %v2837 = vadd.f32 %v2284, %v2836
    %v2838 = vpop.f32.mrb[0].mxu0
    %2839 = vmatprep.mubr.f32.mxu0 0.0
    %v2840 = vand.u32 %v79, 4294901760
    %2841 = vmatmul.mubr.f32.gmra.mrb[0].mxu0 %v2840
    %v2842 = vpop.f32.mrb[0].mxu0
    %v2843 = vadd.f32 %v2292, %v2842
    %v2844 = vpop.f32.mrb[0].mxu0
    %2845 = vmatprep.mubr.f32.mxu0 0.0
    %v2846 = vand.u32 %v80, 4294901760
    %2847 = vmatmul.mubr.f32.gmra.mrb[0].mxu0 %v2846
    %v2848 = vpop.f32.mrb[0].mxu0
    %v2849 = vadd.f32 %v2300, %v2848
    %v2850 = vpop.f32.mrb[0].mxu0
    %2851 = vmatprep.mubr.f32.mxu0 0.0
    %v2852 = vand.u32 %v81, 4294901760
    %2853 = vmatmul.mubr.f32.gmra.mrb[0].mxu0 %v2852
    %v2854 = vpop.f32.mrb[0].mxu0
    %v2855 = vadd.f32 %v2308, %v2854
    %v2856 = vpop.f32.mrb[0].mxu0
    %2857 = vmatprep.mubr.f32.mxu0 0.0
    %v2858 = vand.u32 %v82, 4294901760
    %2859 = vmatmul.mubr.f32.gmra.mrb[0].mxu0 %v2858
    %v2860 = vpop.f32.mrb[0].mxu0
    %v2861 = vadd.f32 %v2316, %v2860
    %v2862 = vpop.f32.mrb[0].mxu0
    %2863 = vmatprep.mubr.f32.mxu0 0.0
    %v2864 = vand.u32 %v83, 4294901760
    %2865 = vmatmul.mubr.f32.gmra.mrb[0].mxu0 %v2864
    %v2866 = vpop.f32.mrb[0].mxu0
    %v2867 = vadd.f32 %v2324, %v2866
    %v2868 = vpop.f32.mrb[0].mxu0
    %2869 = vmatprep.mubr.f32.mxu0 0.0
    %v2870 = vand.u32 %v84, 4294901760
    %2871 = vmatmul.mubr.f32.gmra.mrb[0].mxu0 %v2870
    %v2872 = vpop.f32.mrb[0].mxu0
    %v2873 = vadd.f32 %v2332, %v2872
    %v2874 = vpop.f32.mrb[0].mxu0
    %2875 = vmatprep.mubr.f32.mxu0 0.0
    %v2876 = vand.u32 %v85, 4294901760
    %2877 = vmatmul.mubr.f32.gmra.mrb[0].mxu0 %v2876
    %v2878 = vpop.f32.mrb[0].mxu0
    %v2879 = vadd.f32 %v2340, %v2878
    %v2880 = vpop.f32.mrb[0].mxu0
    %2881 = vmatprep.mubr.f32.mxu0 0.0
    %v2882 = vand.u32 %v86, 4294901760
    %2883 = vmatmul.mubr.f32.gmra.mrb[0].mxu0 %v2882
    %v2884 = vpop.f32.mrb[0].mxu0
    %v2885 = vadd.f32 %v2348, %v2884
    %v2886 = vpop.f32.mrb[0].mxu0
    %2887 = vmatprep.mubr.f32.mxu0 0.0
    %v2888 = vand.u32 %v87, 4294901760
    %2889 = vmatmul.mubr.f32.gmra.mrb[0].mxu0 %v2888
    %v2890 = vpop.f32.mrb[0].mxu0
    %v2891 = vadd.f32 %v2356, %v2890
    %v2892 = vpop.f32.mrb[0].mxu0
    %2893 = vmatprep.mubr.f32.mxu0 0.0
    %v2894 = vand.u32 %v88, 4294901760
    %2895 = vmatmul.mubr.f32.gmra.mrb[0].mxu0 %v2894
    %v2896 = vpop.f32.mrb[0].mxu0
    %v2897 = vadd.f32 %v2364, %v2896
    %v2898 = vpop.f32.mrb[0].mxu0
    %2899 = vmatprep.mubr.f32.mxu0 0.0
    %v2900 = vand.u32 %v89, 4294901760
    %2901 = vmatmul.mubr.f32.gmra.mrb[0].mxu0 %v2900
    %v2902 = vpop.f32.mrb[0].mxu0
    %v2903 = vadd.f32 %v2372, %v2902
    %v2904 = vpop.f32.mrb[0].mxu0
    %2905 = vmatprep.mubr.f32.mxu0 0.0
    %v2906 = vand.u32 %v90, 4294901760
    %2907 = vmatmul.mubr.f32.gmra.mrb[0].mxu0 %v2906
    %v2908 = vpop.f32.mrb[0].mxu0
    %v2909 = vadd.f32 %v2380, %v2908
    %v2910 = vpop.f32.mrb[0].mxu0
    %2911 = vmatprep.mubr.f32.mxu0 0.0
    %v2912 = vand.u32 %v91, 4294901760
    %2913 = vmatmul.mubr.f32.gmra.mrb[0].mxu0 %v2912
    %v2914 = vpop.f32.mrb[0].mxu0
    %v2915 = vadd.f32 %v2388, %v2914
    %v2916 = vpop.f32.mrb[0].mxu0
    %2917 = vmatprep.mubr.f32.mxu0 0.0
    %v2918 = vand.u32 %v92, 4294901760
    %2919 = vmatmul.mubr.f32.gmra.mrb[0].mxu0 %v2918
    %v2920 = vpop.f32.mrb[0].mxu0
    %v2921 = vadd.f32 %v2396, %v2920
    %v2922 = vpop.f32.mrb[0].mxu0
    %2923 = vmatprep.mubr.f32.mxu0 0.0
    %v2924 = vand.u32 %v93, 4294901760
    %2925 = vmatmul.mubr.f32.gmra.mrb[0].mxu0 %v2924
    %v2926 = vpop.f32.mrb[0].mxu0
    %v2927 = vadd.f32 %v2404, %v2926
    %v2928 = vpop.f32.mrb[0].mxu0
    %2929 = vmatprep.mubr.f32.mxu0 0.0
    %v2930 = vand.u32 %v94, 4294901760
    %2931 = vmatmul.mubr.f32.gmra.mrb[0].mxu0 %v2930
    %v2932 = vpop.f32.mrb[0].mxu0
    %v2933 = vadd.f32 %v2412, %v2932
    %v2934 = vpop.f32.mrb[0].mxu0
    %2935 = vmatprep.mubr.f32.mxu0 0.0
    %v2936 = vand.u32 %v95, 4294901760
    %2937 = vmatmul.mubr.f32.gmra.mrb[0].mxu0 %v2936
    %v2938 = vpop.f32.mrb[0].mxu0
    %v2939 = vadd.f32 %v2420, %v2938
    %v2940 = vpop.f32.mrb[0].mxu0
    %2941 = vmatprep.mubr.f32.mxu0 0.0
    %v2942 = vand.u32 %v96, 4294901760
    %2943 = vmatmul.mubr.f32.gmra.mrb[0].mxu0 %v2942
    %v2944 = vpop.f32.mrb[0].mxu0
    %v2945 = vadd.f32 %v2428, %v2944
    %v2946 = vpop.f32.mrb[0].mxu0
    %2947 = vmatprep.mubr.f32.mxu0 0.0
    %v2948 = vand.u32 %v97, 4294901760
    %2949 = vmatmul.mubr.f32.gmra.mrb[0].mxu0 %v2948
    %v2950 = vpop.f32.mrb[0].mxu0
    %v2951 = vadd.f32 %v2436, %v2950
    %v2952 = vpop.f32.mrb[0].mxu0
    %2953 = vmatprep.mubr.f32.mxu0 0.0
    %v2954 = vand.u32 %v98, 4294901760
    %2955 = vmatmul.mubr.f32.gmra.mrb[0].mxu0 %v2954
    %v2956 = vpop.f32.mrb[0].mxu0
    %v2957 = vadd.f32 %v2444, %v2956
    %v2958 = vpop.f32.mrb[0].mxu0
    %2959 = vmatprep.mubr.f32.mxu0 0.0
    %v2960 = vand.u32 %v99, 4294901760
    %2961 = vmatmul.mubr.f32.gmra.mrb[0].mxu0 %v2960
    %v2962 = vpop.f32.mrb[0].mxu0
    %v2963 = vadd.f32 %v2452, %v2962
    %v2964 = vpop.f32.mrb[0].mxu0
    %2965 = vmatprep.mubr.f32.mxu0 0.0
    %v2966 = vand.u32 %v100, 4294901760
    %2967 = vmatmul.mubr.f32.gmra.mrb[0].mxu0 %v2966
    %v2968 = vpop.f32.mrb[0].mxu0
    %v2969 = vadd.f32 %v2460, %v2968
    %v2970 = vpop.f32.mrb[0].mxu0
    %2971 = vmatprep.mubr.f32.mxu0 0.0
    %v2972 = vand.u32 %v101, 4294901760
    %2973 = vmatmul.mubr.f32.gmra.mrb[0].mxu0 %v2972
    %v2974 = vpop.f32.mrb[0].mxu0
    %v2975 = vadd.f32 %v2468, %v2974
    %v2976 = vpop.f32.mrb[0].mxu0
    %2977 = vmatprep.mubr.f32.mxu0 0.0
    %v2978 = vand.u32 %v102, 4294901760
    %2979 = vmatmul.mubr.f32.gmra.mrb[0].mxu0 %v2978
    %v2980 = vpop.f32.mrb[0].mxu0
    %v2981 = vadd.f32 %v2476, %v2980
    %v2982 = vpop.f32.mrb[0].mxu0
    %2983 = vmatprep.mubr.f32.mxu0 0.0
    %v2984 = vand.u32 %v103, 4294901760
    %2985 = vmatmul.mubr.f32.gmra.mrb[0].mxu0 %v2984
    %v2986 = vpop.f32.mrb[0].mxu0
    %v2987 = vadd.f32 %v2484, %v2986
    %v2988 = vpop.f32.mrb[0].mxu0
    %2989 = vmatprep.mubr.f32.mxu0 0.0
    %v2990 = vand.u32 %v104, 4294901760
    %2991 = vmatmul.mubr.f32.gmra.mrb[0].mxu0 %v2990
    %v2992 = vpop.f32.mrb[0].mxu0
    %v2993 = vadd.f32 %v2492, %v2992
    %v2994 = vpop.f32.mrb[0].mxu0
    %2995 = vmatprep.mubr.f32.mxu0 0.0
    %v2996 = vand.u32 %v105, 4294901760
    %2997 = vmatmul.mubr.f32.gmra.mrb[0].mxu0 %v2996
    %v2998 = vpop.f32.mrb[0].mxu0
    %v2999 = vadd.f32 %v2500, %v2998
    %v3000 = vpop.f32.mrb[0].mxu0
    %3001 = vmatprep.mubr.f32.mxu0 0.0
    %v3002 = vand.u32 %v106, 4294901760
    %3003 = vmatmul.mubr.f32.gmra.mrb[0].mxu0 %v3002
    %v3004 = vpop.f32.mrb[0].mxu0
    %v3005 = vadd.f32 %v2508, %v3004
    %v3006 = vpop.f32.mrb[0].mxu0
    %3007 = vdwg.mxu0
    %3008 = vmatprep.subr.mxu0 0.0
    %v3009 = vand.u32 %v107, 4294901760
    %3010 = vmatpush1.msra.mxu0 %v3009
    %3011 = vmatprep.subr.mxu0 0.0
    %v3012 = vand.u32 %v108, 4294901760
    %3013 = vmatpush1.msra.mxu0 %v3012
    %3014 = vmatprep.subr.mxu0 0.0
    %v3015 = vand.u32 %v109, 4294901760
    %3016 = vmatpush1.msra.mxu0 %v3015
    %3017 = vmatprep.subr.mxu0 0.0
    %v3018 = vand.u32 %v110, 4294901760
    %3019 = vmatpush1.msra.mxu0 %v3018
    %3020 = vmatprep.subr.mxu0 0.0
    %v3021 = vand.u32 %v111, 4294901760
    %3022 = vmatpush1.msra.mxu0 %v3021
    %3023 = vmatprep.subr.mxu0 0.0
    %v3024 = vand.u32 %v112, 4294901760
    %3025 = vmatpush1.msra.mxu0 %v3024
    %3026 = vmatprep.subr.mxu0 0.0
    %v3027 = vand.u32 %v113, 4294901760
    %3028 = vmatpush1.msra.mxu0 %v3027
    %3029 = vmatprep.subr.mxu0 0.0
    %v3030 = vand.u32 %v114, 4294901760
    %3031 = vmatpush1.msra.mxu0 %v3030
    %3032 = vmatprep.subr.mxu0 0.0
    %v3033 = vand.u32 %v115, 4294901760
    %3034 = vmatpush1.msra.mxu0 %v3033
    %3035 = vmatprep.subr.mxu0 0.0
    %v3036 = vand.u32 %v116, 4294901760
    %3037 = vmatpush1.msra.mxu0 %v3036
    %3038 = vmatprep.subr.mxu0 0.0
    %v3039 = vand.u32 %v117, 4294901760
    %3040 = vmatpush1.msra.mxu0 %v3039
    %3041 = vmatprep.subr.mxu0 0.0
    %v3042 = vand.u32 %v118, 4294901760
    %3043 = vmatpush1.msra.mxu0 %v3042
    %3044 = vmatprep.subr.mxu0 0.0
    %v3045 = vand.u32 %v119, 4294901760
    %3046 = vmatpush1.msra.mxu0 %v3045
    %3047 = vmatprep.subr.mxu0 0.0
    %v3048 = vand.u32 %v120, 4294901760
    %3049 = vmatpush1.msra.mxu0 %v3048
    %3050 = vmatprep.subr.mxu0 0.0
    %v3051 = vand.u32 %v121, 4294901760
    %3052 = vmatpush1.msra.mxu0 %v3051
    %3053 = vmatprep.subr.mxu0 0.0
    %v3054 = vand.u32 %v122, 4294901760
    %3055 = vmatpush1.msra.mxu0 %v3054
    %3056 = vmatprep.subr.mxu0 0.0
    %3057 = vmatpush1.msra.mxu0 0.0
    %3058 = vmatprep.subr.mxu0 0.0
    %3059 = vmatpush1.msra.mxu0 0.0
    %3060 = vmatprep.subr.mxu0 0.0
    %3061 = vmatpush1.msra.mxu0 0.0
    %3062 = vmatprep.subr.mxu0 0.0
    %3063 = vmatpush1.msra.mxu0 0.0
    %3064 = vmatprep.subr.mxu0 0.0
    %3065 = vmatpush1.msra.mxu0 0.0
    %3066 = vmatprep.subr.mxu0 0.0
    %3067 = vmatpush1.msra.mxu0 0.0
    %3068 = vmatprep.subr.mxu0 0.0
    %3069 = vmatpush1.msra.mxu0 0.0
    %3070 = vmatprep.subr.mxu0 0.0
    %3071 = vmatpush1.msra.mxu0 0.0
    %3072 = vmatprep.subr.mxu0 0.0
    %3073 = vmatpush1.msra.mxu0 0.0
    %3074 = vmatprep.subr.mxu0 0.0
    %3075 = vmatpush1.msra.mxu0 0.0
    %3076 = vmatprep.subr.mxu0 0.0
    %3077 = vmatpush1.msra.mxu0 0.0
    %3078 = vmatprep.subr.mxu0 0.0
    %3079 = vmatpush1.msra.mxu0 0.0
    %3080 = vmatprep.subr.mxu0 0.0
    %3081 = vmatpush1.msra.mxu0 0.0
    %3082 = vmatprep.subr.mxu0 0.0
    %3083 = vmatpush1.msra.mxu0 0.0
    %3084 = vmatprep.subr.mxu0 0.0
    %3085 = vmatpush1.msra.mxu0 0.0
    %3086 = vmatprep.subr.mxu0 0.0
    %3087 = vmatpush1.msra.mxu0 0.0
    %3088 = vmatprep.mubr.f32.mxu0 0.0
    %v3089 = vand.u32 %v43, 4294901760
    %3090 = vmatmul.mubr.f32.gmra.mrb[0].mxu0 %v3089
    %v3091 = vpop.f32.mrb[0].mxu0
    %v3092 = vadd.f32 %v2627, %v3091
    %v3093 = vpop.f32.mrb[0].mxu0
    %3094 = vmatprep.mubr.f32.mxu0 0.0
    %v3095 = vand.u32 %v44, 4294901760
    %3096 = vmatmul.mubr.f32.gmra.mrb[0].mxu0 %v3095
    %v3097 = vpop.f32.mrb[0].mxu0
    %v3098 = vadd.f32 %v2633, %v3097
    %v3099 = vpop.f32.mrb[0].mxu0
    %3100 = vmatprep.mubr.f32.mxu0 0.0
    %v3101 = vand.u32 %v45, 4294901760
    %3102 = vmatmul.mubr.f32.gmra.mrb[0].mxu0 %v3101
    %v3103 = vpop.f32.mrb[0].mxu0
    %v3104 = vadd.f32 %v2639, %v3103
    %v3105 = vpop.f32.mrb[0].mxu0
    %3106 = vmatprep.mubr.f32.mxu0 0.0
    %v3107 = vand.u32 %v46, 4294901760
    %3108 = vmatmul.mubr.f32.gmra.mrb[0].mxu0 %v3107
    %v3109 = vpop.f32.mrb[0].mxu0
    %v3110 = vadd.f32 %v2645, %v3109
    %v3111 = vpop.f32.mrb[0].mxu0
    %3112 = vmatprep.mubr.f32.mxu0 0.0
    %v3113 = vand.u32 %v47, 4294901760
    %3114 = vmatmul.mubr.f32.gmra.mrb[0].mxu0 %v3113
    %v3115 = vpop.f32.mrb[0].mxu0
    %v3116 = vadd.f32 %v2651, %v3115
    %v3117 = vpop.f32.mrb[0].mxu0
    %3118 = vmatprep.mubr.f32.mxu0 0.0
    %v3119 = vand.u32 %v48, 4294901760
    %3120 = vmatmul.mubr.f32.gmra.mrb[0].mxu0 %v3119
    %v3121 = vpop.f32.mrb[0].mxu0
    %v3122 = vadd.f32 %v2657, %v3121
    %v3123 = vpop.f32.mrb[0].mxu0
    %3124 = vmatprep.mubr.f32.mxu0 0.0
    %v3125 = vand.u32 %v49, 4294901760
    %3126 = vmatmul.mubr.f32.gmra.mrb[0].mxu0 %v3125
    %v3127 = vpop.f32.mrb[0].mxu0
    %v3128 = vadd.f32 %v2663, %v3127
    %v3129 = vpop.f32.mrb[0].mxu0
    %3130 = vmatprep.mubr.f32.mxu0 0.0
    %v3131 = vand.u32 %v50, 4294901760
    %3132 = vmatmul.mubr.f32.gmra.mrb[0].mxu0 %v3131
    %v3133 = vpop.f32.mrb[0].mxu0
    %v3134 = vadd.f32 %v2669, %v3133
    %v3135 = vpop.f32.mrb[0].mxu0
    %3136 = vmatprep.mubr.f32.mxu0 0.0
    %v3137 = vand.u32 %v51, 4294901760
    %3138 = vmatmul.mubr.f32.gmra.mrb[0].mxu0 %v3137
    %v3139 = vpop.f32.mrb[0].mxu0
    %v3140 = vadd.f32 %v2675, %v3139
    %v3141 = vpop.f32.mrb[0].mxu0
    %3142 = vmatprep.mubr.f32.mxu0 0.0
    %v3143 = vand.u32 %v52, 4294901760
    %3144 = vmatmul.mubr.f32.gmra.mrb[0].mxu0 %v3143
    %v3145 = vpop.f32.mrb[0].mxu0
    %v3146 = vadd.f32 %v2681, %v3145
    %v3147 = vpop.f32.mrb[0].mxu0
    %3148 = vmatprep.mubr.f32.mxu0 0.0
    %v3149 = vand.u32 %v53, 4294901760
    %3150 = vmatmul.mubr.f32.gmra.mrb[0].mxu0 %v3149
    %v3151 = vpop.f32.mrb[0].mxu0
    %v3152 = vadd.f32 %v2687, %v3151
    %v3153 = vpop.f32.mrb[0].mxu0
    %3154 = vmatprep.mubr.f32.mxu0 0.0
    %v3155 = vand.u32 %v54, 4294901760
    %3156 = vmatmul.mubr.f32.gmra.mrb[0].mxu0 %v3155
    %v3157 = vpop.f32.mrb[0].mxu0
    %v3158 = vadd.f32 %v2693, %v3157
    %v3159 = vpop.f32.mrb[0].mxu0
    %3160 = vmatprep.mubr.f32.mxu0 0.0
    %v3161 = vand.u32 %v55, 4294901760
    %3162 = vmatmul.mubr.f32.gmra.mrb[0].mxu0 %v3161
    %v3163 = vpop.f32.mrb[0].mxu0
    %v3164 = vadd.f32 %v2699, %v3163
    %v3165 = vpop.f32.mrb[0].mxu0
    %3166 = vmatprep.mubr.f32.mxu0 0.0
    %v3167 = vand.u32 %v56, 4294901760
    %3168 = vmatmul.mubr.f32.gmra.mrb[0].mxu0 %v3167
    %v3169 = vpop.f32.mrb[0].mxu0
    %v3170 = vadd.f32 %v2705, %v3169
    %v3171 = vpop.f32.mrb[0].mxu0
    %3172 = vmatprep.mubr.f32.mxu0 0.0
    %v3173 = vand.u32 %v57, 4294901760
    %3174 = vmatmul.mubr.f32.gmra.mrb[0].mxu0 %v3173
    %v3175 = vpop.f32.mrb[0].mxu0
    %v3176 = vadd.f32 %v2711, %v3175
    %v3177 = vpop.f32.mrb[0].mxu0
    %3178 = vmatprep.mubr.f32.mxu0 0.0
    %v3179 = vand.u32 %v58, 4294901760
    %3180 = vmatmul.mubr.f32.gmra.mrb[0].mxu0 %v3179
    %v3181 = vpop.f32.mrb[0].mxu0
    %v3182 = vadd.f32 %v2717, %v3181
    %v3183 = vpop.f32.mrb[0].mxu0
    %3184 = vmatprep.mubr.f32.mxu0 0.0
    %v3185 = vand.u32 %v59, 4294901760
    %3186 = vmatmul.mubr.f32.gmra.mrb[0].mxu0 %v3185
    %v3187 = vpop.f32.mrb[0].mxu0
    %v3188 = vadd.f32 %v2723, %v3187
    %v3189 = vpop.f32.mrb[0].mxu0
    %3190 = vmatprep.mubr.f32.mxu0 0.0
    %v3191 = vand.u32 %v60, 4294901760
    %3192 = vmatmul.mubr.f32.gmra.mrb[0].mxu0 %v3191
    %v3193 = vpop.f32.mrb[0].mxu0
    %v3194 = vadd.f32 %v2729, %v3193
    %v3195 = vpop.f32.mrb[0].mxu0
    %3196 = vmatprep.mubr.f32.mxu0 0.0
    %v3197 = vand.u32 %v61, 4294901760
    %3198 = vmatmul.mubr.f32.gmra.mrb[0].mxu0 %v3197
    %v3199 = vpop.f32.mrb[0].mxu0
    %v3200 = vadd.f32 %v2735, %v3199
    %v3201 = vpop.f32.mrb[0].mxu0
    %3202 = vmatprep.mubr.f32.mxu0 0.0
    %v3203 = vand.u32 %v62, 4294901760
    %3204 = vmatmul.mubr.f32.gmra.mrb[0].mxu0 %v3203
    %v3205 = vpop.f32.mrb[0].mxu0
    %v3206 = vadd.f32 %v2741, %v3205
    %v3207 = vpop.f32.mrb[0].mxu0
    %3208 = vmatprep.mubr.f32.mxu0 0.0
    %v3209 = vand.u32 %v63, 4294901760
    %3210 = vmatmul.mubr.f32.gmra.mrb[0].mxu0 %v3209
    %v3211 = vpop.f32.mrb[0].mxu0
    %v3212 = vadd.f32 %v2747, %v3211
    %v3213 = vpop.f32.mrb[0].mxu0
    %3214 = vmatprep.mubr.f32.mxu0 0.0
    %v3215 = vand.u32 %v64, 4294901760
    %3216 = vmatmul.mubr.f32.gmra.mrb[0].mxu0 %v3215
    %v3217 = vpop.f32.mrb[0].mxu0
    %v3218 = vadd.f32 %v2753, %v3217
    %v3219 = vpop.f32.mrb[0].mxu0
    %3220 = vmatprep.mubr.f32.mxu0 0.0
    %v3221 = vand.u32 %v65, 4294901760
    %3222 = vmatmul.mubr.f32.gmra.mrb[0].mxu0 %v3221
    %v3223 = vpop.f32.mrb[0].mxu0
    %v3224 = vadd.f32 %v2759, %v3223
    %v3225 = vpop.f32.mrb[0].mxu0
    %3226 = vmatprep.mubr.f32.mxu0 0.0
    %v3227 = vand.u32 %v66, 4294901760
    %3228 = vmatmul.mubr.f32.gmra.mrb[0].mxu0 %v3227
    %v3229 = vpop.f32.mrb[0].mxu0
    %v3230 = vadd.f32 %v2765, %v3229
    %v3231 = vpop.f32.mrb[0].mxu0
    %3232 = vmatprep.mubr.f32.mxu0 0.0
    %v3233 = vand.u32 %v67, 4294901760
    %3234 = vmatmul.mubr.f32.gmra.mrb[0].mxu0 %v3233
    %v3235 = vpop.f32.mrb[0].mxu0
    %v3236 = vadd.f32 %v2771, %v3235
    %v3237 = vpop.f32.mrb[0].mxu0
    %3238 = vmatprep.mubr.f32.mxu0 0.0
    %v3239 = vand.u32 %v68, 4294901760
    %3240 = vmatmul.mubr.f32.gmra.mrb[0].mxu0 %v3239
    %v3241 = vpop.f32.mrb[0].mxu0
    %v3242 = vadd.f32 %v2777, %v3241
    %v3243 = vpop.f32.mrb[0].mxu0
    %3244 = vmatprep.mubr.f32.mxu0 0.0
    %v3245 = vand.u32 %v69, 4294901760
    %3246 = vmatmul.mubr.f32.gmra.mrb[0].mxu0 %v3245
    %v3247 = vpop.f32.mrb[0].mxu0
    %v3248 = vadd.f32 %v2783, %v3247
    %v3249 = vpop.f32.mrb[0].mxu0
    %3250 = vmatprep.mubr.f32.mxu0 0.0
    %v3251 = vand.u32 %v70, 4294901760
    %3252 = vmatmul.mubr.f32.gmra.mrb[0].mxu0 %v3251
    %v3253 = vpop.f32.mrb[0].mxu0
    %v3254 = vadd.f32 %v2789, %v3253
    %v3255 = vpop.f32.mrb[0].mxu0
    %3256 = vmatprep.mubr.f32.mxu0 0.0
    %v3257 = vand.u32 %v71, 4294901760
    %3258 = vmatmul.mubr.f32.gmra.mrb[0].mxu0 %v3257
    %v3259 = vpop.f32.mrb[0].mxu0
    %v3260 = vadd.f32 %v2795, %v3259
    %v3261 = vpop.f32.mrb[0].mxu0
    %3262 = vmatprep.mubr.f32.mxu0 0.0
    %v3263 = vand.u32 %v72, 4294901760
    %3264 = vmatmul.mubr.f32.gmra.mrb[0].mxu0 %v3263
    %v3265 = vpop.f32.mrb[0].mxu0
    %v3266 = vadd.f32 %v2801, %v3265
    %v3267 = vpop.f32.mrb[0].mxu0
    %3268 = vmatprep.mubr.f32.mxu0 0.0
    %v3269 = vand.u32 %v73, 4294901760
    %3270 = vmatmul.mubr.f32.gmra.mrb[0].mxu0 %v3269
    %v3271 = vpop.f32.mrb[0].mxu0
    %v3272 = vadd.f32 %v2807, %v3271
    %v3273 = vpop.f32.mrb[0].mxu0
    %3274 = vmatprep.mubr.f32.mxu0 0.0
    %v3275 = vand.u32 %v74, 4294901760
    %3276 = vmatmul.mubr.f32.gmra.mrb[0].mxu0 %v3275
    %v3277 = vpop.f32.mrb[0].mxu0
    %v3278 = vadd.f32 %v2813, %v3277
    %v3279 = vpop.f32.mrb[0].mxu0
    %3280 = vmatprep.mubr.f32.mxu0 0.0
    %v3281 = vand.u32 %v75, 4294901760
    %3282 = vmatmul.mubr.f32.gmra.mrb[0].mxu0 %v3281
    %v3283 = vpop.f32.mrb[0].mxu0
    %v3284 = vadd.f32 %v2819, %v3283
    %v3285 = vpop.f32.mrb[0].mxu0
    %3286 = vmatprep.mubr.f32.mxu0 0.0
    %v3287 = vand.u32 %v76, 4294901760
    %3288 = vmatmul.mubr.f32.gmra.mrb[0].mxu0 %v3287
    %v3289 = vpop.f32.mrb[0].mxu0
    %v3290 = vadd.f32 %v2825, %v3289
    %v3291 = vpop.f32.mrb[0].mxu0
    %3292 = vmatprep.mubr.f32.mxu0 0.0
    %v3293 = vand.u32 %v77, 4294901760
    %3294 = vmatmul.mubr.f32.gmra.mrb[0].mxu0 %v3293
    %v3295 = vpop.f32.mrb[0].mxu0
    %v3296 = vadd.f32 %v2831, %v3295
    %v3297 = vpop.f32.mrb[0].mxu0
    %3298 = vmatprep.mubr.f32.mxu0 0.0
    %v3299 = vand.u32 %v78, 4294901760
    %3300 = vmatmul.mubr.f32.gmra.mrb[0].mxu0 %v3299
    %v3301 = vpop.f32.mrb[0].mxu0
    %v3302 = vadd.f32 %v2837, %v3301
    %v3303 = vpop.f32.mrb[0].mxu0
    %3304 = vmatprep.mubr.f32.mxu0 0.0
    %v3305 = vand.u32 %v79, 4294901760
    %3306 = vmatmul.mubr.f32.gmra.mrb[0].mxu0 %v3305
    %v3307 = vpop.f32.mrb[0].mxu0
    %v3308 = vadd.f32 %v2843, %v3307
    %v3309 = vpop.f32.mrb[0].mxu0
    %3310 = vmatprep.mubr.f32.mxu0 0.0
    %v3311 = vand.u32 %v80, 4294901760
    %3312 = vmatmul.mubr.f32.gmra.mrb[0].mxu0 %v3311
    %v3313 = vpop.f32.mrb[0].mxu0
    %v3314 = vadd.f32 %v2849, %v3313
    %v3315 = vpop.f32.mrb[0].mxu0
    %3316 = vmatprep.mubr.f32.mxu0 0.0
    %v3317 = vand.u32 %v81, 4294901760
    %3318 = vmatmul.mubr.f32.gmra.mrb[0].mxu0 %v3317
    %v3319 = vpop.f32.mrb[0].mxu0
    %v3320 = vadd.f32 %v2855, %v3319
    %v3321 = vpop.f32.mrb[0].mxu0
    %3322 = vmatprep.mubr.f32.mxu0 0.0
    %v3323 = vand.u32 %v82, 4294901760
    %3324 = vmatmul.mubr.f32.gmra.mrb[0].mxu0 %v3323
    %v3325 = vpop.f32.mrb[0].mxu0
    %v3326 = vadd.f32 %v2861, %v3325
    %v3327 = vpop.f32.mrb[0].mxu0
    %3328 = vmatprep.mubr.f32.mxu0 0.0
    %v3329 = vand.u32 %v83, 4294901760
    %3330 = vmatmul.mubr.f32.gmra.mrb[0].mxu0 %v3329
    %v3331 = vpop.f32.mrb[0].mxu0
    %v3332 = vadd.f32 %v2867, %v3331
    %v3333 = vpop.f32.mrb[0].mxu0
    %3334 = vmatprep.mubr.f32.mxu0 0.0
    %v3335 = vand.u32 %v84, 4294901760
    %3336 = vmatmul.mubr.f32.gmra.mrb[0].mxu0 %v3335
    %v3337 = vpop.f32.mrb[0].mxu0
    %v3338 = vadd.f32 %v2873, %v3337
    %v3339 = vpop.f32.mrb[0].mxu0
    %3340 = vmatprep.mubr.f32.mxu0 0.0
    %v3341 = vand.u32 %v85, 4294901760
    %3342 = vmatmul.mubr.f32.gmra.mrb[0].mxu0 %v3341
    %v3343 = vpop.f32.mrb[0].mxu0
    %v3344 = vadd.f32 %v2879, %v3343
    %v3345 = vpop.f32.mrb[0].mxu0
    %3346 = vmatprep.mubr.f32.mxu0 0.0
    %v3347 = vand.u32 %v86, 4294901760
    %3348 = vmatmul.mubr.f32.gmra.mrb[0].mxu0 %v3347
    %v3349 = vpop.f32.mrb[0].mxu0
    %v3350 = vadd.f32 %v2885, %v3349
    %v3351 = vpop.f32.mrb[0].mxu0
    %3352 = vmatprep.mubr.f32.mxu0 0.0
    %v3353 = vand.u32 %v87, 4294901760
    %3354 = vmatmul.mubr.f32.gmra.mrb[0].mxu0 %v3353
    %v3355 = vpop.f32.mrb[0].mxu0
    %v3356 = vadd.f32 %v2891, %v3355
    %v3357 = vpop.f32.mrb[0].mxu0
    %3358 = vmatprep.mubr.f32.mxu0 0.0
    %v3359 = vand.u32 %v88, 4294901760
    %3360 = vmatmul.mubr.f32.gmra.mrb[0].mxu0 %v3359
    %v3361 = vpop.f32.mrb[0].mxu0
    %v3362 = vadd.f32 %v2897, %v3361
    %v3363 = vpop.f32.mrb[0].mxu0
    %3364 = vmatprep.mubr.f32.mxu0 0.0
    %v3365 = vand.u32 %v89, 4294901760
    %3366 = vmatmul.mubr.f32.gmra.mrb[0].mxu0 %v3365
    %v3367 = vpop.f32.mrb[0].mxu0
    %v3368 = vadd.f32 %v2903, %v3367
    %v3369 = vpop.f32.mrb[0].mxu0
    %3370 = vmatprep.mubr.f32.mxu0 0.0
    %v3371 = vand.u32 %v90, 4294901760
    %3372 = vmatmul.mubr.f32.gmra.mrb[0].mxu0 %v3371
    %v3373 = vpop.f32.mrb[0].mxu0
    %v3374 = vadd.f32 %v2909, %v3373
    %v3375 = vpop.f32.mrb[0].mxu0
    %3376 = vmatprep.mubr.f32.mxu0 0.0
    %v3377 = vand.u32 %v91, 4294901760
    %3378 = vmatmul.mubr.f32.gmra.mrb[0].mxu0 %v3377
    %v3379 = vpop.f32.mrb[0].mxu0
    %v3380 = vadd.f32 %v2915, %v3379
    %v3381 = vpop.f32.mrb[0].mxu0
    %3382 = vmatprep.mubr.f32.mxu0 0.0
    %v3383 = vand.u32 %v92, 4294901760
    %3384 = vmatmul.mubr.f32.gmra.mrb[0].mxu0 %v3383
    %v3385 = vpop.f32.mrb[0].mxu0
    %v3386 = vadd.f32 %v2921, %v3385
    %v3387 = vpop.f32.mrb[0].mxu0
    %3388 = vmatprep.mubr.f32.mxu0 0.0
    %v3389 = vand.u32 %v93, 4294901760
    %3390 = vmatmul.mubr.f32.gmra.mrb[0].mxu0 %v3389
    %v3391 = vpop.f32.mrb[0].mxu0
    %v3392 = vadd.f32 %v2927, %v3391
    %v3393 = vpop.f32.mrb[0].mxu0
    %3394 = vmatprep.mubr.f32.mxu0 0.0
    %v3395 = vand.u32 %v94, 4294901760
    %3396 = vmatmul.mubr.f32.gmra.mrb[0].mxu0 %v3395
    %v3397 = vpop.f32.mrb[0].mxu0
    %v3398 = vadd.f32 %v2933, %v3397
    %v3399 = vpop.f32.mrb[0].mxu0
    %3400 = vmatprep.mubr.f32.mxu0 0.0
    %v3401 = vand.u32 %v95, 4294901760
    %3402 = vmatmul.mubr.f32.gmra.mrb[0].mxu0 %v3401
    %v3403 = vpop.f32.mrb[0].mxu0
    %v3404 = vadd.f32 %v2939, %v3403
    %v3405 = vpop.f32.mrb[0].mxu0
    %3406 = vmatprep.mubr.f32.mxu0 0.0
    %v3407 = vand.u32 %v96, 4294901760
    %3408 = vmatmul.mubr.f32.gmra.mrb[0].mxu0 %v3407
    %v3409 = vpop.f32.mrb[0].mxu0
    %v3410 = vadd.f32 %v2945, %v3409
    %v3411 = vpop.f32.mrb[0].mxu0
    %3412 = vmatprep.mubr.f32.mxu0 0.0
    %v3413 = vand.u32 %v97, 4294901760
    %3414 = vmatmul.mubr.f32.gmra.mrb[0].mxu0 %v3413
    %v3415 = vpop.f32.mrb[0].mxu0
    %v3416 = vadd.f32 %v2951, %v3415
    %v3417 = vpop.f32.mrb[0].mxu0
    %3418 = vmatprep.mubr.f32.mxu0 0.0
    %v3419 = vand.u32 %v98, 4294901760
    %3420 = vmatmul.mubr.f32.gmra.mrb[0].mxu0 %v3419
    %v3421 = vpop.f32.mrb[0].mxu0
    %v3422 = vadd.f32 %v2957, %v3421
    %v3423 = vpop.f32.mrb[0].mxu0
    %3424 = vmatprep.mubr.f32.mxu0 0.0
    %v3425 = vand.u32 %v99, 4294901760
    %3426 = vmatmul.mubr.f32.gmra.mrb[0].mxu0 %v3425
    %v3427 = vpop.f32.mrb[0].mxu0
    %v3428 = vadd.f32 %v2963, %v3427
    %v3429 = vpop.f32.mrb[0].mxu0
    %3430 = vmatprep.mubr.f32.mxu0 0.0
    %v3431 = vand.u32 %v100, 4294901760
    %3432 = vmatmul.mubr.f32.gmra.mrb[0].mxu0 %v3431
    %v3433 = vpop.f32.mrb[0].mxu0
    %v3434 = vadd.f32 %v2969, %v3433
    %v3435 = vpop.f32.mrb[0].mxu0
    %3436 = vmatprep.mubr.f32.mxu0 0.0
    %v3437 = vand.u32 %v101, 4294901760
    %3438 = vmatmul.mubr.f32.gmra.mrb[0].mxu0 %v3437
    %v3439 = vpop.f32.mrb[0].mxu0
    %v3440 = vadd.f32 %v2975, %v3439
    %v3441 = vpop.f32.mrb[0].mxu0
    %3442 = vmatprep.mubr.f32.mxu0 0.0
    %v3443 = vand.u32 %v102, 4294901760
    %3444 = vmatmul.mubr.f32.gmra.mrb[0].mxu0 %v3443
    %v3445 = vpop.f32.mrb[0].mxu0
    %v3446 = vadd.f32 %v2981, %v3445
    %v3447 = vpop.f32.mrb[0].mxu0
    %3448 = vmatprep.mubr.f32.mxu0 0.0
    %v3449 = vand.u32 %v103, 4294901760
    %3450 = vmatmul.mubr.f32.gmra.mrb[0].mxu0 %v3449
    %v3451 = vpop.f32.mrb[0].mxu0
    %v3452 = vadd.f32 %v2987, %v3451
    %v3453 = vpop.f32.mrb[0].mxu0
    %3454 = vmatprep.mubr.f32.mxu0 0.0
    %v3455 = vand.u32 %v104, 4294901760
    %3456 = vmatmul.mubr.f32.gmra.mrb[0].mxu0 %v3455
    %v3457 = vpop.f32.mrb[0].mxu0
    %v3458 = vadd.f32 %v2993, %v3457
    %v3459 = vpop.f32.mrb[0].mxu0
    %3460 = vmatprep.mubr.f32.mxu0 0.0
    %v3461 = vand.u32 %v105, 4294901760
    %3462 = vmatmul.mubr.f32.gmra.mrb[0].mxu0 %v3461
    %v3463 = vpop.f32.mrb[0].mxu0
    %v3464 = vadd.f32 %v2999, %v3463
    %v3465 = vpop.f32.mrb[0].mxu0
    %3466 = vmatprep.mubr.f32.mxu0 0.0
    %v3467 = vand.u32 %v106, 4294901760
    %3468 = vmatmul.mubr.f32.gmra.mrb[0].mxu0 %v3467
    %v3469 = vpop.f32.mrb[0].mxu0
    %v3470 = vadd.f32 %v3005, %v3469
    %v3471 = vpop.f32.mrb[0].mxu0
    %3472 = vdwg.mxu0
    %p3473 = scmp.eq.s32.totalorder 0, 0
    // Predicated region
    $region22: #{tpu_custom_call.1} parent=1 // pred_check
      %p3474 = pneg %p3473
    $region23: #{tpu_custom_call.1} parent=1 // pred_check_branch
      %3476 = sbr.rel (%p3474) target = $region25
    $region24: #{tpu_custom_call.1} parent=1 // pred_region
      %v3477 = vld [vmem:[%s2] sm:$0x1]
      %v3479 = vlaneseq
      %v3480 = vshrl.u32 %v3479, 7
      %v3481 = vsub.s32 0, %v3480
      %v3482 = vrot.slane %v3477, %v3481
      %v3484 = vadd.f32 %v3092, %v3482
      %v3485 = vadd.f32 %v3098, %v3482
      %v3486 = vadd.f32 %v3104, %v3482
      %v3487 = vadd.f32 %v3110, %v3482
      %v3488 = vadd.f32 %v3116, %v3482
      %v3489 = vadd.f32 %v3122, %v3482
      %v3490 = vadd.f32 %v3128, %v3482
      %v3491 = vadd.f32 %v3134, %v3482
      %v3492 = vadd.f32 %v3140, %v3482
      %v3493 = vadd.f32 %v3146, %v3482
      %v3494 = vadd.f32 %v3152, %v3482
      %v3495 = vadd.f32 %v3158, %v3482
      %v3496 = vadd.f32 %v3164, %v3482
      %v3497 = vadd.f32 %v3170, %v3482
      %v3498 = vadd.f32 %v3176, %v3482
      %v3499 = vadd.f32 %v3182, %v3482
      %v3500 = vadd.f32 %v3188, %v3482
      %v3501 = vadd.f32 %v3194, %v3482
      %v3502 = vadd.f32 %v3200, %v3482
      %v3503 = vadd.f32 %v3206, %v3482
      %v3504 = vadd.f32 %v3212, %v3482
      %v3505 = vadd.f32 %v3218, %v3482
      %v3506 = vadd.f32 %v3224, %v3482
      %v3507 = vadd.f32 %v3230, %v3482
      %v3508 = vadd.f32 %v3236, %v3482
      %v3509 = vadd.f32 %v3242, %v3482
      %v3510 = vadd.f32 %v3248, %v3482
      %v3511 = vadd.f32 %v3254, %v3482
      %v3512 = vadd.f32 %v3260, %v3482
      %v3513 = vadd.f32 %v3266, %v3482
      %v3514 = vadd.f32 %v3272, %v3482
      %v3515 = vadd.f32 %v3278, %v3482
      %v3516 = vadd.f32 %v3284, %v3482
      %v3517 = vadd.f32 %v3290, %v3482
      %v3518 = vadd.f32 %v3296, %v3482
      %v3519 = vadd.f32 %v3302, %v3482
      %v3520 = vadd.f32 %v3308, %v3482
      %v3521 = vadd.f32 %v3314, %v3482
      %v3522 = vadd.f32 %v3320, %v3482
      %v3523 = vadd.f32 %v3326, %v3482
      %v3524 = vadd.f32 %v3332, %v3482
      %v3525 = vadd.f32 %v3338, %v3482
      %v3526 = vadd.f32 %v3344, %v3482
      %v3527 = vadd.f32 %v3350, %v3482
      %v3528 = vadd.f32 %v3356, %v3482
      %v3529 = vadd.f32 %v3362, %v3482
      %v3530 = vadd.f32 %v3368, %v3482
      %v3531 = vadd.f32 %v3374, %v3482
      %v3532 = vadd.f32 %v3380, %v3482
      %v3533 = vadd.f32 %v3386, %v3482
      %v3534 = vadd.f32 %v3392, %v3482
      %v3535 = vadd.f32 %v3398, %v3482
      %v3536 = vadd.f32 %v3404, %v3482
      %v3537 = vadd.f32 %v3410, %v3482
      %v3538 = vadd.f32 %v3416, %v3482
      %v3539 = vadd.f32 %v3422, %v3482
      %v3540 = vadd.f32 %v3428, %v3482
      %v3541 = vadd.f32 %v3434, %v3482
      %v3542 = vadd.f32 %v3440, %v3482
      %v3543 = vadd.f32 %v3446, %v3482
      %v3544 = vadd.f32 %v3452, %v3482
      %v3545 = vadd.f32 %v3458, %v3482
      %v3546 = vadd.f32 %v3464, %v3482
      %v3547 = vadd.f32 %v3470, %v3482
      %3548 = vst [vmem:[#allocation7] sm:$0xff] %v3484
      %3549 = vst [vmem:[#allocation7 + $0x8] sm:$0xff] %v3485
      %3550 = vst [vmem:[#allocation7 + $0x10] sm:$0xff] %v3486
      %3551 = vst [vmem:[#allocation7 + $0x18] sm:$0xff] %v3487
      %3552 = vst [vmem:[#allocation7 + $0x20] sm:$0xff] %v3488
      %3553 = vst [vmem:[#allocation7 + $0x28] sm:$0xff] %v3489
      %3554 = vst [vmem:[#allocation7 + $0x30] sm:$0xff] %v3490
      %3555 = vst [vmem:[#allocation7 + $0x38] sm:$0xff] %v3491
      %3556 = vst [vmem:[#allocation7 + $0x40] sm:$0xff] %v3492
      %3557 = vst [vmem:[#allocation7 + $0x48] sm:$0xff] %v3493
      %3558 = vst [vmem:[#allocation7 + $0x50] sm:$0xff] %v3494
      %3559 = vst [vmem:[#allocation7 + $0x58] sm:$0xff] %v3495
      %3560 = vst [vmem:[#allocation7 + $0x60] sm:$0xff] %v3496
      %3561 = vst [vmem:[#allocation7 + $0x68] sm:$0xff] %v3497
      %3562 = vst [vmem:[#allocation7 + $0x70] sm:$0xff] %v3498
      %3563 = vst [vmem:[#allocation7 + $0x78] sm:$0xff] %v3499
      %3564 = vst [vmem:[#allocation7 + $0x80] sm:$0xff] %v3500
      %3565 = vst [vmem:[#allocation7 + $0x88] sm:$0xff] %v3501
      %3566 = vst [vmem:[#allocation7 + $0x90] sm:$0xff] %v3502
      %3567 = vst [vmem:[#allocation7 + $0x98] sm:$0xff] %v3503
      %3568 = vst [vmem:[#allocation7 + $0xa0] sm:$0xff] %v3504
      %3569 = vst [vmem:[#allocation7 + $0xa8] sm:$0xff] %v3505
      %3570 = vst [vmem:[#allocation7 + $0xb0] sm:$0xff] %v3506
      %3571 = vst [vmem:[#allocation7 + $0xb8] sm:$0xff] %v3507
      %3572 = vst [vmem:[#allocation7 + $0xc0] sm:$0xff] %v3508
      %3573 = vst [vmem:[#allocation7 + $0xc8] sm:$0xff] %v3509
      %3574 = vst [vmem:[#allocation7 + $0xd0] sm:$0xff] %v3510
      %3575 = vst [vmem:[#allocation7 + $0xd8] sm:$0xff] %v3511
      %3576 = vst [vmem:[#allocation7 + $0xe0] sm:$0xff] %v3512
      %3577 = vst [vmem:[#allocation7 + $0xe8] sm:$0xff] %v3513
      %3578 = vst [vmem:[#allocation7 + $0xf0] sm:$0xff] %v3514
      %3579 = vst [vmem:[#allocation7 + $0xf8] sm:$0xff] %v3515
      %3580 = vst [vmem:[#allocation7 + $0x100] sm:$0xff] %v3516
      %3581 = vst [vmem:[#allocation7 + $0x108] sm:$0xff] %v3517
      %3582 = vst [vmem:[#allocation7 + $0x110] sm:$0xff] %v3518
      %3583 = vst [vmem:[#allocation7 + $0x118] sm:$0xff] %v3519
      %3584 = vst [vmem:[#allocation7 + $0x120] sm:$0xff] %v3520
      %3585 = vst [vmem:[#allocation7 + $0x128] sm:$0xff] %v3521
      %3586 = vst [vmem:[#allocation7 + $0x130] sm:$0xff] %v3522
      %3587 = vst [vmem:[#allocation7 + $0x138] sm:$0xff] %v3523
      %3588 = vst [vmem:[#allocation7 + $0x140] sm:$0xff] %v3524
      %3589 = vst [vmem:[#allocation7 + $0x148] sm:$0xff] %v3525
      %3590 = vst [vmem:[#allocation7 + $0x150] sm:$0xff] %v3526
      %3591 = vst [vmem:[#allocation7 + $0x158] sm:$0xff] %v3527
      %3592 = vst [vmem:[#allocation7 + $0x160] sm:$0xff] %v3528
      %3593 = vst [vmem:[#allocation7 + $0x168] sm:$0xff] %v3529
      %3594 = vst [vmem:[#allocation7 + $0x170] sm:$0xff] %v3530
      %3595 = vst [vmem:[#allocation7 + $0x178] sm:$0xff] %v3531
      %3596 = vst [vmem:[#allocation7 + $0x180] sm:$0xff] %v3532
      %3597 = vst [vmem:[#allocation7 + $0x188] sm:$0xff] %v3533
      %3598 = vst [vmem:[#allocation7 + $0x190] sm:$0xff] %v3534
      %3599 = vst [vmem:[#allocation7 + $0x198] sm:$0xff] %v3535
      %3600 = vst [vmem:[#allocation7 + $0x1a0] sm:$0xff] %v3536
      %3601 = vst [vmem:[#allocation7 + $0x1a8] sm:$0xff] %v3537
      %3602 = vst [vmem:[#allocation7 + $0x1b0] sm:$0xff] %v3538
      %3603 = vst [vmem:[#allocation7 + $0x1b8] sm:$0xff] %v3539
      %3604 = vst [vmem:[#allocation7 + $0x1c0] sm:$0xff] %v3540
      %3605 = vst [vmem:[#allocation7 + $0x1c8] sm:$0xff] %v3541
      %3606 = vst [vmem:[#allocation7 + $0x1d0] sm:$0xff] %v3542
      %3607 = vst [vmem:[#allocation7 + $0x1d8] sm:$0xff] %v3543
      %3608 = vst [vmem:[#allocation7 + $0x1e0] sm:$0xff] %v3544
      %3609 = vst [vmem:[#allocation7 + $0x1e8] sm:$0xff] %v3545
      %3610 = vst [vmem:[#allocation7 + $0x1f0] sm:$0xff] %v3546
      %3611 = vst [vmem:[#allocation7 + $0x1f8] sm:$0xff] %v3547
    $region25: #{tpu_custom_call.1} parent=1 // pred_fallthru
      _
    %p3612 = scmp.gt.s32.totalorder 0, 0
    // Predicated region
    $region26: #{tpu_custom_call.1} parent=1 // pred_check
      %p3613 = pneg %p3612
    $region27: #{tpu_custom_call.1} parent=1 // pred_check_branch
      %3615 = sbr.rel (%p3613) target = $region29
    $region28: #{tpu_custom_call.1} parent=1 // pred_region
      %v3616 = vld [vmem:[#allocation7] sm:$0xff]
      %v3617 = vld [vmem:[#allocation7 + $0x8] sm:$0xff]
      %v3618 = vld [vmem:[#allocation7 + $0x10] sm:$0xff]
      %v3619 = vld [vmem:[#allocation7 + $0x18] sm:$0xff]
      %v3620 = vld [vmem:[#allocation7 + $0x20] sm:$0xff]
      %v3621 = vld [vmem:[#allocation7 + $0x28] sm:$0xff]
      %v3622 = vld [vmem:[#allocation7 + $0x30] sm:$0xff]
      %v3623 = vld [vmem:[#allocation7 + $0x38] sm:$0xff]
      %v3624 = vld [vmem:[#allocation7 + $0x40] sm:$0xff]
      %v3625 = vld [vmem:[#allocation7 + $0x48] sm:$0xff]
      %v3626 = vld [vmem:[#allocation7 + $0x50] sm:$0xff]
      %v3627 = vld [vmem:[#allocation7 + $0x58] sm:$0xff]
      %v3628 = vld [vmem:[#allocation7 + $0x60] sm:$0xff]
      %v3629 = vld [vmem:[#allocation7 + $0x68] sm:$0xff]
      %v3630 = vld [vmem:[#allocation7 + $0x70] sm:$0xff]
      %v3631 = vld [vmem:[#allocation7 + $0x78] sm:$0xff]
      %v3632 = vld [vmem:[#allocation7 + $0x80] sm:$0xff]
      %v3633 = vld [vmem:[#allocation7 + $0x88] sm:$0xff]
      %v3634 = vld [vmem:[#allocation7 + $0x90] sm:$0xff]
      %v3635 = vld [vmem:[#allocation7 + $0x98] sm:$0xff]
      %v3636 = vld [vmem:[#allocation7 + $0xa0] sm:$0xff]
      %v3637 = vld [vmem:[#allocation7 + $0xa8] sm:$0xff]
      %v3638 = vld [vmem:[#allocation7 + $0xb0] sm:$0xff]
      %v3639 = vld [vmem:[#allocation7 + $0xb8] sm:$0xff]
      %v3640 = vld [vmem:[#allocation7 + $0xc0] sm:$0xff]
      %v3641 = vld [vmem:[#allocation7 + $0xc8] sm:$0xff]
      %v3642 = vld [vmem:[#allocation7 + $0xd0] sm:$0xff]
      %v3643 = vld [vmem:[#allocation7 + $0xd8] sm:$0xff]
      %v3644 = vld [vmem:[#allocation7 + $0xe0] sm:$0xff]
      %v3645 = vld [vmem:[#allocation7 + $0xe8] sm:$0xff]
      %v3646 = vld [vmem:[#allocation7 + $0xf0] sm:$0xff]
      %v3647 = vld [vmem:[#allocation7 + $0xf8] sm:$0xff]
      %v3648 = vld [vmem:[#allocation7 + $0x100] sm:$0xff]
      %v3649 = vld [vmem:[#allocation7 + $0x108] sm:$0xff]
      %v3650 = vld [vmem:[#allocation7 + $0x110] sm:$0xff]
      %v3651 = vld [vmem:[#allocation7 + $0x118] sm:$0xff]
      %v3652 = vld [vmem:[#allocation7 + $0x120] sm:$0xff]
      %v3653 = vld [vmem:[#allocation7 + $0x128] sm:$0xff]
      %v3654 = vld [vmem:[#allocation7 + $0x130] sm:$0xff]
      %v3655 = vld [vmem:[#allocation7 + $0x138] sm:$0xff]
      %v3656 = vld [vmem:[#allocation7 + $0x140] sm:$0xff]
      %v3657 = vld [vmem:[#allocation7 + $0x148] sm:$0xff]
      %v3658 = vld [vmem:[#allocation7 + $0x150] sm:$0xff]
      %v3659 = vld [vmem:[#allocation7 + $0x158] sm:$0xff]
      %v3660 = vld [vmem:[#allocation7 + $0x160] sm:$0xff]
      %v3661 = vld [vmem:[#allocation7 + $0x168] sm:$0xff]
      %v3662 = vld [vmem:[#allocation7 + $0x170] sm:$0xff]
      %v3663 = vld [vmem:[#allocation7 + $0x178] sm:$0xff]
      %v3664 = vld [vmem:[#allocation7 + $0x180] sm:$0xff]
      %v3665 = vld [vmem:[#allocation7 + $0x188] sm:$0xff]
      %v3666 = vld [vmem:[#allocation7 + $0x190] sm:$0xff]
      %v3667 = vld [vmem:[#allocation7 + $0x198] sm:$0xff]
      %v3668 = vld [vmem:[#allocation7 + $0x1a0] sm:$0xff]
      %v3669 = vld [vmem:[#allocation7 + $0x1a8] sm:$0xff]
      %v3670 = vld [vmem:[#allocation7 + $0x1b0] sm:$0xff]
      %v3671 = vld [vmem:[#allocation7 + $0x1b8] sm:$0xff]
      %v3672 = vld [vmem:[#allocation7 + $0x1c0] sm:$0xff]
      %v3673 = vld [vmem:[#allocation7 + $0x1c8] sm:$0xff]
      %v3674 = vld [vmem:[#allocation7 + $0x1d0] sm:$0xff]
      %v3675 = vld [vmem:[#allocation7 + $0x1d8] sm:$0xff]
      %v3676 = vld [vmem:[#allocation7 + $0x1e0] sm:$0xff]
      %v3677 = vld [vmem:[#allocation7 + $0x1e8] sm:$0xff]
      %v3678 = vld [vmem:[#allocation7 + $0x1f0] sm:$0xff]
      %v3679 = vld [vmem:[#allocation7 + $0x1f8] sm:$0xff]
      %v3680 = vadd.f32 %v3616, %v3092
      %v3681 = vadd.f32 %v3617, %v3098
      %v3682 = vadd.f32 %v3618, %v3104
      %v3683 = vadd.f32 %v3619, %v3110
      %v3684 = vadd.f32 %v3620, %v3116
      %v3685 = vadd.f32 %v3621, %v3122
      %v3686 = vadd.f32 %v3622, %v3128
      %v3687 = vadd.f32 %v3623, %v3134
      %v3688 = vadd.f32 %v3624, %v3140
      %v3689 = vadd.f32 %v3625, %v3146
      %v3690 = vadd.f32 %v3626, %v3152
      %v3691 = vadd.f32 %v3627, %v3158
      %v3692 = vadd.f32 %v3628, %v3164
      %v3693 = vadd.f32 %v3629, %v3170
      %v3694 = vadd.f32 %v3630, %v3176
      %v3695 = vadd.f32 %v3631, %v3182
      %v3696 = vadd.f32 %v3632, %v3188
      %v3697 = vadd.f32 %v3633, %v3194
      %v3698 = vadd.f32 %v3634, %v3200
      %v3699 = vadd.f32 %v3635, %v3206
      %v3700 = vadd.f32 %v3636, %v3212
      %v3701 = vadd.f32 %v3637, %v3218
      %v3702 = vadd.f32 %v3638, %v3224
      %v3703 = vadd.f32 %v3639, %v3230
      %v3704 = vadd.f32 %v3640, %v3236
      %v3705 = vadd.f32 %v3641, %v3242
      %v3706 = vadd.f32 %v3642, %v3248
      %v3707 = vadd.f32 %v3643, %v3254
      %v3708 = vadd.f32 %v3644, %v3260
      %v3709 = vadd.f32 %v3645, %v3266
      %v3710 = vadd.f32 %v3646, %v3272
      %v3711 = vadd.f32 %v3647, %v3278
      %v3712 = vadd.f32 %v3648, %v3284
      %v3713 = vadd.f32 %v3649, %v3290
      %v3714 = vadd.f32 %v3650, %v3296
      %v3715 = vadd.f32 %v3651, %v3302
      %v3716 = vadd.f32 %v3652, %v3308
      %v3717 = vadd.f32 %v3653, %v3314
      %v3718 = vadd.f32 %v3654, %v3320
      %v3719 = vadd.f32 %v3655, %v3326
      %v3720 = vadd.f32 %v3656, %v3332
      %v3721 = vadd.f32 %v3657, %v3338
      %v3722 = vadd.f32 %v3658, %v3344
      %v3723 = vadd.f32 %v3659, %v3350
      %v3724 = vadd.f32 %v3660, %v3356
      %v3725 = vadd.f32 %v3661, %v3362
      %v3726 = vadd.f32 %v3662, %v3368
      %v3727 = vadd.f32 %v3663, %v3374
      %v3728 = vadd.f32 %v3664, %v3380
      %v3729 = vadd.f32 %v3665, %v3386
      %v3730 = vadd.f32 %v3666, %v3392
      %v3731 = vadd.f32 %v3667, %v3398
      %v3732 = vadd.f32 %v3668, %v3404
      %v3733 = vadd.f32 %v3669, %v3410
      %v3734 = vadd.f32 %v3670, %v3416
      %v3735 = vadd.f32 %v3671, %v3422
      %v3736 = vadd.f32 %v3672, %v3428
      %v3737 = vadd.f32 %v3673, %v3434
      %v3738 = vadd.f32 %v3674, %v3440
      %v3739 = vadd.f32 %v3675, %v3446
      %v3740 = vadd.f32 %v3676, %v3452
      %v3741 = vadd.f32 %v3677, %v3458
      %v3742 = vadd.f32 %v3678, %v3464
      %v3743 = vadd.f32 %v3679, %v3470
      %3744 = vst [vmem:[#allocation7] sm:$0xff] %v3680
      %3745 = vst [vmem:[#allocation7 + $0x8] sm:$0xff] %v3681
      %3746 = vst [vmem:[#allocation7 + $0x10] sm:$0xff] %v3682
      %3747 = vst [vmem:[#allocation7 + $0x18] sm:$0xff] %v3683
      %3748 = vst [vmem:[#allocation7 + $0x20] sm:$0xff] %v3684
      %3749 = vst [vmem:[#allocation7 + $0x28] sm:$0xff] %v3685
      %3750 = vst [vmem:[#allocation7 + $0x30] sm:$0xff] %v3686
      %3751 = vst [vmem:[#allocation7 + $0x38] sm:$0xff] %v3687
      %3752 = vst [vmem:[#allocation7 + $0x40] sm:$0xff] %v3688
      %3753 = vst [vmem:[#allocation7 + $0x48] sm:$0xff] %v3689
      %3754 = vst [vmem:[#allocation7 + $0x50] sm:$0xff] %v3690
      %3755 = vst [vmem:[#allocation7 + $0x58] sm:$0xff] %v3691
      %3756 = vst [vmem:[#allocation7 + $0x60] sm:$0xff] %v3692
      %3757 = vst [vmem:[#allocation7 + $0x68] sm:$0xff] %v3693
      %3758 = vst [vmem:[#allocation7 + $0x70] sm:$0xff] %v3694
      %3759 = vst [vmem:[#allocation7 + $0x78] sm:$0xff] %v3695
      %3760 = vst [vmem:[#allocation7 + $0x80] sm:$0xff] %v3696
      %3761 = vst [vmem:[#allocation7 + $0x88] sm:$0xff] %v3697
      %3762 = vst [vmem:[#allocation7 + $0x90] sm:$0xff] %v3698
      %3763 = vst [vmem:[#allocation7 + $0x98] sm:$0xff] %v3699
      %3764 = vst [vmem:[#allocation7 + $0xa0] sm:$0xff] %v3700
      %3765 = vst [vmem:[#allocation7 + $0xa8] sm:$0xff] %v3701
      %3766 = vst [vmem:[#allocation7 + $0xb0] sm:$0xff] %v3702
      %3767 = vst [vmem:[#allocation7 + $0xb8] sm:$0xff] %v3703
      %3768 = vst [vmem:[#allocation7 + $0xc0] sm:$0xff] %v3704
      %3769 = vst [vmem:[#allocation7 + $0xc8] sm:$0xff] %v3705
      %3770 = vst [vmem:[#allocation7 + $0xd0] sm:$0xff] %v3706
      %3771 = vst [vmem:[#allocation7 + $0xd8] sm:$0xff] %v3707
      %3772 = vst [vmem:[#allocation7 + $0xe0] sm:$0xff] %v3708
      %3773 = vst [vmem:[#allocation7 + $0xe8] sm:$0xff] %v3709
      %3774 = vst [vmem:[#allocation7 + $0xf0] sm:$0xff] %v3710
      %3775 = vst [vmem:[#allocation7 + $0xf8] sm:$0xff] %v3711
      %3776 = vst [vmem:[#allocation7 + $0x100] sm:$0xff] %v3712
      %3777 = vst [vmem:[#allocation7 + $0x108] sm:$0xff] %v3713
      %3778 = vst [vmem:[#allocation7 + $0x110] sm:$0xff] %v3714
      %3779 = vst [vmem:[#allocation7 + $0x118] sm:$0xff] %v3715
      %3780 = vst [vmem:[#allocation7 + $0x120] sm:$0xff] %v3716
      %3781 = vst [vmem:[#allocation7 + $0x128] sm:$0xff] %v3717
      %3782 = vst [vmem:[#allocation7 + $0x130] sm:$0xff] %v3718
      %3783 = vst [vmem:[#allocation7 + $0x138] sm:$0xff] %v3719
      %3784 = vst [vmem:[#allocation7 + $0x140] sm:$0xff] %v3720
      %3785 = vst [vmem:[#allocation7 + $0x148] sm:$0xff] %v3721
      %3786 = vst [vmem:[#allocation7 + $0x150] sm:$0xff] %v3722
      %3787 = vst [vmem:[#allocation7 + $0x158] sm:$0xff] %v3723
      %3788 = vst [vmem:[#allocation7 + $0x160] sm:$0xff] %v3724
      %3789 = vst [vmem:[#allocation7 + $0x168] sm:$0xff] %v3725
      %3790 = vst [vmem:[#allocation7 + $0x170] sm:$0xff] %v3726
      %3791 = vst [vmem:[#allocation7 + $0x178] sm:$0xff] %v3727
      %3792 = vst [vmem:[#allocation7 + $0x180] sm:$0xff] %v3728
      %3793 = vst [vmem:[#allocation7 + $0x188] sm:$0xff] %v3729
      %3794 = vst [vmem:[#allocation7 + $0x190] sm:$0xff] %v3730
      %3795 = vst [vmem:[#allocation7 + $0x198] sm:$0xff] %v3731
      %3796 = vst [vmem:[#allocation7 + $0x1a0] sm:$0xff] %v3732
      %3797 = vst [vmem:[#allocation7 + $0x1a8] sm:$0xff] %v3733
      %3798 = vst [vmem:[#allocation7 + $0x1b0] sm:$0xff] %v3734
      %3799 = vst [vmem:[#allocation7 + $0x1b8] sm:$0xff] %v3735
      %3800 = vst [vmem:[#allocation7 + $0x1c0] sm:$0xff] %v3736
      %3801 = vst [vmem:[#allocation7 + $0x1c8] sm:$0xff] %v3737
      %3802 = vst [vmem:[#allocation7 + $0x1d0] sm:$0xff] %v3738
      %3803 = vst [vmem:[#allocation7 + $0x1d8] sm:$0xff] %v3739
      %3804 = vst [vmem:[#allocation7 + $0x1e0] sm:$0xff] %v3740
      %3805 = vst [vmem:[#allocation7 + $0x1e8] sm:$0xff] %v3741
      %3806 = vst [vmem:[#allocation7 + $0x1f0] sm:$0xff] %v3742
      %3807 = vst [vmem:[#allocation7 + $0x1f8] sm:$0xff] %v3743
    $region29: #{tpu_custom_call.1} parent=1 // pred_fallthru
      _
    // Predicated region
    $region30: #{tpu_custom_call.1} parent=1 // pred_check
      _
    $region31: #{tpu_custom_call.1} parent=1 // pred_check_branch
      %3809 = sbr.rel (0) target = $region33
    $region32: #{tpu_custom_call.1} parent=1 // pred_region
      %s3811 = ssub.s32 8192, 8192
      %3812 = vsyncadd [#allocation4], %s3811
      %s3813 = sshll.u32 [#allocation7], 4
      %s3814 = int_to_ptr.vmem [resolvable:$true] %s3813
      %3819 = dma.vmem_to_hbm [thread:$0]  %s3814, 8192, %s3, [#allocation4], 128, 128, 8
    $region33: #{tpu_custom_call.1} parent=1 // pred_fallthru
      _
    // Predicated region
    $region34: #{tpu_custom_call.1} parent=1 // pred_check
      _
    $region35: #{tpu_custom_call.1} parent=1 // pred_check_branch
      %3821 = sbr.rel (0) target = $region37
    $region36: #{tpu_custom_call.1} parent=1 // pred_region
      %3822 = dma.done [#allocation4], 8192
    $region37: #{tpu_custom_call.1} parent=1 // pred_fallthru
      _
    %3823 = vsyncpa [#allocation3], 1
    %3824 = vsyncpa [#allocation6], 1
    %3825 = vsyncpa [#allocation4], 1

// kernel: tpu_custom_call.1
$region0: #{tpu_custom_call.1}
  #allocation0 [shape = 'u32[]', space=smem, size = 0x4, offset = 0x4, fixed_abs, tag = 'smem constant byte address 0x4 - core index']
  #allocation1 [shape = 'u32[144,128]{1,0:T(1,128)}', space=vmem, size = 0x12000, scoped, tag = 'internal scratch']
  %s0 = inlined_call_operand.hbm [shape: f32[512,128], index: 0, kind: input, shape index: {}]
  %s1 = inlined_call_operand.hbm [shape: f32[128,128], index: 1, kind: input, shape index: {}]
  %s2 = inlined_call_operand.vmem [shape: f32[1,128], index: 2, kind: input, shape index: {}]
  %s3 = inlined_call_operand.hbm [shape: f32[512,128], index: 3, kind: output, shape index: {}]
  %s4 = sld [smem:[#allocation0]]
  $region38: #{tpu_custom_call.1} parent=0
    _
  %s6 = ssub.s32 1, %s4
  %s7 = scalar_select 0, %s6, %s4
  $region1: #{tpu_custom_call.1} parent=0
    #allocation2 [shape = 'u8[262144]{0}', space=vmem, size = 0x40000, scoped, tag = 'input window, operand 0, single buffered']
    #allocation3 [shape = 's32[1]{0}', space=sflag, size = 0x4, scoped, tag = 'scoped memory for tpu_custom_call.1']
    #allocation4 [shape = 's32[1]{0}', space=sflag, size = 0x4, scoped, tag = 'scoped memory for tpu_custom_call.1']
    #allocation5 [shape = 'u8[65536]{0}', space=vmem, size = 0x10000, scoped, tag = 'input window, operand 1, single buffered']
    #allocation6 [shape = 's32[1]{0}', space=sflag, size = 0x4, scoped, tag = 'scoped memory for tpu_custom_call.1']
    #allocation7 [shape = 'u8[262144]{0}', space=vmem, size = 0x40000, scoped, tag = 'output window, operand 0, single buffered']
    %8 = vsyncpa [#allocation3], 0
    %9 = vsyncpa [#allocation6], 0
    %10 = vsyncpa [#allocation4], 0
    // Predicated region
    $region2: #{tpu_custom_call.1} parent=1 // pred_check
      _
    $region3: #{tpu_custom_call.1} parent=1 // pred_check_branch
      %12 = sbr.rel (0) target = $region5
    $region4: #{tpu_custom_call.1} parent=1 // pred_region
      %s14 = ssub.s32 8192, 8192
      %15 = vsyncadd [#allocation3], %s14
      %s16 = sshll.u32 [#allocation2], 4
      %s17 = int_to_ptr.vmem [resolvable:$true] %s16
      %22 = dma.hbm_to_vmem [thread:$0]  %s0, 8192, %s17, [#allocation3], 128, 128, 8
    $region5: #{tpu_custom_call.1} parent=1 // pred_fallthru
      _
    // Predicated region
    $region6: #{tpu_custom_call.1} parent=1 // pred_check
      _
    $region7: #{tpu_custom_call.1} parent=1 // pred_check_branch
      %24 = sbr.rel (0) target = $region9
    $region8: #{tpu_custom_call.1} parent=1 // pred_region
      %s26 = ssub.s32 2048, 2048
      %27 = vsyncadd [#allocation6], %s26
      %s28 = sshll.u32 [#allocation5], 4
      %s29 = int_to_ptr.vmem [resolvable:$true] %s28
      %34 = dma.hbm_to_vmem [thread:$0]  %s1, 2048, %s29, [#allocation6], 128, 128, 8
    $region9: #{tpu_custom_call.1} parent=1 // pred_fallthru
      _
    // Predicated region
    $region10: #{tpu_custom_call.1} parent=1 // pred_check
      _
    $region11: #{tpu_custom_call.1} parent=1 // pred_check_branch
      %36 = sbr.rel (0) target = $region13
    $region12: #{tpu_custom_call.1} parent=1 // pred_region
      _
    $region13: #{tpu_custom_call.1} parent=1 // pred_fallthru
      _
    // Predicated region
    $region14: #{tpu_custom_call.1} parent=1 // pred_check
      _
    $region15: #{tpu_custom_call.1} parent=1 // pred_check_branch
      %38 = sbr.rel (0) target = $region17
    $region16: #{tpu_custom_call.1} parent=1 // pred_region
      %39 = dma.done [#allocation3], 8192
    $region17: #{tpu_custom_call.1} parent=1 // pred_fallthru
      _
    // Predicated region
    $region18: #{tpu_custom_call.1} parent=1 // pred_check
      _
    $region19: #{tpu_custom_call.1} parent=1 // pred_check_branch
      %41 = sbr.rel (0) target = $region21
    $region20: #{tpu_custom_call.1} parent=1 // pred_region
      %42 = dma.done [#allocation6], 2048
    $region21: #{tpu_custom_call.1} parent=1 // pred_fallthru
      _
    %v43 = vld [vmem:[#allocation2] sm:$0xff]
    %v44 = vld [vmem:[#allocation2 + $0x8] sm:$0xff]
    %v45 = vld [vmem:[#allocation2 + $0x10] sm:$0xff]
    %v46 = vld [vmem:[#allocation2 + $0x18] sm:$0xff]
    %v47 = vld [vmem:[#allocation2 + $0x20] sm:$0xff]
    %v48 = vld [vmem:[#allocation2 + $0x28] sm:$0xff]
    %v49 = vld [vmem:[#allocation2 + $0x30] sm:$0xff]
    %v50 = vld [vmem:[#allocation2 + $0x38] sm:$0xff]
    %v51 = vld [vmem:[#allocation2 + $0x40] sm:$0xff]
    %v52 = vld [vmem:[#allocation2 + $0x48] sm:$0xff]
    %v53 = vld [vmem:[#allocation2 + $0x50] sm:$0xff]
    %v54 = vld [vmem:[#allocation2 + $0x58] sm:$0xff]
    %v55 = vld [vmem:[#allocation2 + $0x60] sm:$0xff]
    %v56 = vld [vmem:[#allocation2 + $0x68] sm:$0xff]
    %v57 = vld [vmem:[#allocation2 + $0x70] sm:$0xff]
    %v58 = vld [vmem:[#allocation2 + $0x78] sm:$0xff]
    %v59 = vld [vmem:[#allocation2 + $0x80] sm:$0xff]
    %v60 = vld [vmem:[#allocation2 + $0x88] sm:$0xff]
    %v61 = vld [vmem:[#allocation2 + $0x90] sm:$0xff]
    %v62 = vld [vmem:[#allocation2 + $0x98] sm:$0xff]
    %v63 = vld [vmem:[#allocation2 + $0xa0] sm:$0xff]
    %v64 = vld [vmem:[#allocation2 + $0xa8] sm:$0xff]
    %v65 = vld [vmem:[#allocation2 + $0xb0] sm:$0xff]
    %v66 = vld [vmem:[#allocation2 + $0xb8] sm:$0xff]
    %v67 = vld [vmem:[#allocation2 + $0xc0] sm:$0xff]
    %v68 = vld [vmem:[#allocation2 + $0xc8] sm:$0xff]
    %v69 = vld [vmem:[#allocation2 + $0xd0] sm:$0xff]
    %v70 = vld [vmem:[#allocation2 + $0xd8] sm:$0xff]
    %v71 = vld [vmem:[#allocation2 + $0xe0] sm:$0xff]
    %v72 = vld [vmem:[#allocation2 + $0xe8] sm:$0xff]
    %v73 = vld [vmem:[#allocation2 + $0xf0] sm:$0xff]
    %v74 = vld [vmem:[#allocation2 + $0xf8] sm:$0xff]
    %v75 = vld [vmem:[#allocation2 + $0x100] sm:$0xff]
    %v76 = vld [vmem:[#allocation2 + $0x108] sm:$0xff]
    %v77 = vld [vmem:[#allocation2 + $0x110] sm:$0xff]
    %v78 = vld [vmem:[#allocation2 + $0x118] sm:$0xff]
    %v79 = vld [vmem:[#allocation2 + $0x120] sm:$0xff]
    %v80 = vld [vmem:[#allocation2 + $0x128] sm:$0xff]
    %v81 = vld [vmem:[#allocation2 + $0x130] sm:$0xff]
    %v82 = vld [vmem:[#allocation2 + $0x138] sm:$0xff]
    %v83 = vld [vmem:[#allocation2 + $0x140] sm:$0xff]
    %v84 = vld [vmem:[#allocation2 + $0x148] sm:$0xff]
    %v85 = vld [vmem:[#allocation2 + $0x150] sm:$0xff]
    %v86 = vld [vmem:[#allocation2 + $0x158] sm:$0xff]
    %v87 = vld [vmem:[#allocation2 + $0x160] sm:$0xff]
    %v88 = vld [vmem:[#allocation2 + $0x168] sm:$0xff]
    %v89 = vld [vmem:[#allocation2 + $0x170] sm:$0xff]
    %v90 = vld [vmem:[#allocation2 + $0x178] sm:$0xff]
    %v91 = vld [vmem:[#allocation2 + $0x180] sm:$0xff]
    %v92 = vld [vmem:[#allocation2 + $0x188] sm:$0xff]
    %v93 = vld [vmem:[#allocation2 + $0x190] sm:$0xff]
    %v94 = vld [vmem:[#allocation2 + $0x198] sm:$0xff]
    %v95 = vld [vmem:[#allocation2 + $0x1a0] sm:$0xff]
    %v96 = vld [vmem:[#allocation2 + $0x1a8] sm:$0xff]
    %v97 = vld [vmem:[#allocation2 + $0x1b0] sm:$0xff]
    %v98 = vld [vmem:[#allocation2 + $0x1b8] sm:$0xff]
    %v99 = vld [vmem:[#allocation2 + $0x1c0] sm:$0xff]
    %v100 = vld [vmem:[#allocation2 + $0x1c8] sm:$0xff]
    %v101 = vld [vmem:[#allocation2 + $0x1d0] sm:$0xff]
    %v102 = vld [vmem:[#allocation2 + $0x1d8] sm:$0xff]
    %v103 = vld [vmem:[#allocation2 + $0x1e0] sm:$0xff]
    %v104 = vld [vmem:[#allocation2 + $0x1e8] sm:$0xff]
    %v105 = vld [vmem:[#allocation2 + $0x1f0] sm:$0xff]
    %v106 = vld [vmem:[#allocation2 + $0x1f8] sm:$0xff]
    %v107 = vld [vmem:[#allocation5] sm:$0xff]
    %v108 = vld [vmem:[#allocation5 + $0x8] sm:$0xff]
    %v109 = vld [vmem:[#allocation5 + $0x10] sm:$0xff]
    %v110 = vld [vmem:[#allocation5 + $0x18] sm:$0xff]
    %v111 = vld [vmem:[#allocation5 + $0x20] sm:$0xff]
    %v112 = vld [vmem:[#allocation5 + $0x28] sm:$0xff]
    %v113 = vld [vmem:[#allocation5 + $0x30] sm:$0xff]
    %v114 = vld [vmem:[#allocation5 + $0x38] sm:$0xff]
    %v115 = vld [vmem:[#allocation5 + $0x40] sm:$0xff]
    %v116 = vld [vmem:[#allocation5 + $0x48] sm:$0xff]
    %v117 = vld [vmem:[#allocation5 + $0x50] sm:$0xff]
    %v118 = vld [vmem:[#allocation5 + $0x58] sm:$0xff]
    %v119 = vld [vmem:[#allocation5 + $0x60] sm:$0xff]
    %v120 = vld [vmem:[#allocation5 + $0x68] sm:$0xff]
    %v121 = vld [vmem:[#allocation5 + $0x70] sm:$0xff]
    %v122 = vld [vmem:[#allocation5 + $0x78] sm:$0xff]
    %123 = vmatprep.subr.mxu0 0.0
    %v124 = vand.u32 %v107, 4294901760
    %125 = vmatpush1.msra.mxu0 %v124
    %126 = vmatprep.subr.mxu0 0.0
    %v127 = vand.u32 %v108, 4294901760
    %128 = vmatpush1.msra.mxu0 %v127
    %129 = vmatprep.subr.mxu0 0.0
    %v130 = vand.u32 %v109, 4294901760
    %131 = vmatpush1.msra.mxu0 %v130
    %132 = vmatprep.subr.mxu0 0.0
    %v133 = vand.u32 %v110, 4294901760
    %134 = vmatpush1.msra.mxu0 %v133
    %135 = vmatprep.subr.mxu0 0.0
    %v136 = vand.u32 %v111, 4294901760
    %137 = vmatpush1.msra.mxu0 %v136
    %138 = vmatprep.subr.mxu0 0.0
    %v139 = vand.u32 %v112, 4294901760
    %140 = vmatpush1.msra.mxu0 %v139
    %141 = vmatprep.subr.mxu0 0.0
    %v142 = vand.u32 %v113, 4294901760
    %143 = vmatpush1.msra.mxu0 %v142
    %144 = vmatprep.subr.mxu0 0.0
    %v145 = vand.u32 %v114, 4294901760
    %146 = vmatpush1.msra.mxu0 %v145
    %147 = vmatprep.subr.mxu0 0.0
    %v148 = vand.u32 %v115, 4294901760
    %149 = vmatpush1.msra.mxu0 %v148
    %150 = vmatprep.subr.mxu0 0.0
    %v151 = vand.u32 %v116, 4294901760
    %152 = vmatpush1.msra.mxu0 %v151
    %153 = vmatprep.subr.mxu0 0.0
    %v154 = vand.u32 %v117, 4294901760
    %155 = vmatpush1.msra.mxu0 %v154
    %156 = vmatprep.subr.mxu0 0.0
    %v157 = vand.u32 %v118, 4294901760
    %158 = vmatpush1.msra.mxu0 %v157
    %159 = vmatprep.subr.mxu0 0.0
    %v160 = vand.u32 %v119, 4294901760
    %161 = vmatpush1.msra.mxu0 %v160
    %162 = vmatprep.subr.mxu0 0.0
    %v163 = vand.u32 %v120, 4294901760
    %164 = vmatpush1.msra.mxu0 %v163
    %165 = vmatprep.subr.mxu0 0.0
    %v166 = vand.u32 %v121, 4294901760
    %167 = vmatpush1.msra.mxu0 %v166
    %168 = vmatprep.subr.mxu0 0.0
    %v169 = vand.u32 %v122, 4294901760
    %170 = vmatpush1.msra.mxu0 %v169
    %171 = vmatprep.subr.mxu0 0.0
    %172 = vmatpush1.msra.mxu0 0.0
    %173 = vmatprep.subr.mxu0 0.0
    %174 = vmatpush1.msra.mxu0 0.0
    %175 = vmatprep.subr.mxu0 0.0
    %176 = vmatpush1.msra.mxu0 0.0
    %177 = vmatprep.subr.mxu0 0.0
    %178 = vmatpush1.msra.mxu0 0.0
    %179 = vmatprep.subr.mxu0 0.0
    %180 = vmatpush1.msra.mxu0 0.0
    %181 = vmatprep.subr.mxu0 0.0
    %182 = vmatpush1.msra.mxu0 0.0
    %183 = vmatprep.subr.mxu0 0.0
    %184 = vmatpush1.msra.mxu0 0.0
    %185 = vmatprep.subr.mxu0 0.0
    %186 = vmatpush1.msra.mxu0 0.0
    %187 = vmatprep.subr.mxu0 0.0
    %188 = vmatpush1.msra.mxu0 0.0
    %189 = vmatprep.subr.mxu0 0.0
    %190 = vmatpush1.msra.mxu0 0.0
    %191 = vmatprep.subr.mxu0 0.0
    %192 = vmatpush1.msra.mxu0 0.0
    %193 = vmatprep.subr.mxu0 0.0
    %194 = vmatpush1.msra.mxu0 0.0
    %195 = vmatprep.subr.mxu0 0.0
    %196 = vmatpush1.msra.mxu0 0.0
    %197 = vmatprep.subr.mxu0 0.0
    %198 = vmatpush1.msra.mxu0 0.0
    %199 = vmatprep.subr.mxu0 0.0
    %200 = vmatpush1.msra.mxu0 0.0
    %201 = vmatprep.subr.mxu0 0.0
    %202 = vmatpush1.msra.mxu0 0.0
    %203 = vmatprep.mubr.f32.mxu0 0.0
    %v204 = vand.u32 %v43, 4294901760
    %v205 = vsub.f32 %v43, %v204
    %v206 = vand.u32 %v205, 4294901760
    %v207 = vsub.f32 %v205, %v206
    %v208 = vand.u32 %v207, 4294901760
    %209 = vmatmul.mubr.f32.gmra.mrb[0].mxu0 %v208
    %v210 = vpop.f32.mrb[0].mxu0
    %v211 = vadd.f32 0.0, %v210
    %v212 = vpop.f32.mrb[0].mxu0
    %213 = vmatprep.mubr.f32.mxu0 0.0
    %v214 = vand.u32 %v44, 4294901760
    %v215 = vsub.f32 %v44, %v214
    %v216 = vand.u32 %v215, 4294901760
    %v217 = vsub.f32 %v215, %v216
    %v218 = vand.u32 %v217, 4294901760
    %219 = vmatmul.mubr.f32.gmra.mrb[0].mxu0 %v218
    %v220 = vpop.f32.mrb[0].mxu0
    %v221 = vadd.f32 0.0, %v220
    %v222 = vpop.f32.mrb[0].mxu0
    %223 = vmatprep.mubr.f32.mxu0 0.0
    %v224 = vand.u32 %v45, 4294901760
    %v225 = vsub.f32 %v45, %v224
    %v226 = vand.u32 %v225, 4294901760
    %v227 = vsub.f32 %v225, %v226
    %v228 = vand.u32 %v227, 4294901760
    %229 = vmatmul.mubr.f32.gmra.mrb[0].mxu0 %v228
    %v230 = vpop.f32.mrb[0].mxu0
    %v231 = vadd.f32 0.0, %v230
    %v232 = vpop.f32.mrb[0].mxu0
    %233 = vmatprep.mubr.f32.mxu0 0.0
    %v234 = vand.u32 %v46, 4294901760
    %v235 = vsub.f32 %v46, %v234
    %v236 = vand.u32 %v235, 4294901760
    %v237 = vsub.f32 %v235, %v236
    %v238 = vand.u32 %v237, 4294901760
    %239 = vmatmul.mubr.f32.gmra.mrb[0].mxu0 %v238
    %v240 = vpop.f32.mrb[0].mxu0
    %v241 = vadd.f32 0.0, %v240
    %v242 = vpop.f32.mrb[0].mxu0
    %243 = vmatprep.mubr.f32.mxu0 0.0
    %v244 = vand.u32 %v47, 4294901760
    %v245 = vsub.f32 %v47, %v244
    %v246 = vand.u32 %v245, 4294901760
    %v247 = vsub.f32 %v245, %v246
    %v248 = vand.u32 %v247, 4294901760
    %249 = vmatmul.mubr.f32.gmra.mrb[0].mxu0 %v248
    %v250 = vpop.f32.mrb[0].mxu0
    %v251 = vadd.f32 0.0, %v250
    %v252 = vpop.f32.mrb[0].mxu0
    %253 = vmatprep.mubr.f32.mxu0 0.0
    %v254 = vand.u32 %v48, 4294901760
    %v255 = vsub.f32 %v48, %v254
    %v256 = vand.u32 %v255, 4294901760
    %v257 = vsub.f32 %v255, %v256
    %v258 = vand.u32 %v257, 4294901760
    %259 = vmatmul.mubr.f32.gmra.mrb[0].mxu0 %v258
    %v260 = vpop.f32.mrb[0].mxu0
    %v261 = vadd.f32 0.0, %v260
    %v262 = vpop.f32.mrb[0].mxu0
    %263 = vmatprep.mubr.f32.mxu0 0.0
    %v264 = vand.u32 %v49, 4294901760
    %v265 = vsub.f32 %v49, %v264
    %v266 = vand.u32 %v265, 4294901760
    %v267 = vsub.f32 %v265, %v266
    %v268 = vand.u32 %v267, 4294901760
    %269 = vmatmul.mubr.f32.gmra.mrb[0].mxu0 %v268
    %v270 = vpop.f32.mrb[0].mxu0
    %v271 = vadd.f32 0.0, %v270
    %v272 = vpop.f32.mrb[0].mxu0
    %273 = vmatprep.mubr.f32.mxu0 0.0
    %v274 = vand.u32 %v50, 4294901760
    %v275 = vsub.f32 %v50, %v274
    %v276 = vand.u32 %v275, 4294901760
    %v277 = vsub.f32 %v275, %v276
    %v278 = vand.u32 %v277, 4294901760
    %279 = vmatmul.mubr.f32.gmra.mrb[0].mxu0 %v278
    %v280 = vpop.f32.mrb[0].mxu0
    %v281 = vadd.f32 0.0, %v280
    %v282 = vpop.f32.mrb[0].mxu0
    %283 = vmatprep.mubr.f32.mxu0 0.0
    %v284 = vand.u32 %v51, 4294901760
    %v285 = vsub.f32 %v51, %v284
    %v286 = vand.u32 %v285, 4294901760
    %v287 = vsub.f32 %v285, %v286
    %v288 = vand.u32 %v287, 4294901760
    %289 = vmatmul.mubr.f32.gmra.mrb[0].mxu0 %v288
    %v290 = vpop.f32.mrb[0].mxu0
    %v291 = vadd.f32 0.0, %v290
    %v292 = vpop.f32.mrb[0].mxu0
    %293 = vmatprep.mubr.f32.mxu0 0.0
    %v294 = vand.u32 %v52, 4294901760
    %v295 = vsub.f32 %v52, %v294
    %v296 = vand.u32 %v295, 4294901760
    %v297 = vsub.f32 %v295, %v296
    %v298 = vand.u32 %v297, 4294901760
    %299 = vmatmul.mubr.f32.gmra.mrb[0].mxu0 %v298
    %v300 = vpop.f32.mrb[0].mxu0
    %v301 = vadd.f32 0.0, %v300
    %v302 = vpop.f32.mrb[0].mxu0
    %303 = vmatprep.mubr.f32.mxu0 0.0
    %v304 = vand.u32 %v53, 4294901760
    %v305 = vsub.f32 %v53, %v304
    %v306 = vand.u32 %v305, 4294901760
    %v307 = vsub.f32 %v305, %v306
    %v308 = vand.u32 %v307, 4294901760
    %309 = vmatmul.mubr.f32.gmra.mrb[0].mxu0 %v308
    %v310 = vpop.f32.mrb[0].mxu0
    %v311 = vadd.f32 0.0, %v310
    %v312 = vpop.f32.mrb[0].mxu0
    %313 = vmatprep.mubr.f32.mxu0 0.0
    %v314 = vand.u32 %v54, 4294901760
    %v315 = vsub.f32 %v54, %v314
    %v316 = vand.u32 %v315, 4294901760
    %v317 = vsub.f32 %v315, %v316
    %v318 = vand.u32 %v317, 4294901760
    %319 = vmatmul.mubr.f32.gmra.mrb[0].mxu0 %v318
    %v320 = vpop.f32.mrb[0].mxu0
    %v321 = vadd.f32 0.0, %v320
    %v322 = vpop.f32.mrb[0].mxu0
    %323 = vmatprep.mubr.f32.mxu0 0.0
    %v324 = vand.u32 %v55, 4294901760
    %v325 = vsub.f32 %v55, %v324
    %v326 = vand.u32 %v325, 4294901760
    %v327 = vsub.f32 %v325, %v326
    %v328 = vand.u32 %v327, 4294901760
    %329 = vmatmul.mubr.f32.gmra.mrb[0].mxu0 %v328
    %v330 = vpop.f32.mrb[0].mxu0
    %v331 = vadd.f32 0.0, %v330
    %v332 = vpop.f32.mrb[0].mxu0
    %333 = vmatprep.mubr.f32.mxu0 0.0
    %v334 = vand.u32 %v56, 4294901760
    %v335 = vsub.f32 %v56, %v334
    %v336 = vand.u32 %v335, 4294901760
    %v337 = vsub.f32 %v335, %v336
    %v338 = vand.u32 %v337, 4294901760
    %339 = vmatmul.mubr.f32.gmra.mrb[0].mxu0 %v338
    %v340 = vpop.f32.mrb[0].mxu0
    %v341 = vadd.f32 0.0, %v340
    %v342 = vpop.f32.mrb[0].mxu0
    %343 = vmatprep.mubr.f32.mxu0 0.0
    %v344 = vand.u32 %v57, 4294901760
    %v345 = vsub.f32 %v57, %v344
    %v346 = vand.u32 %v345, 4294901760
    %v347 = vsub.f32 %v345, %v346
    %v348 = vand.u32 %v347, 4294901760
    %349 = vmatmul.mubr.f32.gmra.mrb[0].mxu0 %v348
    %v350 = vpop.f32.mrb[0].mxu0
    %v351 = vadd.f32 0.0, %v350
    %v352 = vpop.f32.mrb[0].mxu0
    %353 = vmatprep.mubr.f32.mxu0 0.0
    %v354 = vand.u32 %v58, 4294901760
    %v355 = vsub.f32 %v58, %v354
    %v356 = vand.u32 %v355, 4294901760
    %v357 = vsub.f32 %v355, %v356
    %v358 = vand.u32 %v357, 4294901760
    %359 = vmatmul.mubr.f32.gmra.mrb[0].mxu0 %v358
    %v360 = vpop.f32.mrb[0].mxu0
    %v361 = vadd.f32 0.0, %v360
    %v362 = vpop.f32.mrb[0].mxu0
    %363 = vmatprep.mubr.f32.mxu0 0.0
    %v364 = vand.u32 %v59, 4294901760
    %v365 = vsub.f32 %v59, %v364
    %v366 = vand.u32 %v365, 4294901760
    %v367 = vsub.f32 %v365, %v366
    %v368 = vand.u32 %v367, 4294901760
    %369 = vmatmul.mubr.f32.gmra.mrb[0].mxu0 %v368
    %v370 = vpop.f32.mrb[0].mxu0
    %v371 = vadd.f32 0.0, %v370
    %v372 = vpop.f32.mrb[0].mxu0
    %373 = vmatprep.mubr.f32.mxu0 0.0
    %v374 = vand.u32 %v60, 4294901760
    %v375 = vsub.f32 %v60, %v374
    %v376 = vand.u32 %v375, 4294901760
    %v377 = vsub.f32 %v375, %v376
    %v378 = vand.u32 %v377, 4294901760
    %379 = vmatmul.mubr.f32.gmra.mrb[0].mxu0 %v378
    %v380 = vpop.f32.mrb[0].mxu0
    %v381 = vadd.f32 0.0, %v380
    %v382 = vpop.f32.mrb[0].mxu0
    %383 = vmatprep.mubr.f32.mxu0 0.0
    %v384 = vand.u32 %v61, 4294901760
    %v385 = vsub.f32 %v61, %v384
    %v386 = vand.u32 %v385, 4294901760
    %v387 = vsub.f32 %v385, %v386
    %v388 = vand.u32 %v387, 4294901760
    %389 = vmatmul.mubr.f32.gmra.mrb[0].mxu0 %v388
    %v390 = vpop.f32.mrb[0].mxu0
    %v391 = vadd.f32 0.0, %v390
    %v392 = vpop.f32.mrb[0].mxu0
    %393 = vmatprep.mubr.f32.mxu0 0.0
    %v394 = vand.u32 %v62, 4294901760
    %v395 = vsub.f32 %v62, %v394
    %v396 = vand.u32 %v395, 4294901760
    %v397 = vsub.f32 %v395, %v396
    %v398 = vand.u32 %v397, 4294901760
    %399 = vmatmul.mubr.f32.gmra.mrb[0].mxu0 %v398
    %v400 = vpop.f32.mrb[0].mxu0
    %v401 = vadd.f32 0.0, %v400
    %v402 = vpop.f32.mrb[0].mxu0
    %403 = vmatprep.mubr.f32.mxu0 0.0
    %v404 = vand.u32 %v63, 4294901760
    %v405 = vsub.f32 %v63, %v404
    %v406 = vand.u32 %v405, 4294901760
    %v407 = vsub.f32 %v405, %v406
    %v408 = vand.u32 %v407, 4294901760
    %409 = vmatmul.mubr.f32.gmra.mrb[0].mxu0 %v408
    %v410 = vpop.f32.mrb[0].mxu0
    %v411 = vadd.f32 0.0, %v410
    %v412 = vpop.f32.mrb[0].mxu0
    %413 = vmatprep.mubr.f32.mxu0 0.0
    %v414 = vand.u32 %v64, 4294901760
    %v415 = vsub.f32 %v64, %v414
    %v416 = vand.u32 %v415, 4294901760
    %v417 = vsub.f32 %v415, %v416
    %v418 = vand.u32 %v417, 4294901760
    %419 = vmatmul.mubr.f32.gmra.mrb[0].mxu0 %v418
    %v420 = vpop.f32.mrb[0].mxu0
    %v421 = vadd.f32 0.0, %v420
    %v422 = vpop.f32.mrb[0].mxu0
    %423 = vmatprep.mubr.f32.mxu0 0.0
    %v424 = vand.u32 %v65, 4294901760
    %v425 = vsub.f32 %v65, %v424
    %v426 = vand.u32 %v425, 4294901760
    %v427 = vsub.f32 %v425, %v426
    %v428 = vand.u32 %v427, 4294901760
    %429 = vmatmul.mubr.f32.gmra.mrb[0].mxu0 %v428
    %v430 = vpop.f32.mrb[0].mxu0
    %v431 = vadd.f32 0.0, %v430
    %v432 = vpop.f32.mrb[0].mxu0
    %433 = vmatprep.mubr.f32.mxu0 0.0
    %v434 = vand.u32 %v66, 4294901760
    %v435 = vsub.f32 %v66, %v434
    %v436 = vand.u32 %v435, 4294901760
    %v437 = vsub.f32 %v435, %v436
    %v438 = vand.u32 %v437, 4294901760
    %439 = vmatmul.mubr.f32.gmra.mrb[0].mxu0 %v438
    %v440 = vpop.f32.mrb[0].mxu0
    %v441 = vadd.f32 0.0, %v440
    %v442 = vpop.f32.mrb[0].mxu0
    %443 = vmatprep.mubr.f32.mxu0 0.0
    %v444 = vand.u32 %v67, 4294901760
    %v445 = vsub.f32 %v67, %v444
    %v446 = vand.u32 %v445, 4294901760
    %v447 = vsub.f32 %v445, %v446
    %v448 = vand.u32 %v447, 4294901760
    %449 = vmatmul.mubr.f32.gmra.mrb[0].mxu0 %v448
    %v450 = vpop.f32.mrb[0].mxu0
    %v451 = vadd.f32 0.0, %v450
    %v452 = vpop.f32.mrb[0].mxu0
    %453 = vmatprep.mubr.f32.mxu0 0.0
    %v454 = vand.u32 %v68, 4294901760
    %v455 = vsub.f32 %v68, %v454
    %v456 = vand.u32 %v455, 4294901760
    %v457 = vsub.f32 %v455, %v456
    %v458 = vand.u32 %v457, 4294901760
    %459 = vmatmul.mubr.f32.gmra.mrb[0].mxu0 %v458
    %v460 = vpop.f32.mrb[0].mxu0
    %v461 = vadd.f32 0.0, %v460
    %v462 = vpop.f32.mrb[0].mxu0
    %463 = vmatprep.mubr.f32.mxu0 0.0
    %v464 = vand.u32 %v69, 4294901760
    %v465 = vsub.f32 %v69, %v464
    %v466 = vand.u32 %v465, 4294901760
    %v467 = vsub.f32 %v465, %v466
    %v468 = vand.u32 %v467, 4294901760
    %469 = vmatmul.mubr.f32.gmra.mrb[0].mxu0 %v468
    %v470 = vpop.f32.mrb[0].mxu0
    %v471 = vadd.f32 0.0, %v470
    %v472 = vpop.f32.mrb[0].mxu0
    %473 = vmatprep.mubr.f32.mxu0 0.0
    %v474 = vand.u32 %v70, 4294901760
    %v475 = vsub.f32 %v70, %v474
    %v476 = vand.u32 %v475, 4294901760
    %v477 = vsub.f32 %v475, %v476
    %v478 = vand.u32 %v477, 4294901760
    %479 = vmatmul.mubr.f32.gmra.mrb[0].mxu0 %v478
    %v480 = vpop.f32.mrb[0].mxu0
    %v481 = vadd.f32 0.0, %v480
    %v482 = vpop.f32.mrb[0].mxu0
    %483 = vmatprep.mubr.f32.mxu0 0.0
    %v484 = vand.u32 %v71, 4294901760
    %v485 = vsub.f32 %v71, %v484
    %v486 = vand.u32 %v485, 4294901760
    %v487 = vsub.f32 %v485, %v486
    %v488 = vand.u32 %v487, 4294901760
    %489 = vmatmul.mubr.f32.gmra.mrb[0].mxu0 %v488
    %v490 = vpop.f32.mrb[0].mxu0
    %v491 = vadd.f32 0.0, %v490
    %v492 = vpop.f32.mrb[0].mxu0
    %493 = vmatprep.mubr.f32.mxu0 0.0
    %v494 = vand.u32 %v72, 4294901760
    %v495 = vsub.f32 %v72, %v494
    %v496 = vand.u32 %v495, 4294901760
    %v497 = vsub.f32 %v495, %v496
    %v498 = vand.u32 %v497, 4294901760
    %499 = vmatmul.mubr.f32.gmra.mrb[0].mxu0 %v498
    %v500 = vpop.f32.mrb[0].mxu0
    %v501 = vadd.f32 0.0, %v500
    %v502 = vpop.f32.mrb[0].mxu0
    %503 = vmatprep.mubr.f32.mxu0 0.0
    %v504 = vand.u32 %v73, 4294901760
    %v505 = vsub.f32 %v73, %v504
    %v506 = vand.u32 %v505, 4294901760
    %v507 = vsub.f32 %v505, %v506
    %v508 = vand.u32 %v507, 4294901760
    %509 = vmatmul.mubr.f32.gmra.mrb[0].mxu0 %v508
    %v510 = vpop.f32.mrb[0].mxu0
    %v511 = vadd.f32 0.0, %v510
    %v512 = vpop.f32.mrb[0].mxu0
    %513 = vmatprep.mubr.f32.mxu0 0.0
    %v514 = vand.u32 %v74, 4294901760
    %v515 = vsub.f32 %v74, %v514
    %v516 = vand.u32 %v515, 4294901760
    %v517 = vsub.f32 %v515, %v516
    %v518 = vand.u32 %v517, 4294901760
    %519 = vmatmul.mubr.f32.gmra.mrb[0].mxu0 %v518
    %v520 = vpop.f32.mrb[0].mxu0
    %v521 = vadd.f32 0.0, %v520
    %v522 = vpop.f32.mrb[0].mxu0
    %523 = vmatprep.mubr.f32.mxu0 0.0
    %v524 = vand.u32 %v75, 4294901760
    %v525 = vsub.f32 %v75, %v524
    %v526 = vand.u32 %v525, 4294901760
    %v527 = vsub.f32 %v525, %v526
    %v528 = vand.u32 %v527, 4294901760
    %529 = vmatmul.mubr.f32.gmra.mrb[0].mxu0 %v528
    %v530 = vpop.f32.mrb[0].mxu0
    %v531 = vadd.f32 0.0, %v530
    %v532 = vpop.f32.mrb[0].mxu0
    %533 = vmatprep.mubr.f32.mxu0 0.0
    %v534 = vand.u32 %v76, 4294901760
    %v535 = vsub.f32 %v76, %v534
    %v536 = vand.u32 %v535, 4294901760
    %v537 = vsub.f32 %v535, %v536
    %v538 = vand.u32 %v537, 4294901760
    %539 = vmatmul.mubr.f32.gmra.mrb[0].mxu0 %v538
    %v540 = vpop.f32.mrb[0].mxu0
    %v541 = vadd.f32 0.0, %v540
    %v542 = vpop.f32.mrb[0].mxu0
    %543 = vmatprep.mubr.f32.mxu0 0.0
    %v544 = vand.u32 %v77, 4294901760
    %v545 = vsub.f32 %v77, %v544
    %v546 = vand.u32 %v545, 4294901760
    %v547 = vsub.f32 %v545, %v546
    %v548 = vand.u32 %v547, 4294901760
    %549 = vmatmul.mubr.f32.gmra.mrb[0].mxu0 %v548
    %v550 = vpop.f32.mrb[0].mxu0
    %v551 = vadd.f32 0.0, %v550
    %v552 = vpop.f32.mrb[0].mxu0
    %553 = vmatprep.mubr.f32.mxu0 0.0
    %v554 = vand.u32 %v78, 4294901760
    %v555 = vsub.f32 %v78, %v554
    %v556 = vand.u32 %v555, 4294901760
    %v557 = vsub.f32 %v555, %v556
    %v558 = vand.u32 %v557, 4294901760
    %559 = vmatmul.mubr.f32.gmra.mrb[0].mxu0 %v558
    %v560 = vpop.f32.mrb[0].mxu0
    %v561 = vadd.f32 0.0, %v560
    %v562 = vpop.f32.mrb[0].mxu0
    %563 = vmatprep.mubr.f32.mxu0 0.0
    %v564 = vand.u32 %v79, 4294901760
    %v565 = vsub.f32 %v79, %v564
    %v566 = vand.u32 %v565, 4294901760
    %v567 = vsub.f32 %v565, %v566
    %v568 = vand.u32 %v567, 4294901760
    %569 = vmatmul.mubr.f32.gmra.mrb[0].mxu0 %v568
    %v570 = vpop.f32.mrb[0].mxu0
    %v571 = vadd.f32 0.0, %v570
    %v572 = vpop.f32.mrb[0].mxu0
    %573 = vmatprep.mubr.f32.mxu0 0.0
    %v574 = vand.u32 %v80, 4294901760
    %v575 = vsub.f32 %v80, %v574
    %v576 = vand.u32 %v575, 4294901760
    %v577 = vsub.f32 %v575, %v576
    %v578 = vand.u32 %v577, 4294901760
    %579 = vmatmul.mubr.f32.gmra.mrb[0].mxu0 %v578
    %v580 = vpop.f32.mrb[0].mxu0
    %v581 = vadd.f32 0.0, %v580
    %v582 = vpop.f32.mrb[0].mxu0
    %583 = vmatprep.mubr.f32.mxu0 0.0
    %v584 = vand.u32 %v81, 4294901760
    %v585 = vsub.f32 %v81, %v584
    %v586 = vand.u32 %v585, 4294901760
    %v587 = vsub.f32 %v585, %v586
    %v588 = vand.u32 %v587, 4294901760
    %589 = vmatmul.mubr.f32.gmra.mrb[0].mxu0 %v588
    %v590 = vpop.f32.mrb[0].mxu0
    %v591 = vadd.f32 0.0, %v590
    %v592 = vpop.f32.mrb[0].mxu0
    %593 = vmatprep.mubr.f32.mxu0 0.0
    %v594 = vand.u32 %v82, 4294901760
    %v595 = vsub.f32 %v82, %v594
    %v596 = vand.u32 %v595, 4294901760
    %v597 = vsub.f32 %v595, %v596
    %v598 = vand.u32 %v597, 4294901760
    %599 = vmatmul.mubr.f32.gmra.mrb[0].mxu0 %v598
    %v600 = vpop.f32.mrb[0].mxu0
    %v601 = vadd.f32 0.0, %v600
    %v602 = vpop.f32.mrb[0].mxu0
    %603 = vmatprep.mubr.f32.mxu0 0.0
    %v604 = vand.u32 %v83, 4294901760
    %v605 = vsub.f32 %v83, %v604
    %v606 = vand.u32 %v605, 4294901760
    %v607 = vsub.f32 %v605, %v606
    %v608 = vand.u32 %v607, 4294901760
    %609 = vmatmul.mubr.f32.gmra.mrb[0].mxu0 %v608
    %v610 = vpop.f32.mrb[0].mxu0
    %v611 = vadd.f32 0.0, %v610
    %v612 = vpop.f32.mrb[0].mxu0
    %613 = vmatprep.mubr.f32.mxu0 0.0
    %v614 = vand.u32 %v84, 4294901760
    %v615 = vsub.f32 %v84, %v614
    %v616 = vand.u32 %v615, 4294901760
    %v617 = vsub.f32 %v615, %v616
    %v618 = vand.u32 %v617, 4294901760
    %619 = vmatmul.mubr.f32.gmra.mrb[0].mxu0 %v618
    %v620 = vpop.f32.mrb[0].mxu0
    %v621 = vadd.f32 0.0, %v620
    %v622 = vpop.f32.mrb[0].mxu0
    %623 = vmatprep.mubr.f32.mxu0 0.0
    %v624 = vand.u32 %v85, 4294901760
    %v625 = vsub.f32 %v85, %v624
    %v626 = vand.u32 %v625, 4294901760
    %v627 = vsub.f32 %v625, %v626
    %v628 = vand.u32 %v627, 4294901760
    %629 = vmatmul.mubr.f32.gmra.mrb[0].mxu0 %v628
    %v630 = vpop.f32.mrb[0].mxu0
    %v631 = vadd.f32 0.0, %v630
    %v632 = vpop.f32.mrb[0].mxu0
    %633 = vmatprep.mubr.f32.mxu0 0.0
    %v634 = vand.u32 %v86, 4294901760
    %v635 = vsub.f32 %v86, %v634
    %v636 = vand.u32 %v635, 4294901760
    %v637 = vsub.f32 %v635, %v636
    %v638 = vand.u32 %v637, 4294901760
    %639 = vmatmul.mubr.f32.gmra.mrb[0].mxu0 %v638
    %v640 = vpop.f32.mrb[0].mxu0
    %v641 = vadd.f32 0.0, %v640
    %v642 = vpop.f32.mrb[0].mxu0
    %643 = vmatprep.mubr.f32.mxu0 0.0
    %v644 = vand.u32 %v87, 4294901760
    %v645 = vsub.f32 %v87, %v644
    %v646 = vand.u32 %v645, 4294901760
    %v647 = vsub.f32 %v645, %v646
    %v648 = vand.u32 %v647, 4294901760
    %649 = vmatmul.mubr.f32.gmra.mrb[0].mxu0 %v648
    %v650 = vpop.f32.mrb[0].mxu0
    %v651 = vadd.f32 0.0, %v650
    %v652 = vpop.f32.mrb[0].mxu0
    %653 = vmatprep.mubr.f32.mxu0 0.0
    %v654 = vand.u32 %v88, 4294901760
    %v655 = vsub.f32 %v88, %v654
    %v656 = vand.u32 %v655, 4294901760
    %v657 = vsub.f32 %v655, %v656
    %v658 = vand.u32 %v657, 4294901760
    %659 = vmatmul.mubr.f32.gmra.mrb[0].mxu0 %v658
    %v660 = vpop.f32.mrb[0].mxu0
    %v661 = vadd.f32 0.0, %v660
    %v662 = vpop.f32.mrb[0].mxu0
    %663 = vmatprep.mubr.f32.mxu0 0.0
    %v664 = vand.u32 %v89, 4294901760
    %v665 = vsub.f32 %v89, %v664
    %v666 = vand.u32 %v665, 4294901760
    %v667 = vsub.f32 %v665, %v666
    %v668 = vand.u32 %v667, 4294901760
    %669 = vmatmul.mubr.f32.gmra.mrb[0].mxu0 %v668
    %v670 = vpop.f32.mrb[0].mxu0
    %v671 = vadd.f32 0.0, %v670
    %v672 = vpop.f32.mrb[0].mxu0
    %673 = vmatprep.mubr.f32.mxu0 0.0
    %v674 = vand.u32 %v90, 4294901760
    %v675 = vsub.f32 %v90, %v674
    %v676 = vand.u32 %v675, 4294901760
    %v677 = vsub.f32 %v675, %v676
    %v678 = vand.u32 %v677, 4294901760
    %679 = vmatmul.mubr.f32.gmra.mrb[0].mxu0 %v678
    %v680 = vpop.f32.mrb[0].mxu0
    %v681 = vadd.f32 0.0, %v680
    %v682 = vpop.f32.mrb[0].mxu0
    %683 = vmatprep.mubr.f32.mxu0 0.0
    %v684 = vand.u32 %v91, 4294901760
    %v685 = vsub.f32 %v91, %v684
    %v686 = vand.u32 %v685, 4294901760
    %v687 = vsub.f32 %v685, %v686
    %v688 = vand.u32 %v687, 4294901760
    %689 = vmatmul.mubr.f32.gmra.mrb[0].mxu0 %v688
    %v690 = vpop.f32.mrb[0].mxu0
    %v691 = vadd.f32 0.0, %v690
    %v692 = vpop.f32.mrb[0].mxu0
    %693 = vmatprep.mubr.f32.mxu0 0.0
    %v694 = vand.u32 %v92, 4294901760
    %v695 = vsub.f32 %v92, %v694
    %v696 = vand.u32 %v695, 4294901760
    %v697 = vsub.f32 %v695, %v696
    %v698 = vand.u32 %v697, 4294901760
    %699 = vmatmul.mubr.f32.gmra.mrb[0].mxu0 %v698
    %v700 = vpop.f32.mrb[0].mxu0
    %v701 = vadd.f32 0.0, %v700
    %v702 = vpop.f32.mrb[0].mxu0
    %703 = vmatprep.mubr.f32.mxu0 0.0
    %v704 = vand.u32 %v93, 4294901760
    %v705 = vsub.f32 %v93, %v704
    %v706 = vand.u32 %v705, 4294901760
    %v707 = vsub.f32 %v705, %v706
    %v708 = vand.u32 %v707, 4294901760
    %709 = vmatmul.mubr.f32.gmra.mrb[0].mxu0 %v708
    %v710 = vpop.f32.mrb[0].mxu0
    %v711 = vadd.f32 0.0, %v710
    %v712 = vpop.f32.mrb[0].mxu0
    %713 = vmatprep.mubr.f32.mxu0 0.0
    %v714 = vand.u32 %v94, 4294901760
    %v715 = vsub.f32 %v94, %v714
    %v716 = vand.u32 %v715, 4294901760
    %v717 = vsub.f32 %v715, %v716
    %v718 = vand.u32 %v717, 4294901760
    %719 = vmatmul.mubr.f32.gmra.mrb[0].mxu0 %v718
    %v720 = vpop.f32.mrb[0].mxu0
    %v721 = vadd.f32 0.0, %v720
    %v722 = vpop.f32.mrb[0].mxu0
    %723 = vmatprep.mubr.f32.mxu0 0.0
    %v724 = vand.u32 %v95, 4294901760
    %v725 = vsub.f32 %v95, %v724
    %v726 = vand.u32 %v725, 4294901760
    %v727 = vsub.f32 %v725, %v726
    %v728 = vand.u32 %v727, 4294901760
    %729 = vmatmul.mubr.f32.gmra.mrb[0].mxu0 %v728
    %v730 = vpop.f32.mrb[0].mxu0
    %v731 = vadd.f32 0.0, %v730
    %v732 = vpop.f32.mrb[0].mxu0
    %733 = vmatprep.mubr.f32.mxu0 0.0
    %v734 = vand.u32 %v96, 4294901760
    %v735 = vsub.f32 %v96, %v734
    %v736 = vand.u32 %v735, 4294901760
    %v737 = vsub.f32 %v735, %v736
    %v738 = vand.u32 %v737, 4294901760
    %739 = vmatmul.mubr.f32.gmra.mrb[0].mxu0 %v738
    %v740 = vpop.f32.mrb[0].mxu0
    %v741 = vadd.f32 0.0, %v740
    %v742 = vpop.f32.mrb[0].mxu0
    %743 = vmatprep.mubr.f32.mxu0 0.0
    %v744 = vand.u32 %v97, 4294901760
    %v745 = vsub.f32 %v97, %v744
    %v746 = vand.u32 %v745, 4294901760
    %v747 = vsub.f32 %v745, %v746
    %v748 = vand.u32 %v747, 4294901760
    %749 = vmatmul.mubr.f32.gmra.mrb[0].mxu0 %v748
    %v750 = vpop.f32.mrb[0].mxu0
    %v751 = vadd.f32 0.0, %v750
    %v752 = vpop.f32.mrb[0].mxu0
    %753 = vmatprep.mubr.f32.mxu0 0.0
    %v754 = vand.u32 %v98, 4294901760
    %v755 = vsub.f32 %v98, %v754
    %v756 = vand.u32 %v755, 4294901760
    %v757 = vsub.f32 %v755, %v756
    %v758 = vand.u32 %v757, 4294901760
    %759 = vmatmul.mubr.f32.gmra.mrb[0].mxu0 %v758
    %v760 = vpop.f32.mrb[0].mxu0
    %v761 = vadd.f32 0.0, %v760
    %v762 = vpop.f32.mrb[0].mxu0
    %763 = vmatprep.mubr.f32.mxu0 0.0
    %v764 = vand.u32 %v99, 4294901760
    %v765 = vsub.f32 %v99, %v764
    %v766 = vand.u32 %v765, 4294901760
    %v767 = vsub.f32 %v765, %v766
    %v768 = vand.u32 %v767, 4294901760
    %769 = vmatmul.mubr.f32.gmra.mrb[0].mxu0 %v768
    %v770 = vpop.f32.mrb[0].mxu0
    %v771 = vadd.f32 0.0, %v770
    %v772 = vpop.f32.mrb[0].mxu0
    %773 = vmatprep.mubr.f32.mxu0 0.0
    %v774 = vand.u32 %v100, 4294901760
    %v775 = vsub.f32 %v100, %v774
    %v776 = vand.u32 %v775, 4294901760
    %v777 = vsub.f32 %v775, %v776
    %v778 = vand.u32 %v777, 4294901760
    %779 = vmatmul.mubr.f32.gmra.mrb[0].mxu0 %v778
    %v780 = vpop.f32.mrb[0].mxu0
    %v781 = vadd.f32 0.0, %v780
    %v782 = vpop.f32.mrb[0].mxu0
    %783 = vmatprep.mubr.f32.mxu0 0.0
    %v784 = vand.u32 %v101, 4294901760
    %v785 = vsub.f32 %v101, %v784
    %v786 = vand.u32 %v785, 4294901760
    %v787 = vsub.f32 %v785, %v786
    %v788 = vand.u32 %v787, 4294901760
    %789 = vmatmul.mubr.f32.gmra.mrb[0].mxu0 %v788
    %v790 = vpop.f32.mrb[0].mxu0
    %v791 = vadd.f32 0.0, %v790
    %v792 = vpop.f32.mrb[0].mxu0
    %793 = vmatprep.mubr.f32.mxu0 0.0
    %v794 = vand.u32 %v102, 4294901760
    %v795 = vsub.f32 %v102, %v794
    %v796 = vand.u32 %v795, 4294901760
    %v797 = vsub.f32 %v795, %v796
    %v798 = vand.u32 %v797, 4294901760
    %799 = vmatmul.mubr.f32.gmra.mrb[0].mxu0 %v798
    %v800 = vpop.f32.mrb[0].mxu0
    %v801 = vadd.f32 0.0, %v800
    %v802 = vpop.f32.mrb[0].mxu0
    %803 = vmatprep.mubr.f32.mxu0 0.0
    %v804 = vand.u32 %v103, 4294901760
    %v805 = vsub.f32 %v103, %v804
    %v806 = vand.u32 %v805, 4294901760
    %v807 = vsub.f32 %v805, %v806
    %v808 = vand.u32 %v807, 4294901760
    %809 = vmatmul.mubr.f32.gmra.mrb[0].mxu0 %v808
    %v810 = vpop.f32.mrb[0].mxu0
    %v811 = vadd.f32 0.0, %v810
    %v812 = vpop.f32.mrb[0].mxu0
    %813 = vmatprep.mubr.f32.mxu0 0.0
    %v814 = vand.u32 %v104, 4294901760
    %v815 = vsub.f32 %v104, %v814
    %v816 = vand.u32 %v815, 4294901760
    %v817 = vsub.f32 %v815, %v816
    %v818 = vand.u32 %v817, 4294901760
    %819 = vmatmul.mubr.f32.gmra.mrb[0].mxu0 %v818
    %v820 = vpop.f32.mrb[0].mxu0
    %v821 = vadd.f32 0.0, %v820
    %v822 = vpop.f32.mrb[0].mxu0
    %823 = vmatprep.mubr.f32.mxu0 0.0
    %v824 = vand.u32 %v105, 4294901760
    %v825 = vsub.f32 %v105, %v824
    %v826 = vand.u32 %v825, 4294901760
    %v827 = vsub.f32 %v825, %v826
    %v828 = vand.u32 %v827, 4294901760
    %829 = vmatmul.mubr.f32.gmra.mrb[0].mxu0 %v828
    %v830 = vpop.f32.mrb[0].mxu0
    %v831 = vadd.f32 0.0, %v830
    %v832 = vpop.f32.mrb[0].mxu0
    %833 = vmatprep.mubr.f32.mxu0 0.0
    %v834 = vand.u32 %v106, 4294901760
    %v835 = vsub.f32 %v106, %v834
    %v836 = vand.u32 %v835, 4294901760
    %v837 = vsub.f32 %v835, %v836
    %v838 = vand.u32 %v837, 4294901760
    %839 = vmatmul.mubr.f32.gmra.mrb[0].mxu0 %v838
    %v840 = vpop.f32.mrb[0].mxu0
    %v841 = vadd.f32 0.0, %v840
    %v842 = vpop.f32.mrb[0].mxu0
    %843 = vdwg.mxu0
    %844 = vmatprep.subr.mxu0 0.0
    %v845 = vand.u32 %v107, 4294901760
    %v846 = vsub.f32 %v107, %v845
    %v847 = vand.u32 %v846, 4294901760
    %v848 = vsub.f32 %v846, %v847
    %v849 = vand.u32 %v848, 4294901760
    %850 = vmatpush1.msra.mxu0 %v849
    %851 = vmatprep.subr.mxu0 0.0
    %v852 = vand.u32 %v108, 4294901760
    %v853 = vsub.f32 %v108, %v852
    %v854 = vand.u32 %v853, 4294901760
    %v855 = vsub.f32 %v853, %v854
    %v856 = vand.u32 %v855, 4294901760
    %857 = vmatpush1.msra.mxu0 %v856
    %858 = vmatprep.subr.mxu0 0.0
    %v859 = vand.u32 %v109, 4294901760
    %v860 = vsub.f32 %v109, %v859
    %v861 = vand.u32 %v860, 4294901760
    %v862 = vsub.f32 %v860, %v861
    %v863 = vand.u32 %v862, 4294901760
    %864 = vmatpush1.msra.mxu0 %v863
    %865 = vmatprep.subr.mxu0 0.0
    %v866 = vand.u32 %v110, 4294901760
    %v867 = vsub.f32 %v110, %v866
    %v868 = vand.u32 %v867, 4294901760
    %v869 = vsub.f32 %v867, %v868
    %v870 = vand.u32 %v869, 4294901760
    %871 = vmatpush1.msra.mxu0 %v870
    %872 = vmatprep.subr.mxu0 0.0
    %v873 = vand.u32 %v111, 4294901760
    %v874 = vsub.f32 %v111, %v873
    %v875 = vand.u32 %v874, 4294901760
    %v876 = vsub.f32 %v874, %v875
    %v877 = vand.u32 %v876, 4294901760
    %878 = vmatpush1.msra.mxu0 %v877
    %879 = vmatprep.subr.mxu0 0.0
    %v880 = vand.u32 %v112, 4294901760
    %v881 = vsub.f32 %v112, %v880
    %v882 = vand.u32 %v881, 4294901760
    %v883 = vsub.f32 %v881, %v882
    %v884 = vand.u32 %v883, 4294901760
    %885 = vmatpush1.msra.mxu0 %v884
    %886 = vmatprep.subr.mxu0 0.0
    %v887 = vand.u32 %v113, 4294901760
    %v888 = vsub.f32 %v113, %v887
    %v889 = vand.u32 %v888, 4294901760
    %v890 = vsub.f32 %v888, %v889
    %v891 = vand.u32 %v890, 4294901760
    %892 = vmatpush1.msra.mxu0 %v891
    %893 = vmatprep.subr.mxu0 0.0
    %v894 = vand.u32 %v114, 4294901760
    %v895 = vsub.f32 %v114, %v894
    %v896 = vand.u32 %v895, 4294901760
    %v897 = vsub.f32 %v895, %v896
    %v898 = vand.u32 %v897, 4294901760
    %899 = vmatpush1.msra.mxu0 %v898
    %900 = vmatprep.subr.mxu0 0.0
    %v901 = vand.u32 %v115, 4294901760
    %v902 = vsub.f32 %v115, %v901
    %v903 = vand.u32 %v902, 4294901760
    %v904 = vsub.f32 %v902, %v903
    %v905 = vand.u32 %v904, 4294901760
    %906 = vmatpush1.msra.mxu0 %v905
    %907 = vmatprep.subr.mxu0 0.0
    %v908 = vand.u32 %v116, 4294901760
    %v909 = vsub.f32 %v116, %v908
    %v910 = vand.u32 %v909, 4294901760
    %v911 = vsub.f32 %v909, %v910
    %v912 = vand.u32 %v911, 4294901760
    %913 = vmatpush1.msra.mxu0 %v912
    %914 = vmatprep.subr.mxu0 0.0
    %v915 = vand.u32 %v117, 4294901760
    %v916 = vsub.f32 %v117, %v915
    %v917 = vand.u32 %v916, 4294901760
    %v918 = vsub.f32 %v916, %v917
    %v919 = vand.u32 %v918, 4294901760
    %920 = vmatpush1.msra.mxu0 %v919
    %921 = vmatprep.subr.mxu0 0.0
    %v922 = vand.u32 %v118, 4294901760
    %v923 = vsub.f32 %v118, %v922
    %v924 = vand.u32 %v923, 4294901760
    %v925 = vsub.f32 %v923, %v924
    %v926 = vand.u32 %v925, 4294901760
    %927 = vmatpush1.msra.mxu0 %v926
    %928 = vmatprep.subr.mxu0 0.0
    %v929 = vand.u32 %v119, 4294901760
    %v930 = vsub.f32 %v119, %v929
    %v931 = vand.u32 %v930, 4294901760
    %v932 = vsub.f32 %v930, %v931
    %v933 = vand.u32 %v932, 4294901760
    %934 = vmatpush1.msra.mxu0 %v933
    %935 = vmatprep.subr.mxu0 0.0
    %v936 = vand.u32 %v120, 4294901760
    %v937 = vsub.f32 %v120, %v936
    %v938 = vand.u32 %v937, 4294901760
    %v939 = vsub.f32 %v937, %v938
    %v940 = vand.u32 %v939, 4294901760
    %941 = vmatpush1.msra.mxu0 %v940
    %942 = vmatprep.subr.mxu0 0.0
    %v943 = vand.u32 %v121, 4294901760
    %v944 = vsub.f32 %v121, %v943
    %v945 = vand.u32 %v944, 4294901760
    %v946 = vsub.f32 %v944, %v945
    %v947 = vand.u32 %v946, 4294901760
    %948 = vmatpush1.msra.mxu0 %v947
    %949 = vmatprep.subr.mxu0 0.0
    %v950 = vand.u32 %v122, 4294901760
    %v951 = vsub.f32 %v122, %v950
    %v952 = vand.u32 %v951, 4294901760
    %v953 = vsub.f32 %v951, %v952
    %v954 = vand.u32 %v953, 4294901760
    %955 = vmatpush1.msra.mxu0 %v954
    %956 = vmatprep.subr.mxu0 0.0
    %957 = vmatpush1.msra.mxu0 0.0
    %958 = vmatprep.subr.mxu0 0.0
    %959 = vmatpush1.msra.mxu0 0.0
    %960 = vmatprep.subr.mxu0 0.0
    %961 = vmatpush1.msra.mxu0 0.0
    %962 = vmatprep.subr.mxu0 0.0
    %963 = vmatpush1.msra.mxu0 0.0
    %964 = vmatprep.subr.mxu0 0.0
    %965 = vmatpush1.msra.mxu0 0.0
    %966 = vmatprep.subr.mxu0 0.0
    %967 = vmatpush1.msra.mxu0 0.0
    %968 = vmatprep.subr.mxu0 0.0
    %969 = vmatpush1.msra.mxu0 0.0
    %970 = vmatprep.subr.mxu0 0.0
    %971 = vmatpush1.msra.mxu0 0.0
    %972 = vmatprep.subr.mxu0 0.0
    %973 = vmatpush1.msra.mxu0 0.0
    %974 = vmatprep.subr.mxu0 0.0
    %975 = vmatpush1.msra.mxu0 0.0
    %976 = vmatprep.subr.mxu0 0.0
    %977 = vmatpush1.msra.mxu0 0.0
    %978 = vmatprep.subr.mxu0 0.0
    %979 = vmatpush1.msra.mxu0 0.0
    %980 = vmatprep.subr.mxu0 0.0
    %981 = vmatpush1.msra.mxu0 0.0
    %982 = vmatprep.subr.mxu0 0.0
    %983 = vmatpush1.msra.mxu0 0.0
    %984 = vmatprep.subr.mxu0 0.0
    %985 = vmatpush1.msra.mxu0 0.0
    %986 = vmatprep.subr.mxu0 0.0
    %987 = vmatpush1.msra.mxu0 0.0
    %988 = vmatprep.mubr.f32.mxu0 0.0
    %v989 = vand.u32 %v43, 4294901760
    %990 = vmatmul.mubr.f32.gmra.mrb[0].mxu0 %v989
    %v991 = vpop.f32.mrb[0].mxu0
    %v992 = vadd.f32 %v211, %v991
    %v993 = vpop.f32.mrb[0].mxu0
    %994 = vmatprep.mubr.f32.mxu0 0.0
    %v995 = vand.u32 %v44, 4294901760
    %996 = vmatmul.mubr.f32.gmra.mrb[0].mxu0 %v995
    %v997 = vpop.f32.mrb[0].mxu0
    %v998 = vadd.f32 %v221, %v997
    %v999 = vpop.f32.mrb[0].mxu0
    %1000 = vmatprep.mubr.f32.mxu0 0.0
    %v1001 = vand.u32 %v45, 4294901760
    %1002 = vmatmul.mubr.f32.gmra.mrb[0].mxu0 %v1001
    %v1003 = vpop.f32.mrb[0].mxu0
    %v1004 = vadd.f32 %v231, %v1003
    %v1005 = vpop.f32.mrb[0].mxu0
    %1006 = vmatprep.mubr.f32.mxu0 0.0
    %v1007 = vand.u32 %v46, 4294901760
    %1008 = vmatmul.mubr.f32.gmra.mrb[0].mxu0 %v1007
    %v1009 = vpop.f32.mrb[0].mxu0
    %v1010 = vadd.f32 %v241, %v1009
    %v1011 = vpop.f32.mrb[0].mxu0
    %1012 = vmatprep.mubr.f32.mxu0 0.0
    %v1013 = vand.u32 %v47, 4294901760
    %1014 = vmatmul.mubr.f32.gmra.mrb[0].mxu0 %v1013
    %v1015 = vpop.f32.mrb[0].mxu0
    %v1016 = vadd.f32 %v251, %v1015
    %v1017 = vpop.f32.mrb[0].mxu0
    %1018 = vmatprep.mubr.f32.mxu0 0.0
    %v1019 = vand.u32 %v48, 4294901760
    %1020 = vmatmul.mubr.f32.gmra.mrb[0].mxu0 %v1019
    %v1021 = vpop.f32.mrb[0].mxu0
    %v1022 = vadd.f32 %v261, %v1021
    %v1023 = vpop.f32.mrb[0].mxu0
    %1024 = vmatprep.mubr.f32.mxu0 0.0
    %v1025 = vand.u32 %v49, 4294901760
    %1026 = vmatmul.mubr.f32.gmra.mrb[0].mxu0 %v1025
    %v1027 = vpop.f32.mrb[0].mxu0
    %v1028 = vadd.f32 %v271, %v1027
    %v1029 = vpop.f32.mrb[0].mxu0
    %1030 = vmatprep.mubr.f32.mxu0 0.0
    %v1031 = vand.u32 %v50, 4294901760
    %1032 = vmatmul.mubr.f32.gmra.mrb[0].mxu0 %v1031
    %v1033 = vpop.f32.mrb[0].mxu0
    %v1034 = vadd.f32 %v281, %v1033
    %v1035 = vpop.f32.mrb[0].mxu0
    %1036 = vmatprep.mubr.f32.mxu0 0.0
    %v1037 = vand.u32 %v51, 4294901760
    %1038 = vmatmul.mubr.f32.gmra.mrb[0].mxu0 %v1037
    %v1039 = vpop.f32.mrb[0].mxu0
    %v1040 = vadd.f32 %v291, %v1039
    %v1041 = vpop.f32.mrb[0].mxu0
    %1042 = vmatprep.mubr.f32.mxu0 0.0
    %v1043 = vand.u32 %v52, 4294901760
    %1044 = vmatmul.mubr.f32.gmra.mrb[0].mxu0 %v1043
    %v1045 = vpop.f32.mrb[0].mxu0
    %v1046 = vadd.f32 %v301, %v1045
    %v1047 = vpop.f32.mrb[0].mxu0
    %1048 = vmatprep.mubr.f32.mxu0 0.0
    %v1049 = vand.u32 %v53, 4294901760
    %1050 = vmatmul.mubr.f32.gmra.mrb[0].mxu0 %v1049
    %v1051 = vpop.f32.mrb[0].mxu0
    %v1052 = vadd.f32 %v311, %v1051
    %v1053 = vpop.f32.mrb[0].mxu0
    %1054 = vmatprep.mubr.f32.mxu0 0.0
    %v1055 = vand.u32 %v54, 4294901760
    %1056 = vmatmul.mubr.f32.gmra.mrb[0].mxu0 %v1055
    %v1057 = vpop.f32.mrb[0].mxu0
    %v1058 = vadd.f32 %v321, %v1057
    %v1059 = vpop.f32.mrb[0].mxu0
    %1060 = vmatprep.mubr.f32.mxu0 0.0
    %v1061 = vand.u32 %v55, 4294901760
    %1062 = vmatmul.mubr.f32.gmra.mrb[0].mxu0 %v1061
    %v1063 = vpop.f32.mrb[0].mxu0
    %v1064 = vadd.f32 %v331, %v1063
    %v1065 = vpop.f32.mrb[0].mxu0
    %1066 = vmatprep.mubr.f32.mxu0 0.0
    %v1067 = vand.u32 %v56, 4294901760
    %1068 = vmatmul.mubr.f32.gmra.mrb[0].mxu0 %v1067
    %v1069 = vpop.f32.mrb[0].mxu0
    %v1070 = vadd.f32 %v341, %v1069
    %v1071 = vpop.f32.mrb[0].mxu0
    %1072 = vmatprep.mubr.f32.mxu0 0.0
    %v1073 = vand.u32 %v57, 4294901760
    %1074 = vmatmul.mubr.f32.gmra.mrb[0].mxu0 %v1073
    %v1075 = vpop.f32.mrb[0].mxu0
    %v1076 = vadd.f32 %v351, %v1075
    %v1077 = vpop.f32.mrb[0].mxu0
    %1078 = vmatprep.mubr.f32.mxu0 0.0
    %v1079 = vand.u32 %v58, 4294901760
    %1080 = vmatmul.mubr.f32.gmra.mrb[0].mxu0 %v1079
    %v1081 = vpop.f32.mrb[0].mxu0
    %v1082 = vadd.f32 %v361, %v1081
    %v1083 = vpop.f32.mrb[0].mxu0
    %1084 = vmatprep.mubr.f32.mxu0 0.0
    %v1085 = vand.u32 %v59, 4294901760
    %1086 = vmatmul.mubr.f32.gmra.mrb[0].mxu0 %v1085
    %v1087 = vpop.f32.mrb[0].mxu0
    %v1088 = vadd.f32 %v371, %v1087
    %v1089 = vpop.f32.mrb[0].mxu0
    %1090 = vmatprep.mubr.f32.mxu0 0.0
    %v1091 = vand.u32 %v60, 4294901760
    %1092 = vmatmul.mubr.f32.gmra.mrb[0].mxu0 %v1091
    %v1093 = vpop.f32.mrb[0].mxu0
    %v1094 = vadd.f32 %v381, %v1093
    %v1095 = vpop.f32.mrb[0].mxu0
    %1096 = vmatprep.mubr.f32.mxu0 0.0
    %v1097 = vand.u32 %v61, 4294901760
    %1098 = vmatmul.mubr.f32.gmra.mrb[0].mxu0 %v1097
    %v1099 = vpop.f32.mrb[0].mxu0
    %v1100 = vadd.f32 %v391, %v1099
    %v1101 = vpop.f32.mrb[0].mxu0
    %1102 = vmatprep.mubr.f32.mxu0 0.0
    %v1103 = vand.u32 %v62, 4294901760
    %1104 = vmatmul.mubr.f32.gmra.mrb[0].mxu0 %v1103
    %v1105 = vpop.f32.mrb[0].mxu0
    %v1106 = vadd.f32 %v401, %v1105
    %v1107 = vpop.f32.mrb[0].mxu0
    %1108 = vmatprep.mubr.f32.mxu0 0.0
    %v1109 = vand.u32 %v63, 4294901760
    %1110 = vmatmul.mubr.f32.gmra.mrb[0].mxu0 %v1109
    %v1111 = vpop.f32.mrb[0].mxu0
    %v1112 = vadd.f32 %v411, %v1111
    %v1113 = vpop.f32.mrb[0].mxu0
    %1114 = vmatprep.mubr.f32.mxu0 0.0
    %v1115 = vand.u32 %v64, 4294901760
    %1116 = vmatmul.mubr.f32.gmra.mrb[0].mxu0 %v1115
    %v1117 = vpop.f32.mrb[0].mxu0
    %v1118 = vadd.f32 %v421, %v1117
    %v1119 = vpop.f32.mrb[0].mxu0
    %1120 = vmatprep.mubr.f32.mxu0 0.0
    %v1121 = vand.u32 %v65, 4294901760
    %1122 = vmatmul.mubr.f32.gmra.mrb[0].mxu0 %v1121
    %v1123 = vpop.f32.mrb[0].mxu0
    %v1124 = vadd.f32 %v431, %v1123
    %v1125 = vpop.f32.mrb[0].mxu0
    %1126 = vmatprep.mubr.f32.mxu0 0.0
    %v1127 = vand.u32 %v66, 4294901760
    %1128 = vmatmul.mubr.f32.gmra.mrb[0].mxu0 %v1127
    %v1129 = vpop.f32.mrb[0].mxu0
    %v1130 = vadd.f32 %v441, %v1129
    %v1131 = vpop.f32.mrb[0].mxu0
    %1132 = vmatprep.mubr.f32.mxu0 0.0
    %v1133 = vand.u32 %v67, 4294901760
    %1134 = vmatmul.mubr.f32.gmra.mrb[0].mxu0 %v1133
    %v1135 = vpop.f32.mrb[0].mxu0
    %v1136 = vadd.f32 %v451, %v1135
    %v1137 = vpop.f32.mrb[0].mxu0
    %1138 = vmatprep.mubr.f32.mxu0 0.0
    %v1139 = vand.u32 %v68, 4294901760
    %1140 = vmatmul.mubr.f32.gmra.mrb[0].mxu0 %v1139
    %v1141 = vpop.f32.mrb[0].mxu0
    %v1142 = vadd.f32 %v461, %v1141
    %v1143 = vpop.f32.mrb[0].mxu0
    %1144 = vmatprep.mubr.f32.mxu0 0.0
    %v1145 = vand.u32 %v69, 4294901760
    %1146 = vmatmul.mubr.f32.gmra.mrb[0].mxu0 %v1145
    %v1147 = vpop.f32.mrb[0].mxu0
    %v1148 = vadd.f32 %v471, %v1147
    %v1149 = vpop.f32.mrb[0].mxu0
    %1150 = vmatprep.mubr.f32.mxu0 0.0
    %v1151 = vand.u32 %v70, 4294901760
    %1152 = vmatmul.mubr.f32.gmra.mrb[0].mxu0 %v1151
    %v1153 = vpop.f32.mrb[0].mxu0
    %v1154 = vadd.f32 %v481, %v1153
    %v1155 = vpop.f32.mrb[0].mxu0
    %1156 = vmatprep.mubr.f32.mxu0 0.0
    %v1157 = vand.u32 %v71, 4294901760
    %1158 = vmatmul.mubr.f32.gmra.mrb[0].mxu0 %v1157
    %v1159 = vpop.f32.mrb[0].mxu0
    %v1160 = vadd.f32 %v491, %v1159
    %v1161 = vpop.f32.mrb[0].mxu0
    %1162 = vmatprep.mubr.f32.mxu0 0.0
    %v1163 = vand.u32 %v72, 4294901760
    %1164 = vmatmul.mubr.f32.gmra.mrb[0].mxu0 %v1163
    %v1165 = vpop.f32.mrb[0].mxu0
    %v1166 = vadd.f32 %v501, %v1165
    %v1167 = vpop.f32.mrb[0].mxu0
    %1168 = vmatprep.mubr.f32.mxu0 0.0
    %v1169 = vand.u32 %v73, 4294901760
    %1170 = vmatmul.mubr.f32.gmra.mrb[0].mxu0 %v1169
    %v1171 = vpop.f32.mrb[0].mxu0
    %v1172 = vadd.f32 %v511, %v1171
    %v1173 = vpop.f32.mrb[0].mxu0
    %1174 = vmatprep.mubr.f32.mxu0 0.0
    %v1175 = vand.u32 %v74, 4294901760
    %1176 = vmatmul.mubr.f32.gmra.mrb[0].mxu0 %v1175
    %v1177 = vpop.f32.mrb[0].mxu0
    %v1178 = vadd.f32 %v521, %v1177
    %v1179 = vpop.f32.mrb[0].mxu0
    %1180 = vmatprep.mubr.f32.mxu0 0.0
    %v1181 = vand.u32 %v75, 4294901760
    %1182 = vmatmul.mubr.f32.gmra.mrb[0].mxu0 %v1181
    %v1183 = vpop.f32.mrb[0].mxu0
    %v1184 = vadd.f32 %v531, %v1183
    %v1185 = vpop.f32.mrb[0].mxu0
    %1186 = vmatprep.mubr.f32.mxu0 0.0
    %v1187 = vand.u32 %v76, 4294901760
    %1188 = vmatmul.mubr.f32.gmra.mrb[0].mxu0 %v1187
    %v1189 = vpop.f32.mrb[0].mxu0
    %v1190 = vadd.f32 %v541, %v1189
    %v1191 = vpop.f32.mrb[0].mxu0
    %1192 = vmatprep.mubr.f32.mxu0 0.0
    %v1193 = vand.u32 %v77, 4294901760
    %1194 = vmatmul.mubr.f32.gmra.mrb[0].mxu0 %v1193
    %v1195 = vpop.f32.mrb[0].mxu0
    %v1196 = vadd.f32 %v551, %v1195
    %v1197 = vpop.f32.mrb[0].mxu0
    %1198 = vmatprep.mubr.f32.mxu0 0.0
    %v1199 = vand.u32 %v78, 4294901760
    %1200 = vmatmul.mubr.f32.gmra.mrb[0].mxu0 %v1199
    %v1201 = vpop.f32.mrb[0].mxu0
    %v1202 = vadd.f32 %v561, %v1201
    %v1203 = vpop.f32.mrb[0].mxu0
    %1204 = vmatprep.mubr.f32.mxu0 0.0
    %v1205 = vand.u32 %v79, 4294901760
    %1206 = vmatmul.mubr.f32.gmra.mrb[0].mxu0 %v1205
    %v1207 = vpop.f32.mrb[0].mxu0
    %v1208 = vadd.f32 %v571, %v1207
    %v1209 = vpop.f32.mrb[0].mxu0
    %1210 = vmatprep.mubr.f32.mxu0 0.0
    %v1211 = vand.u32 %v80, 4294901760
    %1212 = vmatmul.mubr.f32.gmra.mrb[0].mxu0 %v1211
    %v1213 = vpop.f32.mrb[0].mxu0
    %v1214 = vadd.f32 %v581, %v1213
    %v1215 = vpop.f32.mrb[0].mxu0
    %1216 = vmatprep.mubr.f32.mxu0 0.0
    %v1217 = vand.u32 %v81, 4294901760
    %1218 = vmatmul.mubr.f32.gmra.mrb[0].mxu0 %v1217
    %v1219 = vpop.f32.mrb[0].mxu0
    %v1220 = vadd.f32 %v591, %v1219
    %v1221 = vpop.f32.mrb[0].mxu0
    %1222 = vmatprep.mubr.f32.mxu0 0.0
    %v1223 = vand.u32 %v82, 4294901760
    %1224 = vmatmul.mubr.f32.gmra.mrb[0].mxu0 %v1223
    %v1225 = vpop.f32.mrb[0].mxu0
    %v1226 = vadd.f32 %v601, %v1225
    %v1227 = vpop.f32.mrb[0].mxu0
    %1228 = vmatprep.mubr.f32.mxu0 0.0
    %v1229 = vand.u32 %v83, 4294901760
    %1230 = vmatmul.mubr.f32.gmra.mrb[0].mxu0 %v1229
    %v1231 = vpop.f32.mrb[0].mxu0
    %v1232 = vadd.f32 %v611, %v1231
    %v1233 = vpop.f32.mrb[0].mxu0
    %1234 = vmatprep.mubr.f32.mxu0 0.0
    %v1235 = vand.u32 %v84, 4294901760
    %1236 = vmatmul.mubr.f32.gmra.mrb[0].mxu0 %v1235
    %v1237 = vpop.f32.mrb[0].mxu0
    %v1238 = vadd.f32 %v621, %v1237
    %v1239 = vpop.f32.mrb[0].mxu0
    %1240 = vmatprep.mubr.f32.mxu0 0.0
    %v1241 = vand.u32 %v85, 4294901760
    %1242 = vmatmul.mubr.f32.gmra.mrb[0].mxu0 %v1241
    %v1243 = vpop.f32.mrb[0].mxu0
    %v1244 = vadd.f32 %v631, %v1243
    %v1245 = vpop.f32.mrb[0].mxu0
    %1246 = vmatprep.mubr.f32.mxu0 0.0
    %v1247 = vand.u32 %v86, 4294901760
    %1248 = vmatmul.mubr.f32.gmra.mrb[0].mxu0 %v1247
    %v1249 = vpop.f32.mrb[0].mxu0
    %v1250 = vadd.f32 %v641, %v1249
    %v1251 = vpop.f32.mrb[0].mxu0
    %1252 = vmatprep.mubr.f32.mxu0 0.0
    %v1253 = vand.u32 %v87, 4294901760
    %1254 = vmatmul.mubr.f32.gmra.mrb[0].mxu0 %v1253
    %v1255 = vpop.f32.mrb[0].mxu0
    %v1256 = vadd.f32 %v651, %v1255
    %v1257 = vpop.f32.mrb[0].mxu0
    %1258 = vmatprep.mubr.f32.mxu0 0.0
    %v1259 = vand.u32 %v88, 4294901760
    %1260 = vmatmul.mubr.f32.gmra.mrb[0].mxu0 %v1259
    %v1261 = vpop.f32.mrb[0].mxu0
    %v1262 = vadd.f32 %v661, %v1261
    %v1263 = vpop.f32.mrb[0].mxu0
    %1264 = vmatprep.mubr.f32.mxu0 0.0
    %v1265 = vand.u32 %v89, 4294901760
    %1266 = vmatmul.mubr.f32.gmra.mrb[0].mxu0 %v1265
    %v1267 = vpop.f32.mrb[0].mxu0
    %v1268 = vadd.f32 %v671, %v1267
    %v1269 = vpop.f32.mrb[0].mxu0
    %1270 = vmatprep.mubr.f32.mxu0 0.0
    %v1271 = vand.u32 %v90, 4294901760
    %1272 = vmatmul.mubr.f32.gmra.mrb[0].mxu0 %v1271
    %v1273 = vpop.f32.mrb[0].mxu0
    %v1274 = vadd.f32 %v681, %v1273
    %v1275 = vpop.f32.mrb[0].mxu0
    %1276 = vmatprep.mubr.f32.mxu0 0.0
    %v1277 = vand.u32 %v91, 4294901760
    %1278 = vmatmul.mubr.f32.gmra.mrb[0].mxu0 %v1277
    %v1279 = vpop.f32.mrb[0].mxu0
    %v1280 = vadd.f32 %v691, %v1279
    %v1281 = vpop.f32.mrb[0].mxu0
    %1282 = vmatprep.mubr.f32.mxu0 0.0
    %v1283 = vand.u32 %v92, 4294901760
    %1284 = vmatmul.mubr.f32.gmra.mrb[0].mxu0 %v1283
    %v1285 = vpop.f32.mrb[0].mxu0
    %v1286 = vadd.f32 %v701, %v1285
    %v1287 = vpop.f32.mrb[0].mxu0
    %1288 = vmatprep.mubr.f32.mxu0 0.0
    %v1289 = vand.u32 %v93, 4294901760
    %1290 = vmatmul.mubr.f32.gmra.mrb[0].mxu0 %v1289
    %v1291 = vpop.f32.mrb[0].mxu0
    %v1292 = vadd.f32 %v711, %v1291
    %v1293 = vpop.f32.mrb[0].mxu0
    %1294 = vmatprep.mubr.f32.mxu0 0.0
    %v1295 = vand.u32 %v94, 4294901760
    %1296 = vmatmul.mubr.f32.gmra.mrb[0].mxu0 %v1295
    %v1297 = vpop.f32.mrb[0].mxu0
    %v1298 = vadd.f32 %v721, %v1297
    %v1299 = vpop.f32.mrb[0].mxu0
    %1300 = vmatprep.mubr.f32.mxu0 0.0
    %v1301 = vand.u32 %v95, 4294901760
    %1302 = vmatmul.mubr.f32.gmra.mrb[0].mxu0 %v1301
    %v1303 = vpop.f32.mrb[0].mxu0
    %v1304 = vadd.f32 %v731, %v1303
    %v1305 = vpop.f32.mrb[0].mxu0
    %1306 = vmatprep.mubr.f32.mxu0 0.0
    %v1307 = vand.u32 %v96, 4294901760
    %1308 = vmatmul.mubr.f32.gmra.mrb[0].mxu0 %v1307
    %v1309 = vpop.f32.mrb[0].mxu0
    %v1310 = vadd.f32 %v741, %v1309
    %v1311 = vpop.f32.mrb[0].mxu0
    %1312 = vmatprep.mubr.f32.mxu0 0.0
    %v1313 = vand.u32 %v97, 4294901760
    %1314 = vmatmul.mubr.f32.gmra.mrb[0].mxu0 %v1313
    %v1315 = vpop.f32.mrb[0].mxu0
    %v1316 = vadd.f32 %v751, %v1315
    %v1317 = vpop.f32.mrb[0].mxu0
    %1318 = vmatprep.mubr.f32.mxu0 0.0
    %v1319 = vand.u32 %v98, 4294901760
    %1320 = vmatmul.mubr.f32.gmra.mrb[0].mxu0 %v1319
    %v1321 = vpop.f32.mrb[0].mxu0
    %v1322 = vadd.f32 %v761, %v1321
    %v1323 = vpop.f32.mrb[0].mxu0
    %1324 = vmatprep.mubr.f32.mxu0 0.0
    %v1325 = vand.u32 %v99, 4294901760
    %1326 = vmatmul.mubr.f32.gmra.mrb[0].mxu0 %v1325
    %v1327 = vpop.f32.mrb[0].mxu0
    %v1328 = vadd.f32 %v771, %v1327
    %v1329 = vpop.f32.mrb[0].mxu0
    %1330 = vmatprep.mubr.f32.mxu0 0.0
    %v1331 = vand.u32 %v100, 4294901760
    %1332 = vmatmul.mubr.f32.gmra.mrb[0].mxu0 %v1331
    %v1333 = vpop.f32.mrb[0].mxu0
    %v1334 = vadd.f32 %v781, %v1333
    %v1335 = vpop.f32.mrb[0].mxu0
    %1336 = vmatprep.mubr.f32.mxu0 0.0
    %v1337 = vand.u32 %v101, 4294901760
    %1338 = vmatmul.mubr.f32.gmra.mrb[0].mxu0 %v1337
    %v1339 = vpop.f32.mrb[0].mxu0
    %v1340 = vadd.f32 %v791, %v1339
    %v1341 = vpop.f32.mrb[0].mxu0
    %1342 = vmatprep.mubr.f32.mxu0 0.0
    %v1343 = vand.u32 %v102, 4294901760
    %1344 = vmatmul.mubr.f32.gmra.mrb[0].mxu0 %v1343
    %v1345 = vpop.f32.mrb[0].mxu0
    %v1346 = vadd.f32 %v801, %v1345
    %v1347 = vpop.f32.mrb[0].mxu0
    %1348 = vmatprep.mubr.f32.mxu0 0.0
    %v1349 = vand.u32 %v103, 4294901760
    %1350 = vmatmul.mubr.f32.gmra.mrb[0].mxu0 %v1349
    %v1351 = vpop.f32.mrb[0].mxu0
    %v1352 = vadd.f32 %v811, %v1351
    %v1353 = vpop.f32.mrb[0].mxu0
    %1354 = vmatprep.mubr.f32.mxu0 0.0
    %v1355 = vand.u32 %v104, 4294901760
    %1356 = vmatmul.mubr.f32.gmra.mrb[0].mxu0 %v1355
    %v1357 = vpop.f32.mrb[0].mxu0
    %v1358 = vadd.f32 %v821, %v1357
    %v1359 = vpop.f32.mrb[0].mxu0
    %1360 = vmatprep.mubr.f32.mxu0 0.0
    %v1361 = vand.u32 %v105, 4294901760
    %1362 = vmatmul.mubr.f32.gmra.mrb[0].mxu0 %v1361
    %v1363 = vpop.f32.mrb[0].mxu0
    %v1364 = vadd.f32 %v831, %v1363
    %v1365 = vpop.f32.mrb[0].mxu0
    %1366 = vmatprep.mubr.f32.mxu0 0.0
    %v1367 = vand.u32 %v106, 4294901760
    %1368 = vmatmul.mubr.f32.gmra.mrb[0].mxu0 %v1367
    %v1369 = vpop.f32.mrb[0].mxu0
    %v1370 = vadd.f32 %v841, %v1369
    %v1371 = vpop.f32.mrb[0].mxu0
    %1372 = vdwg.mxu0
    %1373 = vmatprep.subr.mxu0 0.0
    %v1374 = vand.u32 %v107, 4294901760
    %v1375 = vsub.f32 %v107, %v1374
    %1376 = vmatpush1.msra.mxu0 %v1375
    %1377 = vmatprep.subr.mxu0 0.0
    %v1378 = vand.u32 %v108, 4294901760
    %v1379 = vsub.f32 %v108, %v1378
    %1380 = vmatpush1.msra.mxu0 %v1379
    %1381 = vmatprep.subr.mxu0 0.0
    %v1382 = vand.u32 %v109, 4294901760
    %v1383 = vsub.f32 %v109, %v1382
    %1384 = vmatpush1.msra.mxu0 %v1383
    %1385 = vmatprep.subr.mxu0 0.0
    %v1386 = vand.u32 %v110, 4294901760
    %v1387 = vsub.f32 %v110, %v1386
    %1388 = vmatpush1.msra.mxu0 %v1387
    %1389 = vmatprep.subr.mxu0 0.0
    %v1390 = vand.u32 %v111, 4294901760
    %v1391 = vsub.f32 %v111, %v1390
    %1392 = vmatpush1.msra.mxu0 %v1391
    %1393 = vmatprep.subr.mxu0 0.0
    %v1394 = vand.u32 %v112, 4294901760
    %v1395 = vsub.f32 %v112, %v1394
    %1396 = vmatpush1.msra.mxu0 %v1395
    %1397 = vmatprep.subr.mxu0 0.0
    %v1398 = vand.u32 %v113, 4294901760
    %v1399 = vsub.f32 %v113, %v1398
    %1400 = vmatpush1.msra.mxu0 %v1399
    %1401 = vmatprep.subr.mxu0 0.0
    %v1402 = vand.u32 %v114, 4294901760
    %v1403 = vsub.f32 %v114, %v1402
    %1404 = vmatpush1.msra.mxu0 %v1403
    %1405 = vmatprep.subr.mxu0 0.0
    %v1406 = vand.u32 %v115, 4294901760
    %v1407 = vsub.f32 %v115, %v1406
    %1408 = vmatpush1.msra.mxu0 %v1407
    %1409 = vmatprep.subr.mxu0 0.0
    %v1410 = vand.u32 %v116, 4294901760
    %v1411 = vsub.f32 %v116, %v1410
    %1412 = vmatpush1.msra.mxu0 %v1411
    %1413 = vmatprep.subr.mxu0 0.0
    %v1414 = vand.u32 %v117, 4294901760
    %v1415 = vsub.f32 %v117, %v1414
    %1416 = vmatpush1.msra.mxu0 %v1415
    %1417 = vmatprep.subr.mxu0 0.0
    %v1418 = vand.u32 %v118, 4294901760
    %v1419 = vsub.f32 %v118, %v1418
    %1420 = vmatpush1.msra.mxu0 %v1419
    %1421 = vmatprep.subr.mxu0 0.0
    %v1422 = vand.u32 %v119, 4294901760
    %v1423 = vsub.f32 %v119, %v1422
    %1424 = vmatpush1.msra.mxu0 %v1423
    %1425 = vmatprep.subr.mxu0 0.0
    %v1426 = vand.u32 %v120, 4294901760
    %v1427 = vsub.f32 %v120, %v1426
    %1428 = vmatpush1.msra.mxu0 %v1427
    %1429 = vmatprep.subr.mxu0 0.0
    %v1430 = vand.u32 %v121, 4294901760
    %v1431 = vsub.f32 %v121, %v1430
    %1432 = vmatpush1.msra.mxu0 %v1431
    %1433 = vmatprep.subr.mxu0 0.0
    %v1434 = vand.u32 %v122, 4294901760
    %v1435 = vsub.f32 %v122, %v1434
    %1436 = vmatpush1.msra.mxu0 %v1435
    %1437 = vmatprep.subr.mxu0 0.0
    %1438 = vmatpush1.msra.mxu0 0.0
    %1439 = vmatprep.subr.mxu0 0.0
    %1440 = vmatpush1.msra.mxu0 0.0
    %1441 = vmatprep.subr.mxu0 0.0
    %1442 = vmatpush1.msra.mxu0 0.0
    %1443 = vmatprep.subr.mxu0 0.0
    %1444 = vmatpush1.msra.mxu0 0.0
    %1445 = vmatprep.subr.mxu0 0.0
    %1446 = vmatpush1.msra.mxu0 0.0
    %1447 = vmatprep.subr.mxu0 0.0
    %1448 = vmatpush1.msra.mxu0 0.0
    %1449 = vmatprep.subr.mxu0 0.0
    %1450 = vmatpush1.msra.mxu0 0.0
    %1451 = vmatprep.subr.mxu0 0.0
    %1452 = vmatpush1.msra.mxu0 0.0
    %1453 = vmatprep.subr.mxu0 0.0
    %1454 = vmatpush1.msra.mxu0 0.0
    %1455 = vmatprep.subr.mxu0 0.0
    %1456 = vmatpush1.msra.mxu0 0.0
    %1457 = vmatprep.subr.mxu0 0.0
    %1458 = vmatpush1.msra.mxu0 0.0
    %1459 = vmatprep.subr.mxu0 0.0
    %1460 = vmatpush1.msra.mxu0 0.0
    %1461 = vmatprep.subr.mxu0 0.0
    %1462 = vmatpush1.msra.mxu0 0.0
    %1463 = vmatprep.subr.mxu0 0.0
    %1464 = vmatpush1.msra.mxu0 0.0
    %1465 = vmatprep.subr.mxu0 0.0
    %1466 = vmatpush1.msra.mxu0 0.0
    %1467 = vmatprep.subr.mxu0 0.0
    %1468 = vmatpush1.msra.mxu0 0.0
    %1469 = vmatprep.mubr.f32.mxu0 0.0
    %v1470 = vand.u32 %v43, 4294901760
    %v1471 = vsub.f32 %v43, %v1470
    %1472 = vmatmul.mubr.f32.gmra.mrb[0].mxu0 %v1471
    %v1473 = vpop.f32.mrb[0].mxu0
    %v1474 = vadd.f32 %v992, %v1473
    %v1475 = vpop.f32.mrb[0].mxu0
    %1476 = vmatprep.mubr.f32.mxu0 0.0
    %v1477 = vand.u32 %v44, 4294901760
    %v1478 = vsub.f32 %v44, %v1477
    %1479 = vmatmul.mubr.f32.gmra.mrb[0].mxu0 %v1478
    %v1480 = vpop.f32.mrb[0].mxu0
    %v1481 = vadd.f32 %v998, %v1480
    %v1482 = vpop.f32.mrb[0].mxu0
    %1483 = vmatprep.mubr.f32.mxu0 0.0
    %v1484 = vand.u32 %v45, 4294901760
    %v1485 = vsub.f32 %v45, %v1484
    %1486 = vmatmul.mubr.f32.gmra.mrb[0].mxu0 %v1485
    %v1487 = vpop.f32.mrb[0].mxu0
    %v1488 = vadd.f32 %v1004, %v1487
    %v1489 = vpop.f32.mrb[0].mxu0
    %1490 = vmatprep.mubr.f32.mxu0 0.0
    %v1491 = vand.u32 %v46, 4294901760
    %v1492 = vsub.f32 %v46, %v1491
    %1493 = vmatmul.mubr.f32.gmra.mrb[0].mxu0 %v1492
    %v1494 = vpop.f32.mrb[0].mxu0
    %v1495 = vadd.f32 %v1010, %v1494
    %v1496 = vpop.f32.mrb[0].mxu0
    %1497 = vmatprep.mubr.f32.mxu0 0.0
    %v1498 = vand.u32 %v47, 4294901760
    %v1499 = vsub.f32 %v47, %v1498
    %1500 = vmatmul.mubr.f32.gmra.mrb[0].mxu0 %v1499
    %v1501 = vpop.f32.mrb[0].mxu0
    %v1502 = vadd.f32 %v1016, %v1501
    %v1503 = vpop.f32.mrb[0].mxu0
    %1504 = vmatprep.mubr.f32.mxu0 0.0
    %v1505 = vand.u32 %v48, 4294901760
    %v1506 = vsub.f32 %v48, %v1505
    %1507 = vmatmul.mubr.f32.gmra.mrb[0].mxu0 %v1506
    %v1508 = vpop.f32.mrb[0].mxu0
    %v1509 = vadd.f32 %v1022, %v1508
    %v1510 = vpop.f32.mrb[0].mxu0
    %1511 = vmatprep.mubr.f32.mxu0 0.0
    %v1512 = vand.u32 %v49, 4294901760
    %v1513 = vsub.f32 %v49, %v1512
    %1514 = vmatmul.mubr.f32.gmra.mrb[0].mxu0 %v1513
    %v1515 = vpop.f32.mrb[0].mxu0
    %v1516 = vadd.f32 %v1028, %v1515
    %v1517 = vpop.f32.mrb[0].mxu0
    %1518 = vmatprep.mubr.f32.mxu0 0.0
    %v1519 = vand.u32 %v50, 4294901760
    %v1520 = vsub.f32 %v50, %v1519
    %1521 = vmatmul.mubr.f32.gmra.mrb[0].mxu0 %v1520
    %v1522 = vpop.f32.mrb[0].mxu0
    %v1523 = vadd.f32 %v1034, %v1522
    %v1524 = vpop.f32.mrb[0].mxu0
    %1525 = vmatprep.mubr.f32.mxu0 0.0
    %v1526 = vand.u32 %v51, 4294901760
    %v1527 = vsub.f32 %v51, %v1526
    %1528 = vmatmul.mubr.f32.gmra.mrb[0].mxu0 %v1527
    %v1529 = vpop.f32.mrb[0].mxu0
    %v1530 = vadd.f32 %v1040, %v1529
    %v1531 = vpop.f32.mrb[0].mxu0
    %1532 = vmatprep.mubr.f32.mxu0 0.0
    %v1533 = vand.u32 %v52, 4294901760
    %v1534 = vsub.f32 %v52, %v1533
    %1535 = vmatmul.mubr.f32.gmra.mrb[0].mxu0 %v1534
    %v1536 = vpop.f32.mrb[0].mxu0
    %v1537 = vadd.f32 %v1046, %v1536
    %v1538 = vpop.f32.mrb[0].mxu0
    %1539 = vmatprep.mubr.f32.mxu0 0.0
    %v1540 = vand.u32 %v53, 4294901760
    %v1541 = vsub.f32 %v53, %v1540
    %1542 = vmatmul.mubr.f32.gmra.mrb[0].mxu0 %v1541
    %v1543 = vpop.f32.mrb[0].mxu0
    %v1544 = vadd.f32 %v1052, %v1543
    %v1545 = vpop.f32.mrb[0].mxu0
    %1546 = vmatprep.mubr.f32.mxu0 0.0
    %v1547 = vand.u32 %v54, 4294901760
    %v1548 = vsub.f32 %v54, %v1547
    %1549 = vmatmul.mubr.f32.gmra.mrb[0].mxu0 %v1548
    %v1550 = vpop.f32.mrb[0].mxu0
    %v1551 = vadd.f32 %v1058, %v1550
    %v1552 = vpop.f32.mrb[0].mxu0
    %1553 = vmatprep.mubr.f32.mxu0 0.0
    %v1554 = vand.u32 %v55, 4294901760
    %v1555 = vsub.f32 %v55, %v1554
    %1556 = vmatmul.mubr.f32.gmra.mrb[0].mxu0 %v1555
    %v1557 = vpop.f32.mrb[0].mxu0
    %v1558 = vadd.f32 %v1064, %v1557
    %v1559 = vpop.f32.mrb[0].mxu0
    %1560 = vmatprep.mubr.f32.mxu0 0.0
    %v1561 = vand.u32 %v56, 4294901760
    %v1562 = vsub.f32 %v56, %v1561
    %1563 = vmatmul.mubr.f32.gmra.mrb[0].mxu0 %v1562
    %v1564 = vpop.f32.mrb[0].mxu0
    %v1565 = vadd.f32 %v1070, %v1564
    %v1566 = vpop.f32.mrb[0].mxu0
    %1567 = vmatprep.mubr.f32.mxu0 0.0
    %v1568 = vand.u32 %v57, 4294901760
    %v1569 = vsub.f32 %v57, %v1568
    %1570 = vmatmul.mubr.f32.gmra.mrb[0].mxu0 %v1569
    %v1571 = vpop.f32.mrb[0].mxu0
    %v1572 = vadd.f32 %v1076, %v1571
    %v1573 = vpop.f32.mrb[0].mxu0
    %1574 = vmatprep.mubr.f32.mxu0 0.0
    %v1575 = vand.u32 %v58, 4294901760
    %v1576 = vsub.f32 %v58, %v1575
    %1577 = vmatmul.mubr.f32.gmra.mrb[0].mxu0 %v1576
    %v1578 = vpop.f32.mrb[0].mxu0
    %v1579 = vadd.f32 %v1082, %v1578
    %v1580 = vpop.f32.mrb[0].mxu0
    %1581 = vmatprep.mubr.f32.mxu0 0.0
    %v1582 = vand.u32 %v59, 4294901760
    %v1583 = vsub.f32 %v59, %v1582
    %1584 = vmatmul.mubr.f32.gmra.mrb[0].mxu0 %v1583
    %v1585 = vpop.f32.mrb[0].mxu0
    %v1586 = vadd.f32 %v1088, %v1585
    %v1587 = vpop.f32.mrb[0].mxu0
    %1588 = vmatprep.mubr.f32.mxu0 0.0
    %v1589 = vand.u32 %v60, 4294901760
    %v1590 = vsub.f32 %v60, %v1589
    %1591 = vmatmul.mubr.f32.gmra.mrb[0].mxu0 %v1590
    %v1592 = vpop.f32.mrb[0].mxu0
    %v1593 = vadd.f32 %v1094, %v1592
    %v1594 = vpop.f32.mrb[0].mxu0
    %1595 = vmatprep.mubr.f32.mxu0 0.0
    %v1596 = vand.u32 %v61, 4294901760
    %v1597 = vsub.f32 %v61, %v1596
    %1598 = vmatmul.mubr.f32.gmra.mrb[0].mxu0 %v1597
    %v1599 = vpop.f32.mrb[0].mxu0
    %v1600 = vadd.f32 %v1100, %v1599
    %v1601 = vpop.f32.mrb[0].mxu0
    %1602 = vmatprep.mubr.f32.mxu0 0.0
    %v1603 = vand.u32 %v62, 4294901760
    %v1604 = vsub.f32 %v62, %v1603
    %1605 = vmatmul.mubr.f32.gmra.mrb[0].mxu0 %v1604
    %v1606 = vpop.f32.mrb[0].mxu0
    %v1607 = vadd.f32 %v1106, %v1606
    %v1608 = vpop.f32.mrb[0].mxu0
    %1609 = vmatprep.mubr.f32.mxu0 0.0
    %v1610 = vand.u32 %v63, 4294901760
    %v1611 = vsub.f32 %v63, %v1610
    %1612 = vmatmul.mubr.f32.gmra.mrb[0].mxu0 %v1611
    %v1613 = vpop.f32.mrb[0].mxu0
    %v1614 = vadd.f32 %v1112, %v1613
    %v1615 = vpop.f32.mrb[0].mxu0
    %1616 = vmatprep.mubr.f32.mxu0 0.0
    %v1617 = vand.u32 %v64, 4294901760
    %v1618 = vsub.f32 %v64, %v1617
    %1619 = vmatmul.mubr.f32.gmra.mrb[0].mxu0 %v1618
    %v1620 = vpop.f32.mrb[0].mxu0
    %v1621 = vadd.f32 %v1118, %v1620
    %v1622 = vpop.f32.mrb[0].mxu0
    %1623 = vmatprep.mubr.f32.mxu0 0.0
    %v1624 = vand.u32 %v65, 4294901760
    %v1625 = vsub.f32 %v65, %v1624
    %1626 = vmatmul.mubr.f32.gmra.mrb[0].mxu0 %v1625
    %v1627 = vpop.f32.mrb[0].mxu0
    %v1628 = vadd.f32 %v1124, %v1627
    %v1629 = vpop.f32.mrb[0].mxu0
    %1630 = vmatprep.mubr.f32.mxu0 0.0
    %v1631 = vand.u32 %v66, 4294901760
    %v1632 = vsub.f32 %v66, %v1631
    %1633 = vmatmul.mubr.f32.gmra.mrb[0].mxu0 %v1632
    %v1634 = vpop.f32.mrb[0].mxu0
    %v1635 = vadd.f32 %v1130, %v1634
    %v1636 = vpop.f32.mrb[0].mxu0
    %1637 = vmatprep.mubr.f32.mxu0 0.0
    %v1638 = vand.u32 %v67, 4294901760
    %v1639 = vsub.f32 %v67, %v1638
    %1640 = vmatmul.mubr.f32.gmra.mrb[0].mxu0 %v1639
    %v1641 = vpop.f32.mrb[0].mxu0
    %v1642 = vadd.f32 %v1136, %v1641
    %v1643 = vpop.f32.mrb[0].mxu0
    %1644 = vmatprep.mubr.f32.mxu0 0.0
    %v1645 = vand.u32 %v68, 4294901760
    %v1646 = vsub.f32 %v68, %v1645
    %1647 = vmatmul.mubr.f32.gmra.mrb[0].mxu0 %v1646
    %v1648 = vpop.f32.mrb[0].mxu0
    %v1649 = vadd.f32 %v1142, %v1648
    %v1650 = vpop.f32.mrb[0].mxu0
    %1651 = vmatprep.mubr.f32.mxu0 0.0
    %v1652 = vand.u32 %v69, 4294901760
    %v1653 = vsub.f32 %v69, %v1652
    %1654 = vmatmul.mubr.f32.gmra.mrb[0].mxu0 %v1653
    %v1655 = vpop.f32.mrb[0].mxu0
    %v1656 = vadd.f32 %v1148, %v1655
    %v1657 = vpop.f32.mrb[0].mxu0
    %1658 = vmatprep.mubr.f32.mxu0 0.0
    %v1659 = vand.u32 %v70, 4294901760
    %v1660 = vsub.f32 %v70, %v1659
    %1661 = vmatmul.mubr.f32.gmra.mrb[0].mxu0 %v1660
    %v1662 = vpop.f32.mrb[0].mxu0
    %v1663 = vadd.f32 %v1154, %v1662
    %v1664 = vpop.f32.mrb[0].mxu0
    %1665 = vmatprep.mubr.f32.mxu0 0.0
    %v1666 = vand.u32 %v71, 4294901760
    %v1667 = vsub.f32 %v71, %v1666
    %1668 = vmatmul.mubr.f32.gmra.mrb[0].mxu0 %v1667
    %v1669 = vpop.f32.mrb[0].mxu0
    %v1670 = vadd.f32 %v1160, %v1669
    %v1671 = vpop.f32.mrb[0].mxu0
    %1672 = vmatprep.mubr.f32.mxu0 0.0
    %v1673 = vand.u32 %v72, 4294901760
    %v1674 = vsub.f32 %v72, %v1673
    %1675 = vmatmul.mubr.f32.gmra.mrb[0].mxu0 %v1674
    %v1676 = vpop.f32.mrb[0].mxu0
    %v1677 = vadd.f32 %v1166, %v1676
    %v1678 = vpop.f32.mrb[0].mxu0
    %1679 = vmatprep.mubr.f32.mxu0 0.0
    %v1680 = vand.u32 %v73, 4294901760
    %v1681 = vsub.f32 %v73, %v1680
    %1682 = vmatmul.mubr.f32.gmra.mrb[0].mxu0 %v1681
    %v1683 = vpop.f32.mrb[0].mxu0
    %v1684 = vadd.f32 %v1172, %v1683
    %v1685 = vpop.f32.mrb[0].mxu0
    %1686 = vmatprep.mubr.f32.mxu0 0.0
    %v1687 = vand.u32 %v74, 4294901760
    %v1688 = vsub.f32 %v74, %v1687
    %1689 = vmatmul.mubr.f32.gmra.mrb[0].mxu0 %v1688
    %v1690 = vpop.f32.mrb[0].mxu0
    %v1691 = vadd.f32 %v1178, %v1690
    %v1692 = vpop.f32.mrb[0].mxu0
    %1693 = vmatprep.mubr.f32.mxu0 0.0
    %v1694 = vand.u32 %v75, 4294901760
    %v1695 = vsub.f32 %v75, %v1694
    %1696 = vmatmul.mubr.f32.gmra.mrb[0].mxu0 %v1695
    %v1697 = vpop.f32.mrb[0].mxu0
    %v1698 = vadd.f32 %v1184, %v1697
    %v1699 = vpop.f32.mrb[0].mxu0
    %1700 = vmatprep.mubr.f32.mxu0 0.0
    %v1701 = vand.u32 %v76, 4294901760
    %v1702 = vsub.f32 %v76, %v1701
    %1703 = vmatmul.mubr.f32.gmra.mrb[0].mxu0 %v1702
    %v1704 = vpop.f32.mrb[0].mxu0
    %v1705 = vadd.f32 %v1190, %v1704
    %v1706 = vpop.f32.mrb[0].mxu0
    %1707 = vmatprep.mubr.f32.mxu0 0.0
    %v1708 = vand.u32 %v77, 4294901760
    %v1709 = vsub.f32 %v77, %v1708
    %1710 = vmatmul.mubr.f32.gmra.mrb[0].mxu0 %v1709
    %v1711 = vpop.f32.mrb[0].mxu0
    %v1712 = vadd.f32 %v1196, %v1711
    %v1713 = vpop.f32.mrb[0].mxu0
    %1714 = vmatprep.mubr.f32.mxu0 0.0
    %v1715 = vand.u32 %v78, 4294901760
    %v1716 = vsub.f32 %v78, %v1715
    %1717 = vmatmul.mubr.f32.gmra.mrb[0].mxu0 %v1716
    %v1718 = vpop.f32.mrb[0].mxu0
    %v1719 = vadd.f32 %v1202, %v1718
    %v1720 = vpop.f32.mrb[0].mxu0
    %1721 = vmatprep.mubr.f32.mxu0 0.0
    %v1722 = vand.u32 %v79, 4294901760
    %v1723 = vsub.f32 %v79, %v1722
    %1724 = vmatmul.mubr.f32.gmra.mrb[0].mxu0 %v1723
    %v1725 = vpop.f32.mrb[0].mxu0
    %v1726 = vadd.f32 %v1208, %v1725
    %v1727 = vpop.f32.mrb[0].mxu0
    %1728 = vmatprep.mubr.f32.mxu0 0.0
    %v1729 = vand.u32 %v80, 4294901760
    %v1730 = vsub.f32 %v80, %v1729
    %1731 = vmatmul.mubr.f32.gmra.mrb[0].mxu0 %v1730
    %v1732 = vpop.f32.mrb[0].mxu0
    %v1733 = vadd.f32 %v1214, %v1732
    %v1734 = vpop.f32.mrb[0].mxu0
    %1735 = vmatprep.mubr.f32.mxu0 0.0
    %v1736 = vand.u32 %v81, 4294901760
    %v1737 = vsub.f32 %v81, %v1736
    %1738 = vmatmul.mubr.f32.gmra.mrb[0].mxu0 %v1737
    %v1739 = vpop.f32.mrb[0].mxu0
    %v1740 = vadd.f32 %v1220, %v1739
    %v1741 = vpop.f32.mrb[0].mxu0
    %1742 = vmatprep.mubr.f32.mxu0 0.0
    %v1743 = vand.u32 %v82, 4294901760
    %v1744 = vsub.f32 %v82, %v1743
    %1745 = vmatmul.mubr.f32.gmra.mrb[0].mxu0 %v1744
    %v1746 = vpop.f32.mrb[0].mxu0
    %v1747 = vadd.f32 %v1226, %v1746
    %v1748 = vpop.f32.mrb[0].mxu0
    %1749 = vmatprep.mubr.f32.mxu0 0.0
    %v1750 = vand.u32 %v83, 4294901760
    %v1751 = vsub.f32 %v83, %v1750
    %1752 = vmatmul.mubr.f32.gmra.mrb[0].mxu0 %v1751
    %v1753 = vpop.f32.mrb[0].mxu0
    %v1754 = vadd.f32 %v1232, %v1753
    %v1755 = vpop.f32.mrb[0].mxu0
    %1756 = vmatprep.mubr.f32.mxu0 0.0
    %v1757 = vand.u32 %v84, 4294901760
    %v1758 = vsub.f32 %v84, %v1757
    %1759 = vmatmul.mubr.f32.gmra.mrb[0].mxu0 %v1758
    %v1760 = vpop.f32.mrb[0].mxu0
    %v1761 = vadd.f32 %v1238, %v1760
    %v1762 = vpop.f32.mrb[0].mxu0
    %1763 = vmatprep.mubr.f32.mxu0 0.0
    %v1764 = vand.u32 %v85, 4294901760
    %v1765 = vsub.f32 %v85, %v1764
    %1766 = vmatmul.mubr.f32.gmra.mrb[0].mxu0 %v1765
    %v1767 = vpop.f32.mrb[0].mxu0
    %v1768 = vadd.f32 %v1244, %v1767
    %v1769 = vpop.f32.mrb[0].mxu0
    %1770 = vmatprep.mubr.f32.mxu0 0.0
    %v1771 = vand.u32 %v86, 4294901760
    %v1772 = vsub.f32 %v86, %v1771
    %1773 = vmatmul.mubr.f32.gmra.mrb[0].mxu0 %v1772
    %v1774 = vpop.f32.mrb[0].mxu0
    %v1775 = vadd.f32 %v1250, %v1774
    %v1776 = vpop.f32.mrb[0].mxu0
    %1777 = vmatprep.mubr.f32.mxu0 0.0
    %v1778 = vand.u32 %v87, 4294901760
    %v1779 = vsub.f32 %v87, %v1778
    %1780 = vmatmul.mubr.f32.gmra.mrb[0].mxu0 %v1779
    %v1781 = vpop.f32.mrb[0].mxu0
    %v1782 = vadd.f32 %v1256, %v1781
    %v1783 = vpop.f32.mrb[0].mxu0
    %1784 = vmatprep.mubr.f32.mxu0 0.0
    %v1785 = vand.u32 %v88, 4294901760
    %v1786 = vsub.f32 %v88, %v1785
    %1787 = vmatmul.mubr.f32.gmra.mrb[0].mxu0 %v1786
    %v1788 = vpop.f32.mrb[0].mxu0
    %v1789 = vadd.f32 %v1262, %v1788
    %v1790 = vpop.f32.mrb[0].mxu0
    %1791 = vmatprep.mubr.f32.mxu0 0.0
    %v1792 = vand.u32 %v89, 4294901760
    %v1793 = vsub.f32 %v89, %v1792
    %1794 = vmatmul.mubr.f32.gmra.mrb[0].mxu0 %v1793
    %v1795 = vpop.f32.mrb[0].mxu0
    %v1796 = vadd.f32 %v1268, %v1795
    %v1797 = vpop.f32.mrb[0].mxu0
    %1798 = vmatprep.mubr.f32.mxu0 0.0
    %v1799 = vand.u32 %v90, 4294901760
    %v1800 = vsub.f32 %v90, %v1799
    %1801 = vmatmul.mubr.f32.gmra.mrb[0].mxu0 %v1800
    %v1802 = vpop.f32.mrb[0].mxu0
    %v1803 = vadd.f32 %v1274, %v1802
    %v1804 = vpop.f32.mrb[0].mxu0
    %1805 = vmatprep.mubr.f32.mxu0 0.0
    %v1806 = vand.u32 %v91, 4294901760
    %v1807 = vsub.f32 %v91, %v1806
    %1808 = vmatmul.mubr.f32.gmra.mrb[0].mxu0 %v1807
    %v1809 = vpop.f32.mrb[0].mxu0
    %v1810 = vadd.f32 %v1280, %v1809
    %v1811 = vpop.f32.mrb[0].mxu0
    %1812 = vmatprep.mubr.f32.mxu0 0.0
    %v1813 = vand.u32 %v92, 4294901760
    %v1814 = vsub.f32 %v92, %v1813
    %1815 = vmatmul.mubr.f32.gmra.mrb[0].mxu0 %v1814
    %v1816 = vpop.f32.mrb[0].mxu0
    %v1817 = vadd.f32 %v1286, %v1816
    %v1818 = vpop.f32.mrb[0].mxu0
    %1819 = vmatprep.mubr.f32.mxu0 0.0
    %v1820 = vand.u32 %v93, 4294901760
    %v1821 = vsub.f32 %v93, %v1820
    %1822 = vmatmul.mubr.f32.gmra.mrb[0].mxu0 %v1821
    %v1823 = vpop.f32.mrb[0].mxu0
    %v1824 = vadd.f32 %v1292, %v1823
    %v1825 = vpop.f32.mrb[0].mxu0
    %1826 = vmatprep.mubr.f32.mxu0 0.0
    %v1827 = vand.u32 %v94, 4294901760
    %v1828 = vsub.f32 %v94, %v1827
    %1829 = vmatmul.mubr.f32.gmra.mrb[0].mxu0 %v1828
    %v1830 = vpop.f32.mrb[0].mxu0
    %v1831 = vadd.f32 %v1298, %v1830
    %v1832 = vpop.f32.mrb[0].mxu0
    %1833 = vmatprep.mubr.f32.mxu0 0.0
    %v1834 = vand.u32 %v95, 4294901760
    %v1835 = vsub.f32 %v95, %v1834
    %1836 = vmatmul.mubr.f32.gmra.mrb[0].mxu0 %v1835
    %v1837 = vpop.f32.mrb[0].mxu0
    %v1838 = vadd.f32 %v1304, %v1837
    %v1839 = vpop.f32.mrb[0].mxu0
    %1840 = vmatprep.mubr.f32.mxu0 0.0
    %v1841 = vand.u32 %v96, 4294901760
    %v1842 = vsub.f32 %v96, %v1841
    %1843 = vmatmul.mubr.f32.gmra.mrb[0].mxu0 %v1842
    %v1844 = vpop.f32.mrb[0].mxu0
    %v1845 = vadd.f32 %v1310, %v1844
    %v1846 = vpop.f32.mrb[0].mxu0
    %1847 = vmatprep.mubr.f32.mxu0 0.0
    %v1848 = vand.u32 %v97, 4294901760
    %v1849 = vsub.f32 %v97, %v1848
    %1850 = vmatmul.mubr.f32.gmra.mrb[0].mxu0 %v1849
    %v1851 = vpop.f32.mrb[0].mxu0
    %v1852 = vadd.f32 %v1316, %v1851
    %v1853 = vpop.f32.mrb[0].mxu0
    %1854 = vmatprep.mubr.f32.mxu0 0.0
    %v1855 = vand.u32 %v98, 4294901760
    %v1856 = vsub.f32 %v98, %v1855
    %1857 = vmatmul.mubr.f32.gmra.mrb[0].mxu0 %v1856
    %v1858 = vpop.f32.mrb[0].mxu0
    %v1859 = vadd.f32 %v1322, %v1858
    %v1860 = vpop.f32.mrb[0].mxu0
    %1861 = vmatprep.mubr.f32.mxu0 0.0
    %v1862 = vand.u32 %v99, 4294901760
    %v1863 = vsub.f32 %v99, %v1862
    %1864 = vmatmul.mubr.f32.gmra.mrb[0].mxu0 %v1863
    %v1865 = vpop.f32.mrb[0].mxu0
    %v1866 = vadd.f32 %v1328, %v1865
    %v1867 = vpop.f32.mrb[0].mxu0
    %1868 = vmatprep.mubr.f32.mxu0 0.0
    %v1869 = vand.u32 %v100, 4294901760
    %v1870 = vsub.f32 %v100, %v1869
    %1871 = vmatmul.mubr.f32.gmra.mrb[0].mxu0 %v1870
    %v1872 = vpop.f32.mrb[0].mxu0
    %v1873 = vadd.f32 %v1334, %v1872
    %v1874 = vpop.f32.mrb[0].mxu0
    %1875 = vmatprep.mubr.f32.mxu0 0.0
    %v1876 = vand.u32 %v101, 4294901760
    %v1877 = vsub.f32 %v101, %v1876
    %1878 = vmatmul.mubr.f32.gmra.mrb[0].mxu0 %v1877
    %v1879 = vpop.f32.mrb[0].mxu0
    %v1880 = vadd.f32 %v1340, %v1879
    %v1881 = vpop.f32.mrb[0].mxu0
    %1882 = vmatprep.mubr.f32.mxu0 0.0
    %v1883 = vand.u32 %v102, 4294901760
    %v1884 = vsub.f32 %v102, %v1883
    %1885 = vmatmul.mubr.f32.gmra.mrb[0].mxu0 %v1884
    %v1886 = vpop.f32.mrb[0].mxu0
    %v1887 = vadd.f32 %v1346, %v1886
    %v1888 = vpop.f32.mrb[0].mxu0
    %1889 = vmatprep.mubr.f32.mxu0 0.0
    %v1890 = vand.u32 %v103, 4294901760
    %v1891 = vsub.f32 %v103, %v1890
    %1892 = vmatmul.mubr.f32.gmra.mrb[0].mxu0 %v1891
    %v1893 = vpop.f32.mrb[0].mxu0
    %v1894 = vadd.f32 %v1352, %v1893
    %v1895 = vpop.f32.mrb[0].mxu0
    %1896 = vmatprep.mubr.f32.mxu0 0.0
    %v1897 = vand.u32 %v104, 4294901760
    %v1898 = vsub.f32 %v104, %v1897
    %1899 = vmatmul.mubr.f32.gmra.mrb[0].mxu0 %v1898
    %v1900 = vpop.f32.mrb[0].mxu0
    %v1901 = vadd.f32 %v1358, %v1900
    %v1902 = vpop.f32.mrb[0].mxu0
    %1903 = vmatprep.mubr.f32.mxu0 0.0
    %v1904 = vand.u32 %v105, 4294901760
    %v1905 = vsub.f32 %v105, %v1904
    %1906 = vmatmul.mubr.f32.gmra.mrb[0].mxu0 %v1905
    %v1907 = vpop.f32.mrb[0].mxu0
    %v1908 = vadd.f32 %v1364, %v1907
    %v1909 = vpop.f32.mrb[0].mxu0
    %1910 = vmatprep.mubr.f32.mxu0 0.0
    %v1911 = vand.u32 %v106, 4294901760
    %v1912 = vsub.f32 %v106, %v1911
    %1913 = vmatmul.mubr.f32.gmra.mrb[0].mxu0 %v1912
    %v1914 = vpop.f32.mrb[0].mxu0
    %v1915 = vadd.f32 %v1370, %v1914
    %v1916 = vpop.f32.mrb[0].mxu0
    %1917 = vdwg.mxu0
    %1918 = vmatprep.subr.mxu0 0.0
    %v1919 = vand.u32 %v107, 4294901760
    %1920 = vmatpush1.msra.mxu0 %v1919
    %1921 = vmatprep.subr.mxu0 0.0
    %v1922 = vand.u32 %v108, 4294901760
    %1923 = vmatpush1.msra.mxu0 %v1922
    %1924 = vmatprep.subr.mxu0 0.0
    %v1925 = vand.u32 %v109, 4294901760
    %1926 = vmatpush1.msra.mxu0 %v1925
    %1927 = vmatprep.subr.mxu0 0.0
    %v1928 = vand.u32 %v110, 4294901760
    %1929 = vmatpush1.msra.mxu0 %v1928
    %1930 = vmatprep.subr.mxu0 0.0
    %v1931 = vand.u32 %v111, 4294901760
    %1932 = vmatpush1.msra.mxu0 %v1931
    %1933 = vmatprep.subr.mxu0 0.0
    %v1934 = vand.u32 %v112, 4294901760
    %1935 = vmatpush1.msra.mxu0 %v1934
    %1936 = vmatprep.subr.mxu0 0.0
    %v1937 = vand.u32 %v113, 4294901760
    %1938 = vmatpush1.msra.mxu0 %v1937
    %1939 = vmatprep.subr.mxu0 0.0
    %v1940 = vand.u32 %v114, 4294901760
    %1941 = vmatpush1.msra.mxu0 %v1940
    %1942 = vmatprep.subr.mxu0 0.0
    %v1943 = vand.u32 %v115, 4294901760
    %1944 = vmatpush1.msra.mxu0 %v1943
    %1945 = vmatprep.subr.mxu0 0.0
    %v1946 = vand.u32 %v116, 4294901760
    %1947 = vmatpush1.msra.mxu0 %v1946
    %1948 = vmatprep.subr.mxu0 0.0
    %v1949 = vand.u32 %v117, 4294901760
    %1950 = vmatpush1.msra.mxu0 %v1949
    %1951 = vmatprep.subr.mxu0 0.0
    %v1952 = vand.u32 %v118, 4294901760
    %1953 = vmatpush1.msra.mxu0 %v1952
    %1954 = vmatprep.subr.mxu0 0.0
    %v1955 = vand.u32 %v119, 4294901760
    %1956 = vmatpush1.msra.mxu0 %v1955
    %1957 = vmatprep.subr.mxu0 0.0
    %v1958 = vand.u32 %v120, 4294901760
    %1959 = vmatpush1.msra.mxu0 %v1958
    %1960 = vmatprep.subr.mxu0 0.0
    %v1961 = vand.u32 %v121, 4294901760
    %1962 = vmatpush1.msra.mxu0 %v1961
    %1963 = vmatprep.subr.mxu0 0.0
    %v1964 = vand.u32 %v122, 4294901760
    %1965 = vmatpush1.msra.mxu0 %v1964
    %1966 = vmatprep.subr.mxu0 0.0
    %1967 = vmatpush1.msra.mxu0 0.0
    %1968 = vmatprep.subr.mxu0 0.0
    %1969 = vmatpush1.msra.mxu0 0.0
    %1970 = vmatprep.subr.mxu0 0.0
    %1971 = vmatpush1.msra.mxu0 0.0
    %1972 = vmatprep.subr.mxu0 0.0
    %1973 = vmatpush1.msra.mxu0 0.0
    %1974 = vmatprep.subr.mxu0 0.0
    %1975 = vmatpush1.msra.mxu0 0.0
    %1976 = vmatprep.subr.mxu0 0.0
    %1977 = vmatpush1.msra.mxu0 0.0
    %1978 = vmatprep.subr.mxu0 0.0
    %1979 = vmatpush1.msra.mxu0 0.0
    %1980 = vmatprep.subr.mxu0 0.0
    %1981 = vmatpush1.msra.mxu0 0.0
    %1982 = vmatprep.subr.mxu0 0.0
    %1983 = vmatpush1.msra.mxu0 0.0
    %1984 = vmatprep.subr.mxu0 0.0
    %1985 = vmatpush1.msra.mxu0 0.0
    %1986 = vmatprep.subr.mxu0 0.0
    %1987 = vmatpush1.msra.mxu0 0.0
    %1988 = vmatprep.subr.mxu0 0.0
    %1989 = vmatpush1.msra.mxu0 0.0
    %1990 = vmatprep.subr.mxu0 0.0
    %1991 = vmatpush1.msra.mxu0 0.0
    %1992 = vmatprep.subr.mxu0 0.0
    %1993 = vmatpush1.msra.mxu0 0.0
    %1994 = vmatprep.subr.mxu0 0.0
    %1995 = vmatpush1.msra.mxu0 0.0
    %1996 = vmatprep.subr.mxu0 0.0
    %1997 = vmatpush1.msra.mxu0 0.0
    %1998 = vmatprep.mubr.f32.mxu0 0.0
    %v1999 = vand.u32 %v43, 4294901760
    %v2000 = vsub.f32 %v43, %v1999
    %v2001 = vand.u32 %v2000, 4294901760
    %2002 = vmatmul.mubr.f32.gmra.mrb[0].mxu0 %v2001
    %v2003 = vpop.f32.mrb[0].mxu0
    %v2004 = vadd.f32 %v1474, %v2003
    %v2005 = vpop.f32.mrb[0].mxu0
    %2006 = vmatprep.mubr.f32.mxu0 0.0
    %v2007 = vand.u32 %v44, 4294901760
    %v2008 = vsub.f32 %v44, %v2007
    %v2009 = vand.u32 %v2008, 4294901760
    %2010 = vmatmul.mubr.f32.gmra.mrb[0].mxu0 %v2009
    %v2011 = vpop.f32.mrb[0].mxu0
    %v2012 = vadd.f32 %v1481, %v2011
    %v2013 = vpop.f32.mrb[0].mxu0
    %2014 = vmatprep.mubr.f32.mxu0 0.0
    %v2015 = vand.u32 %v45, 4294901760
    %v2016 = vsub.f32 %v45, %v2015
    %v2017 = vand.u32 %v2016, 4294901760
    %2018 = vmatmul.mubr.f32.gmra.mrb[0].mxu0 %v2017
    %v2019 = vpop.f32.mrb[0].mxu0
    %v2020 = vadd.f32 %v1488, %v2019
    %v2021 = vpop.f32.mrb[0].mxu0
    %2022 = vmatprep.mubr.f32.mxu0 0.0
    %v2023 = vand.u32 %v46, 4294901760
    %v2024 = vsub.f32 %v46, %v2023
    %v2025 = vand.u32 %v2024, 4294901760
    %2026 = vmatmul.mubr.f32.gmra.mrb[0].mxu0 %v2025
    %v2027 = vpop.f32.mrb[0].mxu0
    %v2028 = vadd.f32 %v1495, %v2027
    %v2029 = vpop.f32.mrb[0].mxu0
    %2030 = vmatprep.mubr.f32.mxu0 0.0
    %v2031 = vand.u32 %v47, 4294901760
    %v2032 = vsub.f32 %v47, %v2031
    %v2033 = vand.u32 %v2032, 4294901760
    %2034 = vmatmul.mubr.f32.gmra.mrb[0].mxu0 %v2033
    %v2035 = vpop.f32.mrb[0].mxu0
    %v2036 = vadd.f32 %v1502, %v2035
    %v2037 = vpop.f32.mrb[0].mxu0
    %2038 = vmatprep.mubr.f32.mxu0 0.0
    %v2039 = vand.u32 %v48, 4294901760
    %v2040 = vsub.f32 %v48, %v2039
    %v2041 = vand.u32 %v2040, 4294901760
    %2042 = vmatmul.mubr.f32.gmra.mrb[0].mxu0 %v2041
    %v2043 = vpop.f32.mrb[0].mxu0
    %v2044 = vadd.f32 %v1509, %v2043
    %v2045 = vpop.f32.mrb[0].mxu0
    %2046 = vmatprep.mubr.f32.mxu0 0.0
    %v2047 = vand.u32 %v49, 4294901760
    %v2048 = vsub.f32 %v49, %v2047
    %v2049 = vand.u32 %v2048, 4294901760
    %2050 = vmatmul.mubr.f32.gmra.mrb[0].mxu0 %v2049
    %v2051 = vpop.f32.mrb[0].mxu0
    %v2052 = vadd.f32 %v1516, %v2051
    %v2053 = vpop.f32.mrb[0].mxu0
    %2054 = vmatprep.mubr.f32.mxu0 0.0
    %v2055 = vand.u32 %v50, 4294901760
    %v2056 = vsub.f32 %v50, %v2055
    %v2057 = vand.u32 %v2056, 4294901760
    %2058 = vmatmul.mubr.f32.gmra.mrb[0].mxu0 %v2057
    %v2059 = vpop.f32.mrb[0].mxu0
    %v2060 = vadd.f32 %v1523, %v2059
    %v2061 = vpop.f32.mrb[0].mxu0
    %2062 = vmatprep.mubr.f32.mxu0 0.0
    %v2063 = vand.u32 %v51, 4294901760
    %v2064 = vsub.f32 %v51, %v2063
    %v2065 = vand.u32 %v2064, 4294901760
    %2066 = vmatmul.mubr.f32.gmra.mrb[0].mxu0 %v2065
    %v2067 = vpop.f32.mrb[0].mxu0
    %v2068 = vadd.f32 %v1530, %v2067
    %v2069 = vpop.f32.mrb[0].mxu0
    %2070 = vmatprep.mubr.f32.mxu0 0.0
    %v2071 = vand.u32 %v52, 4294901760
    %v2072 = vsub.f32 %v52, %v2071
    %v2073 = vand.u32 %v2072, 4294901760
    %2074 = vmatmul.mubr.f32.gmra.mrb[0].mxu0 %v2073
    %v2075 = vpop.f32.mrb[0].mxu0
    %v2076 = vadd.f32 %v1537, %v2075
    %v2077 = vpop.f32.mrb[0].mxu0
    %2078 = vmatprep.mubr.f32.mxu0 0.0
    %v2079 = vand.u32 %v53, 4294901760
    %v2080 = vsub.f32 %v53, %v2079
    %v2081 = vand.u32 %v2080, 4294901760
    %2082 = vmatmul.mubr.f32.gmra.mrb[0].mxu0 %v2081
    %v2083 = vpop.f32.mrb[0].mxu0
    %v2084 = vadd.f32 %v1544, %v2083
    %v2085 = vpop.f32.mrb[0].mxu0
    %2086 = vmatprep.mubr.f32.mxu0 0.0
    %v2087 = vand.u32 %v54, 4294901760
    %v2088 = vsub.f32 %v54, %v2087
    %v2089 = vand.u32 %v2088, 4294901760
    %2090 = vmatmul.mubr.f32.gmra.mrb[0].mxu0 %v2089
    %v2091 = vpop.f32.mrb[0].mxu0
    %v2092 = vadd.f32 %v1551, %v2091
    %v2093 = vpop.f32.mrb[0].mxu0
    %2094 = vmatprep.mubr.f32.mxu0 0.0
    %v2095 = vand.u32 %v55, 4294901760
    %v2096 = vsub.f32 %v55, %v2095
    %v2097 = vand.u32 %v2096, 4294901760
    %2098 = vmatmul.mubr.f32.gmra.mrb[0].mxu0 %v2097
    %v2099 = vpop.f32.mrb[0].mxu0
    %v2100 = vadd.f32 %v1558, %v2099
    %v2101 = vpop.f32.mrb[0].mxu0
    %2102 = vmatprep.mubr.f32.mxu0 0.0
    %v2103 = vand.u32 %v56, 4294901760
    %v2104 = vsub.f32 %v56, %v2103
    %v2105 = vand.u32 %v2104, 4294901760
    %2106 = vmatmul.mubr.f32.gmra.mrb[0].mxu0 %v2105
    %v2107 = vpop.f32.mrb[0].mxu0
    %v2108 = vadd.f32 %v1565, %v2107
    %v2109 = vpop.f32.mrb[0].mxu0
    %2110 = vmatprep.mubr.f32.mxu0 0.0
    %v2111 = vand.u32 %v57, 4294901760
    %v2112 = vsub.f32 %v57, %v2111
    %v2113 = vand.u32 %v2112, 4294901760
    %2114 = vmatmul.mubr.f32.gmra.mrb[0].mxu0 %v2113
    %v2115 = vpop.f32.mrb[0].mxu0
    %v2116 = vadd.f32 %v1572, %v2115
    %v2117 = vpop.f32.mrb[0].mxu0
    %2118 = vmatprep.mubr.f32.mxu0 0.0
    %v2119 = vand.u32 %v58, 4294901760
    %v2120 = vsub.f32 %v58, %v2119
    %v2121 = vand.u32 %v2120, 4294901760
    %2122 = vmatmul.mubr.f32.gmra.mrb[0].mxu0 %v2121
    %v2123 = vpop.f32.mrb[0].mxu0
    %v2124 = vadd.f32 %v1579, %v2123
    %v2125 = vpop.f32.mrb[0].mxu0
    %2126 = vmatprep.mubr.f32.mxu0 0.0
    %v2127 = vand.u32 %v59, 4294901760
    %v2128 = vsub.f32 %v59, %v2127
    %v2129 = vand.u32 %v2128, 4294901760
    %2130 = vmatmul.mubr.f32.gmra.mrb[0].mxu0 %v2129
    %v2131 = vpop.f32.mrb[0].mxu0
    %v2132 = vadd.f32 %v1586, %v2131
    %v2133 = vpop.f32.mrb[0].mxu0
    %2134 = vmatprep.mubr.f32.mxu0 0.0
    %v2135 = vand.u32 %v60, 4294901760
    %v2136 = vsub.f32 %v60, %v2135
    %v2137 = vand.u32 %v2136, 4294901760
    %2138 = vmatmul.mubr.f32.gmra.mrb[0].mxu0 %v2137
    %v2139 = vpop.f32.mrb[0].mxu0
    %v2140 = vadd.f32 %v1593, %v2139
    %v2141 = vpop.f32.mrb[0].mxu0
    %2142 = vmatprep.mubr.f32.mxu0 0.0
    %v2143 = vand.u32 %v61, 4294901760
    %v2144 = vsub.f32 %v61, %v2143
    %v2145 = vand.u32 %v2144, 4294901760
    %2146 = vmatmul.mubr.f32.gmra.mrb[0].mxu0 %v2145
    %v2147 = vpop.f32.mrb[0].mxu0
    %v2148 = vadd.f32 %v1600, %v2147
    %v2149 = vpop.f32.mrb[0].mxu0
    %2150 = vmatprep.mubr.f32.mxu0 0.0
    %v2151 = vand.u32 %v62, 4294901760
    %v2152 = vsub.f32 %v62, %v2151
    %v2153 = vand.u32 %v2152, 4294901760
    %2154 = vmatmul.mubr.f32.gmra.mrb[0].mxu0 %v2153
    %v2155 = vpop.f32.mrb[0].mxu0
    %v2156 = vadd.f32 %v1607, %v2155
    %v2157 = vpop.f32.mrb[0].mxu0
    %2158 = vmatprep.mubr.f32.mxu0 0.0
    %v2159 = vand.u32 %v63, 4294901760
    %v2160 = vsub.f32 %v63, %v2159
    %v2161 = vand.u32 %v2160, 4294901760
    %2162 = vmatmul.mubr.f32.gmra.mrb[0].mxu0 %v2161
    %v2163 = vpop.f32.mrb[0].mxu0
    %v2164 = vadd.f32 %v1614, %v2163
    %v2165 = vpop.f32.mrb[0].mxu0
    %2166 = vmatprep.mubr.f32.mxu0 0.0
    %v2167 = vand.u32 %v64, 4294901760
    %v2168 = vsub.f32 %v64, %v2167
    %v2169 = vand.u32 %v2168, 4294901760
    %2170 = vmatmul.mubr.f32.gmra.mrb[0].mxu0 %v2169
    %v2171 = vpop.f32.mrb[0].mxu0
    %v2172 = vadd.f32 %v1621, %v2171
    %v2173 = vpop.f32.mrb[0].mxu0
    %2174 = vmatprep.mubr.f32.mxu0 0.0
    %v2175 = vand.u32 %v65, 4294901760
    %v2176 = vsub.f32 %v65, %v2175
    %v2177 = vand.u32 %v2176, 4294901760
    %2178 = vmatmul.mubr.f32.gmra.mrb[0].mxu0 %v2177
    %v2179 = vpop.f32.mrb[0].mxu0
    %v2180 = vadd.f32 %v1628, %v2179
    %v2181 = vpop.f32.mrb[0].mxu0
    %2182 = vmatprep.mubr.f32.mxu0 0.0
    %v2183 = vand.u32 %v66, 4294901760
    %v2184 = vsub.f32 %v66, %v2183
    %v2185 = vand.u32 %v2184, 4294901760
    %2186 = vmatmul.mubr.f32.gmra.mrb[0].mxu0 %v2185
    %v2187 = vpop.f32.mrb[0].mxu0
    %v2188 = vadd.f32 %v1635, %v2187
    %v2189 = vpop.f32.mrb[0].mxu0
    %2190 = vmatprep.mubr.f32.mxu0 0.0
    %v2191 = vand.u32 %v67, 4294901760
    %v2192 = vsub.f32 %v67, %v2191
    %v2193 = vand.u32 %v2192, 4294901760
    %2194 = vmatmul.mubr.f32.gmra.mrb[0].mxu0 %v2193
    %v2195 = vpop.f32.mrb[0].mxu0
    %v2196 = vadd.f32 %v1642, %v2195
    %v2197 = vpop.f32.mrb[0].mxu0
    %2198 = vmatprep.mubr.f32.mxu0 0.0
    %v2199 = vand.u32 %v68, 4294901760
    %v2200 = vsub.f32 %v68, %v2199
    %v2201 = vand.u32 %v2200, 4294901760
    %2202 = vmatmul.mubr.f32.gmra.mrb[0].mxu0 %v2201
    %v2203 = vpop.f32.mrb[0].mxu0
    %v2204 = vadd.f32 %v1649, %v2203
    %v2205 = vpop.f32.mrb[0].mxu0
    %2206 = vmatprep.mubr.f32.mxu0 0.0
    %v2207 = vand.u32 %v69, 4294901760
    %v2208 = vsub.f32 %v69, %v2207
    %v2209 = vand.u32 %v2208, 4294901760
    %2210 = vmatmul.mubr.f32.gmra.mrb[0].mxu0 %v2209
    %v2211 = vpop.f32.mrb[0].mxu0
    %v2212 = vadd.f32 %v1656, %v2211
    %v2213 = vpop.f32.mrb[0].mxu0
    %2214 = vmatprep.mubr.f32.mxu0 0.0
    %v2215 = vand.u32 %v70, 4294901760
    %v2216 = vsub.f32 %v70, %v2215
    %v2217 = vand.u32 %v2216, 4294901760
    %2218 = vmatmul.mubr.f32.gmra.mrb[0].mxu0 %v2217
    %v2219 = vpop.f32.mrb[0].mxu0
    %v2220 = vadd.f32 %v1663, %v2219
    %v2221 = vpop.f32.mrb[0].mxu0
    %2222 = vmatprep.mubr.f32.mxu0 0.0
    %v2223 = vand.u32 %v71, 4294901760
    %v2224 = vsub.f32 %v71, %v2223
    %v2225 = vand.u32 %v2224, 4294901760
    %2226 = vmatmul.mubr.f32.gmra.mrb[0].mxu0 %v2225
    %v2227 = vpop.f32.mrb[0].mxu0
    %v2228 = vadd.f32 %v1670, %v2227
    %v2229 = vpop.f32.mrb[0].mxu0
    %2230 = vmatprep.mubr.f32.mxu0 0.0
    %v2231 = vand.u32 %v72, 4294901760
    %v2232 = vsub.f32 %v72, %v2231
    %v2233 = vand.u32 %v2232, 4294901760
    %2234 = vmatmul.mubr.f32.gmra.mrb[0].mxu0 %v2233
    %v2235 = vpop.f32.mrb[0].mxu0
    %v2236 = vadd.f32 %v1677, %v2235
    %v2237 = vpop.f32.mrb[0].mxu0
    %2238 = vmatprep.mubr.f32.mxu0 0.0
    %v2239 = vand.u32 %v73, 4294901760
    %v2240 = vsub.f32 %v73, %v2239
    %v2241 = vand.u32 %v2240, 4294901760
    %2242 = vmatmul.mubr.f32.gmra.mrb[0].mxu0 %v2241
    %v2243 = vpop.f32.mrb[0].mxu0
    %v2244 = vadd.f32 %v1684, %v2243
    %v2245 = vpop.f32.mrb[0].mxu0
    %2246 = vmatprep.mubr.f32.mxu0 0.0
    %v2247 = vand.u32 %v74, 4294901760
    %v2248 = vsub.f32 %v74, %v2247
    %v2249 = vand.u32 %v2248, 4294901760
    %2250 = vmatmul.mubr.f32.gmra.mrb[0].mxu0 %v2249
    %v2251 = vpop.f32.mrb[0].mxu0
    %v2252 = vadd.f32 %v1691, %v2251
    %v2253 = vpop.f32.mrb[0].mxu0
    %2254 = vmatprep.mubr.f32.mxu0 0.0
    %v2255 = vand.u32 %v75, 4294901760
    %v2256 = vsub.f32 %v75, %v2255
    %v2257 = vand.u32 %v2256, 4294901760
    %2258 = vmatmul.mubr.f32.gmra.mrb[0].mxu0 %v2257
    %v2259 = vpop.f32.mrb[0].mxu0
    %v2260 = vadd.f32 %v1698, %v2259
    %v2261 = vpop.f32.mrb[0].mxu0
    %2262 = vmatprep.mubr.f32.mxu0 0.0
    %v2263 = vand.u32 %v76, 4294901760
    %v2264 = vsub.f32 %v76, %v2263
    %v2265 = vand.u32 %v2264, 4294901760
    %2266 = vmatmul.mubr.f32.gmra.mrb[0].mxu0 %v2265
    %v2267 = vpop.f32.mrb[0].mxu0
    %v2268 = vadd.f32 %v1705, %v2267
    %v2269 = vpop.f32.mrb[0].mxu0
    %2270 = vmatprep.mubr.f32.mxu0 0.0
    %v2271 = vand.u32 %v77, 4294901760
    %v2272 = vsub.f32 %v77, %v2271
    %v2273 = vand.u32 %v2272, 4294901760
    %2274 = vmatmul.mubr.f32.gmra.mrb[0].mxu0 %v2273
    %v2275 = vpop.f32.mrb[0].mxu0
    %v2276 = vadd.f32 %v1712, %v2275
    %v2277 = vpop.f32.mrb[0].mxu0
    %2278 = vmatprep.mubr.f32.mxu0 0.0
    %v2279 = vand.u32 %v78, 4294901760
    %v2280 = vsub.f32 %v78, %v2279
    %v2281 = vand.u32 %v2280, 4294901760
    %2282 = vmatmul.mubr.f32.gmra.mrb[0].mxu0 %v2281
    %v2283 = vpop.f32.mrb[0].mxu0
    %v2284 = vadd.f32 %v1719, %v2283
    %v2285 = vpop.f32.mrb[0].mxu0
    %2286 = vmatprep.mubr.f32.mxu0 0.0
    %v2287 = vand.u32 %v79, 4294901760
    %v2288 = vsub.f32 %v79, %v2287
    %v2289 = vand.u32 %v2288, 4294901760
    %2290 = vmatmul.mubr.f32.gmra.mrb[0].mxu0 %v2289
    %v2291 = vpop.f32.mrb[0].mxu0
    %v2292 = vadd.f32 %v1726, %v2291
    %v2293 = vpop.f32.mrb[0].mxu0
    %2294 = vmatprep.mubr.f32.mxu0 0.0
    %v2295 = vand.u32 %v80, 4294901760
    %v2296 = vsub.f32 %v80, %v2295
    %v2297 = vand.u32 %v2296, 4294901760
    %2298 = vmatmul.mubr.f32.gmra.mrb[0].mxu0 %v2297
    %v2299 = vpop.f32.mrb[0].mxu0
    %v2300 = vadd.f32 %v1733, %v2299
    %v2301 = vpop.f32.mrb[0].mxu0
    %2302 = vmatprep.mubr.f32.mxu0 0.0
    %v2303 = vand.u32 %v81, 4294901760
    %v2304 = vsub.f32 %v81, %v2303
    %v2305 = vand.u32 %v2304, 4294901760
    %2306 = vmatmul.mubr.f32.gmra.mrb[0].mxu0 %v2305
    %v2307 = vpop.f32.mrb[0].mxu0
    %v2308 = vadd.f32 %v1740, %v2307
    %v2309 = vpop.f32.mrb[0].mxu0
    %2310 = vmatprep.mubr.f32.mxu0 0.0
    %v2311 = vand.u32 %v82, 4294901760
    %v2312 = vsub.f32 %v82, %v2311
    %v2313 = vand.u32 %v2312, 4294901760
    %2314 = vmatmul.mubr.f32.gmra.mrb[0].mxu0 %v2313
    %v2315 = vpop.f32.mrb[0].mxu0
    %v2316 = vadd.f32 %v1747, %v2315
    %v2317 = vpop.f32.mrb[0].mxu0
    %2318 = vmatprep.mubr.f32.mxu0 0.0
    %v2319 = vand.u32 %v83, 4294901760
    %v2320 = vsub.f32 %v83, %v2319
    %v2321 = vand.u32 %v2320, 4294901760
    %2322 = vmatmul.mubr.f32.gmra.mrb[0].mxu0 %v2321
    %v2323 = vpop.f32.mrb[0].mxu0
    %v2324 = vadd.f32 %v1754, %v2323
    %v2325 = vpop.f32.mrb[0].mxu0
    %2326 = vmatprep.mubr.f32.mxu0 0.0
    %v2327 = vand.u32 %v84, 4294901760
    %v2328 = vsub.f32 %v84, %v2327
    %v2329 = vand.u32 %v2328, 4294901760
    %2330 = vmatmul.mubr.f32.gmra.mrb[0].mxu0 %v2329
    %v2331 = vpop.f32.mrb[0].mxu0
    %v2332 = vadd.f32 %v1761, %v2331
    %v2333 = vpop.f32.mrb[0].mxu0
    %2334 = vmatprep.mubr.f32.mxu0 0.0
    %v2335 = vand.u32 %v85, 4294901760
    %v2336 = vsub.f32 %v85, %v2335
    %v2337 = vand.u32 %v2336, 4294901760
    %2338 = vmatmul.mubr.f32.gmra.mrb[0].mxu0 %v2337
    %v2339 = vpop.f32.mrb[0].mxu0
    %v2340 = vadd.f32 %v1768, %v2339
    %v2341 = vpop.f32.mrb[0].mxu0
    %2342 = vmatprep.mubr.f32.mxu0 0.0
    %v2343 = vand.u32 %v86, 4294901760
    %v2344 = vsub.f32 %v86, %v2343
    %v2345 = vand.u32 %v2344, 4294901760
    %2346 = vmatmul.mubr.f32.gmra.mrb[0].mxu0 %v2345
    %v2347 = vpop.f32.mrb[0].mxu0
    %v2348 = vadd.f32 %v1775, %v2347
    %v2349 = vpop.f32.mrb[0].mxu0
    %2350 = vmatprep.mubr.f32.mxu0 0.0
    %v2351 = vand.u32 %v87, 4294901760
    %v2352 = vsub.f32 %v87, %v2351
    %v2353 = vand.u32 %v2352, 4294901760
    %2354 = vmatmul.mubr.f32.gmra.mrb[0].mxu0 %v2353
    %v2355 = vpop.f32.mrb[0].mxu0
    %v2356 = vadd.f32 %v1782, %v2355
    %v2357 = vpop.f32.mrb[0].mxu0
    %2358 = vmatprep.mubr.f32.mxu0 0.0
    %v2359 = vand.u32 %v88, 4294901760
    %v2360 = vsub.f32 %v88, %v2359
    %v2361 = vand.u32 %v2360, 4294901760
    %2362 = vmatmul.mubr.f32.gmra.mrb[0].mxu0 %v2361
    %v2363 = vpop.f32.mrb[0].mxu0
    %v2364 = vadd.f32 %v1789, %v2363
    %v2365 = vpop.f32.mrb[0].mxu0
    %2366 = vmatprep.mubr.f32.mxu0 0.0
    %v2367 = vand.u32 %v89, 4294901760
    %v2368 = vsub.f32 %v89, %v2367
    %v2369 = vand.u32 %v2368, 4294901760
    %2370 = vmatmul.mubr.f32.gmra.mrb[0].mxu0 %v2369
    %v2371 = vpop.f32.mrb[0].mxu0
    %v2372 = vadd.f32 %v1796, %v2371
    %v2373 = vpop.f32.mrb[0].mxu0
    %2374 = vmatprep.mubr.f32.mxu0 0.0
    %v2375 = vand.u32 %v90, 4294901760
    %v2376 = vsub.f32 %v90, %v2375
    %v2377 = vand.u32 %v2376, 4294901760
    %2378 = vmatmul.mubr.f32.gmra.mrb[0].mxu0 %v2377
    %v2379 = vpop.f32.mrb[0].mxu0
    %v2380 = vadd.f32 %v1803, %v2379
    %v2381 = vpop.f32.mrb[0].mxu0
    %2382 = vmatprep.mubr.f32.mxu0 0.0
    %v2383 = vand.u32 %v91, 4294901760
    %v2384 = vsub.f32 %v91, %v2383
    %v2385 = vand.u32 %v2384, 4294901760
    %2386 = vmatmul.mubr.f32.gmra.mrb[0].mxu0 %v2385
    %v2387 = vpop.f32.mrb[0].mxu0
    %v2388 = vadd.f32 %v1810, %v2387
    %v2389 = vpop.f32.mrb[0].mxu0
    %2390 = vmatprep.mubr.f32.mxu0 0.0
    %v2391 = vand.u32 %v92, 4294901760
    %v2392 = vsub.f32 %v92, %v2391
    %v2393 = vand.u32 %v2392, 4294901760
    %2394 = vmatmul.mubr.f32.gmra.mrb[0].mxu0 %v2393
    %v2395 = vpop.f32.mrb[0].mxu0
    %v2396 = vadd.f32 %v1817, %v2395
    %v2397 = vpop.f32.mrb[0].mxu0
    %2398 = vmatprep.mubr.f32.mxu0 0.0
    %v2399 = vand.u32 %v93, 4294901760
    %v2400 = vsub.f32 %v93, %v2399
    %v2401 = vand.u32 %v2400, 4294901760
    %2402 = vmatmul.mubr.f32.gmra.mrb[0].mxu0 %v2401
    %v2403 = vpop.f32.mrb[0].mxu0
    %v2404 = vadd.f32 %v1824, %v2403
    %v2405 = vpop.f32.mrb[0].mxu0
    %2406 = vmatprep.mubr.f32.mxu0 0.0
    %v2407 = vand.u32 %v94, 4294901760
    %v2408 = vsub.f32 %v94, %v2407
    %v2409 = vand.u32 %v2408, 4294901760
    %2410 = vmatmul.mubr.f32.gmra.mrb[0].mxu0 %v2409
    %v2411 = vpop.f32.mrb[0].mxu0
    %v2412 = vadd.f32 %v1831, %v2411
    %v2413 = vpop.f32.mrb[0].mxu0
    %2414 = vmatprep.mubr.f32.mxu0 0.0
    %v2415 = vand.u32 %v95, 4294901760
    %v2416 = vsub.f32 %v95, %v2415
    %v2417 = vand.u32 %v2416, 4294901760
    %2418 = vmatmul.mubr.f32.gmra.mrb[0].mxu0 %v2417
    %v2419 = vpop.f32.mrb[0].mxu0
    %v2420 = vadd.f32 %v1838, %v2419
    %v2421 = vpop.f32.mrb[0].mxu0
    %2422 = vmatprep.mubr.f32.mxu0 0.0
    %v2423 = vand.u32 %v96, 4294901760
    %v2424 = vsub.f32 %v96, %v2423
    %v2425 = vand.u32 %v2424, 4294901760
    %2426 = vmatmul.mubr.f32.gmra.mrb[0].mxu0 %v2425
    %v2427 = vpop.f32.mrb[0].mxu0
    %v2428 = vadd.f32 %v1845, %v2427
    %v2429 = vpop.f32.mrb[0].mxu0
    %2430 = vmatprep.mubr.f32.mxu0 0.0
    %v2431 = vand.u32 %v97, 4294901760
    %v2432 = vsub.f32 %v97, %v2431
    %v2433 = vand.u32 %v2432, 4294901760
    %2434 = vmatmul.mubr.f32.gmra.mrb[0].mxu0 %v2433
    %v2435 = vpop.f32.mrb[0].mxu0
    %v2436 = vadd.f32 %v1852, %v2435
    %v2437 = vpop.f32.mrb[0].mxu0
    %2438 = vmatprep.mubr.f32.mxu0 0.0
    %v2439 = vand.u32 %v98, 4294901760
    %v2440 = vsub.f32 %v98, %v2439
    %v2441 = vand.u32 %v2440, 4294901760
    %2442 = vmatmul.mubr.f32.gmra.mrb[0].mxu0 %v2441
    %v2443 = vpop.f32.mrb[0].mxu0
    %v2444 = vadd.f32 %v1859, %v2443
    %v2445 = vpop.f32.mrb[0].mxu0
    %2446 = vmatprep.mubr.f32.mxu0 0.0
    %v2447 = vand.u32 %v99, 4294901760
    %v2448 = vsub.f32 %v99, %v2447
    %v2449 = vand.u32 %v2448, 4294901760
    %2450 = vmatmul.mubr.f32.gmra.mrb[0].mxu0 %v2449
    %v2451 = vpop.f32.mrb[0].mxu0
    %v2452 = vadd.f32 %v1866, %v2451
    %v2453 = vpop.f32.mrb[0].mxu0
    %2454 = vmatprep.mubr.f32.mxu0 0.0
    %v2455 = vand.u32 %v100, 4294901760
    %v2456 = vsub.f32 %v100, %v2455
    %v2457 = vand.u32 %v2456, 4294901760
    %2458 = vmatmul.mubr.f32.gmra.mrb[0].mxu0 %v2457
    %v2459 = vpop.f32.mrb[0].mxu0
    %v2460 = vadd.f32 %v1873, %v2459
    %v2461 = vpop.f32.mrb[0].mxu0
    %2462 = vmatprep.mubr.f32.mxu0 0.0
    %v2463 = vand.u32 %v101, 4294901760
    %v2464 = vsub.f32 %v101, %v2463
    %v2465 = vand.u32 %v2464, 4294901760
    %2466 = vmatmul.mubr.f32.gmra.mrb[0].mxu0 %v2465
    %v2467 = vpop.f32.mrb[0].mxu0
    %v2468 = vadd.f32 %v1880, %v2467
    %v2469 = vpop.f32.mrb[0].mxu0
    %2470 = vmatprep.mubr.f32.mxu0 0.0
    %v2471 = vand.u32 %v102, 4294901760
    %v2472 = vsub.f32 %v102, %v2471
    %v2473 = vand.u32 %v2472, 4294901760
    %2474 = vmatmul.mubr.f32.gmra.mrb[0].mxu0 %v2473
    %v2475 = vpop.f32.mrb[0].mxu0
    %v2476 = vadd.f32 %v1887, %v2475
    %v2477 = vpop.f32.mrb[0].mxu0
    %2478 = vmatprep.mubr.f32.mxu0 0.0
    %v2479 = vand.u32 %v103, 4294901760
    %v2480 = vsub.f32 %v103, %v2479
    %v2481 = vand.u32 %v2480, 4294901760
    %2482 = vmatmul.mubr.f32.gmra.mrb[0].mxu0 %v2481
    %v2483 = vpop.f32.mrb[0].mxu0
    %v2484 = vadd.f32 %v1894, %v2483
    %v2485 = vpop.f32.mrb[0].mxu0
    %2486 = vmatprep.mubr.f32.mxu0 0.0
    %v2487 = vand.u32 %v104, 4294901760
    %v2488 = vsub.f32 %v104, %v2487
    %v2489 = vand.u32 %v2488, 4294901760
    %2490 = vmatmul.mubr.f32.gmra.mrb[0].mxu0 %v2489
    %v2491 = vpop.f32.mrb[0].mxu0
    %v2492 = vadd.f32 %v1901, %v2491
    %v2493 = vpop.f32.mrb[0].mxu0
    %2494 = vmatprep.mubr.f32.mxu0 0.0
    %v2495 = vand.u32 %v105, 4294901760
    %v2496 = vsub.f32 %v105, %v2495
    %v2497 = vand.u32 %v2496, 4294901760
    %2498 = vmatmul.mubr.f32.gmra.mrb[0].mxu0 %v2497
    %v2499 = vpop.f32.mrb[0].mxu0
    %v2500 = vadd.f32 %v1908, %v2499
    %v2501 = vpop.f32.mrb[0].mxu0
    %2502 = vmatprep.mubr.f32.mxu0 0.0
    %v2503 = vand.u32 %v106, 4294901760
    %v2504 = vsub.f32 %v106, %v2503
    %v2505 = vand.u32 %v2504, 4294901760
    %2506 = vmatmul.mubr.f32.gmra.mrb[0].mxu0 %v2505
    %v2507 = vpop.f32.mrb[0].mxu0
    %v2508 = vadd.f32 %v1915, %v2507
    %v2509 = vpop.f32.mrb[0].mxu0
    %2510 = vdwg.mxu0
    %2511 = vmatprep.subr.mxu0 0.0
    %v2512 = vand.u32 %v107, 4294901760
    %v2513 = vsub.f32 %v107, %v2512
    %v2514 = vand.u32 %v2513, 4294901760
    %2515 = vmatpush1.msra.mxu0 %v2514
    %2516 = vmatprep.subr.mxu0 0.0
    %v2517 = vand.u32 %v108, 4294901760
    %v2518 = vsub.f32 %v108, %v2517
    %v2519 = vand.u32 %v2518, 4294901760
    %2520 = vmatpush1.msra.mxu0 %v2519
    %2521 = vmatprep.subr.mxu0 0.0
    %v2522 = vand.u32 %v109, 4294901760
    %v2523 = vsub.f32 %v109, %v2522
    %v2524 = vand.u32 %v2523, 4294901760
    %2525 = vmatpush1.msra.mxu0 %v2524
    %2526 = vmatprep.subr.mxu0 0.0
    %v2527 = vand.u32 %v110, 4294901760
    %v2528 = vsub.f32 %v110, %v2527
    %v2529 = vand.u32 %v2528, 4294901760
    %2530 = vmatpush1.msra.mxu0 %v2529
    %2531 = vmatprep.subr.mxu0 0.0
    %v2532 = vand.u32 %v111, 4294901760
    %v2533 = vsub.f32 %v111, %v2532
    %v2534 = vand.u32 %v2533, 4294901760
    %2535 = vmatpush1.msra.mxu0 %v2534
    %2536 = vmatprep.subr.mxu0 0.0
    %v2537 = vand.u32 %v112, 4294901760
    %v2538 = vsub.f32 %v112, %v2537
    %v2539 = vand.u32 %v2538, 4294901760
    %2540 = vmatpush1.msra.mxu0 %v2539
    %2541 = vmatprep.subr.mxu0 0.0
    %v2542 = vand.u32 %v113, 4294901760
    %v2543 = vsub.f32 %v113, %v2542
    %v2544 = vand.u32 %v2543, 4294901760
    %2545 = vmatpush1.msra.mxu0 %v2544
    %2546 = vmatprep.subr.mxu0 0.0
    %v2547 = vand.u32 %v114, 4294901760
    %v2548 = vsub.f32 %v114, %v2547
    %v2549 = vand.u32 %v2548, 4294901760
    %2550 = vmatpush1.msra.mxu0 %v2549
    %2551 = vmatprep.subr.mxu0 0.0
    %v2552 = vand.u32 %v115, 4294901760
    %v2553 = vsub.f32 %v115, %v2552
    %v2554 = vand.u32 %v2553, 4294901760
    %2555 = vmatpush1.msra.mxu0 %v2554
    %2556 = vmatprep.subr.mxu0 0.0
    %v2557 = vand.u32 %v116, 4294901760
    %v2558 = vsub.f32 %v116, %v2557
    %v2559 = vand.u32 %v2558, 4294901760
    %2560 = vmatpush1.msra.mxu0 %v2559
    %2561 = vmatprep.subr.mxu0 0.0
    %v2562 = vand.u32 %v117, 4294901760
    %v2563 = vsub.f32 %v117, %v2562
    %v2564 = vand.u32 %v2563, 4294901760
    %2565 = vmatpush1.msra.mxu0 %v2564
    %2566 = vmatprep.subr.mxu0 0.0
    %v2567 = vand.u32 %v118, 4294901760
    %v2568 = vsub.f32 %v118, %v2567
    %v2569 = vand.u32 %v2568, 4294901760
    %2570 = vmatpush1.msra.mxu0 %v2569
    %2571 = vmatprep.subr.mxu0 0.0
    %v2572 = vand.u32 %v119, 4294901760
    %v2573 = vsub.f32 %v119, %v2572
    %v2574 = vand.u32 %v2573, 4294901760
    %2575 = vmatpush1.msra.mxu0 %v2574
    %2576 = vmatprep.subr.mxu0 0.0
    %v2577 = vand.u32 %v120, 4294901760
    %v2578 = vsub.f32 %v120, %v2577
    %v2579 = vand.u32 %v2578, 4294901760
    %2580 = vmatpush1.msra.mxu0 %v2579
    %2581 = vmatprep.subr.mxu0 0.0
    %v2582 = vand.u32 %v121, 4294901760
    %v2583 = vsub.f32 %v121, %v2582
    %v2584 = vand.u32 %v2583, 4294901760
    %2585 = vmatpush1.msra.mxu0 %v2584
    %2586 = vmatprep.subr.mxu0 0.0
    %v2587 = vand.u32 %v122, 4294901760
    %v2588 = vsub.f32 %v122, %v2587
    %v2589 = vand.u32 %v2588, 4294901760
    %2590 = vmatpush1.msra.mxu0 %v2589
    %2591 = vmatprep.subr.mxu0 0.0
    %2592 = vmatpush1.msra.mxu0 0.0
    %2593 = vmatprep.subr.mxu0 0.0
    %2594 = vmatpush1.msra.mxu0 0.0
    %2595 = vmatprep.subr.mxu0 0.0
    %2596 = vmatpush1.msra.mxu0 0.0
    %2597 = vmatprep.subr.mxu0 0.0
    %2598 = vmatpush1.msra.mxu0 0.0
    %2599 = vmatprep.subr.mxu0 0.0
    %2600 = vmatpush1.msra.mxu0 0.0
    %2601 = vmatprep.subr.mxu0 0.0
    %2602 = vmatpush1.msra.mxu0 0.0
    %2603 = vmatprep.subr.mxu0 0.0
    %2604 = vmatpush1.msra.mxu0 0.0
    %2605 = vmatprep.subr.mxu0 0.0
    %2606 = vmatpush1.msra.mxu0 0.0
    %2607 = vmatprep.subr.mxu0 0.0
    %2608 = vmatpush1.msra.mxu0 0.0
    %2609 = vmatprep.subr.mxu0 0.0
    %2610 = vmatpush1.msra.mxu0 0.0
    %2611 = vmatprep.subr.mxu0 0.0
    %2612 = vmatpush1.msra.mxu0 0.0
    %2613 = vmatprep.subr.mxu0 0.0
    %2614 = vmatpush1.msra.mxu0 0.0
    %2615 = vmatprep.subr.mxu0 0.0
    %2616 = vmatpush1.msra.mxu0 0.0
    %2617 = vmatprep.subr.mxu0 0.0
    %2618 = vmatpush1.msra.mxu0 0.0
    %2619 = vmatprep.subr.mxu0 0.0
    %2620 = vmatpush1.msra.mxu0 0.0
    %2621 = vmatprep.subr.mxu0 0.0
    %2622 = vmatpush1.msra.mxu0 0.0
    %2623 = vmatprep.mubr.f32.mxu0 0.0
    %v2624 = vand.u32 %v43, 4294901760
    %2625 = vmatmul.mubr.f32.gmra.mrb[0].mxu0 %v2624
    %v2626 = vpop.f32.mrb[0].mxu0
    %v2627 = vadd.f32 %v2004, %v2626
    %v2628 = vpop.f32.mrb[0].mxu0
    %2629 = vmatprep.mubr.f32.mxu0 0.0
    %v2630 = vand.u32 %v44, 4294901760
    %2631 = vmatmul.mubr.f32.gmra.mrb[0].mxu0 %v2630
    %v2632 = vpop.f32.mrb[0].mxu0
    %v2633 = vadd.f32 %v2012, %v2632
    %v2634 = vpop.f32.mrb[0].mxu0
    %2635 = vmatprep.mubr.f32.mxu0 0.0
    %v2636 = vand.u32 %v45, 4294901760
    %2637 = vmatmul.mubr.f32.gmra.mrb[0].mxu0 %v2636
    %v2638 = vpop.f32.mrb[0].mxu0
    %v2639 = vadd.f32 %v2020, %v2638
    %v2640 = vpop.f32.mrb[0].mxu0
    %2641 = vmatprep.mubr.f32.mxu0 0.0
    %v2642 = vand.u32 %v46, 4294901760
    %2643 = vmatmul.mubr.f32.gmra.mrb[0].mxu0 %v2642
    %v2644 = vpop.f32.mrb[0].mxu0
    %v2645 = vadd.f32 %v2028, %v2644
    %v2646 = vpop.f32.mrb[0].mxu0
    %2647 = vmatprep.mubr.f32.mxu0 0.0
    %v2648 = vand.u32 %v47, 4294901760
    %2649 = vmatmul.mubr.f32.gmra.mrb[0].mxu0 %v2648
    %v2650 = vpop.f32.mrb[0].mxu0
    %v2651 = vadd.f32 %v2036, %v2650
    %v2652 = vpop.f32.mrb[0].mxu0
    %2653 = vmatprep.mubr.f32.mxu0 0.0
    %v2654 = vand.u32 %v48, 4294901760
    %2655 = vmatmul.mubr.f32.gmra.mrb[0].mxu0 %v2654
    %v2656 = vpop.f32.mrb[0].mxu0
    %v2657 = vadd.f32 %v2044, %v2656
    %v2658 = vpop.f32.mrb[0].mxu0
    %2659 = vmatprep.mubr.f32.mxu0 0.0
    %v2660 = vand.u32 %v49, 4294901760
    %2661 = vmatmul.mubr.f32.gmra.mrb[0].mxu0 %v2660
    %v2662 = vpop.f32.mrb[0].mxu0
    %v2663 = vadd.f32 %v2052, %v2662
    %v2664 = vpop.f32.mrb[0].mxu0
    %2665 = vmatprep.mubr.f32.mxu0 0.0
    %v2666 = vand.u32 %v50, 4294901760
    %2667 = vmatmul.mubr.f32.gmra.mrb[0].mxu0 %v2666
    %v2668 = vpop.f32.mrb[0].mxu0
    %v2669 = vadd.f32 %v2060, %v2668
    %v2670 = vpop.f32.mrb[0].mxu0
    %2671 = vmatprep.mubr.f32.mxu0 0.0
    %v2672 = vand.u32 %v51, 4294901760
    %2673 = vmatmul.mubr.f32.gmra.mrb[0].mxu0 %v2672
    %v2674 = vpop.f32.mrb[0].mxu0
    %v2675 = vadd.f32 %v2068, %v2674
    %v2676 = vpop.f32.mrb[0].mxu0
    %2677 = vmatprep.mubr.f32.mxu0 0.0
    %v2678 = vand.u32 %v52, 4294901760
    %2679 = vmatmul.mubr.f32.gmra.mrb[0].mxu0 %v2678
    %v2680 = vpop.f32.mrb[0].mxu0
    %v2681 = vadd.f32 %v2076, %v2680
    %v2682 = vpop.f32.mrb[0].mxu0
    %2683 = vmatprep.mubr.f32.mxu0 0.0
    %v2684 = vand.u32 %v53, 4294901760
    %2685 = vmatmul.mubr.f32.gmra.mrb[0].mxu0 %v2684
    %v2686 = vpop.f32.mrb[0].mxu0
    %v2687 = vadd.f32 %v2084, %v2686
    %v2688 = vpop.f32.mrb[0].mxu0
    %2689 = vmatprep.mubr.f32.mxu0 0.0
    %v2690 = vand.u32 %v54, 4294901760
    %2691 = vmatmul.mubr.f32.gmra.mrb[0].mxu0 %v2690
    %v2692 = vpop.f32.mrb[0].mxu0
    %v2693 = vadd.f32 %v2092, %v2692
    %v2694 = vpop.f32.mrb[0].mxu0
    %2695 = vmatprep.mubr.f32.mxu0 0.0
    %v2696 = vand.u32 %v55, 4294901760
    %2697 = vmatmul.mubr.f32.gmra.mrb[0].mxu0 %v2696
    %v2698 = vpop.f32.mrb[0].mxu0
    %v2699 = vadd.f32 %v2100, %v2698
    %v2700 = vpop.f32.mrb[0].mxu0
    %2701 = vmatprep.mubr.f32.mxu0 0.0
    %v2702 = vand.u32 %v56, 4294901760
    %2703 = vmatmul.mubr.f32.gmra.mrb[0].mxu0 %v2702
    %v2704 = vpop.f32.mrb[0].mxu0
    %v2705 = vadd.f32 %v2108, %v2704
    %v2706 = vpop.f32.mrb[0].mxu0
    %2707 = vmatprep.mubr.f32.mxu0 0.0
    %v2708 = vand.u32 %v57, 4294901760
    %2709 = vmatmul.mubr.f32.gmra.mrb[0].mxu0 %v2708
    %v2710 = vpop.f32.mrb[0].mxu0
    %v2711 = vadd.f32 %v2116, %v2710
    %v2712 = vpop.f32.mrb[0].mxu0
    %2713 = vmatprep.mubr.f32.mxu0 0.0
    %v2714 = vand.u32 %v58, 4294901760
    %2715 = vmatmul.mubr.f32.gmra.mrb[0].mxu0 %v2714
    %v2716 = vpop.f32.mrb[0].mxu0
    %v2717 = vadd.f32 %v2124, %v2716
    %v2718 = vpop.f32.mrb[0].mxu0
    %2719 = vmatprep.mubr.f32.mxu0 0.0
    %v2720 = vand.u32 %v59, 4294901760
    %2721 = vmatmul.mubr.f32.gmra.mrb[0].mxu0 %v2720
    %v2722 = vpop.f32.mrb[0].mxu0
    %v2723 = vadd.f32 %v2132, %v2722
    %v2724 = vpop.f32.mrb[0].mxu0
    %2725 = vmatprep.mubr.f32.mxu0 0.0
    %v2726 = vand.u32 %v60, 4294901760
    %2727 = vmatmul.mubr.f32.gmra.mrb[0].mxu0 %v2726
    %v2728 = vpop.f32.mrb[0].mxu0
    %v2729 = vadd.f32 %v2140, %v2728
    %v2730 = vpop.f32.mrb[0].mxu0
    %2731 = vmatprep.mubr.f32.mxu0 0.0
    %v2732 = vand.u32 %v61, 4294901760
    %2733 = vmatmul.mubr.f32.gmra.mrb[0].mxu0 %v2732
    %v2734 = vpop.f32.mrb[0].mxu0
    %v2735 = vadd.f32 %v2148, %v2734
    %v2736 = vpop.f32.mrb[0].mxu0
    %2737 = vmatprep.mubr.f32.mxu0 0.0
    %v2738 = vand.u32 %v62, 4294901760
    %2739 = vmatmul.mubr.f32.gmra.mrb[0].mxu0 %v2738
    %v2740 = vpop.f32.mrb[0].mxu0
    %v2741 = vadd.f32 %v2156, %v2740
    %v2742 = vpop.f32.mrb[0].mxu0
    %2743 = vmatprep.mubr.f32.mxu0 0.0
    %v2744 = vand.u32 %v63, 4294901760
    %2745 = vmatmul.mubr.f32.gmra.mrb[0].mxu0 %v2744
    %v2746 = vpop.f32.mrb[0].mxu0
    %v2747 = vadd.f32 %v2164, %v2746
    %v2748 = vpop.f32.mrb[0].mxu0
    %2749 = vmatprep.mubr.f32.mxu0 0.0
    %v2750 = vand.u32 %v64, 4294901760
    %2751 = vmatmul.mubr.f32.gmra.mrb[0].mxu0 %v2750
    %v2752 = vpop.f32.mrb[0].mxu0
    %v2753 = vadd.f32 %v2172, %v2752
    %v2754 = vpop.f32.mrb[0].mxu0
    %2755 = vmatprep.mubr.f32.mxu0 0.0
    %v2756 = vand.u32 %v65, 4294901760
    %2757 = vmatmul.mubr.f32.gmra.mrb[0].mxu0 %v2756
    %v2758 = vpop.f32.mrb[0].mxu0
    %v2759 = vadd.f32 %v2180, %v2758
    %v2760 = vpop.f32.mrb[0].mxu0
    %2761 = vmatprep.mubr.f32.mxu0 0.0
    %v2762 = vand.u32 %v66, 4294901760
    %2763 = vmatmul.mubr.f32.gmra.mrb[0].mxu0 %v2762
    %v2764 = vpop.f32.mrb[0].mxu0
    %v2765 = vadd.f32 %v2188, %v2764
    %v2766 = vpop.f32.mrb[0].mxu0
    %2767 = vmatprep.mubr.f32.mxu0 0.0
    %v2768 = vand.u32 %v67, 4294901760
    %2769 = vmatmul.mubr.f32.gmra.mrb[0].mxu0 %v2768
    %v2770 = vpop.f32.mrb[0].mxu0
    %v2771 = vadd.f32 %v2196, %v2770
    %v2772 = vpop.f32.mrb[0].mxu0
    %2773 = vmatprep.mubr.f32.mxu0 0.0
    %v2774 = vand.u32 %v68, 4294901760
    %2775 = vmatmul.mubr.f32.gmra.mrb[0].mxu0 %v2774
    %v2776 = vpop.f32.mrb[0].mxu0
    %v2777 = vadd.f32 %v2204, %v2776
    %v2778 = vpop.f32.mrb[0].mxu0
    %2779 = vmatprep.mubr.f32.mxu0 0.0
    %v2780 = vand.u32 %v69, 4294901760
    %2781 = vmatmul.mubr.f32.gmra.mrb[0].mxu0 %v2780
    %v2782 = vpop.f32.mrb[0].mxu0
    %v2783 = vadd.f32 %v2212, %v2782
    %v2784 = vpop.f32.mrb[0].mxu0
    %2785 = vmatprep.mubr.f32.mxu0 0.0
    %v2786 = vand.u32 %v70, 4294901760
    %2787 = vmatmul.mubr.f32.gmra.mrb[0].mxu0 %v2786
    %v2788 = vpop.f32.mrb[0].mxu0
    %v2789 = vadd.f32 %v2220, %v2788
    %v2790 = vpop.f32.mrb[0].mxu0
    %2791 = vmatprep.mubr.f32.mxu0 0.0
    %v2792 = vand.u32 %v71, 4294901760
    %2793 = vmatmul.mubr.f32.gmra.mrb[0].mxu0 %v2792
    %v2794 = vpop.f32.mrb[0].mxu0
    %v2795 = vadd.f32 %v2228, %v2794
    %v2796 = vpop.f32.mrb[0].mxu0
    %2797 = vmatprep.mubr.f32.mxu0 0.0
    %v2798 = vand.u32 %v72, 4294901760
    %2799 = vmatmul.mubr.f32.gmra.mrb[0].mxu0 %v2798
    %v2800 = vpop.f32.mrb[0].mxu0
    %v2801 = vadd.f32 %v2236, %v2800
    %v2802 = vpop.f32.mrb[0].mxu0
    %2803 = vmatprep.mubr.f32.mxu0 0.0
    %v2804 = vand.u32 %v73, 4294901760
    %2805 = vmatmul.mubr.f32.gmra.mrb[0].mxu0 %v2804
    %v2806 = vpop.f32.mrb[0].mxu0
    %v2807 = vadd.f32 %v2244, %v2806
    %v2808 = vpop.f32.mrb[0].mxu0
    %2809 = vmatprep.mubr.f32.mxu0 0.0
    %v2810 = vand.u32 %v74, 4294901760
    %2811 = vmatmul.mubr.f32.gmra.mrb[0].mxu0 %v2810
    %v2812 = vpop.f32.mrb[0].mxu0
    %v2813 = vadd.f32 %v2252, %v2812
    %v2814 = vpop.f32.mrb[0].mxu0
    %2815 = vmatprep.mubr.f32.mxu0 0.0
    %v2816 = vand.u32 %v75, 4294901760
    %2817 = vmatmul.mubr.f32.gmra.mrb[0].mxu0 %v2816
    %v2818 = vpop.f32.mrb[0].mxu0
    %v2819 = vadd.f32 %v2260, %v2818
    %v2820 = vpop.f32.mrb[0].mxu0
    %2821 = vmatprep.mubr.f32.mxu0 0.0
    %v2822 = vand.u32 %v76, 4294901760
    %2823 = vmatmul.mubr.f32.gmra.mrb[0].mxu0 %v2822
    %v2824 = vpop.f32.mrb[0].mxu0
    %v2825 = vadd.f32 %v2268, %v2824
    %v2826 = vpop.f32.mrb[0].mxu0
    %2827 = vmatprep.mubr.f32.mxu0 0.0
    %v2828 = vand.u32 %v77, 4294901760
    %2829 = vmatmul.mubr.f32.gmra.mrb[0].mxu0 %v2828
    %v2830 = vpop.f32.mrb[0].mxu0
    %v2831 = vadd.f32 %v2276, %v2830
    %v2832 = vpop.f32.mrb[0].mxu0
    %2833 = vmatprep.mubr.f32.mxu0 0.0
    %v2834 = vand.u32 %v78, 4294901760
    %2835 = vmatmul.mubr.f32.gmra.mrb[0].mxu0 %v2834
    %v2836 = vpop.f32.mrb[0].mxu0
    %v2837 = vadd.f32 %v2284, %v2836
    %v2838 = vpop.f32.mrb[0].mxu0
    %2839 = vmatprep.mubr.f32.mxu0 0.0
    %v2840 = vand.u32 %v79, 4294901760
    %2841 = vmatmul.mubr.f32.gmra.mrb[0].mxu0 %v2840
    %v2842 = vpop.f32.mrb[0].mxu0
    %v2843 = vadd.f32 %v2292, %v2842
    %v2844 = vpop.f32.mrb[0].mxu0
    %2845 = vmatprep.mubr.f32.mxu0 0.0
    %v2846 = vand.u32 %v80, 4294901760
    %2847 = vmatmul.mubr.f32.gmra.mrb[0].mxu0 %v2846
    %v2848 = vpop.f32.mrb[0].mxu0
    %v2849 = vadd.f32 %v2300, %v2848
    %v2850 = vpop.f32.mrb[0].mxu0
    %2851 = vmatprep.mubr.f32.mxu0 0.0
    %v2852 = vand.u32 %v81, 4294901760
    %2853 = vmatmul.mubr.f32.gmra.mrb[0].mxu0 %v2852
    %v2854 = vpop.f32.mrb[0].mxu0
    %v2855 = vadd.f32 %v2308, %v2854
    %v2856 = vpop.f32.mrb[0].mxu0
    %2857 = vmatprep.mubr.f32.mxu0 0.0
    %v2858 = vand.u32 %v82, 4294901760
    %2859 = vmatmul.mubr.f32.gmra.mrb[0].mxu0 %v2858
    %v2860 = vpop.f32.mrb[0].mxu0
    %v2861 = vadd.f32 %v2316, %v2860
    %v2862 = vpop.f32.mrb[0].mxu0
    %2863 = vmatprep.mubr.f32.mxu0 0.0
    %v2864 = vand.u32 %v83, 4294901760
    %2865 = vmatmul.mubr.f32.gmra.mrb[0].mxu0 %v2864
    %v2866 = vpop.f32.mrb[0].mxu0
    %v2867 = vadd.f32 %v2324, %v2866
    %v2868 = vpop.f32.mrb[0].mxu0
    %2869 = vmatprep.mubr.f32.mxu0 0.0
    %v2870 = vand.u32 %v84, 4294901760
    %2871 = vmatmul.mubr.f32.gmra.mrb[0].mxu0 %v2870
    %v2872 = vpop.f32.mrb[0].mxu0
    %v2873 = vadd.f32 %v2332, %v2872
    %v2874 = vpop.f32.mrb[0].mxu0
    %2875 = vmatprep.mubr.f32.mxu0 0.0
    %v2876 = vand.u32 %v85, 4294901760
    %2877 = vmatmul.mubr.f32.gmra.mrb[0].mxu0 %v2876
    %v2878 = vpop.f32.mrb[0].mxu0
    %v2879 = vadd.f32 %v2340, %v2878
    %v2880 = vpop.f32.mrb[0].mxu0
    %2881 = vmatprep.mubr.f32.mxu0 0.0
    %v2882 = vand.u32 %v86, 4294901760
    %2883 = vmatmul.mubr.f32.gmra.mrb[0].mxu0 %v2882
    %v2884 = vpop.f32.mrb[0].mxu0
    %v2885 = vadd.f32 %v2348, %v2884
    %v2886 = vpop.f32.mrb[0].mxu0
    %2887 = vmatprep.mubr.f32.mxu0 0.0
    %v2888 = vand.u32 %v87, 4294901760
    %2889 = vmatmul.mubr.f32.gmra.mrb[0].mxu0 %v2888
    %v2890 = vpop.f32.mrb[0].mxu0
    %v2891 = vadd.f32 %v2356, %v2890
    %v2892 = vpop.f32.mrb[0].mxu0
    %2893 = vmatprep.mubr.f32.mxu0 0.0
    %v2894 = vand.u32 %v88, 4294901760
    %2895 = vmatmul.mubr.f32.gmra.mrb[0].mxu0 %v2894
    %v2896 = vpop.f32.mrb[0].mxu0
    %v2897 = vadd.f32 %v2364, %v2896
    %v2898 = vpop.f32.mrb[0].mxu0
    %2899 = vmatprep.mubr.f32.mxu0 0.0
    %v2900 = vand.u32 %v89, 4294901760
    %2901 = vmatmul.mubr.f32.gmra.mrb[0].mxu0 %v2900
    %v2902 = vpop.f32.mrb[0].mxu0
    %v2903 = vadd.f32 %v2372, %v2902
    %v2904 = vpop.f32.mrb[0].mxu0
    %2905 = vmatprep.mubr.f32.mxu0 0.0
    %v2906 = vand.u32 %v90, 4294901760
    %2907 = vmatmul.mubr.f32.gmra.mrb[0].mxu0 %v2906
    %v2908 = vpop.f32.mrb[0].mxu0
    %v2909 = vadd.f32 %v2380, %v2908
    %v2910 = vpop.f32.mrb[0].mxu0
    %2911 = vmatprep.mubr.f32.mxu0 0.0
    %v2912 = vand.u32 %v91, 4294901760
    %2913 = vmatmul.mubr.f32.gmra.mrb[0].mxu0 %v2912
    %v2914 = vpop.f32.mrb[0].mxu0
    %v2915 = vadd.f32 %v2388, %v2914
    %v2916 = vpop.f32.mrb[0].mxu0
    %2917 = vmatprep.mubr.f32.mxu0 0.0
    %v2918 = vand.u32 %v92, 4294901760
    %2919 = vmatmul.mubr.f32.gmra.mrb[0].mxu0 %v2918
    %v2920 = vpop.f32.mrb[0].mxu0
    %v2921 = vadd.f32 %v2396, %v2920
    %v2922 = vpop.f32.mrb[0].mxu0
    %2923 = vmatprep.mubr.f32.mxu0 0.0
    %v2924 = vand.u32 %v93, 4294901760
    %2925 = vmatmul.mubr.f32.gmra.mrb[0].mxu0 %v2924
    %v2926 = vpop.f32.mrb[0].mxu0
    %v2927 = vadd.f32 %v2404, %v2926
    %v2928 = vpop.f32.mrb[0].mxu0
    %2929 = vmatprep.mubr.f32.mxu0 0.0
    %v2930 = vand.u32 %v94, 4294901760
    %2931 = vmatmul.mubr.f32.gmra.mrb[0].mxu0 %v2930
    %v2932 = vpop.f32.mrb[0].mxu0
    %v2933 = vadd.f32 %v2412, %v2932
    %v2934 = vpop.f32.mrb[0].mxu0
    %2935 = vmatprep.mubr.f32.mxu0 0.0
    %v2936 = vand.u32 %v95, 4294901760
    %2937 = vmatmul.mubr.f32.gmra.mrb[0].mxu0 %v2936
    %v2938 = vpop.f32.mrb[0].mxu0
    %v2939 = vadd.f32 %v2420, %v2938
    %v2940 = vpop.f32.mrb[0].mxu0
    %2941 = vmatprep.mubr.f32.mxu0 0.0
    %v2942 = vand.u32 %v96, 4294901760
    %2943 = vmatmul.mubr.f32.gmra.mrb[0].mxu0 %v2942
    %v2944 = vpop.f32.mrb[0].mxu0
    %v2945 = vadd.f32 %v2428, %v2944
    %v2946 = vpop.f32.mrb[0].mxu0
    %2947 = vmatprep.mubr.f32.mxu0 0.0
    %v2948 = vand.u32 %v97, 4294901760
    %2949 = vmatmul.mubr.f32.gmra.mrb[0].mxu0 %v2948
    %v2950 = vpop.f32.mrb[0].mxu0
    %v2951 = vadd.f32 %v2436, %v2950
    %v2952 = vpop.f32.mrb[0].mxu0
    %2953 = vmatprep.mubr.f32.mxu0 0.0
    %v2954 = vand.u32 %v98, 4294901760
    %2955 = vmatmul.mubr.f32.gmra.mrb[0].mxu0 %v2954
    %v2956 = vpop.f32.mrb[0].mxu0
    %v2957 = vadd.f32 %v2444, %v2956
    %v2958 = vpop.f32.mrb[0].mxu0
    %2959 = vmatprep.mubr.f32.mxu0 0.0
    %v2960 = vand.u32 %v99, 4294901760
    %2961 = vmatmul.mubr.f32.gmra.mrb[0].mxu0 %v2960
    %v2962 = vpop.f32.mrb[0].mxu0
    %v2963 = vadd.f32 %v2452, %v2962
    %v2964 = vpop.f32.mrb[0].mxu0
    %2965 = vmatprep.mubr.f32.mxu0 0.0
    %v2966 = vand.u32 %v100, 4294901760
    %2967 = vmatmul.mubr.f32.gmra.mrb[0].mxu0 %v2966
    %v2968 = vpop.f32.mrb[0].mxu0
    %v2969 = vadd.f32 %v2460, %v2968
    %v2970 = vpop.f32.mrb[0].mxu0
    %2971 = vmatprep.mubr.f32.mxu0 0.0
    %v2972 = vand.u32 %v101, 4294901760
    %2973 = vmatmul.mubr.f32.gmra.mrb[0].mxu0 %v2972
    %v2974 = vpop.f32.mrb[0].mxu0
    %v2975 = vadd.f32 %v2468, %v2974
    %v2976 = vpop.f32.mrb[0].mxu0
    %2977 = vmatprep.mubr.f32.mxu0 0.0
    %v2978 = vand.u32 %v102, 4294901760
    %2979 = vmatmul.mubr.f32.gmra.mrb[0].mxu0 %v2978
    %v2980 = vpop.f32.mrb[0].mxu0
    %v2981 = vadd.f32 %v2476, %v2980
    %v2982 = vpop.f32.mrb[0].mxu0
    %2983 = vmatprep.mubr.f32.mxu0 0.0
    %v2984 = vand.u32 %v103, 4294901760
    %2985 = vmatmul.mubr.f32.gmra.mrb[0].mxu0 %v2984
    %v2986 = vpop.f32.mrb[0].mxu0
    %v2987 = vadd.f32 %v2484, %v2986
    %v2988 = vpop.f32.mrb[0].mxu0
    %2989 = vmatprep.mubr.f32.mxu0 0.0
    %v2990 = vand.u32 %v104, 4294901760
    %2991 = vmatmul.mubr.f32.gmra.mrb[0].mxu0 %v2990
    %v2992 = vpop.f32.mrb[0].mxu0
    %v2993 = vadd.f32 %v2492, %v2992
    %v2994 = vpop.f32.mrb[0].mxu0
    %2995 = vmatprep.mubr.f32.mxu0 0.0
    %v2996 = vand.u32 %v105, 4294901760
    %2997 = vmatmul.mubr.f32.gmra.mrb[0].mxu0 %v2996
    %v2998 = vpop.f32.mrb[0].mxu0
    %v2999 = vadd.f32 %v2500, %v2998
    %v3000 = vpop.f32.mrb[0].mxu0
    %3001 = vmatprep.mubr.f32.mxu0 0.0
    %v3002 = vand.u32 %v106, 4294901760
    %3003 = vmatmul.mubr.f32.gmra.mrb[0].mxu0 %v3002
    %v3004 = vpop.f32.mrb[0].mxu0
    %v3005 = vadd.f32 %v2508, %v3004
    %v3006 = vpop.f32.mrb[0].mxu0
    %3007 = vdwg.mxu0
    %3008 = vmatprep.subr.mxu0 0.0
    %v3009 = vand.u32 %v107, 4294901760
    %3010 = vmatpush1.msra.mxu0 %v3009
    %3011 = vmatprep.subr.mxu0 0.0
    %v3012 = vand.u32 %v108, 4294901760
    %3013 = vmatpush1.msra.mxu0 %v3012
    %3014 = vmatprep.subr.mxu0 0.0
    %v3015 = vand.u32 %v109, 4294901760
    %3016 = vmatpush1.msra.mxu0 %v3015
    %3017 = vmatprep.subr.mxu0 0.0
    %v3018 = vand.u32 %v110, 4294901760
    %3019 = vmatpush1.msra.mxu0 %v3018
    %3020 = vmatprep.subr.mxu0 0.0
    %v3021 = vand.u32 %v111, 4294901760
    %3022 = vmatpush1.msra.mxu0 %v3021
    %3023 = vmatprep.subr.mxu0 0.0
    %v3024 = vand.u32 %v112, 4294901760
    %3025 = vmatpush1.msra.mxu0 %v3024
    %3026 = vmatprep.subr.mxu0 0.0
    %v3027 = vand.u32 %v113, 4294901760
    %3028 = vmatpush1.msra.mxu0 %v3027
    %3029 = vmatprep.subr.mxu0 0.0
    %v3030 = vand.u32 %v114, 4294901760
    %3031 = vmatpush1.msra.mxu0 %v3030
    %3032 = vmatprep.subr.mxu0 0.0
    %v3033 = vand.u32 %v115, 4294901760
    %3034 = vmatpush1.msra.mxu0 %v3033
    %3035 = vmatprep.subr.mxu0 0.0
    %v3036 = vand.u32 %v116, 4294901760
    %3037 = vmatpush1.msra.mxu0 %v3036
    %3038 = vmatprep.subr.mxu0 0.0
    %v3039 = vand.u32 %v117, 4294901760
    %3040 = vmatpush1.msra.mxu0 %v3039
    %3041 = vmatprep.subr.mxu0 0.0
    %v3042 = vand.u32 %v118, 4294901760
    %3043 = vmatpush1.msra.mxu0 %v3042
    %3044 = vmatprep.subr.mxu0 0.0
    %v3045 = vand.u32 %v119, 4294901760
    %3046 = vmatpush1.msra.mxu0 %v3045
    %3047 = vmatprep.subr.mxu0 0.0
    %v3048 = vand.u32 %v120, 4294901760
    %3049 = vmatpush1.msra.mxu0 %v3048
    %3050 = vmatprep.subr.mxu0 0.0
    %v3051 = vand.u32 %v121, 4294901760
    %3052 = vmatpush1.msra.mxu0 %v3051
    %3053 = vmatprep.subr.mxu0 0.0
    %v3054 = vand.u32 %v122, 4294901760
    %3055 = vmatpush1.msra.mxu0 %v3054
    %3056 = vmatprep.subr.mxu0 0.0
    %3057 = vmatpush1.msra.mxu0 0.0
    %3058 = vmatprep.subr.mxu0 0.0
    %3059 = vmatpush1.msra.mxu0 0.0
    %3060 = vmatprep.subr.mxu0 0.0
    %3061 = vmatpush1.msra.mxu0 0.0
    %3062 = vmatprep.subr.mxu0 0.0
    %3063 = vmatpush1.msra.mxu0 0.0
    %3064 = vmatprep.subr.mxu0 0.0
    %3065 = vmatpush1.msra.mxu0 0.0
    %3066 = vmatprep.subr.mxu0 0.0
    %3067 = vmatpush1.msra.mxu0 0.0
    %3068 = vmatprep.subr.mxu0 0.0
    %3069 = vmatpush1.msra.mxu0 0.0
    %3070 = vmatprep.subr.mxu0 0.0
    %3071 = vmatpush1.msra.mxu0 0.0
    %3072 = vmatprep.subr.mxu0 0.0
    %3073 = vmatpush1.msra.mxu0 0.0
    %3074 = vmatprep.subr.mxu0 0.0
    %3075 = vmatpush1.msra.mxu0 0.0
    %3076 = vmatprep.subr.mxu0 0.0
    %3077 = vmatpush1.msra.mxu0 0.0
    %3078 = vmatprep.subr.mxu0 0.0
    %3079 = vmatpush1.msra.mxu0 0.0
    %3080 = vmatprep.subr.mxu0 0.0
    %3081 = vmatpush1.msra.mxu0 0.0
    %3082 = vmatprep.subr.mxu0 0.0
    %3083 = vmatpush1.msra.mxu0 0.0
    %3084 = vmatprep.subr.mxu0 0.0
    %3085 = vmatpush1.msra.mxu0 0.0
    %3086 = vmatprep.subr.mxu0 0.0
    %3087 = vmatpush1.msra.mxu0 0.0
    %3088 = vmatprep.mubr.f32.mxu0 0.0
    %v3089 = vand.u32 %v43, 4294901760
    %3090 = vmatmul.mubr.f32.gmra.mrb[0].mxu0 %v3089
    %v3091 = vpop.f32.mrb[0].mxu0
    %v3092 = vadd.f32 %v2627, %v3091
    %v3093 = vpop.f32.mrb[0].mxu0
    %3094 = vmatprep.mubr.f32.mxu0 0.0
    %v3095 = vand.u32 %v44, 4294901760
    %3096 = vmatmul.mubr.f32.gmra.mrb[0].mxu0 %v3095
    %v3097 = vpop.f32.mrb[0].mxu0
    %v3098 = vadd.f32 %v2633, %v3097
    %v3099 = vpop.f32.mrb[0].mxu0
    %3100 = vmatprep.mubr.f32.mxu0 0.0
    %v3101 = vand.u32 %v45, 4294901760
    %3102 = vmatmul.mubr.f32.gmra.mrb[0].mxu0 %v3101
    %v3103 = vpop.f32.mrb[0].mxu0
    %v3104 = vadd.f32 %v2639, %v3103
    %v3105 = vpop.f32.mrb[0].mxu0
    %3106 = vmatprep.mubr.f32.mxu0 0.0
    %v3107 = vand.u32 %v46, 4294901760
    %3108 = vmatmul.mubr.f32.gmra.mrb[0].mxu0 %v3107
    %v3109 = vpop.f32.mrb[0].mxu0
    %v3110 = vadd.f32 %v2645, %v3109
    %v3111 = vpop.f32.mrb[0].mxu0
    %3112 = vmatprep.mubr.f32.mxu0 0.0
    %v3113 = vand.u32 %v47, 4294901760
    %3114 = vmatmul.mubr.f32.gmra.mrb[0].mxu0 %v3113
    %v3115 = vpop.f32.mrb[0].mxu0
    %v3116 = vadd.f32 %v2651, %v3115
    %v3117 = vpop.f32.mrb[0].mxu0
    %3118 = vmatprep.mubr.f32.mxu0 0.0
    %v3119 = vand.u32 %v48, 4294901760
    %3120 = vmatmul.mubr.f32.gmra.mrb[0].mxu0 %v3119
    %v3121 = vpop.f32.mrb[0].mxu0
    %v3122 = vadd.f32 %v2657, %v3121
    %v3123 = vpop.f32.mrb[0].mxu0
    %3124 = vmatprep.mubr.f32.mxu0 0.0
    %v3125 = vand.u32 %v49, 4294901760
    %3126 = vmatmul.mubr.f32.gmra.mrb[0].mxu0 %v3125
    %v3127 = vpop.f32.mrb[0].mxu0
    %v3128 = vadd.f32 %v2663, %v3127
    %v3129 = vpop.f32.mrb[0].mxu0
    %3130 = vmatprep.mubr.f32.mxu0 0.0
    %v3131 = vand.u32 %v50, 4294901760
    %3132 = vmatmul.mubr.f32.gmra.mrb[0].mxu0 %v3131
    %v3133 = vpop.f32.mrb[0].mxu0
    %v3134 = vadd.f32 %v2669, %v3133
    %v3135 = vpop.f32.mrb[0].mxu0
    %3136 = vmatprep.mubr.f32.mxu0 0.0
    %v3137 = vand.u32 %v51, 4294901760
    %3138 = vmatmul.mubr.f32.gmra.mrb[0].mxu0 %v3137
    %v3139 = vpop.f32.mrb[0].mxu0
    %v3140 = vadd.f32 %v2675, %v3139
    %v3141 = vpop.f32.mrb[0].mxu0
    %3142 = vmatprep.mubr.f32.mxu0 0.0
    %v3143 = vand.u32 %v52, 4294901760
    %3144 = vmatmul.mubr.f32.gmra.mrb[0].mxu0 %v3143
    %v3145 = vpop.f32.mrb[0].mxu0
    %v3146 = vadd.f32 %v2681, %v3145
    %v3147 = vpop.f32.mrb[0].mxu0
    %3148 = vmatprep.mubr.f32.mxu0 0.0
    %v3149 = vand.u32 %v53, 4294901760
    %3150 = vmatmul.mubr.f32.gmra.mrb[0].mxu0 %v3149
    %v3151 = vpop.f32.mrb[0].mxu0
    %v3152 = vadd.f32 %v2687, %v3151
    %v3153 = vpop.f32.mrb[0].mxu0
    %3154 = vmatprep.mubr.f32.mxu0 0.0
    %v3155 = vand.u32 %v54, 4294901760
    %3156 = vmatmul.mubr.f32.gmra.mrb[0].mxu0 %v3155
    %v3157 = vpop.f32.mrb[0].mxu0
    %v3158 = vadd.f32 %v2693, %v3157
    %v3159 = vpop.f32.mrb[0].mxu0
    %3160 = vmatprep.mubr.f32.mxu0 0.0
    %v3161 = vand.u32 %v55, 4294901760
    %3162 = vmatmul.mubr.f32.gmra.mrb[0].mxu0 %v3161
    %v3163 = vpop.f32.mrb[0].mxu0
    %v3164 = vadd.f32 %v2699, %v3163
    %v3165 = vpop.f32.mrb[0].mxu0
    %3166 = vmatprep.mubr.f32.mxu0 0.0
    %v3167 = vand.u32 %v56, 4294901760
    %3168 = vmatmul.mubr.f32.gmra.mrb[0].mxu0 %v3167
    %v3169 = vpop.f32.mrb[0].mxu0
    %v3170 = vadd.f32 %v2705, %v3169
    %v3171 = vpop.f32.mrb[0].mxu0
    %3172 = vmatprep.mubr.f32.mxu0 0.0
    %v3173 = vand.u32 %v57, 4294901760
    %3174 = vmatmul.mubr.f32.gmra.mrb[0].mxu0 %v3173
    %v3175 = vpop.f32.mrb[0].mxu0
    %v3176 = vadd.f32 %v2711, %v3175
    %v3177 = vpop.f32.mrb[0].mxu0
    %3178 = vmatprep.mubr.f32.mxu0 0.0
    %v3179 = vand.u32 %v58, 4294901760
    %3180 = vmatmul.mubr.f32.gmra.mrb[0].mxu0 %v3179
    %v3181 = vpop.f32.mrb[0].mxu0
    %v3182 = vadd.f32 %v2717, %v3181
    %v3183 = vpop.f32.mrb[0].mxu0
    %3184 = vmatprep.mubr.f32.mxu0 0.0
    %v3185 = vand.u32 %v59, 4294901760
    %3186 = vmatmul.mubr.f32.gmra.mrb[0].mxu0 %v3185
    %v3187 = vpop.f32.mrb[0].mxu0
    %v3188 = vadd.f32 %v2723, %v3187
    %v3189 = vpop.f32.mrb[0].mxu0
    %3190 = vmatprep.mubr.f32.mxu0 0.0
    %v3191 = vand.u32 %v60, 4294901760
    %3192 = vmatmul.mubr.f32.gmra.mrb[0].mxu0 %v3191
    %v3193 = vpop.f32.mrb[0].mxu0
    %v3194 = vadd.f32 %v2729, %v3193
    %v3195 = vpop.f32.mrb[0].mxu0
    %3196 = vmatprep.mubr.f32.mxu0 0.0
    %v3197 = vand.u32 %v61, 4294901760
    %3198 = vmatmul.mubr.f32.gmra.mrb[0].mxu0 %v3197
    %v3199 = vpop.f32.mrb[0].mxu0
    %v3200 = vadd.f32 %v2735, %v3199
    %v3201 = vpop.f32.mrb[0].mxu0
    %3202 = vmatprep.mubr.f32.mxu0 0.0
    %v3203 = vand.u32 %v62, 4294901760
    %3204 = vmatmul.mubr.f32.gmra.mrb[0].mxu0 %v3203
    %v3205 = vpop.f32.mrb[0].mxu0
    %v3206 = vadd.f32 %v2741, %v3205
    %v3207 = vpop.f32.mrb[0].mxu0
    %3208 = vmatprep.mubr.f32.mxu0 0.0
    %v3209 = vand.u32 %v63, 4294901760
    %3210 = vmatmul.mubr.f32.gmra.mrb[0].mxu0 %v3209
    %v3211 = vpop.f32.mrb[0].mxu0
    %v3212 = vadd.f32 %v2747, %v3211
    %v3213 = vpop.f32.mrb[0].mxu0
    %3214 = vmatprep.mubr.f32.mxu0 0.0
    %v3215 = vand.u32 %v64, 4294901760
    %3216 = vmatmul.mubr.f32.gmra.mrb[0].mxu0 %v3215
    %v3217 = vpop.f32.mrb[0].mxu0
    %v3218 = vadd.f32 %v2753, %v3217
    %v3219 = vpop.f32.mrb[0].mxu0
    %3220 = vmatprep.mubr.f32.mxu0 0.0
    %v3221 = vand.u32 %v65, 4294901760
    %3222 = vmatmul.mubr.f32.gmra.mrb[0].mxu0 %v3221
    %v3223 = vpop.f32.mrb[0].mxu0
    %v3224 = vadd.f32 %v2759, %v3223
    %v3225 = vpop.f32.mrb[0].mxu0
    %3226 = vmatprep.mubr.f32.mxu0 0.0
    %v3227 = vand.u32 %v66, 4294901760
    %3228 = vmatmul.mubr.f32.gmra.mrb[0].mxu0 %v3227
    %v3229 = vpop.f32.mrb[0].mxu0
    %v3230 = vadd.f32 %v2765, %v3229
    %v3231 = vpop.f32.mrb[0].mxu0
    %3232 = vmatprep.mubr.f32.mxu0 0.0
    %v3233 = vand.u32 %v67, 4294901760
    %3234 = vmatmul.mubr.f32.gmra.mrb[0].mxu0 %v3233
    %v3235 = vpop.f32.mrb[0].mxu0
    %v3236 = vadd.f32 %v2771, %v3235
    %v3237 = vpop.f32.mrb[0].mxu0
    %3238 = vmatprep.mubr.f32.mxu0 0.0
    %v3239 = vand.u32 %v68, 4294901760
    %3240 = vmatmul.mubr.f32.gmra.mrb[0].mxu0 %v3239
    %v3241 = vpop.f32.mrb[0].mxu0
    %v3242 = vadd.f32 %v2777, %v3241
    %v3243 = vpop.f32.mrb[0].mxu0
    %3244 = vmatprep.mubr.f32.mxu0 0.0
    %v3245 = vand.u32 %v69, 4294901760
    %3246 = vmatmul.mubr.f32.gmra.mrb[0].mxu0 %v3245
    %v3247 = vpop.f32.mrb[0].mxu0
    %v3248 = vadd.f32 %v2783, %v3247
    %v3249 = vpop.f32.mrb[0].mxu0
    %3250 = vmatprep.mubr.f32.mxu0 0.0
    %v3251 = vand.u32 %v70, 4294901760
    %3252 = vmatmul.mubr.f32.gmra.mrb[0].mxu0 %v3251
    %v3253 = vpop.f32.mrb[0].mxu0
    %v3254 = vadd.f32 %v2789, %v3253
    %v3255 = vpop.f32.mrb[0].mxu0
    %3256 = vmatprep.mubr.f32.mxu0 0.0
    %v3257 = vand.u32 %v71, 4294901760
    %3258 = vmatmul.mubr.f32.gmra.mrb[0].mxu0 %v3257
    %v3259 = vpop.f32.mrb[0].mxu0
    %v3260 = vadd.f32 %v2795, %v3259
    %v3261 = vpop.f32.mrb[0].mxu0
    %3262 = vmatprep.mubr.f32.mxu0 0.0
    %v3263 = vand.u32 %v72, 4294901760
    %3264 = vmatmul.mubr.f32.gmra.mrb[0].mxu0 %v3263
    %v3265 = vpop.f32.mrb[0].mxu0
    %v3266 = vadd.f32 %v2801, %v3265
    %v3267 = vpop.f32.mrb[0].mxu0
    %3268 = vmatprep.mubr.f32.mxu0 0.0
    %v3269 = vand.u32 %v73, 4294901760
    %3270 = vmatmul.mubr.f32.gmra.mrb[0].mxu0 %v3269
    %v3271 = vpop.f32.mrb[0].mxu0
    %v3272 = vadd.f32 %v2807, %v3271
    %v3273 = vpop.f32.mrb[0].mxu0
    %3274 = vmatprep.mubr.f32.mxu0 0.0
    %v3275 = vand.u32 %v74, 4294901760
    %3276 = vmatmul.mubr.f32.gmra.mrb[0].mxu0 %v3275
    %v3277 = vpop.f32.mrb[0].mxu0
    %v3278 = vadd.f32 %v2813, %v3277
    %v3279 = vpop.f32.mrb[0].mxu0
    %3280 = vmatprep.mubr.f32.mxu0 0.0
    %v3281 = vand.u32 %v75, 4294901760
    %3282 = vmatmul.mubr.f32.gmra.mrb[0].mxu0 %v3281
    %v3283 = vpop.f32.mrb[0].mxu0
    %v3284 = vadd.f32 %v2819, %v3283
    %v3285 = vpop.f32.mrb[0].mxu0
    %3286 = vmatprep.mubr.f32.mxu0 0.0
    %v3287 = vand.u32 %v76, 4294901760
    %3288 = vmatmul.mubr.f32.gmra.mrb[0].mxu0 %v3287
    %v3289 = vpop.f32.mrb[0].mxu0
    %v3290 = vadd.f32 %v2825, %v3289
    %v3291 = vpop.f32.mrb[0].mxu0
    %3292 = vmatprep.mubr.f32.mxu0 0.0
    %v3293 = vand.u32 %v77, 4294901760
    %3294 = vmatmul.mubr.f32.gmra.mrb[0].mxu0 %v3293
    %v3295 = vpop.f32.mrb[0].mxu0
    %v3296 = vadd.f32 %v2831, %v3295
    %v3297 = vpop.f32.mrb[0].mxu0
    %3298 = vmatprep.mubr.f32.mxu0 0.0
    %v3299 = vand.u32 %v78, 4294901760
    %3300 = vmatmul.mubr.f32.gmra.mrb[0].mxu0 %v3299
    %v3301 = vpop.f32.mrb[0].mxu0
    %v3302 = vadd.f32 %v2837, %v3301
    %v3303 = vpop.f32.mrb[0].mxu0
    %3304 = vmatprep.mubr.f32.mxu0 0.0
    %v3305 = vand.u32 %v79, 4294901760
    %3306 = vmatmul.mubr.f32.gmra.mrb[0].mxu0 %v3305
    %v3307 = vpop.f32.mrb[0].mxu0
    %v3308 = vadd.f32 %v2843, %v3307
    %v3309 = vpop.f32.mrb[0].mxu0
    %3310 = vmatprep.mubr.f32.mxu0 0.0
    %v3311 = vand.u32 %v80, 4294901760
    %3312 = vmatmul.mubr.f32.gmra.mrb[0].mxu0 %v3311
    %v3313 = vpop.f32.mrb[0].mxu0
    %v3314 = vadd.f32 %v2849, %v3313
    %v3315 = vpop.f32.mrb[0].mxu0
    %3316 = vmatprep.mubr.f32.mxu0 0.0
    %v3317 = vand.u32 %v81, 4294901760
    %3318 = vmatmul.mubr.f32.gmra.mrb[0].mxu0 %v3317
    %v3319 = vpop.f32.mrb[0].mxu0
    %v3320 = vadd.f32 %v2855, %v3319
    %v3321 = vpop.f32.mrb[0].mxu0
    %3322 = vmatprep.mubr.f32.mxu0 0.0
    %v3323 = vand.u32 %v82, 4294901760
    %3324 = vmatmul.mubr.f32.gmra.mrb[0].mxu0 %v3323
    %v3325 = vpop.f32.mrb[0].mxu0
    %v3326 = vadd.f32 %v2861, %v3325
    %v3327 = vpop.f32.mrb[0].mxu0
    %3328 = vmatprep.mubr.f32.mxu0 0.0
    %v3329 = vand.u32 %v83, 4294901760
    %3330 = vmatmul.mubr.f32.gmra.mrb[0].mxu0 %v3329
    %v3331 = vpop.f32.mrb[0].mxu0
    %v3332 = vadd.f32 %v2867, %v3331
    %v3333 = vpop.f32.mrb[0].mxu0
    %3334 = vmatprep.mubr.f32.mxu0 0.0
    %v3335 = vand.u32 %v84, 4294901760
    %3336 = vmatmul.mubr.f32.gmra.mrb[0].mxu0 %v3335
    %v3337 = vpop.f32.mrb[0].mxu0
    %v3338 = vadd.f32 %v2873, %v3337
    %v3339 = vpop.f32.mrb[0].mxu0
    %3340 = vmatprep.mubr.f32.mxu0 0.0
    %v3341 = vand.u32 %v85, 4294901760
    %3342 = vmatmul.mubr.f32.gmra.mrb[0].mxu0 %v3341
    %v3343 = vpop.f32.mrb[0].mxu0
    %v3344 = vadd.f32 %v2879, %v3343
    %v3345 = vpop.f32.mrb[0].mxu0
    %3346 = vmatprep.mubr.f32.mxu0 0.0
    %v3347 = vand.u32 %v86, 4294901760
    %3348 = vmatmul.mubr.f32.gmra.mrb[0].mxu0 %v3347
    %v3349 = vpop.f32.mrb[0].mxu0
    %v3350 = vadd.f32 %v2885, %v3349
    %v3351 = vpop.f32.mrb[0].mxu0
    %3352 = vmatprep.mubr.f32.mxu0 0.0
    %v3353 = vand.u32 %v87, 4294901760
    %3354 = vmatmul.mubr.f32.gmra.mrb[0].mxu0 %v3353
    %v3355 = vpop.f32.mrb[0].mxu0
    %v3356 = vadd.f32 %v2891, %v3355
    %v3357 = vpop.f32.mrb[0].mxu0
    %3358 = vmatprep.mubr.f32.mxu0 0.0
    %v3359 = vand.u32 %v88, 4294901760
    %3360 = vmatmul.mubr.f32.gmra.mrb[0].mxu0 %v3359
    %v3361 = vpop.f32.mrb[0].mxu0
    %v3362 = vadd.f32 %v2897, %v3361
    %v3363 = vpop.f32.mrb[0].mxu0
    %3364 = vmatprep.mubr.f32.mxu0 0.0
    %v3365 = vand.u32 %v89, 4294901760
    %3366 = vmatmul.mubr.f32.gmra.mrb[0].mxu0 %v3365
    %v3367 = vpop.f32.mrb[0].mxu0
    %v3368 = vadd.f32 %v2903, %v3367
    %v3369 = vpop.f32.mrb[0].mxu0
    %3370 = vmatprep.mubr.f32.mxu0 0.0
    %v3371 = vand.u32 %v90, 4294901760
    %3372 = vmatmul.mubr.f32.gmra.mrb[0].mxu0 %v3371
    %v3373 = vpop.f32.mrb[0].mxu0
    %v3374 = vadd.f32 %v2909, %v3373
    %v3375 = vpop.f32.mrb[0].mxu0
    %3376 = vmatprep.mubr.f32.mxu0 0.0
    %v3377 = vand.u32 %v91, 4294901760
    %3378 = vmatmul.mubr.f32.gmra.mrb[0].mxu0 %v3377
    %v3379 = vpop.f32.mrb[0].mxu0
    %v3380 = vadd.f32 %v2915, %v3379
    %v3381 = vpop.f32.mrb[0].mxu0
    %3382 = vmatprep.mubr.f32.mxu0 0.0
    %v3383 = vand.u32 %v92, 4294901760
    %3384 = vmatmul.mubr.f32.gmra.mrb[0].mxu0 %v3383
    %v3385 = vpop.f32.mrb[0].mxu0
    %v3386 = vadd.f32 %v2921, %v3385
    %v3387 = vpop.f32.mrb[0].mxu0
    %3388 = vmatprep.mubr.f32.mxu0 0.0
    %v3389 = vand.u32 %v93, 4294901760
    %3390 = vmatmul.mubr.f32.gmra.mrb[0].mxu0 %v3389
    %v3391 = vpop.f32.mrb[0].mxu0
    %v3392 = vadd.f32 %v2927, %v3391
    %v3393 = vpop.f32.mrb[0].mxu0
    %3394 = vmatprep.mubr.f32.mxu0 0.0
    %v3395 = vand.u32 %v94, 4294901760
    %3396 = vmatmul.mubr.f32.gmra.mrb[0].mxu0 %v3395
    %v3397 = vpop.f32.mrb[0].mxu0
    %v3398 = vadd.f32 %v2933, %v3397
    %v3399 = vpop.f32.mrb[0].mxu0
    %3400 = vmatprep.mubr.f32.mxu0 0.0
    %v3401 = vand.u32 %v95, 4294901760
    %3402 = vmatmul.mubr.f32.gmra.mrb[0].mxu0 %v3401
    %v3403 = vpop.f32.mrb[0].mxu0
    %v3404 = vadd.f32 %v2939, %v3403
    %v3405 = vpop.f32.mrb[0].mxu0
    %3406 = vmatprep.mubr.f32.mxu0 0.0
    %v3407 = vand.u32 %v96, 4294901760
    %3408 = vmatmul.mubr.f32.gmra.mrb[0].mxu0 %v3407
    %v3409 = vpop.f32.mrb[0].mxu0
    %v3410 = vadd.f32 %v2945, %v3409
    %v3411 = vpop.f32.mrb[0].mxu0
    %3412 = vmatprep.mubr.f32.mxu0 0.0
    %v3413 = vand.u32 %v97, 4294901760
    %3414 = vmatmul.mubr.f32.gmra.mrb[0].mxu0 %v3413
    %v3415 = vpop.f32.mrb[0].mxu0
    %v3416 = vadd.f32 %v2951, %v3415
    %v3417 = vpop.f32.mrb[0].mxu0
    %3418 = vmatprep.mubr.f32.mxu0 0.0
    %v3419 = vand.u32 %v98, 4294901760
    %3420 = vmatmul.mubr.f32.gmra.mrb[0].mxu0 %v3419
    %v3421 = vpop.f32.mrb[0].mxu0
    %v3422 = vadd.f32 %v2957, %v3421
    %v3423 = vpop.f32.mrb[0].mxu0
    %3424 = vmatprep.mubr.f32.mxu0 0.0
    %v3425 = vand.u32 %v99, 4294901760
    %3426 = vmatmul.mubr.f32.gmra.mrb[0].mxu0 %v3425
    %v3427 = vpop.f32.mrb[0].mxu0
    %v3428 = vadd.f32 %v2963, %v3427
    %v3429 = vpop.f32.mrb[0].mxu0
    %3430 = vmatprep.mubr.f32.mxu0 0.0
    %v3431 = vand.u32 %v100, 4294901760
    %3432 = vmatmul.mubr.f32.gmra.mrb[0].mxu0 %v3431
    %v3433 = vpop.f32.mrb[0].mxu0
    %v3434 = vadd.f32 %v2969, %v3433
    %v3435 = vpop.f32.mrb[0].mxu0
    %3436 = vmatprep.mubr.f32.mxu0 0.0
    %v3437 = vand.u32 %v101, 4294901760
    %3438 = vmatmul.mubr.f32.gmra.mrb[0].mxu0 %v3437
    %v3439 = vpop.f32.mrb[0].mxu0
    %v3440 = vadd.f32 %v2975, %v3439
    %v3441 = vpop.f32.mrb[0].mxu0
    %3442 = vmatprep.mubr.f32.mxu0 0.0
    %v3443 = vand.u32 %v102, 4294901760
    %3444 = vmatmul.mubr.f32.gmra.mrb[0].mxu0 %v3443
    %v3445 = vpop.f32.mrb[0].mxu0
    %v3446 = vadd.f32 %v2981, %v3445
    %v3447 = vpop.f32.mrb[0].mxu0
    %3448 = vmatprep.mubr.f32.mxu0 0.0
    %v3449 = vand.u32 %v103, 4294901760
    %3450 = vmatmul.mubr.f32.gmra.mrb[0].mxu0 %v3449
    %v3451 = vpop.f32.mrb[0].mxu0
    %v3452 = vadd.f32 %v2987, %v3451
    %v3453 = vpop.f32.mrb[0].mxu0
    %3454 = vmatprep.mubr.f32.mxu0 0.0
    %v3455 = vand.u32 %v104, 4294901760
    %3456 = vmatmul.mubr.f32.gmra.mrb[0].mxu0 %v3455
    %v3457 = vpop.f32.mrb[0].mxu0
    %v3458 = vadd.f32 %v2993, %v3457
    %v3459 = vpop.f32.mrb[0].mxu0
    %3460 = vmatprep.mubr.f32.mxu0 0.0
    %v3461 = vand.u32 %v105, 4294901760
    %3462 = vmatmul.mubr.f32.gmra.mrb[0].mxu0 %v3461
    %v3463 = vpop.f32.mrb[0].mxu0
    %v3464 = vadd.f32 %v2999, %v3463
    %v3465 = vpop.f32.mrb[0].mxu0
    %3466 = vmatprep.mubr.f32.mxu0 0.0
    %v3467 = vand.u32 %v106, 4294901760
    %3468 = vmatmul.mubr.f32.gmra.mrb[0].mxu0 %v3467
    %v3469 = vpop.f32.mrb[0].mxu0
    %v3470 = vadd.f32 %v3005, %v3469
    %v3471 = vpop.f32.mrb[0].mxu0
    %3472 = vdwg.mxu0
    %p3473 = scmp.eq.s32.totalorder 0, 0
    // Predicated region
    $region22: #{tpu_custom_call.1} parent=1 // pred_check
      %p3474 = pneg %p3473
    $region23: #{tpu_custom_call.1} parent=1 // pred_check_branch
      %3476 = sbr.rel (%p3474) target = $region25
    $region24: #{tpu_custom_call.1} parent=1 // pred_region
      %v3477 = vld [vmem:[%s2] sm:$0x1]
      %v3479 = vlaneseq
      %v3480 = vshrl.u32 %v3479, 7
      %v3481 = vsub.s32 0, %v3480
      %v3482 = vrot.slane %v3477, %v3481
      %v3484 = vadd.f32 %v3092, %v3482
      %v3485 = vadd.f32 %v3098, %v3482
      %v3486 = vadd.f32 %v3104, %v3482
      %v3487 = vadd.f32 %v3110, %v3482
      %v3488 = vadd.f32 %v3116, %v3482
      %v3489 = vadd.f32 %v3122, %v3482
      %v3490 = vadd.f32 %v3128, %v3482
      %v3491 = vadd.f32 %v3134, %v3482
      %v3492 = vadd.f32 %v3140, %v3482
      %v3493 = vadd.f32 %v3146, %v3482
      %v3494 = vadd.f32 %v3152, %v3482
      %v3495 = vadd.f32 %v3158, %v3482
      %v3496 = vadd.f32 %v3164, %v3482
      %v3497 = vadd.f32 %v3170, %v3482
      %v3498 = vadd.f32 %v3176, %v3482
      %v3499 = vadd.f32 %v3182, %v3482
      %v3500 = vadd.f32 %v3188, %v3482
      %v3501 = vadd.f32 %v3194, %v3482
      %v3502 = vadd.f32 %v3200, %v3482
      %v3503 = vadd.f32 %v3206, %v3482
      %v3504 = vadd.f32 %v3212, %v3482
      %v3505 = vadd.f32 %v3218, %v3482
      %v3506 = vadd.f32 %v3224, %v3482
      %v3507 = vadd.f32 %v3230, %v3482
      %v3508 = vadd.f32 %v3236, %v3482
      %v3509 = vadd.f32 %v3242, %v3482
      %v3510 = vadd.f32 %v3248, %v3482
      %v3511 = vadd.f32 %v3254, %v3482
      %v3512 = vadd.f32 %v3260, %v3482
      %v3513 = vadd.f32 %v3266, %v3482
      %v3514 = vadd.f32 %v3272, %v3482
      %v3515 = vadd.f32 %v3278, %v3482
      %v3516 = vadd.f32 %v3284, %v3482
      %v3517 = vadd.f32 %v3290, %v3482
      %v3518 = vadd.f32 %v3296, %v3482
      %v3519 = vadd.f32 %v3302, %v3482
      %v3520 = vadd.f32 %v3308, %v3482
      %v3521 = vadd.f32 %v3314, %v3482
      %v3522 = vadd.f32 %v3320, %v3482
      %v3523 = vadd.f32 %v3326, %v3482
      %v3524 = vadd.f32 %v3332, %v3482
      %v3525 = vadd.f32 %v3338, %v3482
      %v3526 = vadd.f32 %v3344, %v3482
      %v3527 = vadd.f32 %v3350, %v3482
      %v3528 = vadd.f32 %v3356, %v3482
      %v3529 = vadd.f32 %v3362, %v3482
      %v3530 = vadd.f32 %v3368, %v3482
      %v3531 = vadd.f32 %v3374, %v3482
      %v3532 = vadd.f32 %v3380, %v3482
      %v3533 = vadd.f32 %v3386, %v3482
      %v3534 = vadd.f32 %v3392, %v3482
      %v3535 = vadd.f32 %v3398, %v3482
      %v3536 = vadd.f32 %v3404, %v3482
      %v3537 = vadd.f32 %v3410, %v3482
      %v3538 = vadd.f32 %v3416, %v3482
      %v3539 = vadd.f32 %v3422, %v3482
      %v3540 = vadd.f32 %v3428, %v3482
      %v3541 = vadd.f32 %v3434, %v3482
      %v3542 = vadd.f32 %v3440, %v3482
      %v3543 = vadd.f32 %v3446, %v3482
      %v3544 = vadd.f32 %v3452, %v3482
      %v3545 = vadd.f32 %v3458, %v3482
      %v3546 = vadd.f32 %v3464, %v3482
      %v3547 = vadd.f32 %v3470, %v3482
      %3548 = vst [vmem:[#allocation7] sm:$0xff] %v3484
      %3549 = vst [vmem:[#allocation7 + $0x8] sm:$0xff] %v3485
      %3550 = vst [vmem:[#allocation7 + $0x10] sm:$0xff] %v3486
      %3551 = vst [vmem:[#allocation7 + $0x18] sm:$0xff] %v3487
      %3552 = vst [vmem:[#allocation7 + $0x20] sm:$0xff] %v3488
      %3553 = vst [vmem:[#allocation7 + $0x28] sm:$0xff] %v3489
      %3554 = vst [vmem:[#allocation7 + $0x30] sm:$0xff] %v3490
      %3555 = vst [vmem:[#allocation7 + $0x38] sm:$0xff] %v3491
      %3556 = vst [vmem:[#allocation7 + $0x40] sm:$0xff] %v3492
      %3557 = vst [vmem:[#allocation7 + $0x48] sm:$0xff] %v3493
      %3558 = vst [vmem:[#allocation7 + $0x50] sm:$0xff] %v3494
      %3559 = vst [vmem:[#allocation7 + $0x58] sm:$0xff] %v3495
      %3560 = vst [vmem:[#allocation7 + $0x60] sm:$0xff] %v3496
      %3561 = vst [vmem:[#allocation7 + $0x68] sm:$0xff] %v3497
      %3562 = vst [vmem:[#allocation7 + $0x70] sm:$0xff] %v3498
      %3563 = vst [vmem:[#allocation7 + $0x78] sm:$0xff] %v3499
      %3564 = vst [vmem:[#allocation7 + $0x80] sm:$0xff] %v3500
      %3565 = vst [vmem:[#allocation7 + $0x88] sm:$0xff] %v3501
      %3566 = vst [vmem:[#allocation7 + $0x90] sm:$0xff] %v3502
      %3567 = vst [vmem:[#allocation7 + $0x98] sm:$0xff] %v3503
      %3568 = vst [vmem:[#allocation7 + $0xa0] sm:$0xff] %v3504
      %3569 = vst [vmem:[#allocation7 + $0xa8] sm:$0xff] %v3505
      %3570 = vst [vmem:[#allocation7 + $0xb0] sm:$0xff] %v3506
      %3571 = vst [vmem:[#allocation7 + $0xb8] sm:$0xff] %v3507
      %3572 = vst [vmem:[#allocation7 + $0xc0] sm:$0xff] %v3508
      %3573 = vst [vmem:[#allocation7 + $0xc8] sm:$0xff] %v3509
      %3574 = vst [vmem:[#allocation7 + $0xd0] sm:$0xff] %v3510
      %3575 = vst [vmem:[#allocation7 + $0xd8] sm:$0xff] %v3511
      %3576 = vst [vmem:[#allocation7 + $0xe0] sm:$0xff] %v3512
      %3577 = vst [vmem:[#allocation7 + $0xe8] sm:$0xff] %v3513
      %3578 = vst [vmem:[#allocation7 + $0xf0] sm:$0xff] %v3514
      %3579 = vst [vmem:[#allocation7 + $0xf8] sm:$0xff] %v3515
      %3580 = vst [vmem:[#allocation7 + $0x100] sm:$0xff] %v3516
      %3581 = vst [vmem:[#allocation7 + $0x108] sm:$0xff] %v3517
      %3582 = vst [vmem:[#allocation7 + $0x110] sm:$0xff] %v3518
      %3583 = vst [vmem:[#allocation7 + $0x118] sm:$0xff] %v3519
      %3584 = vst [vmem:[#allocation7 + $0x120] sm:$0xff] %v3520
      %3585 = vst [vmem:[#allocation7 + $0x128] sm:$0xff] %v3521
      %3586 = vst [vmem:[#allocation7 + $0x130] sm:$0xff] %v3522
      %3587 = vst [vmem:[#allocation7 + $0x138] sm:$0xff] %v3523
      %3588 = vst [vmem:[#allocation7 + $0x140] sm:$0xff] %v3524
      %3589 = vst [vmem:[#allocation7 + $0x148] sm:$0xff] %v3525
      %3590 = vst [vmem:[#allocation7 + $0x150] sm:$0xff] %v3526
      %3591 = vst [vmem:[#allocation7 + $0x158] sm:$0xff] %v3527
      %3592 = vst [vmem:[#allocation7 + $0x160] sm:$0xff] %v3528
      %3593 = vst [vmem:[#allocation7 + $0x168] sm:$0xff] %v3529
      %3594 = vst [vmem:[#allocation7 + $0x170] sm:$0xff] %v3530
      %3595 = vst [vmem:[#allocation7 + $0x178] sm:$0xff] %v3531
      %3596 = vst [vmem:[#allocation7 + $0x180] sm:$0xff] %v3532
      %3597 = vst [vmem:[#allocation7 + $0x188] sm:$0xff] %v3533
      %3598 = vst [vmem:[#allocation7 + $0x190] sm:$0xff] %v3534
      %3599 = vst [vmem:[#allocation7 + $0x198] sm:$0xff] %v3535
      %3600 = vst [vmem:[#allocation7 + $0x1a0] sm:$0xff] %v3536
      %3601 = vst [vmem:[#allocation7 + $0x1a8] sm:$0xff] %v3537
      %3602 = vst [vmem:[#allocation7 + $0x1b0] sm:$0xff] %v3538
      %3603 = vst [vmem:[#allocation7 + $0x1b8] sm:$0xff] %v3539
      %3604 = vst [vmem:[#allocation7 + $0x1c0] sm:$0xff] %v3540
      %3605 = vst [vmem:[#allocation7 + $0x1c8] sm:$0xff] %v3541
      %3606 = vst [vmem:[#allocation7 + $0x1d0] sm:$0xff] %v3542
      %3607 = vst [vmem:[#allocation7 + $0x1d8] sm:$0xff] %v3543
      %3608 = vst [vmem:[#allocation7 + $0x1e0] sm:$0xff] %v3544
      %3609 = vst [vmem:[#allocation7 + $0x1e8] sm:$0xff] %v3545
      %3610 = vst [vmem:[#allocation7 + $0x1f0] sm:$0xff] %v3546
      %3611 = vst [vmem:[#allocation7 + $0x1f8] sm:$0xff] %v3547
    $region25: #{tpu_custom_call.1} parent=1 // pred_fallthru
      _
    %p3612 = scmp.gt.s32.totalorder 0, 0
    // Predicated region
    $region26: #{tpu_custom_call.1} parent=1 // pred_check
      %p3613 = pneg %p3612
    $region27: #{tpu_custom_call.1} parent=1 // pred_check_branch
      %3615 = sbr.rel (%p3613) target = $region29
    $region28: #{tpu_custom_call.1} parent=1 // pred_region
      %v3616 = vld [vmem:[#allocation7] sm:$0xff]
      %v3617 = vld [vmem:[#allocation7 + $0x8] sm:$0xff]
      %v3618 = vld [vmem:[#allocation7 + $0x10] sm:$0xff]
      %v3619 = vld [vmem:[#allocation7 + $0x18] sm:$0xff]
      %v3620 = vld [vmem:[#allocation7 + $0x20] sm:$0xff]
      %v3621 = vld [vmem:[#allocation7 + $0x28] sm:$0xff]
      %v3622 = vld [vmem:[#allocation7 + $0x30] sm:$0xff]
      %v3623 = vld [vmem:[#allocation7 + $0x38] sm:$0xff]
      %v3624 = vld [vmem:[#allocation7 + $0x40] sm:$0xff]
      %v3625 = vld [vmem:[#allocation7 + $0x48] sm:$0xff]
      %v3626 = vld [vmem:[#allocation7 + $0x50] sm:$0xff]
      %v3627 = vld [vmem:[#allocation7 + $0x58] sm:$0xff]
      %v3628 = vld [vmem:[#allocation7 + $0x60] sm:$0xff]
      %v3629 = vld [vmem:[#allocation7 + $0x68] sm:$0xff]
      %v3630 = vld [vmem:[#allocation7 + $0x70] sm:$0xff]
      %v3631 = vld [vmem:[#allocation7 + $0x78] sm:$0xff]
      %v3632 = vld [vmem:[#allocation7 + $0x80] sm:$0xff]
      %v3633 = vld [vmem:[#allocation7 + $0x88] sm:$0xff]
      %v3634 = vld [vmem:[#allocation7 + $0x90] sm:$0xff]
      %v3635 = vld [vmem:[#allocation7 + $0x98] sm:$0xff]
      %v3636 = vld [vmem:[#allocation7 + $0xa0] sm:$0xff]
      %v3637 = vld [vmem:[#allocation7 + $0xa8] sm:$0xff]
      %v3638 = vld [vmem:[#allocation7 + $0xb0] sm:$0xff]
      %v3639 = vld [vmem:[#allocation7 + $0xb8] sm:$0xff]
      %v3640 = vld [vmem:[#allocation7 + $0xc0] sm:$0xff]
      %v3641 = vld [vmem:[#allocation7 + $0xc8] sm:$0xff]
      %v3642 = vld [vmem:[#allocation7 + $0xd0] sm:$0xff]
      %v3643 = vld [vmem:[#allocation7 + $0xd8] sm:$0xff]
      %v3644 = vld [vmem:[#allocation7 + $0xe0] sm:$0xff]
      %v3645 = vld [vmem:[#allocation7 + $0xe8] sm:$0xff]
      %v3646 = vld [vmem:[#allocation7 + $0xf0] sm:$0xff]
      %v3647 = vld [vmem:[#allocation7 + $0xf8] sm:$0xff]
      %v3648 = vld [vmem:[#allocation7 + $0x100] sm:$0xff]
      %v3649 = vld [vmem:[#allocation7 + $0x108] sm:$0xff]
      %v3650 = vld [vmem:[#allocation7 + $0x110] sm:$0xff]
      %v3651 = vld [vmem:[#allocation7 + $0x118] sm:$0xff]
      %v3652 = vld [vmem:[#allocation7 + $0x120] sm:$0xff]
      %v3653 = vld [vmem:[#allocation7 + $0x128] sm:$0xff]
      %v3654 = vld [vmem:[#allocation7 + $0x130] sm:$0xff]
      %v3655 = vld [vmem:[#allocation7 + $0x138] sm:$0xff]
      %v3656 = vld [vmem:[#allocation7 + $0x140] sm:$0xff]
      %v3657 = vld [vmem:[#allocation7 + $0x148] sm:$0xff]
      %v3658 = vld [vmem:[#allocation7 + $0x150] sm:$0xff]
      %v3659 = vld [vmem:[#allocation7 + $0x158] sm:$0xff]
      %v3660 = vld [vmem:[#allocation7 + $0x160] sm:$0xff]
      %v3661 = vld [vmem:[#allocation7 + $0x168] sm:$0xff]
      %v3662 = vld [vmem:[#allocation7 + $0x170] sm:$0xff]
      %v3663 = vld [vmem:[#allocation7 + $0x178] sm:$0xff]
      %v3664 = vld [vmem:[#allocation7 + $0x180] sm:$0xff]
      %v3665 = vld [vmem:[#allocation7 + $0x188] sm:$0xff]
      %v3666 = vld [vmem:[#allocation7 + $0x190] sm:$0xff]
      %v3667 = vld [vmem:[#allocation7 + $0x198] sm:$0xff]
      %v3668 = vld [vmem:[#allocation7 + $0x1a0] sm:$0xff]
      %v3669 = vld [vmem:[#allocation7 + $0x1a8] sm:$0xff]
      %v3670 = vld [vmem:[#allocation7 + $0x1b0] sm:$0xff]
      %v3671 = vld [vmem:[#allocation7 + $0x1b8] sm:$0xff]
      %v3672 = vld [vmem:[#allocation7 + $0x1c0] sm:$0xff]
      %v3673 = vld [vmem:[#allocation7 + $0x1c8] sm:$0xff]
      %v3674 = vld [vmem:[#allocation7 + $0x1d0] sm:$0xff]
      %v3675 = vld [vmem:[#allocation7 + $0x1d8] sm:$0xff]
      %v3676 = vld [vmem:[#allocation7 + $0x1e0] sm:$0xff]
      %v3677 = vld [vmem:[#allocation7 + $0x1e8] sm:$0xff]
      %v3678 = vld [vmem:[#allocation7 + $0x1f0] sm:$0xff]
      %v3679 = vld [vmem:[#allocation7 + $0x1f8] sm:$0xff]
      %v3680 = vadd.f32 %v3616, %v3092
      %v3681 = vadd.f32 %v3617, %v3098
      %v3682 = vadd.f32 %v3618, %v3104
      %v3683 = vadd.f32 %v3619, %v3110
      %v3684 = vadd.f32 %v3620, %v3116
      %v3685 = vadd.f32 %v3621, %v3122
      %v3686 = vadd.f32 %v3622, %v3128
      %v3687 = vadd.f32 %v3623, %v3134
      %v3688 = vadd.f32 %v3624, %v3140
      %v3689 = vadd.f32 %v3625, %v3146
      %v3690 = vadd.f32 %v3626, %v3152
      %v3691 = vadd.f32 %v3627, %v3158
      %v3692 = vadd.f32 %v3628, %v3164
      %v3693 = vadd.f32 %v3629, %v3170
      %v3694 = vadd.f32 %v3630, %v3176
      %v3695 = vadd.f32 %v3631, %v3182
      %v3696 = vadd.f32 %v3632, %v3188
      %v3697 = vadd.f32 %v3633, %v3194
      %v3698 = vadd.f32 %v3634, %v3200
      %v3699 = vadd.f32 %v3635, %v3206
      %v3700 = vadd.f32 %v3636, %v3212
      %v3701 = vadd.f32 %v3637, %v3218
      %v3702 = vadd.f32 %v3638, %v3224
      %v3703 = vadd.f32 %v3639, %v3230
      %v3704 = vadd.f32 %v3640, %v3236
      %v3705 = vadd.f32 %v3641, %v3242
      %v3706 = vadd.f32 %v3642, %v3248
      %v3707 = vadd.f32 %v3643, %v3254
      %v3708 = vadd.f32 %v3644, %v3260
      %v3709 = vadd.f32 %v3645, %v3266
      %v3710 = vadd.f32 %v3646, %v3272
      %v3711 = vadd.f32 %v3647, %v3278
      %v3712 = vadd.f32 %v3648, %v3284
      %v3713 = vadd.f32 %v3649, %v3290
      %v3714 = vadd.f32 %v3650, %v3296
      %v3715 = vadd.f32 %v3651, %v3302
      %v3716 = vadd.f32 %v3652, %v3308
      %v3717 = vadd.f32 %v3653, %v3314
      %v3718 = vadd.f32 %v3654, %v3320
      %v3719 = vadd.f32 %v3655, %v3326
      %v3720 = vadd.f32 %v3656, %v3332
      %v3721 = vadd.f32 %v3657, %v3338
      %v3722 = vadd.f32 %v3658, %v3344
      %v3723 = vadd.f32 %v3659, %v3350
      %v3724 = vadd.f32 %v3660, %v3356
      %v3725 = vadd.f32 %v3661, %v3362
      %v3726 = vadd.f32 %v3662, %v3368
      %v3727 = vadd.f32 %v3663, %v3374
      %v3728 = vadd.f32 %v3664, %v3380
      %v3729 = vadd.f32 %v3665, %v3386
      %v3730 = vadd.f32 %v3666, %v3392
      %v3731 = vadd.f32 %v3667, %v3398
      %v3732 = vadd.f32 %v3668, %v3404
      %v3733 = vadd.f32 %v3669, %v3410
      %v3734 = vadd.f32 %v3670, %v3416
      %v3735 = vadd.f32 %v3671, %v3422
      %v3736 = vadd.f32 %v3672, %v3428
      %v3737 = vadd.f32 %v3673, %v3434
      %v3738 = vadd.f32 %v3674, %v3440
      %v3739 = vadd.f32 %v3675, %v3446
      %v3740 = vadd.f32 %v3676, %v3452
      %v3741 = vadd.f32 %v3677, %v3458
      %v3742 = vadd.f32 %v3678, %v3464
      %v3743 = vadd.f32 %v3679, %v3470
      %3744 = vst [vmem:[#allocation7] sm:$0xff] %v3680
      %3745 = vst [vmem:[#allocation7 + $0x8] sm:$0xff] %v3681
      %3746 = vst [vmem:[#allocation7 + $0x10] sm:$0xff] %v3682
      %3747 = vst [vmem:[#allocation7 + $0x18] sm:$0xff] %v3683
      %3748 = vst [vmem:[#allocation7 + $0x20] sm:$0xff] %v3684
      %3749 = vst [vmem:[#allocation7 + $0x28] sm:$0xff] %v3685
      %3750 = vst [vmem:[#allocation7 + $0x30] sm:$0xff] %v3686
      %3751 = vst [vmem:[#allocation7 + $0x38] sm:$0xff] %v3687
      %3752 = vst [vmem:[#allocation7 + $0x40] sm:$0xff] %v3688
      %3753 = vst [vmem:[#allocation7 + $0x48] sm:$0xff] %v3689
      %3754 = vst [vmem:[#allocation7 + $0x50] sm:$0xff] %v3690
      %3755 = vst [vmem:[#allocation7 + $0x58] sm:$0xff] %v3691
      %3756 = vst [vmem:[#allocation7 + $0x60] sm:$0xff] %v3692
      %3757 = vst [vmem:[#allocation7 + $0x68] sm:$0xff] %v3693
      %3758 = vst [vmem:[#allocation7 + $0x70] sm:$0xff] %v3694
      %3759 = vst [vmem:[#allocation7 + $0x78] sm:$0xff] %v3695
      %3760 = vst [vmem:[#allocation7 + $0x80] sm:$0xff] %v3696
      %3761 = vst [vmem:[#allocation7 + $0x88] sm:$0xff] %v3697
      %3762 = vst [vmem:[#allocation7 + $0x90] sm:$0xff] %v3698
      %3763 = vst [vmem:[#allocation7 + $0x98] sm:$0xff] %v3699
      %3764 = vst [vmem:[#allocation7 + $0xa0] sm:$0xff] %v3700
      %3765 = vst [vmem:[#allocation7 + $0xa8] sm:$0xff] %v3701
      %3766 = vst [vmem:[#allocation7 + $0xb0] sm:$0xff] %v3702
      %3767 = vst [vmem:[#allocation7 + $0xb8] sm:$0xff] %v3703
      %3768 = vst [vmem:[#allocation7 + $0xc0] sm:$0xff] %v3704
      %3769 = vst [vmem:[#allocation7 + $0xc8] sm:$0xff] %v3705
      %3770 = vst [vmem:[#allocation7 + $0xd0] sm:$0xff] %v3706
      %3771 = vst [vmem:[#allocation7 + $0xd8] sm:$0xff] %v3707
      %3772 = vst [vmem:[#allocation7 + $0xe0] sm:$0xff] %v3708
      %3773 = vst [vmem:[#allocation7 + $0xe8] sm:$0xff] %v3709
      %3774 = vst [vmem:[#allocation7 + $0xf0] sm:$0xff] %v3710
      %3775 = vst [vmem:[#allocation7 + $0xf8] sm:$0xff] %v3711
      %3776 = vst [vmem:[#allocation7 + $0x100] sm:$0xff] %v3712
      %3777 = vst [vmem:[#allocation7 + $0x108] sm:$0xff] %v3713
      %3778 = vst [vmem:[#allocation7 + $0x110] sm:$0xff] %v3714
      %3779 = vst [vmem:[#allocation7 + $0x118] sm:$0xff] %v3715
      %3780 = vst [vmem:[#allocation7 + $0x120] sm:$0xff] %v3716
      %3781 = vst [vmem:[#allocation7 + $0x128] sm:$0xff] %v3717
      %3782 = vst [vmem:[#allocation7 + $0x130] sm:$0xff] %v3718
      %3783 = vst [vmem:[#allocation7 + $0x138] sm:$0xff] %v3719
      %3784 = vst [vmem:[#allocation7 + $0x140] sm:$0xff] %v3720
      %3785 = vst [vmem:[#allocation7 + $0x148] sm:$0xff] %v3721
      %3786 = vst [vmem:[#allocation7 + $0x150] sm:$0xff] %v3722
      %3787 = vst [vmem:[#allocation7 + $0x158] sm:$0xff] %v3723
      %3788 = vst [vmem:[#allocation7 + $0x160] sm:$0xff] %v3724
      %3789 = vst [vmem:[#allocation7 + $0x168] sm:$0xff] %v3725
      %3790 = vst [vmem:[#allocation7 + $0x170] sm:$0xff] %v3726
      %3791 = vst [vmem:[#allocation7 + $0x178] sm:$0xff] %v3727
      %3792 = vst [vmem:[#allocation7 + $0x180] sm:$0xff] %v3728
      %3793 = vst [vmem:[#allocation7 + $0x188] sm:$0xff] %v3729
      %3794 = vst [vmem:[#allocation7 + $0x190] sm:$0xff] %v3730
      %3795 = vst [vmem:[#allocation7 + $0x198] sm:$0xff] %v3731
      %3796 = vst [vmem:[#allocation7 + $0x1a0] sm:$0xff] %v3732
      %3797 = vst [vmem:[#allocation7 + $0x1a8] sm:$0xff] %v3733
      %3798 = vst [vmem:[#allocation7 + $0x1b0] sm:$0xff] %v3734
      %3799 = vst [vmem:[#allocation7 + $0x1b8] sm:$0xff] %v3735
      %3800 = vst [vmem:[#allocation7 + $0x1c0] sm:$0xff] %v3736
      %3801 = vst [vmem:[#allocation7 + $0x1c8] sm:$0xff] %v3737
      %3802 = vst [vmem:[#allocation7 + $0x1d0] sm:$0xff] %v3738
      %3803 = vst [vmem:[#allocation7 + $0x1d8] sm:$0xff] %v3739
      %3804 = vst [vmem:[#allocation7 + $0x1e0] sm:$0xff] %v3740
      %3805 = vst [vmem:[#allocation7 + $0x1e8] sm:$0xff] %v3741
      %3806 = vst [vmem:[#allocation7 + $0x1f0] sm:$0xff] %v3742
      %3807 = vst [vmem:[#allocation7 + $0x1f8] sm:$0xff] %v3743
    $region29: #{tpu_custom_call.1} parent=1 // pred_fallthru
      _
    // Predicated region
    $region30: #{tpu_custom_call.1} parent=1 // pred_check
      _
    $region31: #{tpu_custom_call.1} parent=1 // pred_check_branch
      %3809 = sbr.rel (0) target = $region33
    $region32: #{tpu_custom_call.1} parent=1 // pred_region
      %s3811 = ssub.s32 8192, 8192
      %3812 = vsyncadd [#allocation4], %s3811
      %s3813 = sshll.u32 [#allocation7], 4
      %s3814 = int_to_ptr.vmem [resolvable:$true] %s3813
      %3819 = dma.vmem_to_hbm [thread:$0]  %s3814, 8192, %s3, [#allocation4], 128, 128, 8
    $region33: #{tpu_custom_call.1} parent=1 // pred_fallthru
      _
    // Predicated region
    $region34: #{tpu_custom_call.1} parent=1 // pred_check
      _
    $region35: #{tpu_custom_call.1} parent=1 // pred_check_branch
      %3821 = sbr.rel (0) target = $region37
    $region36: #{tpu_custom_call.1} parent=1 // pred_region
      %3822 = dma.done [#allocation4], 8192
    $region37: #{tpu_custom_call.1} parent=1 // pred_fallthru
      _
    %3823 = vsyncpa [#allocation3], 1
    %3824 = vsyncpa [#allocation6], 1
    %3825 = vsyncpa [#allocation4], 1

</llo_original>
